<compile_context>
chip_gen: v7x
topology: tpu7x:2x2x1
jax: 0.10.0
libtpu: 0.0.40
codegen_flags: <defaults>
</compile_context>

<pallas_src>
import jax
import jax.numpy as jnp
from jax.experimental import pallas as pl
from jax.experimental.pallas import tpu as pltpu

# Small, forward-consistent shapes.
B, T, D = 2, 8, 32            # batch, max sentence length, word-embedding dim
WORD_HIDDEN = 64
H = 2 * WORD_HIDDEN           # GRU hidden (char_bidirectional=True -> 2*word_hidden) = 128
NUM_LAYERS = 5                # num_layers=5 in the PyTorch GRU
NUM_CLASSES = 2               # final_pred = nn.Linear(2*word_hidden_size, 2)
VOCAB = 20                    # synthetic vocabulary (incl. <PAD>, <UNK>)
BP = 8                        # batch tile = one f32 sublane tile
DP = 128                      # layer-0 input dim padded to one lane tile
OUTP = 128                    # logits padded to one lane tile (sliced to 2 outside)


def _sigmoid(x):
    # sigmoid(x) = 0.5 * (tanh(x/2) + 1): one EUP transcendental, no divide.
    return 0.5 * (jnp.tanh(0.5 * x) + 1.0)


def gru_ner_kernel(x_ref,      # (T, BP, DP)  f32  embedded sentences (lane-padded)
                   wih0_ref,   # (DP, 3H)     f32  layer-0 input weights (row-padded)
                   wih_ref,    # (L-1, H, 3H) bf16 layers 1..4 input weights
                   whh_ref,    # (L, H, 3H)   bf16 hidden weights
                   bgi_ref,    # (L, 1, 3H)   f32  b_ih with b_hh[r|z] folded in
                   bhn_ref,    # (L, 1, H)    f32  b_hh for the n gate
                   wout_ref,   # (H, OUTP)    f32  final Linear (lane-padded)
                   bout_ref,   # (1, OUTP)    f32
                   out_ref,    # (BP, OUTP)   f32  logits (lane-dense store)
                   gi0_ref):   # scratch (T*BP, 3H) f32: layer-0 input projections
    f32, bf16 = jnp.float32, jnp.bfloat16

    # --- layer-0 input projection for ALL timesteps: one matmul, bias folded.
    x2d = x_ref[...].reshape(T * BP, DP)
    gi0_ref[...] = (jnp.dot(x2d, wih0_ref[...], preferred_element_type=f32)
                    + bgi_ref[0])

    def cell(l, t, h_below, h_prev):
        """One GRU cell (layer l, time t) -> new hidden (BP, H); gates in f32."""
        if l == 0:
            gi = gi0_ref[t * BP:(t + 1) * BP, :]          # precomputed slab
        else:
            # Weight streamed from VMEM inside the dot (no hoisted vreg slab).
            gi = (jnp.dot(h_below.astype(bf16), wih_ref[l - 1],
                          preferred_element_type=f32) + bgi_ref[l])
        if t == 0:
            # h_prev == 0: gh vanishes and the z * h_prev term drops out.
            rz = _sigmoid(gi[:, :2 * H])
            r, z = rz[:, :H], rz[:, H:]
            n = jnp.tanh(gi[:, 2 * H:] + r * bhn_ref[l])
            return (1.0 - z) * n
        gh = jnp.dot(h_prev.astype(bf16), whh_ref[l], preferred_element_type=f32)
        # PyTorch gate order along the 3H axis: [r | z | n].
        rz = _sigmoid(gi[:, :2 * H] + gh[:, :2 * H])      # one (BP, 2H) slab
        r, z = rz[:, :H], rz[:, H:]
        n = jnp.tanh(gi[:, 2 * H:] + r * (gh[:, 2 * H:] + bhn_ref[l]))
        return (1.0 - z) * n + z * h_prev

    # --- wavefront sweep over the (layer, time) grid along diagonals w = l+t.
    # Cells on one diagonal are independent, so their MXU pushes pipeline; the
    # dependent chain is T + L - 1 = 12 links instead of L * T = 40.
    h_cur = [jnp.zeros((BP, H), f32) for _ in range(NUM_LAYERS)]  # never read (t==0 path skips h_prev)
    for w in range(T + NUM_LAYERS - 1):
        updates = {}
        for l in range(max(0, w - T + 1), min(NUM_LAYERS, w + 1)):
            t = w - l
            updates[l] = cell(l, t, h_cur[l - 1] if l > 0 else None, h_cur[l])
        for l, h_new in updates.items():      # commit after the whole diagonal
            h_cur[l] = h_new

    # outputs[:, -1, :] of the top layer is exactly its final hidden state.
    out_ref[...] = (jnp.dot(h_cur[-1], wout_ref[...], preferred_element_type=f32)
                    + bout_ref[...])


@jax.jit
def ner_forward(token_ids, emb_table, params):
    bsz, seq_len = token_ids.shape
    assert seq_len == T
    n_tiles = pl.cdiv(bsz, BP)
    bpt = n_tiles * BP

    # Pad the batch with <PAD> (index 0) rows up to whole 8-row tiles; padded
    # rows carry garbage after the GRU and are dropped below.
    ids_p = jnp.pad(token_ids, ((0, bpt - bsz), (0, 0)))            # (bpt, T)
    x = emb_table[ids_p]                                            # (bpt, T, D)
    x = jnp.transpose(x, (1, 0, 2))                                 # (T, bpt, D) time-major
    x = jnp.pad(x, ((0, 0), (0, 0), (0, DP - D)))                   # lane-dense layer-0 input

    # Weight prep (pure XLA, tiny):
    #  * layer-0 input weight row-padded D -> 128 (matches padded x lanes),
    #  * recurrent / upper-layer weights cast to bf16 for the MXU,
    #  * b_ih (+ b_hh for r/z gates) folded into one gi bias; n-gate hidden
    #    bias stays separate: n = tanh(gi_n + r*(W_hn h + b_hn)) as in torch.nn.GRU,
    #  * final Linear lane-padded to 128 outputs for an unmasked store.
    bih, bhh = params["bih"], params["bhh"]
    bgi = bih.at[:, :, :2 * H].add(bhh[:, :, :2 * H])               # (L, 1, 3H)
    bhn = bhh[:, :, 2 * H:]                                         # (L, 1, H)
    wih0p = jnp.pad(params["wih0"], ((0, DP - D), (0, 0)))          # (128, 3H) f32
    wih_b = params["wih"].astype(jnp.bfloat16)                      # (L-1, H, 3H)
    whh_b = params["whh"].astype(jnp.bfloat16)                      # (L, H, 3H)
    woutp = jnp.pad(params["wout"], ((0, 0), (0, OUTP - NUM_CLASSES)))
    boutp = jnp.pad(params["bout"], ((0, 0), (0, OUTP - NUM_CLASSES)))
    # TODO(synk): for serving, keep the ~1 MiB weight set VMEM-resident across
    # calls (cross-call prefetch / semaphore futures) instead of re-sending it.

    vmem_full = pl.BlockSpec(memory_space=pltpu.MemorySpace.VMEM)   # whole array, VMEM-resident
    logits_p = pl.pallas_call(
        gru_ner_kernel,
        out_shape=jax.ShapeDtypeStruct((bpt, OUTP), jnp.float32),
        grid=(n_tiles,),
        in_specs=[pl.BlockSpec((T, BP, DP), lambda b: (0, b, 0))]   # batch-tiled input
                 + [vmem_full] * 7,                                 # weights / biases
        out_specs=pl.BlockSpec((BP, OUTP), lambda b: (b, 0)),
        scratch_shapes=[pltpu.VMEM((T * BP, 3 * H), jnp.float32)],  # layer-0 gi slab
        compiler_params=pltpu.CompilerParams(
            dimension_semantics=("parallel",)),                     # batch tiles shard across TCs (v7x)
    )(x, wih0p, wih_b, whh_b, bgi, bhn, woutp, boutp)
    return logits_p[:bsz, :NUM_CLASSES]


def init_params(key):
    ks = jax.random.split(key, 7)
    s = 0.1
    return dict(
        wih0=s * jax.random.normal(ks[0], (D, 3 * H), jnp.float32),
        wih=s * jax.random.normal(ks[1], (NUM_LAYERS - 1, H, 3 * H), jnp.float32),
        whh=s * jax.random.normal(ks[2], (NUM_LAYERS, H, 3 * H), jnp.float32),
        bih=s * jax.random.normal(ks[3], (NUM_LAYERS, 1, 3 * H), jnp.float32),
        bhh=s * jax.random.normal(ks[4], (NUM_LAYERS, 1, 3 * H), jnp.float32),
        wout=s * jax.random.normal(ks[5], (H, NUM_CLASSES), jnp.float32),
        bout=s * jax.random.normal(ks[6], (1, NUM_CLASSES), jnp.float32),
    )


def ref_forward(token_ids, emb_table, params):
    """Pure-JAX f32 reference matching torch.nn.GRU(num_layers=5) + Linear."""
    hp = jax.lax.Precision.HIGHEST
    bsz = token_ids.shape[0]
    seq = emb_table[token_ids]              # (B, T, D)
    for layer in range(NUM_LAYERS):
        wih = params["wih0"] if layer == 0 else params["wih"][layer - 1]
        whh = params["whh"][layer]
        bih = params["bih"][layer, 0]
        bhh = params["bhh"][layer, 0]
        h = jnp.zeros((bsz, H), jnp.float32)
        outs = []
        for t in range(T):
            gi = jnp.dot(seq[:, t, :], wih, precision=hp) + bih
            gh = jnp.dot(h, whh, precision=hp) + bhh
            r = 1.0 / (1.0 + jnp.exp(-(gi[:, 0:H] + gh[:, 0:H])))
            z = 1.0 / (1.0 + jnp.exp(-(gi[:, H:2 * H] + gh[:, H:2 * H])))
            n = jnp.tanh(gi[:, 2 * H:3 * H] + r * gh[:, 2 * H:3 * H])
            h = (1.0 - z) * n + z * h
            outs.append(h)
        seq = jnp.stack(outs, axis=1)       # (B, T, H)
    return jnp.dot(seq[:, -1, :], params["wout"], precision=hp) + params["bout"][0]


if __name__ == "__main__":
    key = jax.random.PRNGKey(0)
    k_emb, k_ids, k_par = jax.random.split(key, 3)

    # Synthetic "GloVe" table: row 0 = <PAD> (zeros), row 1 = <UNK> (-1s),
    # mirroring load_glove_embeddings' padding convention.
    emb_table = 0.5 * jax.random.normal(k_emb, (VOCAB, D), jnp.float32)
    emb_table = emb_table.at[0].set(0.0)
    emb_table = emb_table.at[1].set(-1.0)

    # TODO(synk): string tokenization / w2i dict lookup happens host-side in
    # the original module; here we start from integer token ids directly.
    token_ids = jax.random.randint(k_ids, (B, T), 0, VOCAB, dtype=jnp.int32)

    params = init_params(k_par)

    logits = jax.block_until_ready(ner_forward(token_ids, emb_table, params))
    ref = ref_forward(token_ids, emb_table, params)

    assert logits.shape == (B, NUM_CLASSES)
    assert bool(jnp.all(jnp.isfinite(logits)))
    # bf16 MXU operands (with f32 accumulation and f32 gate math) vs. the
    # all-f32 reference: tolerance reflects the deliberate mixed precision.
    assert bool(jnp.allclose(logits, ref, atol=3e-2, rtol=3e-2)), (logits, ref)

    print("KERNEL_OK")
</pallas_src>

<mosaic_0001>
module attributes {stable_mosaic.version = 11 : i64} {
  func.func @gru_ner_kernel(%arg0: i32, %arg1: memref<8x8x128xf32, #tpu.memory_space<vmem>>, %arg2: memref<128x384xf32, #tpu.memory_space<vmem>>, %arg3: memref<4x128x384xbf16, #tpu.memory_space<vmem>>, %arg4: memref<5x128x384xbf16, #tpu.memory_space<vmem>>, %arg5: memref<5x1x384xf32, #tpu.memory_space<vmem>>, %arg6: memref<5x1x128xf32, #tpu.memory_space<vmem>>, %arg7: memref<128x128xf32, #tpu.memory_space<vmem>>, %arg8: memref<1x128xf32, #tpu.memory_space<vmem>>, %arg9: memref<8x128xf32, #tpu.memory_space<vmem>>, %arg10: memref<64x384xf32, #tpu.memory_space<vmem>>) attributes {dimension_semantics = [#tpu.dimension_semantics<parallel>], iteration_bounds = array<i64: 1>, scalar_prefetch = 0 : i64, scratch_operands = 1 : i64, tpu.core_type = #tpu.core_type<tc>, window_params = [{transform_indices = @transform_0, window_bounds = array<i64: 8, 8, 128>}, {pipeline_mode = #tpu.pipeline_mode<synchronous>, transform_indices = @transform_1, window_bounds = array<i64: 128, 384>}, {pipeline_mode = #tpu.pipeline_mode<synchronous>, transform_indices = @transform_2, window_bounds = array<i64: 4, 128, 384>}, {pipeline_mode = #tpu.pipeline_mode<synchronous>, transform_indices = @transform_3, window_bounds = array<i64: 5, 128, 384>}, {pipeline_mode = #tpu.pipeline_mode<synchronous>, transform_indices = @transform_4, window_bounds = array<i64: 5, 1, 384>}, {pipeline_mode = #tpu.pipeline_mode<synchronous>, transform_indices = @transform_5, window_bounds = array<i64: 5, 1, 128>}, {pipeline_mode = #tpu.pipeline_mode<synchronous>, transform_indices = @transform_6, window_bounds = array<i64: 128, 128>}, {pipeline_mode = #tpu.pipeline_mode<synchronous>, transform_indices = @transform_7, window_bounds = array<i64: 1, 128>}, {transform_indices = @transform_8, window_bounds = array<i64: 8, 128>}]} {
    %c0 = arith.constant 0 : index
    %c0_0 = arith.constant 0 : index
    %c0_1 = arith.constant 0 : index
    %0 = vector.load %arg1[%c0, %c0_0, %c0_1] : memref<8x8x128xf32, #tpu.memory_space<vmem>>, vector<8x8x128xf32>
    %1 = vector.shape_cast %0 : vector<8x8x128xf32> to vector<64x128xf32>
    %c0_2 = arith.constant 0 : index
    %c0_3 = arith.constant 0 : index
    %2 = vector.load %arg2[%c0_2, %c0_3] : memref<128x384xf32, #tpu.memory_space<vmem>>, vector<128x384xf32>
    %cst = arith.constant dense<0.000000e+00> : vector<64x384xf32>
    %3 = tpu.matmul %1, %2, %cst {dimension_numbers = #tpu.dot_dimension_numbers<[1], [0], [0], [1], [0, 0, 1, 1], [], []>} : vector<64x128xf32>, vector<128x384xf32>, vector<64x384xf32> -> vector<64x384xf32>
    %c0_4 = arith.constant 0 : index
    %c0_5 = arith.constant 0 : index
    %c0_6 = arith.constant 0 : index
    %4 = vector.load %arg5[%c0_4, %c0_5, %c0_6] : memref<5x1x384xf32, #tpu.memory_space<vmem>>, vector<1x1x384xf32>
    %5 = vector.shape_cast %4 : vector<1x1x384xf32> to vector<1x384xf32>
    %6 = vector.broadcast %5 : vector<1x384xf32> to vector<64x384xf32>
    %7 = arith.addf %3, %6 : vector<64x384xf32>
    %c0_7 = arith.constant 0 : index
    %c0_8 = arith.constant 0 : index
    %8 = vector.load %arg10[%c0_7, %c0_8] : memref<64x384xf32, #tpu.memory_space<vmem>>, vector<64x384xf32>
    tpu.vector_store %arg10[%c0_7, %c0_8], %7 {strides = array<i32>} : memref<64x384xf32, #tpu.memory_space<vmem>>, vector<64x384xf32>,
    %c0_9 = arith.constant 0 : index
    %c0_10 = arith.constant 0 : index
    %9 = vector.load %arg10[%c0_9, %c0_10] : memref<64x384xf32, #tpu.memory_space<vmem>>, vector<8x384xf32>
    %10 = vector.extract_strided_slice %9 {offsets = [0, 0], sizes = [8, 256], strides = [1, 1]} : vector<8x384xf32> to vector<8x256xf32>
    %cst_11 = arith.constant 5.000000e-01 : f32
    %11 = vector.broadcast %cst_11 : f32 to vector<8x256xf32>
    %12 = arith.mulf %11, %10 : vector<8x256xf32>
    %13 = math.tanh %12 : vector<8x256xf32>
    %cst_12 = arith.constant 1.000000e+00 : f32
    %14 = vector.broadcast %cst_12 : f32 to vector<8x256xf32>
    %15 = arith.addf %13, %14 : vector<8x256xf32>
    %cst_13 = arith.constant 5.000000e-01 : f32
    %16 = vector.broadcast %cst_13 : f32 to vector<8x256xf32>
    %17 = arith.mulf %16, %15 : vector<8x256xf32>
    %18 = vector.extract_strided_slice %17 {offsets = [0, 0], sizes = [8, 128], strides = [1, 1]} : vector<8x256xf32> to vector<8x128xf32>
    %19 = vector.extract_strided_slice %17 {offsets = [0, 128], sizes = [8, 128], strides = [1, 1]} : vector<8x256xf32> to vector<8x128xf32>
    %20 = vector.extract_strided_slice %9 {offsets = [0, 256], sizes = [8, 128], strides = [1, 1]} : vector<8x384xf32> to vector<8x128xf32>
    %c0_14 = arith.constant 0 : index
    %c0_15 = arith.constant 0 : index
    %c0_16 = arith.constant 0 : index
    %21 = vector.load %arg6[%c0_14, %c0_15, %c0_16] : memref<5x1x128xf32, #tpu.memory_space<vmem>>, vector<1x1x128xf32>
    %22 = vector.shape_cast %21 : vector<1x1x128xf32> to vector<1x128xf32>
    %23 = vector.broadcast %22 : vector<1x128xf32> to vector<8x128xf32>
    %24 = arith.mulf %18, %23 : vector<8x128xf32>
    %25 = arith.addf %20, %24 : vector<8x128xf32>
    %26 = math.tanh %25 : vector<8x128xf32>
    %cst_17 = arith.constant 1.000000e+00 : f32
    %27 = vector.broadcast %cst_17 : f32 to vector<8x128xf32>
    %28 = arith.subf %27, %19 : vector<8x128xf32>
    %29 = arith.mulf %28, %26 : vector<8x128xf32>
    %c8 = arith.constant 8 : index
    %c0_18 = arith.constant 0 : index
    %30 = vector.load %arg10[%c8, %c0_18] : memref<64x384xf32, #tpu.memory_space<vmem>>, vector<8x384xf32>
    %31 = arith.truncf %29 : vector<8x128xf32> to vector<8x128xbf16>
    %c0_19 = arith.constant 0 : index
    %c0_20 = arith.constant 0 : index
    %c0_21 = arith.constant 0 : index
    %32 = vector.load %arg4[%c0_19, %c0_20, %c0_21] : memref<5x128x384xbf16, #tpu.memory_space<vmem>>, vector<1x128x384xbf16>
    %33 = vector.shape_cast %32 : vector<1x128x384xbf16> to vector<128x384xbf16>
    %cst_22 = arith.constant dense<0.000000e+00> : vector<8x384xf32>
    %34 = tpu.matmul %31, %33, %cst_22 {dimension_numbers = #tpu.dot_dimension_numbers<[1], [0], [0], [1], [0, 0, 1, 1], [], []>} : vector<8x128xbf16>, vector<128x384xbf16>, vector<8x384xf32> -> vector<8x384xf32>
    %35 = vector.extract_strided_slice %30 {offsets = [0, 0], sizes = [8, 256], strides = [1, 1]} : vector<8x384xf32> to vector<8x256xf32>
    %36 = vector.extract_strided_slice %34 {offsets = [0, 0], sizes = [8, 256], strides = [1, 1]} : vector<8x384xf32> to vector<8x256xf32>
    %37 = arith.addf %35, %36 : vector<8x256xf32>
    %cst_23 = arith.constant 5.000000e-01 : f32
    %38 = vector.broadcast %cst_23 : f32 to vector<8x256xf32>
    %39 = arith.mulf %38, %37 : vector<8x256xf32>
    %40 = math.tanh %39 : vector<8x256xf32>
    %cst_24 = arith.constant 1.000000e+00 : f32
    %41 = vector.broadcast %cst_24 : f32 to vector<8x256xf32>
    %42 = arith.addf %40, %41 : vector<8x256xf32>
    %cst_25 = arith.constant 5.000000e-01 : f32
    %43 = vector.broadcast %cst_25 : f32 to vector<8x256xf32>
    %44 = arith.mulf %43, %42 : vector<8x256xf32>
    %45 = vector.extract_strided_slice %44 {offsets = [0, 0], sizes = [8, 128], strides = [1, 1]} : vector<8x256xf32> to vector<8x128xf32>
    %46 = vector.extract_strided_slice %44 {offsets = [0, 128], sizes = [8, 128], strides = [1, 1]} : vector<8x256xf32> to vector<8x128xf32>
    %47 = vector.extract_strided_slice %30 {offsets = [0, 256], sizes = [8, 128], strides = [1, 1]} : vector<8x384xf32> to vector<8x128xf32>
    %48 = vector.extract_strided_slice %34 {offsets = [0, 256], sizes = [8, 128], strides = [1, 1]} : vector<8x384xf32> to vector<8x128xf32>
    %c0_26 = arith.constant 0 : index
    %c0_27 = arith.constant 0 : index
    %c0_28 = arith.constant 0 : index
    %49 = vector.load %arg6[%c0_26, %c0_27, %c0_28] : memref<5x1x128xf32, #tpu.memory_space<vmem>>, vector<1x1x128xf32>
    %50 = vector.shape_cast %49 : vector<1x1x128xf32> to vector<1x128xf32>
    %51 = vector.broadcast %50 : vector<1x128xf32> to vector<8x128xf32>
    %52 = arith.addf %48, %51 : vector<8x128xf32>
    %53 = arith.mulf %45, %52 : vector<8x128xf32>
    %54 = arith.addf %47, %53 : vector<8x128xf32>
    %55 = math.tanh %54 : vector<8x128xf32>
    %cst_29 = arith.constant 1.000000e+00 : f32
    %56 = vector.broadcast %cst_29 : f32 to vector<8x128xf32>
    %57 = arith.subf %56, %46 : vector<8x128xf32>
    %58 = arith.mulf %57, %55 : vector<8x128xf32>
    %59 = arith.mulf %46, %29 : vector<8x128xf32>
    %60 = arith.addf %58, %59 : vector<8x128xf32>
    %61 = arith.truncf %29 : vector<8x128xf32> to vector<8x128xbf16>
    %c0_30 = arith.constant 0 : index
    %c0_31 = arith.constant 0 : index
    %c0_32 = arith.constant 0 : index
    %62 = vector.load %arg3[%c0_30, %c0_31, %c0_32] : memref<4x128x384xbf16, #tpu.memory_space<vmem>>, vector<1x128x384xbf16>
    %63 = vector.shape_cast %62 : vector<1x128x384xbf16> to vector<128x384xbf16>
    %cst_33 = arith.constant dense<0.000000e+00> : vector<8x384xf32>
    %64 = tpu.matmul %61, %63, %cst_33 {dimension_numbers = #tpu.dot_dimension_numbers<[1], [0], [0], [1], [0, 0, 1, 1], [], []>} : vector<8x128xbf16>, vector<128x384xbf16>, vector<8x384xf32> -> vector<8x384xf32>
    %c1 = arith.constant 1 : index
    %c0_34 = arith.constant 0 : index
    %c0_35 = arith.constant 0 : index
    %65 = vector.load %arg5[%c1, %c0_34, %c0_35] : memref<5x1x384xf32, #tpu.memory_space<vmem>>, vector<1x1x384xf32>
    %66 = vector.shape_cast %65 : vector<1x1x384xf32> to vector<1x384xf32>
    %67 = vector.broadcast %66 : vector<1x384xf32> to vector<8x384xf32>
    %68 = arith.addf %64, %67 : vector<8x384xf32>
    %69 = vector.extract_strided_slice %68 {offsets = [0, 0], sizes = [8, 256], strides = [1, 1]} : vector<8x384xf32> to vector<8x256xf32>
    %cst_36 = arith.constant 5.000000e-01 : f32
    %70 = vector.broadcast %cst_36 : f32 to vector<8x256xf32>
    %71 = arith.mulf %70, %69 : vector<8x256xf32>
    %72 = math.tanh %71 : vector<8x256xf32>
    %cst_37 = arith.constant 1.000000e+00 : f32
    %73 = vector.broadcast %cst_37 : f32 to vector<8x256xf32>
    %74 = arith.addf %72, %73 : vector<8x256xf32>
    %cst_38 = arith.constant 5.000000e-01 : f32
    %75 = vector.broadcast %cst_38 : f32 to vector<8x256xf32>
    %76 = arith.mulf %75, %74 : vector<8x256xf32>
    %77 = vector.extract_strided_slice %76 {offsets = [0, 0], sizes = [8, 128], strides = [1, 1]} : vector<8x256xf32> to vector<8x128xf32>
    %78 = vector.extract_strided_slice %76 {offsets = [0, 128], sizes = [8, 128], strides = [1, 1]} : vector<8x256xf32> to vector<8x128xf32>
    %79 = vector.extract_strided_slice %68 {offsets = [0, 256], sizes = [8, 128], strides = [1, 1]} : vector<8x384xf32> to vector<8x128xf32>
    %c1_39 = arith.constant 1 : index
    %c0_40 = arith.constant 0 : index
    %c0_41 = arith.constant 0 : index
    %80 = vector.load %arg6[%c1_39, %c0_40, %c0_41] : memref<5x1x128xf32, #tpu.memory_space<vmem>>, vector<1x1x128xf32>
    %81 = vector.shape_cast %80 : vector<1x1x128xf32> to vector<1x128xf32>
    %82 = vector.broadcast %81 : vector<1x128xf32> to vector<8x128xf32>
    %83 = arith.mulf %77, %82 : vector<8x128xf32>
    %84 = arith.addf %79, %83 : vector<8x128xf32>
    %85 = math.tanh %84 : vector<8x128xf32>
    %cst_42 = arith.constant 1.000000e+00 : f32
    %86 = vector.broadcast %cst_42 : f32 to vector<8x128xf32>
    %87 = arith.subf %86, %78 : vector<8x128xf32>
    %88 = arith.mulf %87, %85 : vector<8x128xf32>
    %c16 = arith.constant 16 : index
    %c0_43 = arith.constant 0 : index
    %89 = vector.load %arg10[%c16, %c0_43] : memref<64x384xf32, #tpu.memory_space<vmem>>, vector<8x384xf32>
    %90 = arith.truncf %60 : vector<8x128xf32> to vector<8x128xbf16>
    %c0_44 = arith.constant 0 : index
    %c0_45 = arith.constant 0 : index
    %c0_46 = arith.constant 0 : index
    %91 = vector.load %arg4[%c0_44, %c0_45, %c0_46] : memref<5x128x384xbf16, #tpu.memory_space<vmem>>, vector<1x128x384xbf16>
    %92 = vector.shape_cast %91 : vector<1x128x384xbf16> to vector<128x384xbf16>
    %cst_47 = arith.constant dense<0.000000e+00> : vector<8x384xf32>
    %93 = tpu.matmul %90, %92, %cst_47 {dimension_numbers = #tpu.dot_dimension_numbers<[1], [0], [0], [1], [0, 0, 1, 1], [], []>} : vector<8x128xbf16>, vector<128x384xbf16>, vector<8x384xf32> -> vector<8x384xf32>
    %94 = vector.extract_strided_slice %89 {offsets = [0, 0], sizes = [8, 256], strides = [1, 1]} : vector<8x384xf32> to vector<8x256xf32>
    %95 = vector.extract_strided_slice %93 {offsets = [0, 0], sizes = [8, 256], strides = [1, 1]} : vector<8x384xf32> to vector<8x256xf32>
    %96 = arith.addf %94, %95 : vector<8x256xf32>
    %cst_48 = arith.constant 5.000000e-01 : f32
    %97 = vector.broadcast %cst_48 : f32 to vector<8x256xf32>
    %98 = arith.mulf %97, %96 : vector<8x256xf32>
    %99 = math.tanh %98 : vector<8x256xf32>
    %cst_49 = arith.constant 1.000000e+00 : f32
    %100 = vector.broadcast %cst_49 : f32 to vector<8x256xf32>
    %101 = arith.addf %99, %100 : vector<8x256xf32>
    %cst_50 = arith.constant 5.000000e-01 : f32
    %102 = vector.broadcast %cst_50 : f32 to vector<8x256xf32>
    %103 = arith.mulf %102, %101 : vector<8x256xf32>
    %104 = vector.extract_strided_slice %103 {offsets = [0, 0], sizes = [8, 128], strides = [1, 1]} : vector<8x256xf32> to vector<8x128xf32>
    %105 = vector.extract_strided_slice %103 {offsets = [0, 128], sizes = [8, 128], strides = [1, 1]} : vector<8x256xf32> to vector<8x128xf32>
    %106 = vector.extract_strided_slice %89 {offsets = [0, 256], sizes = [8, 128], strides = [1, 1]} : vector<8x384xf32> to vector<8x128xf32>
    %107 = vector.extract_strided_slice %93 {offsets = [0, 256], sizes = [8, 128], strides = [1, 1]} : vector<8x384xf32> to vector<8x128xf32>
    %c0_51 = arith.constant 0 : index
    %c0_52 = arith.constant 0 : index
    %c0_53 = arith.constant 0 : index
    %108 = vector.load %arg6[%c0_51, %c0_52, %c0_53] : memref<5x1x128xf32, #tpu.memory_space<vmem>>, vector<1x1x128xf32>
    %109 = vector.shape_cast %108 : vector<1x1x128xf32> to vector<1x128xf32>
    %110 = vector.broadcast %109 : vector<1x128xf32> to vector<8x128xf32>
    %111 = arith.addf %107, %110 : vector<8x128xf32>
    %112 = arith.mulf %104, %111 : vector<8x128xf32>
    %113 = arith.addf %106, %112 : vector<8x128xf32>
    %114 = math.tanh %113 : vector<8x128xf32>
    %cst_54 = arith.constant 1.000000e+00 : f32
    %115 = vector.broadcast %cst_54 : f32 to vector<8x128xf32>
    %116 = arith.subf %115, %105 : vector<8x128xf32>
    %117 = arith.mulf %116, %114 : vector<8x128xf32>
    %118 = arith.mulf %105, %60 : vector<8x128xf32>
    %119 = arith.addf %117, %118 : vector<8x128xf32>
    %120 = arith.truncf %60 : vector<8x128xf32> to vector<8x128xbf16>
    %c0_55 = arith.constant 0 : index
    %c0_56 = arith.constant 0 : index
    %c0_57 = arith.constant 0 : index
    %121 = vector.load %arg3[%c0_55, %c0_56, %c0_57] : memref<4x128x384xbf16, #tpu.memory_space<vmem>>, vector<1x128x384xbf16>
    %122 = vector.shape_cast %121 : vector<1x128x384xbf16> to vector<128x384xbf16>
    %cst_58 = arith.constant dense<0.000000e+00> : vector<8x384xf32>
    %123 = tpu.matmul %120, %122, %cst_58 {dimension_numbers = #tpu.dot_dimension_numbers<[1], [0], [0], [1], [0, 0, 1, 1], [], []>} : vector<8x128xbf16>, vector<128x384xbf16>, vector<8x384xf32> -> vector<8x384xf32>
    %c1_59 = arith.constant 1 : index
    %c0_60 = arith.constant 0 : index
    %c0_61 = arith.constant 0 : index
    %124 = vector.load %arg5[%c1_59, %c0_60, %c0_61] : memref<5x1x384xf32, #tpu.memory_space<vmem>>, vector<1x1x384xf32>
    %125 = vector.shape_cast %124 : vector<1x1x384xf32> to vector<1x384xf32>
    %126 = vector.broadcast %125 : vector<1x384xf32> to vector<8x384xf32>
    %127 = arith.addf %123, %126 : vector<8x384xf32>
    %128 = arith.truncf %88 : vector<8x128xf32> to vector<8x128xbf16>
    %c1_62 = arith.constant 1 : index
    %c0_63 = arith.constant 0 : index
    %c0_64 = arith.constant 0 : index
    %129 = vector.load %arg4[%c1_62, %c0_63, %c0_64] : memref<5x128x384xbf16, #tpu.memory_space<vmem>>, vector<1x128x384xbf16>
    %130 = vector.shape_cast %129 : vector<1x128x384xbf16> to vector<128x384xbf16>
    %cst_65 = arith.constant dense<0.000000e+00> : vector<8x384xf32>
    %131 = tpu.matmul %128, %130, %cst_65 {dimension_numbers = #tpu.dot_dimension_numbers<[1], [0], [0], [1], [0, 0, 1, 1], [], []>} : vector<8x128xbf16>, vector<128x384xbf16>, vector<8x384xf32> -> vector<8x384xf32>
    %132 = vector.extract_strided_slice %127 {offsets = [0, 0], sizes = [8, 256], strides = [1, 1]} : vector<8x384xf32> to vector<8x256xf32>
    %133 = vector.extract_strided_slice %131 {offsets = [0, 0], sizes = [8, 256], strides = [1, 1]} : vector<8x384xf32> to vector<8x256xf32>
    %134 = arith.addf %132, %133 : vector<8x256xf32>
    %cst_66 = arith.constant 5.000000e-01 : f32
    %135 = vector.broadcast %cst_66 : f32 to vector<8x256xf32>
    %136 = arith.mulf %135, %134 : vector<8x256xf32>
    %137 = math.tanh %136 : vector<8x256xf32>
    %cst_67 = arith.constant 1.000000e+00 : f32
    %138 = vector.broadcast %cst_67 : f32 to vector<8x256xf32>
    %139 = arith.addf %137, %138 : vector<8x256xf32>
    %cst_68 = arith.constant 5.000000e-01 : f32
    %140 = vector.broadcast %cst_68 : f32 to vector<8x256xf32>
    %141 = arith.mulf %140, %139 : vector<8x256xf32>
    %142 = vector.extract_strided_slice %141 {offsets = [0, 0], sizes = [8, 128], strides = [1, 1]} : vector<8x256xf32> to vector<8x128xf32>
    %143 = vector.extract_strided_slice %141 {offsets = [0, 128], sizes = [8, 128], strides = [1, 1]} : vector<8x256xf32> to vector<8x128xf32>
    %144 = vector.extract_strided_slice %127 {offsets = [0, 256], sizes = [8, 128], strides = [1, 1]} : vector<8x384xf32> to vector<8x128xf32>
    %145 = vector.extract_strided_slice %131 {offsets = [0, 256], sizes = [8, 128], strides = [1, 1]} : vector<8x384xf32> to vector<8x128xf32>
    %c1_69 = arith.constant 1 : index
    %c0_70 = arith.constant 0 : index
    %c0_71 = arith.constant 0 : index
    %146 = vector.load %arg6[%c1_69, %c0_70, %c0_71] : memref<5x1x128xf32, #tpu.memory_space<vmem>>, vector<1x1x128xf32>
    %147 = vector.shape_cast %146 : vector<1x1x128xf32> to vector<1x128xf32>
    %148 = vector.broadcast %147 : vector<1x128xf32> to vector<8x128xf32>
    %149 = arith.addf %145, %148 : vector<8x128xf32>
    %150 = arith.mulf %142, %149 : vector<8x128xf32>
    %151 = arith.addf %144, %150 : vector<8x128xf32>
    %152 = math.tanh %151 : vector<8x128xf32>
    %cst_72 = arith.constant 1.000000e+00 : f32
    %153 = vector.broadcast %cst_72 : f32 to vector<8x128xf32>
    %154 = arith.subf %153, %143 : vector<8x128xf32>
    %155 = arith.mulf %154, %152 : vector<8x128xf32>
    %156 = arith.mulf %143, %88 : vector<8x128xf32>
    %157 = arith.addf %155, %156 : vector<8x128xf32>
    %158 = arith.truncf %88 : vector<8x128xf32> to vector<8x128xbf16>
    %c1_73 = arith.constant 1 : index
    %c0_74 = arith.constant 0 : index
    %c0_75 = arith.constant 0 : index
    %159 = vector.load %arg3[%c1_73, %c0_74, %c0_75] : memref<4x128x384xbf16, #tpu.memory_space<vmem>>, vector<1x128x384xbf16>
    %160 = vector.shape_cast %159 : vector<1x128x384xbf16> to vector<128x384xbf16>
    %cst_76 = arith.constant dense<0.000000e+00> : vector<8x384xf32>
    %161 = tpu.matmul %158, %160, %cst_76 {dimension_numbers = #tpu.dot_dimension_numbers<[1], [0], [0], [1], [0, 0, 1, 1], [], []>} : vector<8x128xbf16>, vector<128x384xbf16>, vector<8x384xf32> -> vector<8x384xf32>
    %c2 = arith.constant 2 : index
    %c0_77 = arith.constant 0 : index
    %c0_78 = arith.constant 0 : index
    %162 = vector.load %arg5[%c2, %c0_77, %c0_78] : memref<5x1x384xf32, #tpu.memory_space<vmem>>, vector<1x1x384xf32>
    %163 = vector.shape_cast %162 : vector<1x1x384xf32> to vector<1x384xf32>
    %164 = vector.broadcast %163 : vector<1x384xf32> to vector<8x384xf32>
    %165 = arith.addf %161, %164 : vector<8x384xf32>
    %166 = vector.extract_strided_slice %165 {offsets = [0, 0], sizes = [8, 256], strides = [1, 1]} : vector<8x384xf32> to vector<8x256xf32>
    %cst_79 = arith.constant 5.000000e-01 : f32
    %167 = vector.broadcast %cst_79 : f32 to vector<8x256xf32>
    %168 = arith.mulf %167, %166 : vector<8x256xf32>
    %169 = math.tanh %168 : vector<8x256xf32>
    %cst_80 = arith.constant 1.000000e+00 : f32
    %170 = vector.broadcast %cst_80 : f32 to vector<8x256xf32>
    %171 = arith.addf %169, %170 : vector<8x256xf32>
    %cst_81 = arith.constant 5.000000e-01 : f32
    %172 = vector.broadcast %cst_81 : f32 to vector<8x256xf32>
    %173 = arith.mulf %172, %171 : vector<8x256xf32>
    %174 = vector.extract_strided_slice %173 {offsets = [0, 0], sizes = [8, 128], strides = [1, 1]} : vector<8x256xf32> to vector<8x128xf32>
    %175 = vector.extract_strided_slice %173 {offsets = [0, 128], sizes = [8, 128], strides = [1, 1]} : vector<8x256xf32> to vector<8x128xf32>
    %176 = vector.extract_strided_slice %165 {offsets = [0, 256], sizes = [8, 128], strides = [1, 1]} : vector<8x384xf32> to vector<8x128xf32>
    %c2_82 = arith.constant 2 : index
    %c0_83 = arith.constant 0 : index
    %c0_84 = arith.constant 0 : index
    %177 = vector.load %arg6[%c2_82, %c0_83, %c0_84] : memref<5x1x128xf32, #tpu.memory_space<vmem>>, vector<1x1x128xf32>
    %178 = vector.shape_cast %177 : vector<1x1x128xf32> to vector<1x128xf32>
    %179 = vector.broadcast %178 : vector<1x128xf32> to vector<8x128xf32>
    %180 = arith.mulf %174, %179 : vector<8x128xf32>
    %181 = arith.addf %176, %180 : vector<8x128xf32>
    %182 = math.tanh %181 : vector<8x128xf32>
    %cst_85 = arith.constant 1.000000e+00 : f32
    %183 = vector.broadcast %cst_85 : f32 to vector<8x128xf32>
    %184 = arith.subf %183, %175 : vector<8x128xf32>
    %185 = arith.mulf %184, %182 : vector<8x128xf32>
    %c24 = arith.constant 24 : index
    %c0_86 = arith.constant 0 : index
    %186 = vector.load %arg10[%c24, %c0_86] : memref<64x384xf32, #tpu.memory_space<vmem>>, vector<8x384xf32>
    %187 = arith.truncf %119 : vector<8x128xf32> to vector<8x128xbf16>
    %c0_87 = arith.constant 0 : index
    %c0_88 = arith.constant 0 : index
    %c0_89 = arith.constant 0 : index
    %188 = vector.load %arg4[%c0_87, %c0_88, %c0_89] : memref<5x128x384xbf16, #tpu.memory_space<vmem>>, vector<1x128x384xbf16>
    %189 = vector.shape_cast %188 : vector<1x128x384xbf16> to vector<128x384xbf16>
    %cst_90 = arith.constant dense<0.000000e+00> : vector<8x384xf32>
    %190 = tpu.matmul %187, %189, %cst_90 {dimension_numbers = #tpu.dot_dimension_numbers<[1], [0], [0], [1], [0, 0, 1, 1], [], []>} : vector<8x128xbf16>, vector<128x384xbf16>, vector<8x384xf32> -> vector<8x384xf32>
    %191 = vector.extract_strided_slice %186 {offsets = [0, 0], sizes = [8, 256], strides = [1, 1]} : vector<8x384xf32> to vector<8x256xf32>
    %192 = vector.extract_strided_slice %190 {offsets = [0, 0], sizes = [8, 256], strides = [1, 1]} : vector<8x384xf32> to vector<8x256xf32>
    %193 = arith.addf %191, %192 : vector<8x256xf32>
    %cst_91 = arith.constant 5.000000e-01 : f32
    %194 = vector.broadcast %cst_91 : f32 to vector<8x256xf32>
    %195 = arith.mulf %194, %193 : vector<8x256xf32>
    %196 = math.tanh %195 : vector<8x256xf32>
    %cst_92 = arith.constant 1.000000e+00 : f32
    %197 = vector.broadcast %cst_92 : f32 to vector<8x256xf32>
    %198 = arith.addf %196, %197 : vector<8x256xf32>
    %cst_93 = arith.constant 5.000000e-01 : f32
    %199 = vector.broadcast %cst_93 : f32 to vector<8x256xf32>
    %200 = arith.mulf %199, %198 : vector<8x256xf32>
    %201 = vector.extract_strided_slice %200 {offsets = [0, 0], sizes = [8, 128], strides = [1, 1]} : vector<8x256xf32> to vector<8x128xf32>
    %202 = vector.extract_strided_slice %200 {offsets = [0, 128], sizes = [8, 128], strides = [1, 1]} : vector<8x256xf32> to vector<8x128xf32>
    %203 = vector.extract_strided_slice %186 {offsets = [0, 256], sizes = [8, 128], strides = [1, 1]} : vector<8x384xf32> to vector<8x128xf32>
    %204 = vector.extract_strided_slice %190 {offsets = [0, 256], sizes = [8, 128], strides = [1, 1]} : vector<8x384xf32> to vector<8x128xf32>
    %c0_94 = arith.constant 0 : index
    %c0_95 = arith.constant 0 : index
    %c0_96 = arith.constant 0 : index
    %205 = vector.load %arg6[%c0_94, %c0_95, %c0_96] : memref<5x1x128xf32, #tpu.memory_space<vmem>>, vector<1x1x128xf32>
    %206 = vector.shape_cast %205 : vector<1x1x128xf32> to vector<1x128xf32>
    %207 = vector.broadcast %206 : vector<1x128xf32> to vector<8x128xf32>
    %208 = arith.addf %204, %207 : vector<8x128xf32>
    %209 = arith.mulf %201, %208 : vector<8x128xf32>
    %210 = arith.addf %203, %209 : vector<8x128xf32>
    %211 = math.tanh %210 : vector<8x128xf32>
    %cst_97 = arith.constant 1.000000e+00 : f32
    %212 = vector.broadcast %cst_97 : f32 to vector<8x128xf32>
    %213 = arith.subf %212, %202 : vector<8x128xf32>
    %214 = arith.mulf %213, %211 : vector<8x128xf32>
    %215 = arith.mulf %202, %119 : vector<8x128xf32>
    %216 = arith.addf %214, %215 : vector<8x128xf32>
    %217 = arith.truncf %119 : vector<8x128xf32> to vector<8x128xbf16>
    %c0_98 = arith.constant 0 : index
    %c0_99 = arith.constant 0 : index
    %c0_100 = arith.constant 0 : index
    %218 = vector.load %arg3[%c0_98, %c0_99, %c0_100] : memref<4x128x384xbf16, #tpu.memory_space<vmem>>, vector<1x128x384xbf16>
    %219 = vector.shape_cast %218 : vector<1x128x384xbf16> to vector<128x384xbf16>
    %cst_101 = arith.constant dense<0.000000e+00> : vector<8x384xf32>
    %220 = tpu.matmul %217, %219, %cst_101 {dimension_numbers = #tpu.dot_dimension_numbers<[1], [0], [0], [1], [0, 0, 1, 1], [], []>} : vector<8x128xbf16>, vector<128x384xbf16>, vector<8x384xf32> -> vector<8x384xf32>
    %c1_102 = arith.constant 1 : index
    %c0_103 = arith.constant 0 : index
    %c0_104 = arith.constant 0 : index
    %221 = vector.load %arg5[%c1_102, %c0_103, %c0_104] : memref<5x1x384xf32, #tpu.memory_space<vmem>>, vector<1x1x384xf32>
    %222 = vector.shape_cast %221 : vector<1x1x384xf32> to vector<1x384xf32>
    %223 = vector.broadcast %222 : vector<1x384xf32> to vector<8x384xf32>
    %224 = arith.addf %220, %223 : vector<8x384xf32>
    %225 = arith.truncf %157 : vector<8x128xf32> to vector<8x128xbf16>
    %c1_105 = arith.constant 1 : index
    %c0_106 = arith.constant 0 : index
    %c0_107 = arith.constant 0 : index
    %226 = vector.load %arg4[%c1_105, %c0_106, %c0_107] : memref<5x128x384xbf16, #tpu.memory_space<vmem>>, vector<1x128x384xbf16>
    %227 = vector.shape_cast %226 : vector<1x128x384xbf16> to vector<128x384xbf16>
    %cst_108 = arith.constant dense<0.000000e+00> : vector<8x384xf32>
    %228 = tpu.matmul %225, %227, %cst_108 {dimension_numbers = #tpu.dot_dimension_numbers<[1], [0], [0], [1], [0, 0, 1, 1], [], []>} : vector<8x128xbf16>, vector<128x384xbf16>, vector<8x384xf32> -> vector<8x384xf32>
    %229 = vector.extract_strided_slice %224 {offsets = [0, 0], sizes = [8, 256], strides = [1, 1]} : vector<8x384xf32> to vector<8x256xf32>
    %230 = vector.extract_strided_slice %228 {offsets = [0, 0], sizes = [8, 256], strides = [1, 1]} : vector<8x384xf32> to vector<8x256xf32>
    %231 = arith.addf %229, %230 : vector<8x256xf32>
    %cst_109 = arith.constant 5.000000e-01 : f32
    %232 = vector.broadcast %cst_109 : f32 to vector<8x256xf32>
    %233 = arith.mulf %232, %231 : vector<8x256xf32>
    %234 = math.tanh %233 : vector<8x256xf32>
    %cst_110 = arith.constant 1.000000e+00 : f32
    %235 = vector.broadcast %cst_110 : f32 to vector<8x256xf32>
    %236 = arith.addf %234, %235 : vector<8x256xf32>
    %cst_111 = arith.constant 5.000000e-01 : f32
    %237 = vector.broadcast %cst_111 : f32 to vector<8x256xf32>
    %238 = arith.mulf %237, %236 : vector<8x256xf32>
    %239 = vector.extract_strided_slice %238 {offsets = [0, 0], sizes = [8, 128], strides = [1, 1]} : vector<8x256xf32> to vector<8x128xf32>
    %240 = vector.extract_strided_slice %238 {offsets = [0, 128], sizes = [8, 128], strides = [1, 1]} : vector<8x256xf32> to vector<8x128xf32>
    %241 = vector.extract_strided_slice %224 {offsets = [0, 256], sizes = [8, 128], strides = [1, 1]} : vector<8x384xf32> to vector<8x128xf32>
    %242 = vector.extract_strided_slice %228 {offsets = [0, 256], sizes = [8, 128], strides = [1, 1]} : vector<8x384xf32> to vector<8x128xf32>
    %c1_112 = arith.constant 1 : index
    %c0_113 = arith.constant 0 : index
    %c0_114 = arith.constant 0 : index
    %243 = vector.load %arg6[%c1_112, %c0_113, %c0_114] : memref<5x1x128xf32, #tpu.memory_space<vmem>>, vector<1x1x128xf32>
    %244 = vector.shape_cast %243 : vector<1x1x128xf32> to vector<1x128xf32>
    %245 = vector.broadcast %244 : vector<1x128xf32> to vector<8x128xf32>
    %246 = arith.addf %242, %245 : vector<8x128xf32>
    %247 = arith.mulf %239, %246 : vector<8x128xf32>
    %248 = arith.addf %241, %247 : vector<8x128xf32>
    %249 = math.tanh %248 : vector<8x128xf32>
    %cst_115 = arith.constant 1.000000e+00 : f32
    %250 = vector.broadcast %cst_115 : f32 to vector<8x128xf32>
    %251 = arith.subf %250, %240 : vector<8x128xf32>
    %252 = arith.mulf %251, %249 : vector<8x128xf32>
    %253 = arith.mulf %240, %157 : vector<8x128xf32>
    %254 = arith.addf %252, %253 : vector<8x128xf32>
    %255 = arith.truncf %157 : vector<8x128xf32> to vector<8x128xbf16>
    %c1_116 = arith.constant 1 : index
    %c0_117 = arith.constant 0 : index
    %c0_118 = arith.constant 0 : index
    %256 = vector.load %arg3[%c1_116, %c0_117, %c0_118] : memref<4x128x384xbf16, #tpu.memory_space<vmem>>, vector<1x128x384xbf16>
    %257 = vector.shape_cast %256 : vector<1x128x384xbf16> to vector<128x384xbf16>
    %cst_119 = arith.constant dense<0.000000e+00> : vector<8x384xf32>
    %258 = tpu.matmul %255, %257, %cst_119 {dimension_numbers = #tpu.dot_dimension_numbers<[1], [0], [0], [1], [0, 0, 1, 1], [], []>} : vector<8x128xbf16>, vector<128x384xbf16>, vector<8x384xf32> -> vector<8x384xf32>
    %c2_120 = arith.constant 2 : index
    %c0_121 = arith.constant 0 : index
    %c0_122 = arith.constant 0 : index
    %259 = vector.load %arg5[%c2_120, %c0_121, %c0_122] : memref<5x1x384xf32, #tpu.memory_space<vmem>>, vector<1x1x384xf32>
    %260 = vector.shape_cast %259 : vector<1x1x384xf32> to vector<1x384xf32>
    %261 = vector.broadcast %260 : vector<1x384xf32> to vector<8x384xf32>
    %262 = arith.addf %258, %261 : vector<8x384xf32>
    %263 = arith.truncf %185 : vector<8x128xf32> to vector<8x128xbf16>
    %c2_123 = arith.constant 2 : index
    %c0_124 = arith.constant 0 : index
    %c0_125 = arith.constant 0 : index
    %264 = vector.load %arg4[%c2_123, %c0_124, %c0_125] : memref<5x128x384xbf16, #tpu.memory_space<vmem>>, vector<1x128x384xbf16>
    %265 = vector.shape_cast %264 : vector<1x128x384xbf16> to vector<128x384xbf16>
    %cst_126 = arith.constant dense<0.000000e+00> : vector<8x384xf32>
    %266 = tpu.matmul %263, %265, %cst_126 {dimension_numbers = #tpu.dot_dimension_numbers<[1], [0], [0], [1], [0, 0, 1, 1], [], []>} : vector<8x128xbf16>, vector<128x384xbf16>, vector<8x384xf32> -> vector<8x384xf32>
    %267 = vector.extract_strided_slice %262 {offsets = [0, 0], sizes = [8, 256], strides = [1, 1]} : vector<8x384xf32> to vector<8x256xf32>
    %268 = vector.extract_strided_slice %266 {offsets = [0, 0], sizes = [8, 256], strides = [1, 1]} : vector<8x384xf32> to vector<8x256xf32>
    %269 = arith.addf %267, %268 : vector<8x256xf32>
    %cst_127 = arith.constant 5.000000e-01 : f32
    %270 = vector.broadcast %cst_127 : f32 to vector<8x256xf32>
    %271 = arith.mulf %270, %269 : vector<8x256xf32>
    %272 = math.tanh %271 : vector<8x256xf32>
    %cst_128 = arith.constant 1.000000e+00 : f32
    %273 = vector.broadcast %cst_128 : f32 to vector<8x256xf32>
    %274 = arith.addf %272, %273 : vector<8x256xf32>
    %cst_129 = arith.constant 5.000000e-01 : f32
    %275 = vector.broadcast %cst_129 : f32 to vector<8x256xf32>
    %276 = arith.mulf %275, %274 : vector<8x256xf32>
    %277 = vector.extract_strided_slice %276 {offsets = [0, 0], sizes = [8, 128], strides = [1, 1]} : vector<8x256xf32> to vector<8x128xf32>
    %278 = vector.extract_strided_slice %276 {offsets = [0, 128], sizes = [8, 128], strides = [1, 1]} : vector<8x256xf32> to vector<8x128xf32>
    %279 = vector.extract_strided_slice %262 {offsets = [0, 256], sizes = [8, 128], strides = [1, 1]} : vector<8x384xf32> to vector<8x128xf32>
    %280 = vector.extract_strided_slice %266 {offsets = [0, 256], sizes = [8, 128], strides = [1, 1]} : vector<8x384xf32> to vector<8x128xf32>
    %c2_130 = arith.constant 2 : index
    %c0_131 = arith.constant 0 : index
    %c0_132 = arith.constant 0 : index
    %281 = vector.load %arg6[%c2_130, %c0_131, %c0_132] : memref<5x1x128xf32, #tpu.memory_space<vmem>>, vector<1x1x128xf32>
    %282 = vector.shape_cast %281 : vector<1x1x128xf32> to vector<1x128xf32>
    %283 = vector.broadcast %282 : vector<1x128xf32> to vector<8x128xf32>
    %284 = arith.addf %280, %283 : vector<8x128xf32>
    %285 = arith.mulf %277, %284 : vector<8x128xf32>
    %286 = arith.addf %279, %285 : vector<8x128xf32>
    %287 = math.tanh %286 : vector<8x128xf32>
    %cst_133 = arith.constant 1.000000e+00 : f32
    %288 = vector.broadcast %cst_133 : f32 to vector<8x128xf32>
    %289 = arith.subf %288, %278 : vector<8x128xf32>
    %290 = arith.mulf %289, %287 : vector<8x128xf32>
    %291 = arith.mulf %278, %185 : vector<8x128xf32>
    %292 = arith.addf %290, %291 : vector<8x128xf32>
    %293 = arith.truncf %185 : vector<8x128xf32> to vector<8x128xbf16>
    %c2_134 = arith.constant 2 : index
    %c0_135 = arith.constant 0 : index
    %c0_136 = arith.constant 0 : index
    %294 = vector.load %arg3[%c2_134, %c0_135, %c0_136] : memref<4x128x384xbf16, #tpu.memory_space<vmem>>, vector<1x128x384xbf16>
    %295 = vector.shape_cast %294 : vector<1x128x384xbf16> to vector<128x384xbf16>
    %cst_137 = arith.constant dense<0.000000e+00> : vector<8x384xf32>
    %296 = tpu.matmul %293, %295, %cst_137 {dimension_numbers = #tpu.dot_dimension_numbers<[1], [0], [0], [1], [0, 0, 1, 1], [], []>} : vector<8x128xbf16>, vector<128x384xbf16>, vector<8x384xf32> -> vector<8x384xf32>
    %c3 = arith.constant 3 : index
    %c0_138 = arith.constant 0 : index
    %c0_139 = arith.constant 0 : index
    %297 = vector.load %arg5[%c3, %c0_138, %c0_139] : memref<5x1x384xf32, #tpu.memory_space<vmem>>, vector<1x1x384xf32>
    %298 = vector.shape_cast %297 : vector<1x1x384xf32> to vector<1x384xf32>
    %299 = vector.broadcast %298 : vector<1x384xf32> to vector<8x384xf32>
    %300 = arith.addf %296, %299 : vector<8x384xf32>
    %301 = vector.extract_strided_slice %300 {offsets = [0, 0], sizes = [8, 256], strides = [1, 1]} : vector<8x384xf32> to vector<8x256xf32>
    %cst_140 = arith.constant 5.000000e-01 : f32
    %302 = vector.broadcast %cst_140 : f32 to vector<8x256xf32>
    %303 = arith.mulf %302, %301 : vector<8x256xf32>
    %304 = math.tanh %303 : vector<8x256xf32>
    %cst_141 = arith.constant 1.000000e+00 : f32
    %305 = vector.broadcast %cst_141 : f32 to vector<8x256xf32>
    %306 = arith.addf %304, %305 : vector<8x256xf32>
    %cst_142 = arith.constant 5.000000e-01 : f32
    %307 = vector.broadcast %cst_142 : f32 to vector<8x256xf32>
    %308 = arith.mulf %307, %306 : vector<8x256xf32>
    %309 = vector.extract_strided_slice %308 {offsets = [0, 0], sizes = [8, 128], strides = [1, 1]} : vector<8x256xf32> to vector<8x128xf32>
    %310 = vector.extract_strided_slice %308 {offsets = [0, 128], sizes = [8, 128], strides = [1, 1]} : vector<8x256xf32> to vector<8x128xf32>
    %311 = vector.extract_strided_slice %300 {offsets = [0, 256], sizes = [8, 128], strides = [1, 1]} : vector<8x384xf32> to vector<8x128xf32>
    %c3_143 = arith.constant 3 : index
    %c0_144 = arith.constant 0 : index
    %c0_145 = arith.constant 0 : index
    %312 = vector.load %arg6[%c3_143, %c0_144, %c0_145] : memref<5x1x128xf32, #tpu.memory_space<vmem>>, vector<1x1x128xf32>
    %313 = vector.shape_cast %312 : vector<1x1x128xf32> to vector<1x128xf32>
    %314 = vector.broadcast %313 : vector<1x128xf32> to vector<8x128xf32>
    %315 = arith.mulf %309, %314 : vector<8x128xf32>
    %316 = arith.addf %311, %315 : vector<8x128xf32>
    %317 = math.tanh %316 : vector<8x128xf32>
    %cst_146 = arith.constant 1.000000e+00 : f32
    %318 = vector.broadcast %cst_146 : f32 to vector<8x128xf32>
    %319 = arith.subf %318, %310 : vector<8x128xf32>
    %320 = arith.mulf %319, %317 : vector<8x128xf32>
    %c32 = arith.constant 32 : index
    %c0_147 = arith.constant 0 : index
    %321 = vector.load %arg10[%c32, %c0_147] : memref<64x384xf32, #tpu.memory_space<vmem>>, vector<8x384xf32>
    %322 = arith.truncf %216 : vector<8x128xf32> to vector<8x128xbf16>
    %c0_148 = arith.constant 0 : index
    %c0_149 = arith.constant 0 : index
    %c0_150 = arith.constant 0 : index
    %323 = vector.load %arg4[%c0_148, %c0_149, %c0_150] : memref<5x128x384xbf16, #tpu.memory_space<vmem>>, vector<1x128x384xbf16>
    %324 = vector.shape_cast %323 : vector<1x128x384xbf16> to vector<128x384xbf16>
    %cst_151 = arith.constant dense<0.000000e+00> : vector<8x384xf32>
    %325 = tpu.matmul %322, %324, %cst_151 {dimension_numbers = #tpu.dot_dimension_numbers<[1], [0], [0], [1], [0, 0, 1, 1], [], []>} : vector<8x128xbf16>, vector<128x384xbf16>, vector<8x384xf32> -> vector<8x384xf32>
    %326 = vector.extract_strided_slice %321 {offsets = [0, 0], sizes = [8, 256], strides = [1, 1]} : vector<8x384xf32> to vector<8x256xf32>
    %327 = vector.extract_strided_slice %325 {offsets = [0, 0], sizes = [8, 256], strides = [1, 1]} : vector<8x384xf32> to vector<8x256xf32>
    %328 = arith.addf %326, %327 : vector<8x256xf32>
    %cst_152 = arith.constant 5.000000e-01 : f32
    %329 = vector.broadcast %cst_152 : f32 to vector<8x256xf32>
    %330 = arith.mulf %329, %328 : vector<8x256xf32>
    %331 = math.tanh %330 : vector<8x256xf32>
    %cst_153 = arith.constant 1.000000e+00 : f32
    %332 = vector.broadcast %cst_153 : f32 to vector<8x256xf32>
    %333 = arith.addf %331, %332 : vector<8x256xf32>
    %cst_154 = arith.constant 5.000000e-01 : f32
    %334 = vector.broadcast %cst_154 : f32 to vector<8x256xf32>
    %335 = arith.mulf %334, %333 : vector<8x256xf32>
    %336 = vector.extract_strided_slice %335 {offsets = [0, 0], sizes = [8, 128], strides = [1, 1]} : vector<8x256xf32> to vector<8x128xf32>
    %337 = vector.extract_strided_slice %335 {offsets = [0, 128], sizes = [8, 128], strides = [1, 1]} : vector<8x256xf32> to vector<8x128xf32>
    %338 = vector.extract_strided_slice %321 {offsets = [0, 256], sizes = [8, 128], strides = [1, 1]} : vector<8x384xf32> to vector<8x128xf32>
    %339 = vector.extract_strided_slice %325 {offsets = [0, 256], sizes = [8, 128], strides = [1, 1]} : vector<8x384xf32> to vector<8x128xf32>
    %c0_155 = arith.constant 0 : index
    %c0_156 = arith.constant 0 : index
    %c0_157 = arith.constant 0 : index
    %340 = vector.load %arg6[%c0_155, %c0_156, %c0_157] : memref<5x1x128xf32, #tpu.memory_space<vmem>>, vector<1x1x128xf32>
    %341 = vector.shape_cast %340 : vector<1x1x128xf32> to vector<1x128xf32>
    %342 = vector.broadcast %341 : vector<1x128xf32> to vector<8x128xf32>
    %343 = arith.addf %339, %342 : vector<8x128xf32>
    %344 = arith.mulf %336, %343 : vector<8x128xf32>
    %345 = arith.addf %338, %344 : vector<8x128xf32>
    %346 = math.tanh %345 : vector<8x128xf32>
    %cst_158 = arith.constant 1.000000e+00 : f32
    %347 = vector.broadcast %cst_158 : f32 to vector<8x128xf32>
    %348 = arith.subf %347, %337 : vector<8x128xf32>
    %349 = arith.mulf %348, %346 : vector<8x128xf32>
    %350 = arith.mulf %337, %216 : vector<8x128xf32>
    %351 = arith.addf %349, %350 : vector<8x128xf32>
    %352 = arith.truncf %216 : vector<8x128xf32> to vector<8x128xbf16>
    %c0_159 = arith.constant 0 : index
    %c0_160 = arith.constant 0 : index
    %c0_161 = arith.constant 0 : index
    %353 = vector.load %arg3[%c0_159, %c0_160, %c0_161] : memref<4x128x384xbf16, #tpu.memory_space<vmem>>, vector<1x128x384xbf16>
    %354 = vector.shape_cast %353 : vector<1x128x384xbf16> to vector<128x384xbf16>
    %cst_162 = arith.constant dense<0.000000e+00> : vector<8x384xf32>
    %355 = tpu.matmul %352, %354, %cst_162 {dimension_numbers = #tpu.dot_dimension_numbers<[1], [0], [0], [1], [0, 0, 1, 1], [], []>} : vector<8x128xbf16>, vector<128x384xbf16>, vector<8x384xf32> -> vector<8x384xf32>
    %c1_163 = arith.constant 1 : index
    %c0_164 = arith.constant 0 : index
    %c0_165 = arith.constant 0 : index
    %356 = vector.load %arg5[%c1_163, %c0_164, %c0_165] : memref<5x1x384xf32, #tpu.memory_space<vmem>>, vector<1x1x384xf32>
    %357 = vector.shape_cast %356 : vector<1x1x384xf32> to vector<1x384xf32>
    %358 = vector.broadcast %357 : vector<1x384xf32> to vector<8x384xf32>
    %359 = arith.addf %355, %358 : vector<8x384xf32>
    %360 = arith.truncf %254 : vector<8x128xf32> to vector<8x128xbf16>
    %c1_166 = arith.constant 1 : index
    %c0_167 = arith.constant 0 : index
    %c0_168 = arith.constant 0 : index
    %361 = vector.load %arg4[%c1_166, %c0_167, %c0_168] : memref<5x128x384xbf16, #tpu.memory_space<vmem>>, vector<1x128x384xbf16>
    %362 = vector.shape_cast %361 : vector<1x128x384xbf16> to vector<128x384xbf16>
    %cst_169 = arith.constant dense<0.000000e+00> : vector<8x384xf32>
    %363 = tpu.matmul %360, %362, %cst_169 {dimension_numbers = #tpu.dot_dimension_numbers<[1], [0], [0], [1], [0, 0, 1, 1], [], []>} : vector<8x128xbf16>, vector<128x384xbf16>, vector<8x384xf32> -> vector<8x384xf32>
    %364 = vector.extract_strided_slice %359 {offsets = [0, 0], sizes = [8, 256], strides = [1, 1]} : vector<8x384xf32> to vector<8x256xf32>
    %365 = vector.extract_strided_slice %363 {offsets = [0, 0], sizes = [8, 256], strides = [1, 1]} : vector<8x384xf32> to vector<8x256xf32>
    %366 = arith.addf %364, %365 : vector<8x256xf32>
    %cst_170 = arith.constant 5.000000e-01 : f32
    %367 = vector.broadcast %cst_170 : f32 to vector<8x256xf32>
    %368 = arith.mulf %367, %366 : vector<8x256xf32>
    %369 = math.tanh %368 : vector<8x256xf32>
    %cst_171 = arith.constant 1.000000e+00 : f32
    %370 = vector.broadcast %cst_171 : f32 to vector<8x256xf32>
    %371 = arith.addf %369, %370 : vector<8x256xf32>
    %cst_172 = arith.constant 5.000000e-01 : f32
    %372 = vector.broadcast %cst_172 : f32 to vector<8x256xf32>
    %373 = arith.mulf %372, %371 : vector<8x256xf32>
    %374 = vector.extract_strided_slice %373 {offsets = [0, 0], sizes = [8, 128], strides = [1, 1]} : vector<8x256xf32> to vector<8x128xf32>
    %375 = vector.extract_strided_slice %373 {offsets = [0, 128], sizes = [8, 128], strides = [1, 1]} : vector<8x256xf32> to vector<8x128xf32>
    %376 = vector.extract_strided_slice %359 {offsets = [0, 256], sizes = [8, 128], strides = [1, 1]} : vector<8x384xf32> to vector<8x128xf32>
    %377 = vector.extract_strided_slice %363 {offsets = [0, 256], sizes = [8, 128], strides = [1, 1]} : vector<8x384xf32> to vector<8x128xf32>
    %c1_173 = arith.constant 1 : index
    %c0_174 = arith.constant 0 : index
    %c0_175 = arith.constant 0 : index
    %378 = vector.load %arg6[%c1_173, %c0_174, %c0_175] : memref<5x1x128xf32, #tpu.memory_space<vmem>>, vector<1x1x128xf32>
    %379 = vector.shape_cast %378 : vector<1x1x128xf32> to vector<1x128xf32>
    %380 = vector.broadcast %379 : vector<1x128xf32> to vector<8x128xf32>
    %381 = arith.addf %377, %380 : vector<8x128xf32>
    %382 = arith.mulf %374, %381 : vector<8x128xf32>
    %383 = arith.addf %376, %382 : vector<8x128xf32>
    %384 = math.tanh %383 : vector<8x128xf32>
    %cst_176 = arith.constant 1.000000e+00 : f32
    %385 = vector.broadcast %cst_176 : f32 to vector<8x128xf32>
    %386 = arith.subf %385, %375 : vector<8x128xf32>
    %387 = arith.mulf %386, %384 : vector<8x128xf32>
    %388 = arith.mulf %375, %254 : vector<8x128xf32>
    %389 = arith.addf %387, %388 : vector<8x128xf32>
    %390 = arith.truncf %254 : vector<8x128xf32> to vector<8x128xbf16>
    %c1_177 = arith.constant 1 : index
    %c0_178 = arith.constant 0 : index
    %c0_179 = arith.constant 0 : index
    %391 = vector.load %arg3[%c1_177, %c0_178, %c0_179] : memref<4x128x384xbf16, #tpu.memory_space<vmem>>, vector<1x128x384xbf16>
    %392 = vector.shape_cast %391 : vector<1x128x384xbf16> to vector<128x384xbf16>
    %cst_180 = arith.constant dense<0.000000e+00> : vector<8x384xf32>
    %393 = tpu.matmul %390, %392, %cst_180 {dimension_numbers = #tpu.dot_dimension_numbers<[1], [0], [0], [1], [0, 0, 1, 1], [], []>} : vector<8x128xbf16>, vector<128x384xbf16>, vector<8x384xf32> -> vector<8x384xf32>
    %c2_181 = arith.constant 2 : index
    %c0_182 = arith.constant 0 : index
    %c0_183 = arith.constant 0 : index
    %394 = vector.load %arg5[%c2_181, %c0_182, %c0_183] : memref<5x1x384xf32, #tpu.memory_space<vmem>>, vector<1x1x384xf32>
    %395 = vector.shape_cast %394 : vector<1x1x384xf32> to vector<1x384xf32>
    %396 = vector.broadcast %395 : vector<1x384xf32> to vector<8x384xf32>
    %397 = arith.addf %393, %396 : vector<8x384xf32>
    %398 = arith.truncf %292 : vector<8x128xf32> to vector<8x128xbf16>
    %c2_184 = arith.constant 2 : index
    %c0_185 = arith.constant 0 : index
    %c0_186 = arith.constant 0 : index
    %399 = vector.load %arg4[%c2_184, %c0_185, %c0_186] : memref<5x128x384xbf16, #tpu.memory_space<vmem>>, vector<1x128x384xbf16>
    %400 = vector.shape_cast %399 : vector<1x128x384xbf16> to vector<128x384xbf16>
    %cst_187 = arith.constant dense<0.000000e+00> : vector<8x384xf32>
    %401 = tpu.matmul %398, %400, %cst_187 {dimension_numbers = #tpu.dot_dimension_numbers<[1], [0], [0], [1], [0, 0, 1, 1], [], []>} : vector<8x128xbf16>, vector<128x384xbf16>, vector<8x384xf32> -> vector<8x384xf32>
    %402 = vector.extract_strided_slice %397 {offsets = [0, 0], sizes = [8, 256], strides = [1, 1]} : vector<8x384xf32> to vector<8x256xf32>
    %403 = vector.extract_strided_slice %401 {offsets = [0, 0], sizes = [8, 256], strides = [1, 1]} : vector<8x384xf32> to vector<8x256xf32>
    %404 = arith.addf %402, %403 : vector<8x256xf32>
    %cst_188 = arith.constant 5.000000e-01 : f32
    %405 = vector.broadcast %cst_188 : f32 to vector<8x256xf32>
    %406 = arith.mulf %405, %404 : vector<8x256xf32>
    %407 = math.tanh %406 : vector<8x256xf32>
    %cst_189 = arith.constant 1.000000e+00 : f32
    %408 = vector.broadcast %cst_189 : f32 to vector<8x256xf32>
    %409 = arith.addf %407, %408 : vector<8x256xf32>
    %cst_190 = arith.constant 5.000000e-01 : f32
    %410 = vector.broadcast %cst_190 : f32 to vector<8x256xf32>
    %411 = arith.mulf %410, %409 : vector<8x256xf32>
    %412 = vector.extract_strided_slice %411 {offsets = [0, 0], sizes = [8, 128], strides = [1, 1]} : vector<8x256xf32> to vector<8x128xf32>
    %413 = vector.extract_strided_slice %411 {offsets = [0, 128], sizes = [8, 128], strides = [1, 1]} : vector<8x256xf32> to vector<8x128xf32>
    %414 = vector.extract_strided_slice %397 {offsets = [0, 256], sizes = [8, 128], strides = [1, 1]} : vector<8x384xf32> to vector<8x128xf32>
    %415 = vector.extract_strided_slice %401 {offsets = [0, 256], sizes = [8, 128], strides = [1, 1]} : vector<8x384xf32> to vector<8x128xf32>
    %c2_191 = arith.constant 2 : index
    %c0_192 = arith.constant 0 : index
    %c0_193 = arith.constant 0 : index
    %416 = vector.load %arg6[%c2_191, %c0_192, %c0_193] : memref<5x1x128xf32, #tpu.memory_space<vmem>>, vector<1x1x128xf32>
    %417 = vector.shape_cast %416 : vector<1x1x128xf32> to vector<1x128xf32>
    %418 = vector.broadcast %417 : vector<1x128xf32> to vector<8x128xf32>
    %419 = arith.addf %415, %418 : vector<8x128xf32>
    %420 = arith.mulf %412, %419 : vector<8x128xf32>
    %421 = arith.addf %414, %420 : vector<8x128xf32>
    %422 = math.tanh %421 : vector<8x128xf32>
    %cst_194 = arith.constant 1.000000e+00 : f32
    %423 = vector.broadcast %cst_194 : f32 to vector<8x128xf32>
    %424 = arith.subf %423, %413 : vector<8x128xf32>
    %425 = arith.mulf %424, %422 : vector<8x128xf32>
    %426 = arith.mulf %413, %292 : vector<8x128xf32>
    %427 = arith.addf %425, %426 : vector<8x128xf32>
    %428 = arith.truncf %292 : vector<8x128xf32> to vector<8x128xbf16>
    %c2_195 = arith.constant 2 : index
    %c0_196 = arith.constant 0 : index
    %c0_197 = arith.constant 0 : index
    %429 = vector.load %arg3[%c2_195, %c0_196, %c0_197] : memref<4x128x384xbf16, #tpu.memory_space<vmem>>, vector<1x128x384xbf16>
    %430 = vector.shape_cast %429 : vector<1x128x384xbf16> to vector<128x384xbf16>
    %cst_198 = arith.constant dense<0.000000e+00> : vector<8x384xf32>
    %431 = tpu.matmul %428, %430, %cst_198 {dimension_numbers = #tpu.dot_dimension_numbers<[1], [0], [0], [1], [0, 0, 1, 1], [], []>} : vector<8x128xbf16>, vector<128x384xbf16>, vector<8x384xf32> -> vector<8x384xf32>
    %c3_199 = arith.constant 3 : index
    %c0_200 = arith.constant 0 : index
    %c0_201 = arith.constant 0 : index
    %432 = vector.load %arg5[%c3_199, %c0_200, %c0_201] : memref<5x1x384xf32, #tpu.memory_space<vmem>>, vector<1x1x384xf32>
    %433 = vector.shape_cast %432 : vector<1x1x384xf32> to vector<1x384xf32>
    %434 = vector.broadcast %433 : vector<1x384xf32> to vector<8x384xf32>
    %435 = arith.addf %431, %434 : vector<8x384xf32>
    %436 = arith.truncf %320 : vector<8x128xf32> to vector<8x128xbf16>
    %c3_202 = arith.constant 3 : index
    %c0_203 = arith.constant 0 : index
    %c0_204 = arith.constant 0 : index
    %437 = vector.load %arg4[%c3_202, %c0_203, %c0_204] : memref<5x128x384xbf16, #tpu.memory_space<vmem>>, vector<1x128x384xbf16>
    %438 = vector.shape_cast %437 : vector<1x128x384xbf16> to vector<128x384xbf16>
    %cst_205 = arith.constant dense<0.000000e+00> : vector<8x384xf32>
    %439 = tpu.matmul %436, %438, %cst_205 {dimension_numbers = #tpu.dot_dimension_numbers<[1], [0], [0], [1], [0, 0, 1, 1], [], []>} : vector<8x128xbf16>, vector<128x384xbf16>, vector<8x384xf32> -> vector<8x384xf32>
    %440 = vector.extract_strided_slice %435 {offsets = [0, 0], sizes = [8, 256], strides = [1, 1]} : vector<8x384xf32> to vector<8x256xf32>
    %441 = vector.extract_strided_slice %439 {offsets = [0, 0], sizes = [8, 256], strides = [1, 1]} : vector<8x384xf32> to vector<8x256xf32>
    %442 = arith.addf %440, %441 : vector<8x256xf32>
    %cst_206 = arith.constant 5.000000e-01 : f32
    %443 = vector.broadcast %cst_206 : f32 to vector<8x256xf32>
    %444 = arith.mulf %443, %442 : vector<8x256xf32>
    %445 = math.tanh %444 : vector<8x256xf32>
    %cst_207 = arith.constant 1.000000e+00 : f32
    %446 = vector.broadcast %cst_207 : f32 to vector<8x256xf32>
    %447 = arith.addf %445, %446 : vector<8x256xf32>
    %cst_208 = arith.constant 5.000000e-01 : f32
    %448 = vector.broadcast %cst_208 : f32 to vector<8x256xf32>
    %449 = arith.mulf %448, %447 : vector<8x256xf32>
    %450 = vector.extract_strided_slice %449 {offsets = [0, 0], sizes = [8, 128], strides = [1, 1]} : vector<8x256xf32> to vector<8x128xf32>
    %451 = vector.extract_strided_slice %449 {offsets = [0, 128], sizes = [8, 128], strides = [1, 1]} : vector<8x256xf32> to vector<8x128xf32>
    %452 = vector.extract_strided_slice %435 {offsets = [0, 256], sizes = [8, 128], strides = [1, 1]} : vector<8x384xf32> to vector<8x128xf32>
    %453 = vector.extract_strided_slice %439 {offsets = [0, 256], sizes = [8, 128], strides = [1, 1]} : vector<8x384xf32> to vector<8x128xf32>
    %c3_209 = arith.constant 3 : index
    %c0_210 = arith.constant 0 : index
    %c0_211 = arith.constant 0 : index
    %454 = vector.load %arg6[%c3_209, %c0_210, %c0_211] : memref<5x1x128xf32, #tpu.memory_space<vmem>>, vector<1x1x128xf32>
    %455 = vector.shape_cast %454 : vector<1x1x128xf32> to vector<1x128xf32>
    %456 = vector.broadcast %455 : vector<1x128xf32> to vector<8x128xf32>
    %457 = arith.addf %453, %456 : vector<8x128xf32>
    %458 = arith.mulf %450, %457 : vector<8x128xf32>
    %459 = arith.addf %452, %458 : vector<8x128xf32>
    %460 = math.tanh %459 : vector<8x128xf32>
    %cst_212 = arith.constant 1.000000e+00 : f32
    %461 = vector.broadcast %cst_212 : f32 to vector<8x128xf32>
    %462 = arith.subf %461, %451 : vector<8x128xf32>
    %463 = arith.mulf %462, %460 : vector<8x128xf32>
    %464 = arith.mulf %451, %320 : vector<8x128xf32>
    %465 = arith.addf %463, %464 : vector<8x128xf32>
    %466 = arith.truncf %320 : vector<8x128xf32> to vector<8x128xbf16>
    %c3_213 = arith.constant 3 : index
    %c0_214 = arith.constant 0 : index
    %c0_215 = arith.constant 0 : index
    %467 = vector.load %arg3[%c3_213, %c0_214, %c0_215] : memref<4x128x384xbf16, #tpu.memory_space<vmem>>, vector<1x128x384xbf16>
    %468 = vector.shape_cast %467 : vector<1x128x384xbf16> to vector<128x384xbf16>
    %cst_216 = arith.constant dense<0.000000e+00> : vector<8x384xf32>
    %469 = tpu.matmul %466, %468, %cst_216 {dimension_numbers = #tpu.dot_dimension_numbers<[1], [0], [0], [1], [0, 0, 1, 1], [], []>} : vector<8x128xbf16>, vector<128x384xbf16>, vector<8x384xf32> -> vector<8x384xf32>
    %c4 = arith.constant 4 : index
    %c0_217 = arith.constant 0 : index
    %c0_218 = arith.constant 0 : index
    %470 = vector.load %arg5[%c4, %c0_217, %c0_218] : memref<5x1x384xf32, #tpu.memory_space<vmem>>, vector<1x1x384xf32>
    %471 = vector.shape_cast %470 : vector<1x1x384xf32> to vector<1x384xf32>
    %472 = vector.broadcast %471 : vector<1x384xf32> to vector<8x384xf32>
    %473 = arith.addf %469, %472 : vector<8x384xf32>
    %474 = vector.extract_strided_slice %473 {offsets = [0, 0], sizes = [8, 256], strides = [1, 1]} : vector<8x384xf32> to vector<8x256xf32>
    %cst_219 = arith.constant 5.000000e-01 : f32
    %475 = vector.broadcast %cst_219 : f32 to vector<8x256xf32>
    %476 = arith.mulf %475, %474 : vector<8x256xf32>
    %477 = math.tanh %476 : vector<8x256xf32>
    %cst_220 = arith.constant 1.000000e+00 : f32
    %478 = vector.broadcast %cst_220 : f32 to vector<8x256xf32>
    %479 = arith.addf %477, %478 : vector<8x256xf32>
    %cst_221 = arith.constant 5.000000e-01 : f32
    %480 = vector.broadcast %cst_221 : f32 to vector<8x256xf32>
    %481 = arith.mulf %480, %479 : vector<8x256xf32>
    %482 = vector.extract_strided_slice %481 {offsets = [0, 0], sizes = [8, 128], strides = [1, 1]} : vector<8x256xf32> to vector<8x128xf32>
    %483 = vector.extract_strided_slice %481 {offsets = [0, 128], sizes = [8, 128], strides = [1, 1]} : vector<8x256xf32> to vector<8x128xf32>
    %484 = vector.extract_strided_slice %473 {offsets = [0, 256], sizes = [8, 128], strides = [1, 1]} : vector<8x384xf32> to vector<8x128xf32>
    %c4_222 = arith.constant 4 : index
    %c0_223 = arith.constant 0 : index
    %c0_224 = arith.constant 0 : index
    %485 = vector.load %arg6[%c4_222, %c0_223, %c0_224] : memref<5x1x128xf32, #tpu.memory_space<vmem>>, vector<1x1x128xf32>
    %486 = vector.shape_cast %485 : vector<1x1x128xf32> to vector<1x128xf32>
    %487 = vector.broadcast %486 : vector<1x128xf32> to vector<8x128xf32>
    %488 = arith.mulf %482, %487 : vector<8x128xf32>
    %489 = arith.addf %484, %488 : vector<8x128xf32>
    %490 = math.tanh %489 : vector<8x128xf32>
    %cst_225 = arith.constant 1.000000e+00 : f32
    %491 = vector.broadcast %cst_225 : f32 to vector<8x128xf32>
    %492 = arith.subf %491, %483 : vector<8x128xf32>
    %493 = arith.mulf %492, %490 : vector<8x128xf32>
    %c40 = arith.constant 40 : index
    %c0_226 = arith.constant 0 : index
    %494 = vector.load %arg10[%c40, %c0_226] : memref<64x384xf32, #tpu.memory_space<vmem>>, vector<8x384xf32>
    %495 = arith.truncf %351 : vector<8x128xf32> to vector<8x128xbf16>
    %c0_227 = arith.constant 0 : index
    %c0_228 = arith.constant 0 : index
    %c0_229 = arith.constant 0 : index
    %496 = vector.load %arg4[%c0_227, %c0_228, %c0_229] : memref<5x128x384xbf16, #tpu.memory_space<vmem>>, vector<1x128x384xbf16>
    %497 = vector.shape_cast %496 : vector<1x128x384xbf16> to vector<128x384xbf16>
    %cst_230 = arith.constant dense<0.000000e+00> : vector<8x384xf32>
    %498 = tpu.matmul %495, %497, %cst_230 {dimension_numbers = #tpu.dot_dimension_numbers<[1], [0], [0], [1], [0, 0, 1, 1], [], []>} : vector<8x128xbf16>, vector<128x384xbf16>, vector<8x384xf32> -> vector<8x384xf32>
    %499 = vector.extract_strided_slice %494 {offsets = [0, 0], sizes = [8, 256], strides = [1, 1]} : vector<8x384xf32> to vector<8x256xf32>
    %500 = vector.extract_strided_slice %498 {offsets = [0, 0], sizes = [8, 256], strides = [1, 1]} : vector<8x384xf32> to vector<8x256xf32>
    %501 = arith.addf %499, %500 : vector<8x256xf32>
    %cst_231 = arith.constant 5.000000e-01 : f32
    %502 = vector.broadcast %cst_231 : f32 to vector<8x256xf32>
    %503 = arith.mulf %502, %501 : vector<8x256xf32>
    %504 = math.tanh %503 : vector<8x256xf32>
    %cst_232 = arith.constant 1.000000e+00 : f32
    %505 = vector.broadcast %cst_232 : f32 to vector<8x256xf32>
    %506 = arith.addf %504, %505 : vector<8x256xf32>
    %cst_233 = arith.constant 5.000000e-01 : f32
    %507 = vector.broadcast %cst_233 : f32 to vector<8x256xf32>
    %508 = arith.mulf %507, %506 : vector<8x256xf32>
    %509 = vector.extract_strided_slice %508 {offsets = [0, 0], sizes = [8, 128], strides = [1, 1]} : vector<8x256xf32> to vector<8x128xf32>
    %510 = vector.extract_strided_slice %508 {offsets = [0, 128], sizes = [8, 128], strides = [1, 1]} : vector<8x256xf32> to vector<8x128xf32>
    %511 = vector.extract_strided_slice %494 {offsets = [0, 256], sizes = [8, 128], strides = [1, 1]} : vector<8x384xf32> to vector<8x128xf32>
    %512 = vector.extract_strided_slice %498 {offsets = [0, 256], sizes = [8, 128], strides = [1, 1]} : vector<8x384xf32> to vector<8x128xf32>
    %c0_234 = arith.constant 0 : index
    %c0_235 = arith.constant 0 : index
    %c0_236 = arith.constant 0 : index
    %513 = vector.load %arg6[%c0_234, %c0_235, %c0_236] : memref<5x1x128xf32, #tpu.memory_space<vmem>>, vector<1x1x128xf32>
    %514 = vector.shape_cast %513 : vector<1x1x128xf32> to vector<1x128xf32>
    %515 = vector.broadcast %514 : vector<1x128xf32> to vector<8x128xf32>
    %516 = arith.addf %512, %515 : vector<8x128xf32>
    %517 = arith.mulf %509, %516 : vector<8x128xf32>
    %518 = arith.addf %511, %517 : vector<8x128xf32>
    %519 = math.tanh %518 : vector<8x128xf32>
    %cst_237 = arith.constant 1.000000e+00 : f32
    %520 = vector.broadcast %cst_237 : f32 to vector<8x128xf32>
    %521 = arith.subf %520, %510 : vector<8x128xf32>
    %522 = arith.mulf %521, %519 : vector<8x128xf32>
    %523 = arith.mulf %510, %351 : vector<8x128xf32>
    %524 = arith.addf %522, %523 : vector<8x128xf32>
    %525 = arith.truncf %351 : vector<8x128xf32> to vector<8x128xbf16>
    %c0_238 = arith.constant 0 : index
    %c0_239 = arith.constant 0 : index
    %c0_240 = arith.constant 0 : index
    %526 = vector.load %arg3[%c0_238, %c0_239, %c0_240] : memref<4x128x384xbf16, #tpu.memory_space<vmem>>, vector<1x128x384xbf16>
    %527 = vector.shape_cast %526 : vector<1x128x384xbf16> to vector<128x384xbf16>
    %cst_241 = arith.constant dense<0.000000e+00> : vector<8x384xf32>
    %528 = tpu.matmul %525, %527, %cst_241 {dimension_numbers = #tpu.dot_dimension_numbers<[1], [0], [0], [1], [0, 0, 1, 1], [], []>} : vector<8x128xbf16>, vector<128x384xbf16>, vector<8x384xf32> -> vector<8x384xf32>
    %c1_242 = arith.constant 1 : index
    %c0_243 = arith.constant 0 : index
    %c0_244 = arith.constant 0 : index
    %529 = vector.load %arg5[%c1_242, %c0_243, %c0_244] : memref<5x1x384xf32, #tpu.memory_space<vmem>>, vector<1x1x384xf32>
    %530 = vector.shape_cast %529 : vector<1x1x384xf32> to vector<1x384xf32>
    %531 = vector.broadcast %530 : vector<1x384xf32> to vector<8x384xf32>
    %532 = arith.addf %528, %531 : vector<8x384xf32>
    %533 = arith.truncf %389 : vector<8x128xf32> to vector<8x128xbf16>
    %c1_245 = arith.constant 1 : index
    %c0_246 = arith.constant 0 : index
    %c0_247 = arith.constant 0 : index
    %534 = vector.load %arg4[%c1_245, %c0_246, %c0_247] : memref<5x128x384xbf16, #tpu.memory_space<vmem>>, vector<1x128x384xbf16>
    %535 = vector.shape_cast %534 : vector<1x128x384xbf16> to vector<128x384xbf16>
    %cst_248 = arith.constant dense<0.000000e+00> : vector<8x384xf32>
    %536 = tpu.matmul %533, %535, %cst_248 {dimension_numbers = #tpu.dot_dimension_numbers<[1], [0], [0], [1], [0, 0, 1, 1], [], []>} : vector<8x128xbf16>, vector<128x384xbf16>, vector<8x384xf32> -> vector<8x384xf32>
    %537 = vector.extract_strided_slice %532 {offsets = [0, 0], sizes = [8, 256], strides = [1, 1]} : vector<8x384xf32> to vector<8x256xf32>
    %538 = vector.extract_strided_slice %536 {offsets = [0, 0], sizes = [8, 256], strides = [1, 1]} : vector<8x384xf32> to vector<8x256xf32>
    %539 = arith.addf %537, %538 : vector<8x256xf32>
    %cst_249 = arith.constant 5.000000e-01 : f32
    %540 = vector.broadcast %cst_249 : f32 to vector<8x256xf32>
    %541 = arith.mulf %540, %539 : vector<8x256xf32>
    %542 = math.tanh %541 : vector<8x256xf32>
    %cst_250 = arith.constant 1.000000e+00 : f32
    %543 = vector.broadcast %cst_250 : f32 to vector<8x256xf32>
    %544 = arith.addf %542, %543 : vector<8x256xf32>
    %cst_251 = arith.constant 5.000000e-01 : f32
    %545 = vector.broadcast %cst_251 : f32 to vector<8x256xf32>
    %546 = arith.mulf %545, %544 : vector<8x256xf32>
    %547 = vector.extract_strided_slice %546 {offsets = [0, 0], sizes = [8, 128], strides = [1, 1]} : vector<8x256xf32> to vector<8x128xf32>
    %548 = vector.extract_strided_slice %546 {offsets = [0, 128], sizes = [8, 128], strides = [1, 1]} : vector<8x256xf32> to vector<8x128xf32>
    %549 = vector.extract_strided_slice %532 {offsets = [0, 256], sizes = [8, 128], strides = [1, 1]} : vector<8x384xf32> to vector<8x128xf32>
    %550 = vector.extract_strided_slice %536 {offsets = [0, 256], sizes = [8, 128], strides = [1, 1]} : vector<8x384xf32> to vector<8x128xf32>
    %c1_252 = arith.constant 1 : index
    %c0_253 = arith.constant 0 : index
    %c0_254 = arith.constant 0 : index
    %551 = vector.load %arg6[%c1_252, %c0_253, %c0_254] : memref<5x1x128xf32, #tpu.memory_space<vmem>>, vector<1x1x128xf32>
    %552 = vector.shape_cast %551 : vector<1x1x128xf32> to vector<1x128xf32>
    %553 = vector.broadcast %552 : vector<1x128xf32> to vector<8x128xf32>
    %554 = arith.addf %550, %553 : vector<8x128xf32>
    %555 = arith.mulf %547, %554 : vector<8x128xf32>
    %556 = arith.addf %549, %555 : vector<8x128xf32>
    %557 = math.tanh %556 : vector<8x128xf32>
    %cst_255 = arith.constant 1.000000e+00 : f32
    %558 = vector.broadcast %cst_255 : f32 to vector<8x128xf32>
    %559 = arith.subf %558, %548 : vector<8x128xf32>
    %560 = arith.mulf %559, %557 : vector<8x128xf32>
    %561 = arith.mulf %548, %389 : vector<8x128xf32>
    %562 = arith.addf %560, %561 : vector<8x128xf32>
    %563 = arith.truncf %389 : vector<8x128xf32> to vector<8x128xbf16>
    %c1_256 = arith.constant 1 : index
    %c0_257 = arith.constant 0 : index
    %c0_258 = arith.constant 0 : index
    %564 = vector.load %arg3[%c1_256, %c0_257, %c0_258] : memref<4x128x384xbf16, #tpu.memory_space<vmem>>, vector<1x128x384xbf16>
    %565 = vector.shape_cast %564 : vector<1x128x384xbf16> to vector<128x384xbf16>
    %cst_259 = arith.constant dense<0.000000e+00> : vector<8x384xf32>
    %566 = tpu.matmul %563, %565, %cst_259 {dimension_numbers = #tpu.dot_dimension_numbers<[1], [0], [0], [1], [0, 0, 1, 1], [], []>} : vector<8x128xbf16>, vector<128x384xbf16>, vector<8x384xf32> -> vector<8x384xf32>
    %c2_260 = arith.constant 2 : index
    %c0_261 = arith.constant 0 : index
    %c0_262 = arith.constant 0 : index
    %567 = vector.load %arg5[%c2_260, %c0_261, %c0_262] : memref<5x1x384xf32, #tpu.memory_space<vmem>>, vector<1x1x384xf32>
    %568 = vector.shape_cast %567 : vector<1x1x384xf32> to vector<1x384xf32>
    %569 = vector.broadcast %568 : vector<1x384xf32> to vector<8x384xf32>
    %570 = arith.addf %566, %569 : vector<8x384xf32>
    %571 = arith.truncf %427 : vector<8x128xf32> to vector<8x128xbf16>
    %c2_263 = arith.constant 2 : index
    %c0_264 = arith.constant 0 : index
    %c0_265 = arith.constant 0 : index
    %572 = vector.load %arg4[%c2_263, %c0_264, %c0_265] : memref<5x128x384xbf16, #tpu.memory_space<vmem>>, vector<1x128x384xbf16>
    %573 = vector.shape_cast %572 : vector<1x128x384xbf16> to vector<128x384xbf16>
    %cst_266 = arith.constant dense<0.000000e+00> : vector<8x384xf32>
    %574 = tpu.matmul %571, %573, %cst_266 {dimension_numbers = #tpu.dot_dimension_numbers<[1], [0], [0], [1], [0, 0, 1, 1], [], []>} : vector<8x128xbf16>, vector<128x384xbf16>, vector<8x384xf32> -> vector<8x384xf32>
    %575 = vector.extract_strided_slice %570 {offsets = [0, 0], sizes = [8, 256], strides = [1, 1]} : vector<8x384xf32> to vector<8x256xf32>
    %576 = vector.extract_strided_slice %574 {offsets = [0, 0], sizes = [8, 256], strides = [1, 1]} : vector<8x384xf32> to vector<8x256xf32>
    %577 = arith.addf %575, %576 : vector<8x256xf32>
    %cst_267 = arith.constant 5.000000e-01 : f32
    %578 = vector.broadcast %cst_267 : f32 to vector<8x256xf32>
    %579 = arith.mulf %578, %577 : vector<8x256xf32>
    %580 = math.tanh %579 : vector<8x256xf32>
    %cst_268 = arith.constant 1.000000e+00 : f32
    %581 = vector.broadcast %cst_268 : f32 to vector<8x256xf32>
    %582 = arith.addf %580, %581 : vector<8x256xf32>
    %cst_269 = arith.constant 5.000000e-01 : f32
    %583 = vector.broadcast %cst_269 : f32 to vector<8x256xf32>
    %584 = arith.mulf %583, %582 : vector<8x256xf32>
    %585 = vector.extract_strided_slice %584 {offsets = [0, 0], sizes = [8, 128], strides = [1, 1]} : vector<8x256xf32> to vector<8x128xf32>
    %586 = vector.extract_strided_slice %584 {offsets = [0, 128], sizes = [8, 128], strides = [1, 1]} : vector<8x256xf32> to vector<8x128xf32>
    %587 = vector.extract_strided_slice %570 {offsets = [0, 256], sizes = [8, 128], strides = [1, 1]} : vector<8x384xf32> to vector<8x128xf32>
    %588 = vector.extract_strided_slice %574 {offsets = [0, 256], sizes = [8, 128], strides = [1, 1]} : vector<8x384xf32> to vector<8x128xf32>
    %c2_270 = arith.constant 2 : index
    %c0_271 = arith.constant 0 : index
    %c0_272 = arith.constant 0 : index
    %589 = vector.load %arg6[%c2_270, %c0_271, %c0_272] : memref<5x1x128xf32, #tpu.memory_space<vmem>>, vector<1x1x128xf32>
    %590 = vector.shape_cast %589 : vector<1x1x128xf32> to vector<1x128xf32>
    %591 = vector.broadcast %590 : vector<1x128xf32> to vector<8x128xf32>
    %592 = arith.addf %588, %591 : vector<8x128xf32>
    %593 = arith.mulf %585, %592 : vector<8x128xf32>
    %594 = arith.addf %587, %593 : vector<8x128xf32>
    %595 = math.tanh %594 : vector<8x128xf32>
    %cst_273 = arith.constant 1.000000e+00 : f32
    %596 = vector.broadcast %cst_273 : f32 to vector<8x128xf32>
    %597 = arith.subf %596, %586 : vector<8x128xf32>
    %598 = arith.mulf %597, %595 : vector<8x128xf32>
    %599 = arith.mulf %586, %427 : vector<8x128xf32>
    %600 = arith.addf %598, %599 : vector<8x128xf32>
    %601 = arith.truncf %427 : vector<8x128xf32> to vector<8x128xbf16>
    %c2_274 = arith.constant 2 : index
    %c0_275 = arith.constant 0 : index
    %c0_276 = arith.constant 0 : index
    %602 = vector.load %arg3[%c2_274, %c0_275, %c0_276] : memref<4x128x384xbf16, #tpu.memory_space<vmem>>, vector<1x128x384xbf16>
    %603 = vector.shape_cast %602 : vector<1x128x384xbf16> to vector<128x384xbf16>
    %cst_277 = arith.constant dense<0.000000e+00> : vector<8x384xf32>
    %604 = tpu.matmul %601, %603, %cst_277 {dimension_numbers = #tpu.dot_dimension_numbers<[1], [0], [0], [1], [0, 0, 1, 1], [], []>} : vector<8x128xbf16>, vector<128x384xbf16>, vector<8x384xf32> -> vector<8x384xf32>
    %c3_278 = arith.constant 3 : index
    %c0_279 = arith.constant 0 : index
    %c0_280 = arith.constant 0 : index
    %605 = vector.load %arg5[%c3_278, %c0_279, %c0_280] : memref<5x1x384xf32, #tpu.memory_space<vmem>>, vector<1x1x384xf32>
    %606 = vector.shape_cast %605 : vector<1x1x384xf32> to vector<1x384xf32>
    %607 = vector.broadcast %606 : vector<1x384xf32> to vector<8x384xf32>
    %608 = arith.addf %604, %607 : vector<8x384xf32>
    %609 = arith.truncf %465 : vector<8x128xf32> to vector<8x128xbf16>
    %c3_281 = arith.constant 3 : index
    %c0_282 = arith.constant 0 : index
    %c0_283 = arith.constant 0 : index
    %610 = vector.load %arg4[%c3_281, %c0_282, %c0_283] : memref<5x128x384xbf16, #tpu.memory_space<vmem>>, vector<1x128x384xbf16>
    %611 = vector.shape_cast %610 : vector<1x128x384xbf16> to vector<128x384xbf16>
    %cst_284 = arith.constant dense<0.000000e+00> : vector<8x384xf32>
    %612 = tpu.matmul %609, %611, %cst_284 {dimension_numbers = #tpu.dot_dimension_numbers<[1], [0], [0], [1], [0, 0, 1, 1], [], []>} : vector<8x128xbf16>, vector<128x384xbf16>, vector<8x384xf32> -> vector<8x384xf32>
    %613 = vector.extract_strided_slice %608 {offsets = [0, 0], sizes = [8, 256], strides = [1, 1]} : vector<8x384xf32> to vector<8x256xf32>
    %614 = vector.extract_strided_slice %612 {offsets = [0, 0], sizes = [8, 256], strides = [1, 1]} : vector<8x384xf32> to vector<8x256xf32>
    %615 = arith.addf %613, %614 : vector<8x256xf32>
    %cst_285 = arith.constant 5.000000e-01 : f32
    %616 = vector.broadcast %cst_285 : f32 to vector<8x256xf32>
    %617 = arith.mulf %616, %615 : vector<8x256xf32>
    %618 = math.tanh %617 : vector<8x256xf32>
    %cst_286 = arith.constant 1.000000e+00 : f32
    %619 = vector.broadcast %cst_286 : f32 to vector<8x256xf32>
    %620 = arith.addf %618, %619 : vector<8x256xf32>
    %cst_287 = arith.constant 5.000000e-01 : f32
    %621 = vector.broadcast %cst_287 : f32 to vector<8x256xf32>
    %622 = arith.mulf %621, %620 : vector<8x256xf32>
    %623 = vector.extract_strided_slice %622 {offsets = [0, 0], sizes = [8, 128], strides = [1, 1]} : vector<8x256xf32> to vector<8x128xf32>
    %624 = vector.extract_strided_slice %622 {offsets = [0, 128], sizes = [8, 128], strides = [1, 1]} : vector<8x256xf32> to vector<8x128xf32>
    %625 = vector.extract_strided_slice %608 {offsets = [0, 256], sizes = [8, 128], strides = [1, 1]} : vector<8x384xf32> to vector<8x128xf32>
    %626 = vector.extract_strided_slice %612 {offsets = [0, 256], sizes = [8, 128], strides = [1, 1]} : vector<8x384xf32> to vector<8x128xf32>
    %c3_288 = arith.constant 3 : index
    %c0_289 = arith.constant 0 : index
    %c0_290 = arith.constant 0 : index
    %627 = vector.load %arg6[%c3_288, %c0_289, %c0_290] : memref<5x1x128xf32, #tpu.memory_space<vmem>>, vector<1x1x128xf32>
    %628 = vector.shape_cast %627 : vector<1x1x128xf32> to vector<1x128xf32>
    %629 = vector.broadcast %628 : vector<1x128xf32> to vector<8x128xf32>
    %630 = arith.addf %626, %629 : vector<8x128xf32>
    %631 = arith.mulf %623, %630 : vector<8x128xf32>
    %632 = arith.addf %625, %631 : vector<8x128xf32>
    %633 = math.tanh %632 : vector<8x128xf32>
    %cst_291 = arith.constant 1.000000e+00 : f32
    %634 = vector.broadcast %cst_291 : f32 to vector<8x128xf32>
    %635 = arith.subf %634, %624 : vector<8x128xf32>
    %636 = arith.mulf %635, %633 : vector<8x128xf32>
    %637 = arith.mulf %624, %465 : vector<8x128xf32>
    %638 = arith.addf %636, %637 : vector<8x128xf32>
    %639 = arith.truncf %465 : vector<8x128xf32> to vector<8x128xbf16>
    %c3_292 = arith.constant 3 : index
    %c0_293 = arith.constant 0 : index
    %c0_294 = arith.constant 0 : index
    %640 = vector.load %arg3[%c3_292, %c0_293, %c0_294] : memref<4x128x384xbf16, #tpu.memory_space<vmem>>, vector<1x128x384xbf16>
    %641 = vector.shape_cast %640 : vector<1x128x384xbf16> to vector<128x384xbf16>
    %cst_295 = arith.constant dense<0.000000e+00> : vector<8x384xf32>
    %642 = tpu.matmul %639, %641, %cst_295 {dimension_numbers = #tpu.dot_dimension_numbers<[1], [0], [0], [1], [0, 0, 1, 1], [], []>} : vector<8x128xbf16>, vector<128x384xbf16>, vector<8x384xf32> -> vector<8x384xf32>
    %c4_296 = arith.constant 4 : index
    %c0_297 = arith.constant 0 : index
    %c0_298 = arith.constant 0 : index
    %643 = vector.load %arg5[%c4_296, %c0_297, %c0_298] : memref<5x1x384xf32, #tpu.memory_space<vmem>>, vector<1x1x384xf32>
    %644 = vector.shape_cast %643 : vector<1x1x384xf32> to vector<1x384xf32>
    %645 = vector.broadcast %644 : vector<1x384xf32> to vector<8x384xf32>
    %646 = arith.addf %642, %645 : vector<8x384xf32>
    %647 = arith.truncf %493 : vector<8x128xf32> to vector<8x128xbf16>
    %c4_299 = arith.constant 4 : index
    %c0_300 = arith.constant 0 : index
    %c0_301 = arith.constant 0 : index
    %648 = vector.load %arg4[%c4_299, %c0_300, %c0_301] : memref<5x128x384xbf16, #tpu.memory_space<vmem>>, vector<1x128x384xbf16>
    %649 = vector.shape_cast %648 : vector<1x128x384xbf16> to vector<128x384xbf16>
    %cst_302 = arith.constant dense<0.000000e+00> : vector<8x384xf32>
    %650 = tpu.matmul %647, %649, %cst_302 {dimension_numbers = #tpu.dot_dimension_numbers<[1], [0], [0], [1], [0, 0, 1, 1], [], []>} : vector<8x128xbf16>, vector<128x384xbf16>, vector<8x384xf32> -> vector<8x384xf32>
    %651 = vector.extract_strided_slice %646 {offsets = [0, 0], sizes = [8, 256], strides = [1, 1]} : vector<8x384xf32> to vector<8x256xf32>
    %652 = vector.extract_strided_slice %650 {offsets = [0, 0], sizes = [8, 256], strides = [1, 1]} : vector<8x384xf32> to vector<8x256xf32>
    %653 = arith.addf %651, %652 : vector<8x256xf32>
    %cst_303 = arith.constant 5.000000e-01 : f32
    %654 = vector.broadcast %cst_303 : f32 to vector<8x256xf32>
    %655 = arith.mulf %654, %653 : vector<8x256xf32>
    %656 = math.tanh %655 : vector<8x256xf32>
    %cst_304 = arith.constant 1.000000e+00 : f32
    %657 = vector.broadcast %cst_304 : f32 to vector<8x256xf32>
    %658 = arith.addf %656, %657 : vector<8x256xf32>
    %cst_305 = arith.constant 5.000000e-01 : f32
    %659 = vector.broadcast %cst_305 : f32 to vector<8x256xf32>
    %660 = arith.mulf %659, %658 : vector<8x256xf32>
    %661 = vector.extract_strided_slice %660 {offsets = [0, 0], sizes = [8, 128], strides = [1, 1]} : vector<8x256xf32> to vector<8x128xf32>
    %662 = vector.extract_strided_slice %660 {offsets = [0, 128], sizes = [8, 128], strides = [1, 1]} : vector<8x256xf32> to vector<8x128xf32>
    %663 = vector.extract_strided_slice %646 {offsets = [0, 256], sizes = [8, 128], strides = [1, 1]} : vector<8x384xf32> to vector<8x128xf32>
    %664 = vector.extract_strided_slice %650 {offsets = [0, 256], sizes = [8, 128], strides = [1, 1]} : vector<8x384xf32> to vector<8x128xf32>
    %c4_306 = arith.constant 4 : index
    %c0_307 = arith.constant 0 : index
    %c0_308 = arith.constant 0 : index
    %665 = vector.load %arg6[%c4_306, %c0_307, %c0_308] : memref<5x1x128xf32, #tpu.memory_space<vmem>>, vector<1x1x128xf32>
    %666 = vector.shape_cast %665 : vector<1x1x128xf32> to vector<1x128xf32>
    %667 = vector.broadcast %666 : vector<1x128xf32> to vector<8x128xf32>
    %668 = arith.addf %664, %667 : vector<8x128xf32>
    %669 = arith.mulf %661, %668 : vector<8x128xf32>
    %670 = arith.addf %663, %669 : vector<8x128xf32>
    %671 = math.tanh %670 : vector<8x128xf32>
    %cst_309 = arith.constant 1.000000e+00 : f32
    %672 = vector.broadcast %cst_309 : f32 to vector<8x128xf32>
    %673 = arith.subf %672, %662 : vector<8x128xf32>
    %674 = arith.mulf %673, %671 : vector<8x128xf32>
    %675 = arith.mulf %662, %493 : vector<8x128xf32>
    %676 = arith.addf %674, %675 : vector<8x128xf32>
    %c48 = arith.constant 48 : index
    %c0_310 = arith.constant 0 : index
    %677 = vector.load %arg10[%c48, %c0_310] : memref<64x384xf32, #tpu.memory_space<vmem>>, vector<8x384xf32>
    %678 = arith.truncf %524 : vector<8x128xf32> to vector<8x128xbf16>
    %c0_311 = arith.constant 0 : index
    %c0_312 = arith.constant 0 : index
    %c0_313 = arith.constant 0 : index
    %679 = vector.load %arg4[%c0_311, %c0_312, %c0_313] : memref<5x128x384xbf16, #tpu.memory_space<vmem>>, vector<1x128x384xbf16>
    %680 = vector.shape_cast %679 : vector<1x128x384xbf16> to vector<128x384xbf16>
    %cst_314 = arith.constant dense<0.000000e+00> : vector<8x384xf32>
    %681 = tpu.matmul %678, %680, %cst_314 {dimension_numbers = #tpu.dot_dimension_numbers<[1], [0], [0], [1], [0, 0, 1, 1], [], []>} : vector<8x128xbf16>, vector<128x384xbf16>, vector<8x384xf32> -> vector<8x384xf32>
    %682 = vector.extract_strided_slice %677 {offsets = [0, 0], sizes = [8, 256], strides = [1, 1]} : vector<8x384xf32> to vector<8x256xf32>
    %683 = vector.extract_strided_slice %681 {offsets = [0, 0], sizes = [8, 256], strides = [1, 1]} : vector<8x384xf32> to vector<8x256xf32>
    %684 = arith.addf %682, %683 : vector<8x256xf32>
    %cst_315 = arith.constant 5.000000e-01 : f32
    %685 = vector.broadcast %cst_315 : f32 to vector<8x256xf32>
    %686 = arith.mulf %685, %684 : vector<8x256xf32>
    %687 = math.tanh %686 : vector<8x256xf32>
    %cst_316 = arith.constant 1.000000e+00 : f32
    %688 = vector.broadcast %cst_316 : f32 to vector<8x256xf32>
    %689 = arith.addf %687, %688 : vector<8x256xf32>
    %cst_317 = arith.constant 5.000000e-01 : f32
    %690 = vector.broadcast %cst_317 : f32 to vector<8x256xf32>
    %691 = arith.mulf %690, %689 : vector<8x256xf32>
    %692 = vector.extract_strided_slice %691 {offsets = [0, 0], sizes = [8, 128], strides = [1, 1]} : vector<8x256xf32> to vector<8x128xf32>
    %693 = vector.extract_strided_slice %691 {offsets = [0, 128], sizes = [8, 128], strides = [1, 1]} : vector<8x256xf32> to vector<8x128xf32>
    %694 = vector.extract_strided_slice %677 {offsets = [0, 256], sizes = [8, 128], strides = [1, 1]} : vector<8x384xf32> to vector<8x128xf32>
    %695 = vector.extract_strided_slice %681 {offsets = [0, 256], sizes = [8, 128], strides = [1, 1]} : vector<8x384xf32> to vector<8x128xf32>
    %c0_318 = arith.constant 0 : index
    %c0_319 = arith.constant 0 : index
    %c0_320 = arith.constant 0 : index
    %696 = vector.load %arg6[%c0_318, %c0_319, %c0_320] : memref<5x1x128xf32, #tpu.memory_space<vmem>>, vector<1x1x128xf32>
    %697 = vector.shape_cast %696 : vector<1x1x128xf32> to vector<1x128xf32>
    %698 = vector.broadcast %697 : vector<1x128xf32> to vector<8x128xf32>
    %699 = arith.addf %695, %698 : vector<8x128xf32>
    %700 = arith.mulf %692, %699 : vector<8x128xf32>
    %701 = arith.addf %694, %700 : vector<8x128xf32>
    %702 = math.tanh %701 : vector<8x128xf32>
    %cst_321 = arith.constant 1.000000e+00 : f32
    %703 = vector.broadcast %cst_321 : f32 to vector<8x128xf32>
    %704 = arith.subf %703, %693 : vector<8x128xf32>
    %705 = arith.mulf %704, %702 : vector<8x128xf32>
    %706 = arith.mulf %693, %524 : vector<8x128xf32>
    %707 = arith.addf %705, %706 : vector<8x128xf32>
    %708 = arith.truncf %524 : vector<8x128xf32> to vector<8x128xbf16>
    %c0_322 = arith.constant 0 : index
    %c0_323 = arith.constant 0 : index
    %c0_324 = arith.constant 0 : index
    %709 = vector.load %arg3[%c0_322, %c0_323, %c0_324] : memref<4x128x384xbf16, #tpu.memory_space<vmem>>, vector<1x128x384xbf16>
    %710 = vector.shape_cast %709 : vector<1x128x384xbf16> to vector<128x384xbf16>
    %cst_325 = arith.constant dense<0.000000e+00> : vector<8x384xf32>
    %711 = tpu.matmul %708, %710, %cst_325 {dimension_numbers = #tpu.dot_dimension_numbers<[1], [0], [0], [1], [0, 0, 1, 1], [], []>} : vector<8x128xbf16>, vector<128x384xbf16>, vector<8x384xf32> -> vector<8x384xf32>
    %c1_326 = arith.constant 1 : index
    %c0_327 = arith.constant 0 : index
    %c0_328 = arith.constant 0 : index
    %712 = vector.load %arg5[%c1_326, %c0_327, %c0_328] : memref<5x1x384xf32, #tpu.memory_space<vmem>>, vector<1x1x384xf32>
    %713 = vector.shape_cast %712 : vector<1x1x384xf32> to vector<1x384xf32>
    %714 = vector.broadcast %713 : vector<1x384xf32> to vector<8x384xf32>
    %715 = arith.addf %711, %714 : vector<8x384xf32>
    %716 = arith.truncf %562 : vector<8x128xf32> to vector<8x128xbf16>
    %c1_329 = arith.constant 1 : index
    %c0_330 = arith.constant 0 : index
    %c0_331 = arith.constant 0 : index
    %717 = vector.load %arg4[%c1_329, %c0_330, %c0_331] : memref<5x128x384xbf16, #tpu.memory_space<vmem>>, vector<1x128x384xbf16>
    %718 = vector.shape_cast %717 : vector<1x128x384xbf16> to vector<128x384xbf16>
    %cst_332 = arith.constant dense<0.000000e+00> : vector<8x384xf32>
    %719 = tpu.matmul %716, %718, %cst_332 {dimension_numbers = #tpu.dot_dimension_numbers<[1], [0], [0], [1], [0, 0, 1, 1], [], []>} : vector<8x128xbf16>, vector<128x384xbf16>, vector<8x384xf32> -> vector<8x384xf32>
    %720 = vector.extract_strided_slice %715 {offsets = [0, 0], sizes = [8, 256], strides = [1, 1]} : vector<8x384xf32> to vector<8x256xf32>
    %721 = vector.extract_strided_slice %719 {offsets = [0, 0], sizes = [8, 256], strides = [1, 1]} : vector<8x384xf32> to vector<8x256xf32>
    %722 = arith.addf %720, %721 : vector<8x256xf32>
    %cst_333 = arith.constant 5.000000e-01 : f32
    %723 = vector.broadcast %cst_333 : f32 to vector<8x256xf32>
    %724 = arith.mulf %723, %722 : vector<8x256xf32>
    %725 = math.tanh %724 : vector<8x256xf32>
    %cst_334 = arith.constant 1.000000e+00 : f32
    %726 = vector.broadcast %cst_334 : f32 to vector<8x256xf32>
    %727 = arith.addf %725, %726 : vector<8x256xf32>
    %cst_335 = arith.constant 5.000000e-01 : f32
    %728 = vector.broadcast %cst_335 : f32 to vector<8x256xf32>
    %729 = arith.mulf %728, %727 : vector<8x256xf32>
    %730 = vector.extract_strided_slice %729 {offsets = [0, 0], sizes = [8, 128], strides = [1, 1]} : vector<8x256xf32> to vector<8x128xf32>
    %731 = vector.extract_strided_slice %729 {offsets = [0, 128], sizes = [8, 128], strides = [1, 1]} : vector<8x256xf32> to vector<8x128xf32>
    %732 = vector.extract_strided_slice %715 {offsets = [0, 256], sizes = [8, 128], strides = [1, 1]} : vector<8x384xf32> to vector<8x128xf32>
    %733 = vector.extract_strided_slice %719 {offsets = [0, 256], sizes = [8, 128], strides = [1, 1]} : vector<8x384xf32> to vector<8x128xf32>
    %c1_336 = arith.constant 1 : index
    %c0_337 = arith.constant 0 : index
    %c0_338 = arith.constant 0 : index
    %734 = vector.load %arg6[%c1_336, %c0_337, %c0_338] : memref<5x1x128xf32, #tpu.memory_space<vmem>>, vector<1x1x128xf32>
    %735 = vector.shape_cast %734 : vector<1x1x128xf32> to vector<1x128xf32>
    %736 = vector.broadcast %735 : vector<1x128xf32> to vector<8x128xf32>
    %737 = arith.addf %733, %736 : vector<8x128xf32>
    %738 = arith.mulf %730, %737 : vector<8x128xf32>
    %739 = arith.addf %732, %738 : vector<8x128xf32>
    %740 = math.tanh %739 : vector<8x128xf32>
    %cst_339 = arith.constant 1.000000e+00 : f32
    %741 = vector.broadcast %cst_339 : f32 to vector<8x128xf32>
    %742 = arith.subf %741, %731 : vector<8x128xf32>
    %743 = arith.mulf %742, %740 : vector<8x128xf32>
    %744 = arith.mulf %731, %562 : vector<8x128xf32>
    %745 = arith.addf %743, %744 : vector<8x128xf32>
    %746 = arith.truncf %562 : vector<8x128xf32> to vector<8x128xbf16>
    %c1_340 = arith.constant 1 : index
    %c0_341 = arith.constant 0 : index
    %c0_342 = arith.constant 0 : index
    %747 = vector.load %arg3[%c1_340, %c0_341, %c0_342] : memref<4x128x384xbf16, #tpu.memory_space<vmem>>, vector<1x128x384xbf16>
    %748 = vector.shape_cast %747 : vector<1x128x384xbf16> to vector<128x384xbf16>
    %cst_343 = arith.constant dense<0.000000e+00> : vector<8x384xf32>
    %749 = tpu.matmul %746, %748, %cst_343 {dimension_numbers = #tpu.dot_dimension_numbers<[1], [0], [0], [1], [0, 0, 1, 1], [], []>} : vector<8x128xbf16>, vector<128x384xbf16>, vector<8x384xf32> -> vector<8x384xf32>
    %c2_344 = arith.constant 2 : index
    %c0_345 = arith.constant 0 : index
    %c0_346 = arith.constant 0 : index
    %750 = vector.load %arg5[%c2_344, %c0_345, %c0_346] : memref<5x1x384xf32, #tpu.memory_space<vmem>>, vector<1x1x384xf32>
    %751 = vector.shape_cast %750 : vector<1x1x384xf32> to vector<1x384xf32>
    %752 = vector.broadcast %751 : vector<1x384xf32> to vector<8x384xf32>
    %753 = arith.addf %749, %752 : vector<8x384xf32>
    %754 = arith.truncf %600 : vector<8x128xf32> to vector<8x128xbf16>
    %c2_347 = arith.constant 2 : index
    %c0_348 = arith.constant 0 : index
    %c0_349 = arith.constant 0 : index
    %755 = vector.load %arg4[%c2_347, %c0_348, %c0_349] : memref<5x128x384xbf16, #tpu.memory_space<vmem>>, vector<1x128x384xbf16>
    %756 = vector.shape_cast %755 : vector<1x128x384xbf16> to vector<128x384xbf16>
    %cst_350 = arith.constant dense<0.000000e+00> : vector<8x384xf32>
    %757 = tpu.matmul %754, %756, %cst_350 {dimension_numbers = #tpu.dot_dimension_numbers<[1], [0], [0], [1], [0, 0, 1, 1], [], []>} : vector<8x128xbf16>, vector<128x384xbf16>, vector<8x384xf32> -> vector<8x384xf32>
    %758 = vector.extract_strided_slice %753 {offsets = [0, 0], sizes = [8, 256], strides = [1, 1]} : vector<8x384xf32> to vector<8x256xf32>
    %759 = vector.extract_strided_slice %757 {offsets = [0, 0], sizes = [8, 256], strides = [1, 1]} : vector<8x384xf32> to vector<8x256xf32>
    %760 = arith.addf %758, %759 : vector<8x256xf32>
    %cst_351 = arith.constant 5.000000e-01 : f32
    %761 = vector.broadcast %cst_351 : f32 to vector<8x256xf32>
    %762 = arith.mulf %761, %760 : vector<8x256xf32>
    %763 = math.tanh %762 : vector<8x256xf32>
    %cst_352 = arith.constant 1.000000e+00 : f32
    %764 = vector.broadcast %cst_352 : f32 to vector<8x256xf32>
    %765 = arith.addf %763, %764 : vector<8x256xf32>
    %cst_353 = arith.constant 5.000000e-01 : f32
    %766 = vector.broadcast %cst_353 : f32 to vector<8x256xf32>
    %767 = arith.mulf %766, %765 : vector<8x256xf32>
    %768 = vector.extract_strided_slice %767 {offsets = [0, 0], sizes = [8, 128], strides = [1, 1]} : vector<8x256xf32> to vector<8x128xf32>
    %769 = vector.extract_strided_slice %767 {offsets = [0, 128], sizes = [8, 128], strides = [1, 1]} : vector<8x256xf32> to vector<8x128xf32>
    %770 = vector.extract_strided_slice %753 {offsets = [0, 256], sizes = [8, 128], strides = [1, 1]} : vector<8x384xf32> to vector<8x128xf32>
    %771 = vector.extract_strided_slice %757 {offsets = [0, 256], sizes = [8, 128], strides = [1, 1]} : vector<8x384xf32> to vector<8x128xf32>
    %c2_354 = arith.constant 2 : index
    %c0_355 = arith.constant 0 : index
    %c0_356 = arith.constant 0 : index
    %772 = vector.load %arg6[%c2_354, %c0_355, %c0_356] : memref<5x1x128xf32, #tpu.memory_space<vmem>>, vector<1x1x128xf32>
    %773 = vector.shape_cast %772 : vector<1x1x128xf32> to vector<1x128xf32>
    %774 = vector.broadcast %773 : vector<1x128xf32> to vector<8x128xf32>
    %775 = arith.addf %771, %774 : vector<8x128xf32>
    %776 = arith.mulf %768, %775 : vector<8x128xf32>
    %777 = arith.addf %770, %776 : vector<8x128xf32>
    %778 = math.tanh %777 : vector<8x128xf32>
    %cst_357 = arith.constant 1.000000e+00 : f32
    %779 = vector.broadcast %cst_357 : f32 to vector<8x128xf32>
    %780 = arith.subf %779, %769 : vector<8x128xf32>
    %781 = arith.mulf %780, %778 : vector<8x128xf32>
    %782 = arith.mulf %769, %600 : vector<8x128xf32>
    %783 = arith.addf %781, %782 : vector<8x128xf32>
    %784 = arith.truncf %600 : vector<8x128xf32> to vector<8x128xbf16>
    %c2_358 = arith.constant 2 : index
    %c0_359 = arith.constant 0 : index
    %c0_360 = arith.constant 0 : index
    %785 = vector.load %arg3[%c2_358, %c0_359, %c0_360] : memref<4x128x384xbf16, #tpu.memory_space<vmem>>, vector<1x128x384xbf16>
    %786 = vector.shape_cast %785 : vector<1x128x384xbf16> to vector<128x384xbf16>
    %cst_361 = arith.constant dense<0.000000e+00> : vector<8x384xf32>
    %787 = tpu.matmul %784, %786, %cst_361 {dimension_numbers = #tpu.dot_dimension_numbers<[1], [0], [0], [1], [0, 0, 1, 1], [], []>} : vector<8x128xbf16>, vector<128x384xbf16>, vector<8x384xf32> -> vector<8x384xf32>
    %c3_362 = arith.constant 3 : index
    %c0_363 = arith.constant 0 : index
    %c0_364 = arith.constant 0 : index
    %788 = vector.load %arg5[%c3_362, %c0_363, %c0_364] : memref<5x1x384xf32, #tpu.memory_space<vmem>>, vector<1x1x384xf32>
    %789 = vector.shape_cast %788 : vector<1x1x384xf32> to vector<1x384xf32>
    %790 = vector.broadcast %789 : vector<1x384xf32> to vector<8x384xf32>
    %791 = arith.addf %787, %790 : vector<8x384xf32>
    %792 = arith.truncf %638 : vector<8x128xf32> to vector<8x128xbf16>
    %c3_365 = arith.constant 3 : index
    %c0_366 = arith.constant 0 : index
    %c0_367 = arith.constant 0 : index
    %793 = vector.load %arg4[%c3_365, %c0_366, %c0_367] : memref<5x128x384xbf16, #tpu.memory_space<vmem>>, vector<1x128x384xbf16>
    %794 = vector.shape_cast %793 : vector<1x128x384xbf16> to vector<128x384xbf16>
    %cst_368 = arith.constant dense<0.000000e+00> : vector<8x384xf32>
    %795 = tpu.matmul %792, %794, %cst_368 {dimension_numbers = #tpu.dot_dimension_numbers<[1], [0], [0], [1], [0, 0, 1, 1], [], []>} : vector<8x128xbf16>, vector<128x384xbf16>, vector<8x384xf32> -> vector<8x384xf32>
    %796 = vector.extract_strided_slice %791 {offsets = [0, 0], sizes = [8, 256], strides = [1, 1]} : vector<8x384xf32> to vector<8x256xf32>
    %797 = vector.extract_strided_slice %795 {offsets = [0, 0], sizes = [8, 256], strides = [1, 1]} : vector<8x384xf32> to vector<8x256xf32>
    %798 = arith.addf %796, %797 : vector<8x256xf32>
    %cst_369 = arith.constant 5.000000e-01 : f32
    %799 = vector.broadcast %cst_369 : f32 to vector<8x256xf32>
    %800 = arith.mulf %799, %798 : vector<8x256xf32>
    %801 = math.tanh %800 : vector<8x256xf32>
    %cst_370 = arith.constant 1.000000e+00 : f32
    %802 = vector.broadcast %cst_370 : f32 to vector<8x256xf32>
    %803 = arith.addf %801, %802 : vector<8x256xf32>
    %cst_371 = arith.constant 5.000000e-01 : f32
    %804 = vector.broadcast %cst_371 : f32 to vector<8x256xf32>
    %805 = arith.mulf %804, %803 : vector<8x256xf32>
    %806 = vector.extract_strided_slice %805 {offsets = [0, 0], sizes = [8, 128], strides = [1, 1]} : vector<8x256xf32> to vector<8x128xf32>
    %807 = vector.extract_strided_slice %805 {offsets = [0, 128], sizes = [8, 128], strides = [1, 1]} : vector<8x256xf32> to vector<8x128xf32>
    %808 = vector.extract_strided_slice %791 {offsets = [0, 256], sizes = [8, 128], strides = [1, 1]} : vector<8x384xf32> to vector<8x128xf32>
    %809 = vector.extract_strided_slice %795 {offsets = [0, 256], sizes = [8, 128], strides = [1, 1]} : vector<8x384xf32> to vector<8x128xf32>
    %c3_372 = arith.constant 3 : index
    %c0_373 = arith.constant 0 : index
    %c0_374 = arith.constant 0 : index
    %810 = vector.load %arg6[%c3_372, %c0_373, %c0_374] : memref<5x1x128xf32, #tpu.memory_space<vmem>>, vector<1x1x128xf32>
    %811 = vector.shape_cast %810 : vector<1x1x128xf32> to vector<1x128xf32>
    %812 = vector.broadcast %811 : vector<1x128xf32> to vector<8x128xf32>
    %813 = arith.addf %809, %812 : vector<8x128xf32>
    %814 = arith.mulf %806, %813 : vector<8x128xf32>
    %815 = arith.addf %808, %814 : vector<8x128xf32>
    %816 = math.tanh %815 : vector<8x128xf32>
    %cst_375 = arith.constant 1.000000e+00 : f32
    %817 = vector.broadcast %cst_375 : f32 to vector<8x128xf32>
    %818 = arith.subf %817, %807 : vector<8x128xf32>
    %819 = arith.mulf %818, %816 : vector<8x128xf32>
    %820 = arith.mulf %807, %638 : vector<8x128xf32>
    %821 = arith.addf %819, %820 : vector<8x128xf32>
    %822 = arith.truncf %638 : vector<8x128xf32> to vector<8x128xbf16>
    %c3_376 = arith.constant 3 : index
    %c0_377 = arith.constant 0 : index
    %c0_378 = arith.constant 0 : index
    %823 = vector.load %arg3[%c3_376, %c0_377, %c0_378] : memref<4x128x384xbf16, #tpu.memory_space<vmem>>, vector<1x128x384xbf16>
    %824 = vector.shape_cast %823 : vector<1x128x384xbf16> to vector<128x384xbf16>
    %cst_379 = arith.constant dense<0.000000e+00> : vector<8x384xf32>
    %825 = tpu.matmul %822, %824, %cst_379 {dimension_numbers = #tpu.dot_dimension_numbers<[1], [0], [0], [1], [0, 0, 1, 1], [], []>} : vector<8x128xbf16>, vector<128x384xbf16>, vector<8x384xf32> -> vector<8x384xf32>
    %c4_380 = arith.constant 4 : index
    %c0_381 = arith.constant 0 : index
    %c0_382 = arith.constant 0 : index
    %826 = vector.load %arg5[%c4_380, %c0_381, %c0_382] : memref<5x1x384xf32, #tpu.memory_space<vmem>>, vector<1x1x384xf32>
    %827 = vector.shape_cast %826 : vector<1x1x384xf32> to vector<1x384xf32>
    %828 = vector.broadcast %827 : vector<1x384xf32> to vector<8x384xf32>
    %829 = arith.addf %825, %828 : vector<8x384xf32>
    %830 = arith.truncf %676 : vector<8x128xf32> to vector<8x128xbf16>
    %c4_383 = arith.constant 4 : index
    %c0_384 = arith.constant 0 : index
    %c0_385 = arith.constant 0 : index
    %831 = vector.load %arg4[%c4_383, %c0_384, %c0_385] : memref<5x128x384xbf16, #tpu.memory_space<vmem>>, vector<1x128x384xbf16>
    %832 = vector.shape_cast %831 : vector<1x128x384xbf16> to vector<128x384xbf16>
    %cst_386 = arith.constant dense<0.000000e+00> : vector<8x384xf32>
    %833 = tpu.matmul %830, %832, %cst_386 {dimension_numbers = #tpu.dot_dimension_numbers<[1], [0], [0], [1], [0, 0, 1, 1], [], []>} : vector<8x128xbf16>, vector<128x384xbf16>, vector<8x384xf32> -> vector<8x384xf32>
    %834 = vector.extract_strided_slice %829 {offsets = [0, 0], sizes = [8, 256], strides = [1, 1]} : vector<8x384xf32> to vector<8x256xf32>
    %835 = vector.extract_strided_slice %833 {offsets = [0, 0], sizes = [8, 256], strides = [1, 1]} : vector<8x384xf32> to vector<8x256xf32>
    %836 = arith.addf %834, %835 : vector<8x256xf32>
    %cst_387 = arith.constant 5.000000e-01 : f32
    %837 = vector.broadcast %cst_387 : f32 to vector<8x256xf32>
    %838 = arith.mulf %837, %836 : vector<8x256xf32>
    %839 = math.tanh %838 : vector<8x256xf32>
    %cst_388 = arith.constant 1.000000e+00 : f32
    %840 = vector.broadcast %cst_388 : f32 to vector<8x256xf32>
    %841 = arith.addf %839, %840 : vector<8x256xf32>
    %cst_389 = arith.constant 5.000000e-01 : f32
    %842 = vector.broadcast %cst_389 : f32 to vector<8x256xf32>
    %843 = arith.mulf %842, %841 : vector<8x256xf32>
    %844 = vector.extract_strided_slice %843 {offsets = [0, 0], sizes = [8, 128], strides = [1, 1]} : vector<8x256xf32> to vector<8x128xf32>
    %845 = vector.extract_strided_slice %843 {offsets = [0, 128], sizes = [8, 128], strides = [1, 1]} : vector<8x256xf32> to vector<8x128xf32>
    %846 = vector.extract_strided_slice %829 {offsets = [0, 256], sizes = [8, 128], strides = [1, 1]} : vector<8x384xf32> to vector<8x128xf32>
    %847 = vector.extract_strided_slice %833 {offsets = [0, 256], sizes = [8, 128], strides = [1, 1]} : vector<8x384xf32> to vector<8x128xf32>
    %c4_390 = arith.constant 4 : index
    %c0_391 = arith.constant 0 : index
    %c0_392 = arith.constant 0 : index
    %848 = vector.load %arg6[%c4_390, %c0_391, %c0_392] : memref<5x1x128xf32, #tpu.memory_space<vmem>>, vector<1x1x128xf32>
    %849 = vector.shape_cast %848 : vector<1x1x128xf32> to vector<1x128xf32>
    %850 = vector.broadcast %849 : vector<1x128xf32> to vector<8x128xf32>
    %851 = arith.addf %847, %850 : vector<8x128xf32>
    %852 = arith.mulf %844, %851 : vector<8x128xf32>
    %853 = arith.addf %846, %852 : vector<8x128xf32>
    %854 = math.tanh %853 : vector<8x128xf32>
    %cst_393 = arith.constant 1.000000e+00 : f32
    %855 = vector.broadcast %cst_393 : f32 to vector<8x128xf32>
    %856 = arith.subf %855, %845 : vector<8x128xf32>
    %857 = arith.mulf %856, %854 : vector<8x128xf32>
    %858 = arith.mulf %845, %676 : vector<8x128xf32>
    %859 = arith.addf %857, %858 : vector<8x128xf32>
    %c56 = arith.constant 56 : index
    %c0_394 = arith.constant 0 : index
    %860 = vector.load %arg10[%c56, %c0_394] : memref<64x384xf32, #tpu.memory_space<vmem>>, vector<8x384xf32>
    %861 = arith.truncf %707 : vector<8x128xf32> to vector<8x128xbf16>
    %c0_395 = arith.constant 0 : index
    %c0_396 = arith.constant 0 : index
    %c0_397 = arith.constant 0 : index
    %862 = vector.load %arg4[%c0_395, %c0_396, %c0_397] : memref<5x128x384xbf16, #tpu.memory_space<vmem>>, vector<1x128x384xbf16>
    %863 = vector.shape_cast %862 : vector<1x128x384xbf16> to vector<128x384xbf16>
    %cst_398 = arith.constant dense<0.000000e+00> : vector<8x384xf32>
    %864 = tpu.matmul %861, %863, %cst_398 {dimension_numbers = #tpu.dot_dimension_numbers<[1], [0], [0], [1], [0, 0, 1, 1], [], []>} : vector<8x128xbf16>, vector<128x384xbf16>, vector<8x384xf32> -> vector<8x384xf32>
    %865 = vector.extract_strided_slice %860 {offsets = [0, 0], sizes = [8, 256], strides = [1, 1]} : vector<8x384xf32> to vector<8x256xf32>
    %866 = vector.extract_strided_slice %864 {offsets = [0, 0], sizes = [8, 256], strides = [1, 1]} : vector<8x384xf32> to vector<8x256xf32>
    %867 = arith.addf %865, %866 : vector<8x256xf32>
    %cst_399 = arith.constant 5.000000e-01 : f32
    %868 = vector.broadcast %cst_399 : f32 to vector<8x256xf32>
    %869 = arith.mulf %868, %867 : vector<8x256xf32>
    %870 = math.tanh %869 : vector<8x256xf32>
    %cst_400 = arith.constant 1.000000e+00 : f32
    %871 = vector.broadcast %cst_400 : f32 to vector<8x256xf32>
    %872 = arith.addf %870, %871 : vector<8x256xf32>
    %cst_401 = arith.constant 5.000000e-01 : f32
    %873 = vector.broadcast %cst_401 : f32 to vector<8x256xf32>
    %874 = arith.mulf %873, %872 : vector<8x256xf32>
    %875 = vector.extract_strided_slice %874 {offsets = [0, 0], sizes = [8, 128], strides = [1, 1]} : vector<8x256xf32> to vector<8x128xf32>
    %876 = vector.extract_strided_slice %874 {offsets = [0, 128], sizes = [8, 128], strides = [1, 1]} : vector<8x256xf32> to vector<8x128xf32>
    %877 = vector.extract_strided_slice %860 {offsets = [0, 256], sizes = [8, 128], strides = [1, 1]} : vector<8x384xf32> to vector<8x128xf32>
    %878 = vector.extract_strided_slice %864 {offsets = [0, 256], sizes = [8, 128], strides = [1, 1]} : vector<8x384xf32> to vector<8x128xf32>
    %c0_402 = arith.constant 0 : index
    %c0_403 = arith.constant 0 : index
    %c0_404 = arith.constant 0 : index
    %879 = vector.load %arg6[%c0_402, %c0_403, %c0_404] : memref<5x1x128xf32, #tpu.memory_space<vmem>>, vector<1x1x128xf32>
    %880 = vector.shape_cast %879 : vector<1x1x128xf32> to vector<1x128xf32>
    %881 = vector.broadcast %880 : vector<1x128xf32> to vector<8x128xf32>
    %882 = arith.addf %878, %881 : vector<8x128xf32>
    %883 = arith.mulf %875, %882 : vector<8x128xf32>
    %884 = arith.addf %877, %883 : vector<8x128xf32>
    %885 = math.tanh %884 : vector<8x128xf32>
    %cst_405 = arith.constant 1.000000e+00 : f32
    %886 = vector.broadcast %cst_405 : f32 to vector<8x128xf32>
    %887 = arith.subf %886, %876 : vector<8x128xf32>
    %888 = arith.mulf %887, %885 : vector<8x128xf32>
    %889 = arith.mulf %876, %707 : vector<8x128xf32>
    %890 = arith.addf %888, %889 : vector<8x128xf32>
    %891 = arith.truncf %707 : vector<8x128xf32> to vector<8x128xbf16>
    %c0_406 = arith.constant 0 : index
    %c0_407 = arith.constant 0 : index
    %c0_408 = arith.constant 0 : index
    %892 = vector.load %arg3[%c0_406, %c0_407, %c0_408] : memref<4x128x384xbf16, #tpu.memory_space<vmem>>, vector<1x128x384xbf16>
    %893 = vector.shape_cast %892 : vector<1x128x384xbf16> to vector<128x384xbf16>
    %cst_409 = arith.constant dense<0.000000e+00> : vector<8x384xf32>
    %894 = tpu.matmul %891, %893, %cst_409 {dimension_numbers = #tpu.dot_dimension_numbers<[1], [0], [0], [1], [0, 0, 1, 1], [], []>} : vector<8x128xbf16>, vector<128x384xbf16>, vector<8x384xf32> -> vector<8x384xf32>
    %c1_410 = arith.constant 1 : index
    %c0_411 = arith.constant 0 : index
    %c0_412 = arith.constant 0 : index
    %895 = vector.load %arg5[%c1_410, %c0_411, %c0_412] : memref<5x1x384xf32, #tpu.memory_space<vmem>>, vector<1x1x384xf32>
    %896 = vector.shape_cast %895 : vector<1x1x384xf32> to vector<1x384xf32>
    %897 = vector.broadcast %896 : vector<1x384xf32> to vector<8x384xf32>
    %898 = arith.addf %894, %897 : vector<8x384xf32>
    %899 = arith.truncf %745 : vector<8x128xf32> to vector<8x128xbf16>
    %c1_413 = arith.constant 1 : index
    %c0_414 = arith.constant 0 : index
    %c0_415 = arith.constant 0 : index
    %900 = vector.load %arg4[%c1_413, %c0_414, %c0_415] : memref<5x128x384xbf16, #tpu.memory_space<vmem>>, vector<1x128x384xbf16>
    %901 = vector.shape_cast %900 : vector<1x128x384xbf16> to vector<128x384xbf16>
    %cst_416 = arith.constant dense<0.000000e+00> : vector<8x384xf32>
    %902 = tpu.matmul %899, %901, %cst_416 {dimension_numbers = #tpu.dot_dimension_numbers<[1], [0], [0], [1], [0, 0, 1, 1], [], []>} : vector<8x128xbf16>, vector<128x384xbf16>, vector<8x384xf32> -> vector<8x384xf32>
    %903 = vector.extract_strided_slice %898 {offsets = [0, 0], sizes = [8, 256], strides = [1, 1]} : vector<8x384xf32> to vector<8x256xf32>
    %904 = vector.extract_strided_slice %902 {offsets = [0, 0], sizes = [8, 256], strides = [1, 1]} : vector<8x384xf32> to vector<8x256xf32>
    %905 = arith.addf %903, %904 : vector<8x256xf32>
    %cst_417 = arith.constant 5.000000e-01 : f32
    %906 = vector.broadcast %cst_417 : f32 to vector<8x256xf32>
    %907 = arith.mulf %906, %905 : vector<8x256xf32>
    %908 = math.tanh %907 : vector<8x256xf32>
    %cst_418 = arith.constant 1.000000e+00 : f32
    %909 = vector.broadcast %cst_418 : f32 to vector<8x256xf32>
    %910 = arith.addf %908, %909 : vector<8x256xf32>
    %cst_419 = arith.constant 5.000000e-01 : f32
    %911 = vector.broadcast %cst_419 : f32 to vector<8x256xf32>
    %912 = arith.mulf %911, %910 : vector<8x256xf32>
    %913 = vector.extract_strided_slice %912 {offsets = [0, 0], sizes = [8, 128], strides = [1, 1]} : vector<8x256xf32> to vector<8x128xf32>
    %914 = vector.extract_strided_slice %912 {offsets = [0, 128], sizes = [8, 128], strides = [1, 1]} : vector<8x256xf32> to vector<8x128xf32>
    %915 = vector.extract_strided_slice %898 {offsets = [0, 256], sizes = [8, 128], strides = [1, 1]} : vector<8x384xf32> to vector<8x128xf32>
    %916 = vector.extract_strided_slice %902 {offsets = [0, 256], sizes = [8, 128], strides = [1, 1]} : vector<8x384xf32> to vector<8x128xf32>
    %c1_420 = arith.constant 1 : index
    %c0_421 = arith.constant 0 : index
    %c0_422 = arith.constant 0 : index
    %917 = vector.load %arg6[%c1_420, %c0_421, %c0_422] : memref<5x1x128xf32, #tpu.memory_space<vmem>>, vector<1x1x128xf32>
    %918 = vector.shape_cast %917 : vector<1x1x128xf32> to vector<1x128xf32>
    %919 = vector.broadcast %918 : vector<1x128xf32> to vector<8x128xf32>
    %920 = arith.addf %916, %919 : vector<8x128xf32>
    %921 = arith.mulf %913, %920 : vector<8x128xf32>
    %922 = arith.addf %915, %921 : vector<8x128xf32>
    %923 = math.tanh %922 : vector<8x128xf32>
    %cst_423 = arith.constant 1.000000e+00 : f32
    %924 = vector.broadcast %cst_423 : f32 to vector<8x128xf32>
    %925 = arith.subf %924, %914 : vector<8x128xf32>
    %926 = arith.mulf %925, %923 : vector<8x128xf32>
    %927 = arith.mulf %914, %745 : vector<8x128xf32>
    %928 = arith.addf %926, %927 : vector<8x128xf32>
    %929 = arith.truncf %745 : vector<8x128xf32> to vector<8x128xbf16>
    %c1_424 = arith.constant 1 : index
    %c0_425 = arith.constant 0 : index
    %c0_426 = arith.constant 0 : index
    %930 = vector.load %arg3[%c1_424, %c0_425, %c0_426] : memref<4x128x384xbf16, #tpu.memory_space<vmem>>, vector<1x128x384xbf16>
    %931 = vector.shape_cast %930 : vector<1x128x384xbf16> to vector<128x384xbf16>
    %cst_427 = arith.constant dense<0.000000e+00> : vector<8x384xf32>
    %932 = tpu.matmul %929, %931, %cst_427 {dimension_numbers = #tpu.dot_dimension_numbers<[1], [0], [0], [1], [0, 0, 1, 1], [], []>} : vector<8x128xbf16>, vector<128x384xbf16>, vector<8x384xf32> -> vector<8x384xf32>
    %c2_428 = arith.constant 2 : index
    %c0_429 = arith.constant 0 : index
    %c0_430 = arith.constant 0 : index
    %933 = vector.load %arg5[%c2_428, %c0_429, %c0_430] : memref<5x1x384xf32, #tpu.memory_space<vmem>>, vector<1x1x384xf32>
    %934 = vector.shape_cast %933 : vector<1x1x384xf32> to vector<1x384xf32>
    %935 = vector.broadcast %934 : vector<1x384xf32> to vector<8x384xf32>
    %936 = arith.addf %932, %935 : vector<8x384xf32>
    %937 = arith.truncf %783 : vector<8x128xf32> to vector<8x128xbf16>
    %c2_431 = arith.constant 2 : index
    %c0_432 = arith.constant 0 : index
    %c0_433 = arith.constant 0 : index
    %938 = vector.load %arg4[%c2_431, %c0_432, %c0_433] : memref<5x128x384xbf16, #tpu.memory_space<vmem>>, vector<1x128x384xbf16>
    %939 = vector.shape_cast %938 : vector<1x128x384xbf16> to vector<128x384xbf16>
    %cst_434 = arith.constant dense<0.000000e+00> : vector<8x384xf32>
    %940 = tpu.matmul %937, %939, %cst_434 {dimension_numbers = #tpu.dot_dimension_numbers<[1], [0], [0], [1], [0, 0, 1, 1], [], []>} : vector<8x128xbf16>, vector<128x384xbf16>, vector<8x384xf32> -> vector<8x384xf32>
    %941 = vector.extract_strided_slice %936 {offsets = [0, 0], sizes = [8, 256], strides = [1, 1]} : vector<8x384xf32> to vector<8x256xf32>
    %942 = vector.extract_strided_slice %940 {offsets = [0, 0], sizes = [8, 256], strides = [1, 1]} : vector<8x384xf32> to vector<8x256xf32>
    %943 = arith.addf %941, %942 : vector<8x256xf32>
    %cst_435 = arith.constant 5.000000e-01 : f32
    %944 = vector.broadcast %cst_435 : f32 to vector<8x256xf32>
    %945 = arith.mulf %944, %943 : vector<8x256xf32>
    %946 = math.tanh %945 : vector<8x256xf32>
    %cst_436 = arith.constant 1.000000e+00 : f32
    %947 = vector.broadcast %cst_436 : f32 to vector<8x256xf32>
    %948 = arith.addf %946, %947 : vector<8x256xf32>
    %cst_437 = arith.constant 5.000000e-01 : f32
    %949 = vector.broadcast %cst_437 : f32 to vector<8x256xf32>
    %950 = arith.mulf %949, %948 : vector<8x256xf32>
    %951 = vector.extract_strided_slice %950 {offsets = [0, 0], sizes = [8, 128], strides = [1, 1]} : vector<8x256xf32> to vector<8x128xf32>
    %952 = vector.extract_strided_slice %950 {offsets = [0, 128], sizes = [8, 128], strides = [1, 1]} : vector<8x256xf32> to vector<8x128xf32>
    %953 = vector.extract_strided_slice %936 {offsets = [0, 256], sizes = [8, 128], strides = [1, 1]} : vector<8x384xf32> to vector<8x128xf32>
    %954 = vector.extract_strided_slice %940 {offsets = [0, 256], sizes = [8, 128], strides = [1, 1]} : vector<8x384xf32> to vector<8x128xf32>
    %c2_438 = arith.constant 2 : index
    %c0_439 = arith.constant 0 : index
    %c0_440 = arith.constant 0 : index
    %955 = vector.load %arg6[%c2_438, %c0_439, %c0_440] : memref<5x1x128xf32, #tpu.memory_space<vmem>>, vector<1x1x128xf32>
    %956 = vector.shape_cast %955 : vector<1x1x128xf32> to vector<1x128xf32>
    %957 = vector.broadcast %956 : vector<1x128xf32> to vector<8x128xf32>
    %958 = arith.addf %954, %957 : vector<8x128xf32>
    %959 = arith.mulf %951, %958 : vector<8x128xf32>
    %960 = arith.addf %953, %959 : vector<8x128xf32>
    %961 = math.tanh %960 : vector<8x128xf32>
    %cst_441 = arith.constant 1.000000e+00 : f32
    %962 = vector.broadcast %cst_441 : f32 to vector<8x128xf32>
    %963 = arith.subf %962, %952 : vector<8x128xf32>
    %964 = arith.mulf %963, %961 : vector<8x128xf32>
    %965 = arith.mulf %952, %783 : vector<8x128xf32>
    %966 = arith.addf %964, %965 : vector<8x128xf32>
    %967 = arith.truncf %783 : vector<8x128xf32> to vector<8x128xbf16>
    %c2_442 = arith.constant 2 : index
    %c0_443 = arith.constant 0 : index
    %c0_444 = arith.constant 0 : index
    %968 = vector.load %arg3[%c2_442, %c0_443, %c0_444] : memref<4x128x384xbf16, #tpu.memory_space<vmem>>, vector<1x128x384xbf16>
    %969 = vector.shape_cast %968 : vector<1x128x384xbf16> to vector<128x384xbf16>
    %cst_445 = arith.constant dense<0.000000e+00> : vector<8x384xf32>
    %970 = tpu.matmul %967, %969, %cst_445 {dimension_numbers = #tpu.dot_dimension_numbers<[1], [0], [0], [1], [0, 0, 1, 1], [], []>} : vector<8x128xbf16>, vector<128x384xbf16>, vector<8x384xf32> -> vector<8x384xf32>
    %c3_446 = arith.constant 3 : index
    %c0_447 = arith.constant 0 : index
    %c0_448 = arith.constant 0 : index
    %971 = vector.load %arg5[%c3_446, %c0_447, %c0_448] : memref<5x1x384xf32, #tpu.memory_space<vmem>>, vector<1x1x384xf32>
    %972 = vector.shape_cast %971 : vector<1x1x384xf32> to vector<1x384xf32>
    %973 = vector.broadcast %972 : vector<1x384xf32> to vector<8x384xf32>
    %974 = arith.addf %970, %973 : vector<8x384xf32>
    %975 = arith.truncf %821 : vector<8x128xf32> to vector<8x128xbf16>
    %c3_449 = arith.constant 3 : index
    %c0_450 = arith.constant 0 : index
    %c0_451 = arith.constant 0 : index
    %976 = vector.load %arg4[%c3_449, %c0_450, %c0_451] : memref<5x128x384xbf16, #tpu.memory_space<vmem>>, vector<1x128x384xbf16>
    %977 = vector.shape_cast %976 : vector<1x128x384xbf16> to vector<128x384xbf16>
    %cst_452 = arith.constant dense<0.000000e+00> : vector<8x384xf32>
    %978 = tpu.matmul %975, %977, %cst_452 {dimension_numbers = #tpu.dot_dimension_numbers<[1], [0], [0], [1], [0, 0, 1, 1], [], []>} : vector<8x128xbf16>, vector<128x384xbf16>, vector<8x384xf32> -> vector<8x384xf32>
    %979 = vector.extract_strided_slice %974 {offsets = [0, 0], sizes = [8, 256], strides = [1, 1]} : vector<8x384xf32> to vector<8x256xf32>
    %980 = vector.extract_strided_slice %978 {offsets = [0, 0], sizes = [8, 256], strides = [1, 1]} : vector<8x384xf32> to vector<8x256xf32>
    %981 = arith.addf %979, %980 : vector<8x256xf32>
    %cst_453 = arith.constant 5.000000e-01 : f32
    %982 = vector.broadcast %cst_453 : f32 to vector<8x256xf32>
    %983 = arith.mulf %982, %981 : vector<8x256xf32>
    %984 = math.tanh %983 : vector<8x256xf32>
    %cst_454 = arith.constant 1.000000e+00 : f32
    %985 = vector.broadcast %cst_454 : f32 to vector<8x256xf32>
    %986 = arith.addf %984, %985 : vector<8x256xf32>
    %cst_455 = arith.constant 5.000000e-01 : f32
    %987 = vector.broadcast %cst_455 : f32 to vector<8x256xf32>
    %988 = arith.mulf %987, %986 : vector<8x256xf32>
    %989 = vector.extract_strided_slice %988 {offsets = [0, 0], sizes = [8, 128], strides = [1, 1]} : vector<8x256xf32> to vector<8x128xf32>
    %990 = vector.extract_strided_slice %988 {offsets = [0, 128], sizes = [8, 128], strides = [1, 1]} : vector<8x256xf32> to vector<8x128xf32>
    %991 = vector.extract_strided_slice %974 {offsets = [0, 256], sizes = [8, 128], strides = [1, 1]} : vector<8x384xf32> to vector<8x128xf32>
    %992 = vector.extract_strided_slice %978 {offsets = [0, 256], sizes = [8, 128], strides = [1, 1]} : vector<8x384xf32> to vector<8x128xf32>
    %c3_456 = arith.constant 3 : index
    %c0_457 = arith.constant 0 : index
    %c0_458 = arith.constant 0 : index
    %993 = vector.load %arg6[%c3_456, %c0_457, %c0_458] : memref<5x1x128xf32, #tpu.memory_space<vmem>>, vector<1x1x128xf32>
    %994 = vector.shape_cast %993 : vector<1x1x128xf32> to vector<1x128xf32>
    %995 = vector.broadcast %994 : vector<1x128xf32> to vector<8x128xf32>
    %996 = arith.addf %992, %995 : vector<8x128xf32>
    %997 = arith.mulf %989, %996 : vector<8x128xf32>
    %998 = arith.addf %991, %997 : vector<8x128xf32>
    %999 = math.tanh %998 : vector<8x128xf32>
    %cst_459 = arith.constant 1.000000e+00 : f32
    %1000 = vector.broadcast %cst_459 : f32 to vector<8x128xf32>
    %1001 = arith.subf %1000, %990 : vector<8x128xf32>
    %1002 = arith.mulf %1001, %999 : vector<8x128xf32>
    %1003 = arith.mulf %990, %821 : vector<8x128xf32>
    %1004 = arith.addf %1002, %1003 : vector<8x128xf32>
    %1005 = arith.truncf %821 : vector<8x128xf32> to vector<8x128xbf16>
    %c3_460 = arith.constant 3 : index
    %c0_461 = arith.constant 0 : index
    %c0_462 = arith.constant 0 : index
    %1006 = vector.load %arg3[%c3_460, %c0_461, %c0_462] : memref<4x128x384xbf16, #tpu.memory_space<vmem>>, vector<1x128x384xbf16>
    %1007 = vector.shape_cast %1006 : vector<1x128x384xbf16> to vector<128x384xbf16>
    %cst_463 = arith.constant dense<0.000000e+00> : vector<8x384xf32>
    %1008 = tpu.matmul %1005, %1007, %cst_463 {dimension_numbers = #tpu.dot_dimension_numbers<[1], [0], [0], [1], [0, 0, 1, 1], [], []>} : vector<8x128xbf16>, vector<128x384xbf16>, vector<8x384xf32> -> vector<8x384xf32>
    %c4_464 = arith.constant 4 : index
    %c0_465 = arith.constant 0 : index
    %c0_466 = arith.constant 0 : index
    %1009 = vector.load %arg5[%c4_464, %c0_465, %c0_466] : memref<5x1x384xf32, #tpu.memory_space<vmem>>, vector<1x1x384xf32>
    %1010 = vector.shape_cast %1009 : vector<1x1x384xf32> to vector<1x384xf32>
    %1011 = vector.broadcast %1010 : vector<1x384xf32> to vector<8x384xf32>
    %1012 = arith.addf %1008, %1011 : vector<8x384xf32>
    %1013 = arith.truncf %859 : vector<8x128xf32> to vector<8x128xbf16>
    %c4_467 = arith.constant 4 : index
    %c0_468 = arith.constant 0 : index
    %c0_469 = arith.constant 0 : index
    %1014 = vector.load %arg4[%c4_467, %c0_468, %c0_469] : memref<5x128x384xbf16, #tpu.memory_space<vmem>>, vector<1x128x384xbf16>
    %1015 = vector.shape_cast %1014 : vector<1x128x384xbf16> to vector<128x384xbf16>
    %cst_470 = arith.constant dense<0.000000e+00> : vector<8x384xf32>
    %1016 = tpu.matmul %1013, %1015, %cst_470 {dimension_numbers = #tpu.dot_dimension_numbers<[1], [0], [0], [1], [0, 0, 1, 1], [], []>} : vector<8x128xbf16>, vector<128x384xbf16>, vector<8x384xf32> -> vector<8x384xf32>
    %1017 = vector.extract_strided_slice %1012 {offsets = [0, 0], sizes = [8, 256], strides = [1, 1]} : vector<8x384xf32> to vector<8x256xf32>
    %1018 = vector.extract_strided_slice %1016 {offsets = [0, 0], sizes = [8, 256], strides = [1, 1]} : vector<8x384xf32> to vector<8x256xf32>
    %1019 = arith.addf %1017, %1018 : vector<8x256xf32>
    %cst_471 = arith.constant 5.000000e-01 : f32
    %1020 = vector.broadcast %cst_471 : f32 to vector<8x256xf32>
    %1021 = arith.mulf %1020, %1019 : vector<8x256xf32>
    %1022 = math.tanh %1021 : vector<8x256xf32>
    %cst_472 = arith.constant 1.000000e+00 : f32
    %1023 = vector.broadcast %cst_472 : f32 to vector<8x256xf32>
    %1024 = arith.addf %1022, %1023 : vector<8x256xf32>
    %cst_473 = arith.constant 5.000000e-01 : f32
    %1025 = vector.broadcast %cst_473 : f32 to vector<8x256xf32>
    %1026 = arith.mulf %1025, %1024 : vector<8x256xf32>
    %1027 = vector.extract_strided_slice %1026 {offsets = [0, 0], sizes = [8, 128], strides = [1, 1]} : vector<8x256xf32> to vector<8x128xf32>
    %1028 = vector.extract_strided_slice %1026 {offsets = [0, 128], sizes = [8, 128], strides = [1, 1]} : vector<8x256xf32> to vector<8x128xf32>
    %1029 = vector.extract_strided_slice %1012 {offsets = [0, 256], sizes = [8, 128], strides = [1, 1]} : vector<8x384xf32> to vector<8x128xf32>
    %1030 = vector.extract_strided_slice %1016 {offsets = [0, 256], sizes = [8, 128], strides = [1, 1]} : vector<8x384xf32> to vector<8x128xf32>
    %c4_474 = arith.constant 4 : index
    %c0_475 = arith.constant 0 : index
    %c0_476 = arith.constant 0 : index
    %1031 = vector.load %arg6[%c4_474, %c0_475, %c0_476] : memref<5x1x128xf32, #tpu.memory_space<vmem>>, vector<1x1x128xf32>
    %1032 = vector.shape_cast %1031 : vector<1x1x128xf32> to vector<1x128xf32>
    %1033 = vector.broadcast %1032 : vector<1x128xf32> to vector<8x128xf32>
    %1034 = arith.addf %1030, %1033 : vector<8x128xf32>
    %1035 = arith.mulf %1027, %1034 : vector<8x128xf32>
    %1036 = arith.addf %1029, %1035 : vector<8x128xf32>
    %1037 = math.tanh %1036 : vector<8x128xf32>
    %cst_477 = arith.constant 1.000000e+00 : f32
    %1038 = vector.broadcast %cst_477 : f32 to vector<8x128xf32>
    %1039 = arith.subf %1038, %1028 : vector<8x128xf32>
    %1040 = arith.mulf %1039, %1037 : vector<8x128xf32>
    %1041 = arith.mulf %1028, %859 : vector<8x128xf32>
    %1042 = arith.addf %1040, %1041 : vector<8x128xf32>
    %1043 = arith.truncf %890 : vector<8x128xf32> to vector<8x128xbf16>
    %c0_478 = arith.constant 0 : index
    %c0_479 = arith.constant 0 : index
    %c0_480 = arith.constant 0 : index
    %1044 = vector.load %arg3[%c0_478, %c0_479, %c0_480] : memref<4x128x384xbf16, #tpu.memory_space<vmem>>, vector<1x128x384xbf16>
    %1045 = vector.shape_cast %1044 : vector<1x128x384xbf16> to vector<128x384xbf16>
    %cst_481 = arith.constant dense<0.000000e+00> : vector<8x384xf32>
    %1046 = tpu.matmul %1043, %1045, %cst_481 {dimension_numbers = #tpu.dot_dimension_numbers<[1], [0], [0], [1], [0, 0, 1, 1], [], []>} : vector<8x128xbf16>, vector<128x384xbf16>, vector<8x384xf32> -> vector<8x384xf32>
    %c1_482 = arith.constant 1 : index
    %c0_483 = arith.constant 0 : index
    %c0_484 = arith.constant 0 : index
    %1047 = vector.load %arg5[%c1_482, %c0_483, %c0_484] : memref<5x1x384xf32, #tpu.memory_space<vmem>>, vector<1x1x384xf32>
    %1048 = vector.shape_cast %1047 : vector<1x1x384xf32> to vector<1x384xf32>
    %1049 = vector.broadcast %1048 : vector<1x384xf32> to vector<8x384xf32>
    %1050 = arith.addf %1046, %1049 : vector<8x384xf32>
    %1051 = arith.truncf %928 : vector<8x128xf32> to vector<8x128xbf16>
    %c1_485 = arith.constant 1 : index
    %c0_486 = arith.constant 0 : index
    %c0_487 = arith.constant 0 : index
    %1052 = vector.load %arg4[%c1_485, %c0_486, %c0_487] : memref<5x128x384xbf16, #tpu.memory_space<vmem>>, vector<1x128x384xbf16>
    %1053 = vector.shape_cast %1052 : vector<1x128x384xbf16> to vector<128x384xbf16>
    %cst_488 = arith.constant dense<0.000000e+00> : vector<8x384xf32>
    %1054 = tpu.matmul %1051, %1053, %cst_488 {dimension_numbers = #tpu.dot_dimension_numbers<[1], [0], [0], [1], [0, 0, 1, 1], [], []>} : vector<8x128xbf16>, vector<128x384xbf16>, vector<8x384xf32> -> vector<8x384xf32>
    %1055 = vector.extract_strided_slice %1050 {offsets = [0, 0], sizes = [8, 256], strides = [1, 1]} : vector<8x384xf32> to vector<8x256xf32>
    %1056 = vector.extract_strided_slice %1054 {offsets = [0, 0], sizes = [8, 256], strides = [1, 1]} : vector<8x384xf32> to vector<8x256xf32>
    %1057 = arith.addf %1055, %1056 : vector<8x256xf32>
    %cst_489 = arith.constant 5.000000e-01 : f32
    %1058 = vector.broadcast %cst_489 : f32 to vector<8x256xf32>
    %1059 = arith.mulf %1058, %1057 : vector<8x256xf32>
    %1060 = math.tanh %1059 : vector<8x256xf32>
    %cst_490 = arith.constant 1.000000e+00 : f32
    %1061 = vector.broadcast %cst_490 : f32 to vector<8x256xf32>
    %1062 = arith.addf %1060, %1061 : vector<8x256xf32>
    %cst_491 = arith.constant 5.000000e-01 : f32
    %1063 = vector.broadcast %cst_491 : f32 to vector<8x256xf32>
    %1064 = arith.mulf %1063, %1062 : vector<8x256xf32>
    %1065 = vector.extract_strided_slice %1064 {offsets = [0, 0], sizes = [8, 128], strides = [1, 1]} : vector<8x256xf32> to vector<8x128xf32>
    %1066 = vector.extract_strided_slice %1064 {offsets = [0, 128], sizes = [8, 128], strides = [1, 1]} : vector<8x256xf32> to vector<8x128xf32>
    %1067 = vector.extract_strided_slice %1050 {offsets = [0, 256], sizes = [8, 128], strides = [1, 1]} : vector<8x384xf32> to vector<8x128xf32>
    %1068 = vector.extract_strided_slice %1054 {offsets = [0, 256], sizes = [8, 128], strides = [1, 1]} : vector<8x384xf32> to vector<8x128xf32>
    %c1_492 = arith.constant 1 : index
    %c0_493 = arith.constant 0 : index
    %c0_494 = arith.constant 0 : index
    %1069 = vector.load %arg6[%c1_492, %c0_493, %c0_494] : memref<5x1x128xf32, #tpu.memory_space<vmem>>, vector<1x1x128xf32>
    %1070 = vector.shape_cast %1069 : vector<1x1x128xf32> to vector<1x128xf32>
    %1071 = vector.broadcast %1070 : vector<1x128xf32> to vector<8x128xf32>
    %1072 = arith.addf %1068, %1071 : vector<8x128xf32>
    %1073 = arith.mulf %1065, %1072 : vector<8x128xf32>
    %1074 = arith.addf %1067, %1073 : vector<8x128xf32>
    %1075 = math.tanh %1074 : vector<8x128xf32>
    %cst_495 = arith.constant 1.000000e+00 : f32
    %1076 = vector.broadcast %cst_495 : f32 to vector<8x128xf32>
    %1077 = arith.subf %1076, %1066 : vector<8x128xf32>
    %1078 = arith.mulf %1077, %1075 : vector<8x128xf32>
    %1079 = arith.mulf %1066, %928 : vector<8x128xf32>
    %1080 = arith.addf %1078, %1079 : vector<8x128xf32>
    %1081 = arith.truncf %928 : vector<8x128xf32> to vector<8x128xbf16>
    %c1_496 = arith.constant 1 : index
    %c0_497 = arith.constant 0 : index
    %c0_498 = arith.constant 0 : index
    %1082 = vector.load %arg3[%c1_496, %c0_497, %c0_498] : memref<4x128x384xbf16, #tpu.memory_space<vmem>>, vector<1x128x384xbf16>
    %1083 = vector.shape_cast %1082 : vector<1x128x384xbf16> to vector<128x384xbf16>
    %cst_499 = arith.constant dense<0.000000e+00> : vector<8x384xf32>
    %1084 = tpu.matmul %1081, %1083, %cst_499 {dimension_numbers = #tpu.dot_dimension_numbers<[1], [0], [0], [1], [0, 0, 1, 1], [], []>} : vector<8x128xbf16>, vector<128x384xbf16>, vector<8x384xf32> -> vector<8x384xf32>
    %c2_500 = arith.constant 2 : index
    %c0_501 = arith.constant 0 : index
    %c0_502 = arith.constant 0 : index
    %1085 = vector.load %arg5[%c2_500, %c0_501, %c0_502] : memref<5x1x384xf32, #tpu.memory_space<vmem>>, vector<1x1x384xf32>
    %1086 = vector.shape_cast %1085 : vector<1x1x384xf32> to vector<1x384xf32>
    %1087 = vector.broadcast %1086 : vector<1x384xf32> to vector<8x384xf32>
    %1088 = arith.addf %1084, %1087 : vector<8x384xf32>
    %1089 = arith.truncf %966 : vector<8x128xf32> to vector<8x128xbf16>
    %c2_503 = arith.constant 2 : index
    %c0_504 = arith.constant 0 : index
    %c0_505 = arith.constant 0 : index
    %1090 = vector.load %arg4[%c2_503, %c0_504, %c0_505] : memref<5x128x384xbf16, #tpu.memory_space<vmem>>, vector<1x128x384xbf16>
    %1091 = vector.shape_cast %1090 : vector<1x128x384xbf16> to vector<128x384xbf16>
    %cst_506 = arith.constant dense<0.000000e+00> : vector<8x384xf32>
    %1092 = tpu.matmul %1089, %1091, %cst_506 {dimension_numbers = #tpu.dot_dimension_numbers<[1], [0], [0], [1], [0, 0, 1, 1], [], []>} : vector<8x128xbf16>, vector<128x384xbf16>, vector<8x384xf32> -> vector<8x384xf32>
    %1093 = vector.extract_strided_slice %1088 {offsets = [0, 0], sizes = [8, 256], strides = [1, 1]} : vector<8x384xf32> to vector<8x256xf32>
    %1094 = vector.extract_strided_slice %1092 {offsets = [0, 0], sizes = [8, 256], strides = [1, 1]} : vector<8x384xf32> to vector<8x256xf32>
    %1095 = arith.addf %1093, %1094 : vector<8x256xf32>
    %cst_507 = arith.constant 5.000000e-01 : f32
    %1096 = vector.broadcast %cst_507 : f32 to vector<8x256xf32>
    %1097 = arith.mulf %1096, %1095 : vector<8x256xf32>
    %1098 = math.tanh %1097 : vector<8x256xf32>
    %cst_508 = arith.constant 1.000000e+00 : f32
    %1099 = vector.broadcast %cst_508 : f32 to vector<8x256xf32>
    %1100 = arith.addf %1098, %1099 : vector<8x256xf32>
    %cst_509 = arith.constant 5.000000e-01 : f32
    %1101 = vector.broadcast %cst_509 : f32 to vector<8x256xf32>
    %1102 = arith.mulf %1101, %1100 : vector<8x256xf32>
    %1103 = vector.extract_strided_slice %1102 {offsets = [0, 0], sizes = [8, 128], strides = [1, 1]} : vector<8x256xf32> to vector<8x128xf32>
    %1104 = vector.extract_strided_slice %1102 {offsets = [0, 128], sizes = [8, 128], strides = [1, 1]} : vector<8x256xf32> to vector<8x128xf32>
    %1105 = vector.extract_strided_slice %1088 {offsets = [0, 256], sizes = [8, 128], strides = [1, 1]} : vector<8x384xf32> to vector<8x128xf32>
    %1106 = vector.extract_strided_slice %1092 {offsets = [0, 256], sizes = [8, 128], strides = [1, 1]} : vector<8x384xf32> to vector<8x128xf32>
    %c2_510 = arith.constant 2 : index
    %c0_511 = arith.constant 0 : index
    %c0_512 = arith.constant 0 : index
    %1107 = vector.load %arg6[%c2_510, %c0_511, %c0_512] : memref<5x1x128xf32, #tpu.memory_space<vmem>>, vector<1x1x128xf32>
    %1108 = vector.shape_cast %1107 : vector<1x1x128xf32> to vector<1x128xf32>
    %1109 = vector.broadcast %1108 : vector<1x128xf32> to vector<8x128xf32>
    %1110 = arith.addf %1106, %1109 : vector<8x128xf32>
    %1111 = arith.mulf %1103, %1110 : vector<8x128xf32>
    %1112 = arith.addf %1105, %1111 : vector<8x128xf32>
    %1113 = math.tanh %1112 : vector<8x128xf32>
    %cst_513 = arith.constant 1.000000e+00 : f32
    %1114 = vector.broadcast %cst_513 : f32 to vector<8x128xf32>
    %1115 = arith.subf %1114, %1104 : vector<8x128xf32>
    %1116 = arith.mulf %1115, %1113 : vector<8x128xf32>
    %1117 = arith.mulf %1104, %966 : vector<8x128xf32>
    %1118 = arith.addf %1116, %1117 : vector<8x128xf32>
    %1119 = arith.truncf %966 : vector<8x128xf32> to vector<8x128xbf16>
    %c2_514 = arith.constant 2 : index
    %c0_515 = arith.constant 0 : index
    %c0_516 = arith.constant 0 : index
    %1120 = vector.load %arg3[%c2_514, %c0_515, %c0_516] : memref<4x128x384xbf16, #tpu.memory_space<vmem>>, vector<1x128x384xbf16>
    %1121 = vector.shape_cast %1120 : vector<1x128x384xbf16> to vector<128x384xbf16>
    %cst_517 = arith.constant dense<0.000000e+00> : vector<8x384xf32>
    %1122 = tpu.matmul %1119, %1121, %cst_517 {dimension_numbers = #tpu.dot_dimension_numbers<[1], [0], [0], [1], [0, 0, 1, 1], [], []>} : vector<8x128xbf16>, vector<128x384xbf16>, vector<8x384xf32> -> vector<8x384xf32>
    %c3_518 = arith.constant 3 : index
    %c0_519 = arith.constant 0 : index
    %c0_520 = arith.constant 0 : index
    %1123 = vector.load %arg5[%c3_518, %c0_519, %c0_520] : memref<5x1x384xf32, #tpu.memory_space<vmem>>, vector<1x1x384xf32>
    %1124 = vector.shape_cast %1123 : vector<1x1x384xf32> to vector<1x384xf32>
    %1125 = vector.broadcast %1124 : vector<1x384xf32> to vector<8x384xf32>
    %1126 = arith.addf %1122, %1125 : vector<8x384xf32>
    %1127 = arith.truncf %1004 : vector<8x128xf32> to vector<8x128xbf16>
    %c3_521 = arith.constant 3 : index
    %c0_522 = arith.constant 0 : index
    %c0_523 = arith.constant 0 : index
    %1128 = vector.load %arg4[%c3_521, %c0_522, %c0_523] : memref<5x128x384xbf16, #tpu.memory_space<vmem>>, vector<1x128x384xbf16>
    %1129 = vector.shape_cast %1128 : vector<1x128x384xbf16> to vector<128x384xbf16>
    %cst_524 = arith.constant dense<0.000000e+00> : vector<8x384xf32>
    %1130 = tpu.matmul %1127, %1129, %cst_524 {dimension_numbers = #tpu.dot_dimension_numbers<[1], [0], [0], [1], [0, 0, 1, 1], [], []>} : vector<8x128xbf16>, vector<128x384xbf16>, vector<8x384xf32> -> vector<8x384xf32>
    %1131 = vector.extract_strided_slice %1126 {offsets = [0, 0], sizes = [8, 256], strides = [1, 1]} : vector<8x384xf32> to vector<8x256xf32>
    %1132 = vector.extract_strided_slice %1130 {offsets = [0, 0], sizes = [8, 256], strides = [1, 1]} : vector<8x384xf32> to vector<8x256xf32>
    %1133 = arith.addf %1131, %1132 : vector<8x256xf32>
    %cst_525 = arith.constant 5.000000e-01 : f32
    %1134 = vector.broadcast %cst_525 : f32 to vector<8x256xf32>
    %1135 = arith.mulf %1134, %1133 : vector<8x256xf32>
    %1136 = math.tanh %1135 : vector<8x256xf32>
    %cst_526 = arith.constant 1.000000e+00 : f32
    %1137 = vector.broadcast %cst_526 : f32 to vector<8x256xf32>
    %1138 = arith.addf %1136, %1137 : vector<8x256xf32>
    %cst_527 = arith.constant 5.000000e-01 : f32
    %1139 = vector.broadcast %cst_527 : f32 to vector<8x256xf32>
    %1140 = arith.mulf %1139, %1138 : vector<8x256xf32>
    %1141 = vector.extract_strided_slice %1140 {offsets = [0, 0], sizes = [8, 128], strides = [1, 1]} : vector<8x256xf32> to vector<8x128xf32>
    %1142 = vector.extract_strided_slice %1140 {offsets = [0, 128], sizes = [8, 128], strides = [1, 1]} : vector<8x256xf32> to vector<8x128xf32>
    %1143 = vector.extract_strided_slice %1126 {offsets = [0, 256], sizes = [8, 128], strides = [1, 1]} : vector<8x384xf32> to vector<8x128xf32>
    %1144 = vector.extract_strided_slice %1130 {offsets = [0, 256], sizes = [8, 128], strides = [1, 1]} : vector<8x384xf32> to vector<8x128xf32>
    %c3_528 = arith.constant 3 : index
    %c0_529 = arith.constant 0 : index
    %c0_530 = arith.constant 0 : index
    %1145 = vector.load %arg6[%c3_528, %c0_529, %c0_530] : memref<5x1x128xf32, #tpu.memory_space<vmem>>, vector<1x1x128xf32>
    %1146 = vector.shape_cast %1145 : vector<1x1x128xf32> to vector<1x128xf32>
    %1147 = vector.broadcast %1146 : vector<1x128xf32> to vector<8x128xf32>
    %1148 = arith.addf %1144, %1147 : vector<8x128xf32>
    %1149 = arith.mulf %1141, %1148 : vector<8x128xf32>
    %1150 = arith.addf %1143, %1149 : vector<8x128xf32>
    %1151 = math.tanh %1150 : vector<8x128xf32>
    %cst_531 = arith.constant 1.000000e+00 : f32
    %1152 = vector.broadcast %cst_531 : f32 to vector<8x128xf32>
    %1153 = arith.subf %1152, %1142 : vector<8x128xf32>
    %1154 = arith.mulf %1153, %1151 : vector<8x128xf32>
    %1155 = arith.mulf %1142, %1004 : vector<8x128xf32>
    %1156 = arith.addf %1154, %1155 : vector<8x128xf32>
    %1157 = arith.truncf %1004 : vector<8x128xf32> to vector<8x128xbf16>
    %c3_532 = arith.constant 3 : index
    %c0_533 = arith.constant 0 : index
    %c0_534 = arith.constant 0 : index
    %1158 = vector.load %arg3[%c3_532, %c0_533, %c0_534] : memref<4x128x384xbf16, #tpu.memory_space<vmem>>, vector<1x128x384xbf16>
    %1159 = vector.shape_cast %1158 : vector<1x128x384xbf16> to vector<128x384xbf16>
    %cst_535 = arith.constant dense<0.000000e+00> : vector<8x384xf32>
    %1160 = tpu.matmul %1157, %1159, %cst_535 {dimension_numbers = #tpu.dot_dimension_numbers<[1], [0], [0], [1], [0, 0, 1, 1], [], []>} : vector<8x128xbf16>, vector<128x384xbf16>, vector<8x384xf32> -> vector<8x384xf32>
    %c4_536 = arith.constant 4 : index
    %c0_537 = arith.constant 0 : index
    %c0_538 = arith.constant 0 : index
    %1161 = vector.load %arg5[%c4_536, %c0_537, %c0_538] : memref<5x1x384xf32, #tpu.memory_space<vmem>>, vector<1x1x384xf32>
    %1162 = vector.shape_cast %1161 : vector<1x1x384xf32> to vector<1x384xf32>
    %1163 = vector.broadcast %1162 : vector<1x384xf32> to vector<8x384xf32>
    %1164 = arith.addf %1160, %1163 : vector<8x384xf32>
    %1165 = arith.truncf %1042 : vector<8x128xf32> to vector<8x128xbf16>
    %c4_539 = arith.constant 4 : index
    %c0_540 = arith.constant 0 : index
    %c0_541 = arith.constant 0 : index
    %1166 = vector.load %arg4[%c4_539, %c0_540, %c0_541] : memref<5x128x384xbf16, #tpu.memory_space<vmem>>, vector<1x128x384xbf16>
    %1167 = vector.shape_cast %1166 : vector<1x128x384xbf16> to vector<128x384xbf16>
    %cst_542 = arith.constant dense<0.000000e+00> : vector<8x384xf32>
    %1168 = tpu.matmul %1165, %1167, %cst_542 {dimension_numbers = #tpu.dot_dimension_numbers<[1], [0], [0], [1], [0, 0, 1, 1], [], []>} : vector<8x128xbf16>, vector<128x384xbf16>, vector<8x384xf32> -> vector<8x384xf32>
    %1169 = vector.extract_strided_slice %1164 {offsets = [0, 0], sizes = [8, 256], strides = [1, 1]} : vector<8x384xf32> to vector<8x256xf32>
    %1170 = vector.extract_strided_slice %1168 {offsets = [0, 0], sizes = [8, 256], strides = [1, 1]} : vector<8x384xf32> to vector<8x256xf32>
    %1171 = arith.addf %1169, %1170 : vector<8x256xf32>
    %cst_543 = arith.constant 5.000000e-01 : f32
    %1172 = vector.broadcast %cst_543 : f32 to vector<8x256xf32>
    %1173 = arith.mulf %1172, %1171 : vector<8x256xf32>
    %1174 = math.tanh %1173 : vector<8x256xf32>
    %cst_544 = arith.constant 1.000000e+00 : f32
    %1175 = vector.broadcast %cst_544 : f32 to vector<8x256xf32>
    %1176 = arith.addf %1174, %1175 : vector<8x256xf32>
    %cst_545 = arith.constant 5.000000e-01 : f32
    %1177 = vector.broadcast %cst_545 : f32 to vector<8x256xf32>
    %1178 = arith.mulf %1177, %1176 : vector<8x256xf32>
    %1179 = vector.extract_strided_slice %1178 {offsets = [0, 0], sizes = [8, 128], strides = [1, 1]} : vector<8x256xf32> to vector<8x128xf32>
    %1180 = vector.extract_strided_slice %1178 {offsets = [0, 128], sizes = [8, 128], strides = [1, 1]} : vector<8x256xf32> to vector<8x128xf32>
    %1181 = vector.extract_strided_slice %1164 {offsets = [0, 256], sizes = [8, 128], strides = [1, 1]} : vector<8x384xf32> to vector<8x128xf32>
    %1182 = vector.extract_strided_slice %1168 {offsets = [0, 256], sizes = [8, 128], strides = [1, 1]} : vector<8x384xf32> to vector<8x128xf32>
    %c4_546 = arith.constant 4 : index
    %c0_547 = arith.constant 0 : index
    %c0_548 = arith.constant 0 : index
    %1183 = vector.load %arg6[%c4_546, %c0_547, %c0_548] : memref<5x1x128xf32, #tpu.memory_space<vmem>>, vector<1x1x128xf32>
    %1184 = vector.shape_cast %1183 : vector<1x1x128xf32> to vector<1x128xf32>
    %1185 = vector.broadcast %1184 : vector<1x128xf32> to vector<8x128xf32>
    %1186 = arith.addf %1182, %1185 : vector<8x128xf32>
    %1187 = arith.mulf %1179, %1186 : vector<8x128xf32>
    %1188 = arith.addf %1181, %1187 : vector<8x128xf32>
    %1189 = math.tanh %1188 : vector<8x128xf32>
    %cst_549 = arith.constant 1.000000e+00 : f32
    %1190 = vector.broadcast %cst_549 : f32 to vector<8x128xf32>
    %1191 = arith.subf %1190, %1180 : vector<8x128xf32>
    %1192 = arith.mulf %1191, %1189 : vector<8x128xf32>
    %1193 = arith.mulf %1180, %1042 : vector<8x128xf32>
    %1194 = arith.addf %1192, %1193 : vector<8x128xf32>
    %1195 = arith.truncf %1080 : vector<8x128xf32> to vector<8x128xbf16>
    %c1_550 = arith.constant 1 : index
    %c0_551 = arith.constant 0 : index
    %c0_552 = arith.constant 0 : index
    %1196 = vector.load %arg3[%c1_550, %c0_551, %c0_552] : memref<4x128x384xbf16, #tpu.memory_space<vmem>>, vector<1x128x384xbf16>
    %1197 = vector.shape_cast %1196 : vector<1x128x384xbf16> to vector<128x384xbf16>
    %cst_553 = arith.constant dense<0.000000e+00> : vector<8x384xf32>
    %1198 = tpu.matmul %1195, %1197, %cst_553 {dimension_numbers = #tpu.dot_dimension_numbers<[1], [0], [0], [1], [0, 0, 1, 1], [], []>} : vector<8x128xbf16>, vector<128x384xbf16>, vector<8x384xf32> -> vector<8x384xf32>
    %c2_554 = arith.constant 2 : index
    %c0_555 = arith.constant 0 : index
    %c0_556 = arith.constant 0 : index
    %1199 = vector.load %arg5[%c2_554, %c0_555, %c0_556] : memref<5x1x384xf32, #tpu.memory_space<vmem>>, vector<1x1x384xf32>
    %1200 = vector.shape_cast %1199 : vector<1x1x384xf32> to vector<1x384xf32>
    %1201 = vector.broadcast %1200 : vector<1x384xf32> to vector<8x384xf32>
    %1202 = arith.addf %1198, %1201 : vector<8x384xf32>
    %1203 = arith.truncf %1118 : vector<8x128xf32> to vector<8x128xbf16>
    %c2_557 = arith.constant 2 : index
    %c0_558 = arith.constant 0 : index
    %c0_559 = arith.constant 0 : index
    %1204 = vector.load %arg4[%c2_557, %c0_558, %c0_559] : memref<5x128x384xbf16, #tpu.memory_space<vmem>>, vector<1x128x384xbf16>
    %1205 = vector.shape_cast %1204 : vector<1x128x384xbf16> to vector<128x384xbf16>
    %cst_560 = arith.constant dense<0.000000e+00> : vector<8x384xf32>
    %1206 = tpu.matmul %1203, %1205, %cst_560 {dimension_numbers = #tpu.dot_dimension_numbers<[1], [0], [0], [1], [0, 0, 1, 1], [], []>} : vector<8x128xbf16>, vector<128x384xbf16>, vector<8x384xf32> -> vector<8x384xf32>
    %1207 = vector.extract_strided_slice %1202 {offsets = [0, 0], sizes = [8, 256], strides = [1, 1]} : vector<8x384xf32> to vector<8x256xf32>
    %1208 = vector.extract_strided_slice %1206 {offsets = [0, 0], sizes = [8, 256], strides = [1, 1]} : vector<8x384xf32> to vector<8x256xf32>
    %1209 = arith.addf %1207, %1208 : vector<8x256xf32>
    %cst_561 = arith.constant 5.000000e-01 : f32
    %1210 = vector.broadcast %cst_561 : f32 to vector<8x256xf32>
    %1211 = arith.mulf %1210, %1209 : vector<8x256xf32>
    %1212 = math.tanh %1211 : vector<8x256xf32>
    %cst_562 = arith.constant 1.000000e+00 : f32
    %1213 = vector.broadcast %cst_562 : f32 to vector<8x256xf32>
    %1214 = arith.addf %1212, %1213 : vector<8x256xf32>
    %cst_563 = arith.constant 5.000000e-01 : f32
    %1215 = vector.broadcast %cst_563 : f32 to vector<8x256xf32>
    %1216 = arith.mulf %1215, %1214 : vector<8x256xf32>
    %1217 = vector.extract_strided_slice %1216 {offsets = [0, 0], sizes = [8, 128], strides = [1, 1]} : vector<8x256xf32> to vector<8x128xf32>
    %1218 = vector.extract_strided_slice %1216 {offsets = [0, 128], sizes = [8, 128], strides = [1, 1]} : vector<8x256xf32> to vector<8x128xf32>
    %1219 = vector.extract_strided_slice %1202 {offsets = [0, 256], sizes = [8, 128], strides = [1, 1]} : vector<8x384xf32> to vector<8x128xf32>
    %1220 = vector.extract_strided_slice %1206 {offsets = [0, 256], sizes = [8, 128], strides = [1, 1]} : vector<8x384xf32> to vector<8x128xf32>
    %c2_564 = arith.constant 2 : index
    %c0_565 = arith.constant 0 : index
    %c0_566 = arith.constant 0 : index
    %1221 = vector.load %arg6[%c2_564, %c0_565, %c0_566] : memref<5x1x128xf32, #tpu.memory_space<vmem>>, vector<1x1x128xf32>
    %1222 = vector.shape_cast %1221 : vector<1x1x128xf32> to vector<1x128xf32>
    %1223 = vector.broadcast %1222 : vector<1x128xf32> to vector<8x128xf32>
    %1224 = arith.addf %1220, %1223 : vector<8x128xf32>
    %1225 = arith.mulf %1217, %1224 : vector<8x128xf32>
    %1226 = arith.addf %1219, %1225 : vector<8x128xf32>
    %1227 = math.tanh %1226 : vector<8x128xf32>
    %cst_567 = arith.constant 1.000000e+00 : f32
    %1228 = vector.broadcast %cst_567 : f32 to vector<8x128xf32>
    %1229 = arith.subf %1228, %1218 : vector<8x128xf32>
    %1230 = arith.mulf %1229, %1227 : vector<8x128xf32>
    %1231 = arith.mulf %1218, %1118 : vector<8x128xf32>
    %1232 = arith.addf %1230, %1231 : vector<8x128xf32>
    %1233 = arith.truncf %1118 : vector<8x128xf32> to vector<8x128xbf16>
    %c2_568 = arith.constant 2 : index
    %c0_569 = arith.constant 0 : index
    %c0_570 = arith.constant 0 : index
    %1234 = vector.load %arg3[%c2_568, %c0_569, %c0_570] : memref<4x128x384xbf16, #tpu.memory_space<vmem>>, vector<1x128x384xbf16>
    %1235 = vector.shape_cast %1234 : vector<1x128x384xbf16> to vector<128x384xbf16>
    %cst_571 = arith.constant dense<0.000000e+00> : vector<8x384xf32>
    %1236 = tpu.matmul %1233, %1235, %cst_571 {dimension_numbers = #tpu.dot_dimension_numbers<[1], [0], [0], [1], [0, 0, 1, 1], [], []>} : vector<8x128xbf16>, vector<128x384xbf16>, vector<8x384xf32> -> vector<8x384xf32>
    %c3_572 = arith.constant 3 : index
    %c0_573 = arith.constant 0 : index
    %c0_574 = arith.constant 0 : index
    %1237 = vector.load %arg5[%c3_572, %c0_573, %c0_574] : memref<5x1x384xf32, #tpu.memory_space<vmem>>, vector<1x1x384xf32>
    %1238 = vector.shape_cast %1237 : vector<1x1x384xf32> to vector<1x384xf32>
    %1239 = vector.broadcast %1238 : vector<1x384xf32> to vector<8x384xf32>
    %1240 = arith.addf %1236, %1239 : vector<8x384xf32>
    %1241 = arith.truncf %1156 : vector<8x128xf32> to vector<8x128xbf16>
    %c3_575 = arith.constant 3 : index
    %c0_576 = arith.constant 0 : index
    %c0_577 = arith.constant 0 : index
    %1242 = vector.load %arg4[%c3_575, %c0_576, %c0_577] : memref<5x128x384xbf16, #tpu.memory_space<vmem>>, vector<1x128x384xbf16>
    %1243 = vector.shape_cast %1242 : vector<1x128x384xbf16> to vector<128x384xbf16>
    %cst_578 = arith.constant dense<0.000000e+00> : vector<8x384xf32>
    %1244 = tpu.matmul %1241, %1243, %cst_578 {dimension_numbers = #tpu.dot_dimension_numbers<[1], [0], [0], [1], [0, 0, 1, 1], [], []>} : vector<8x128xbf16>, vector<128x384xbf16>, vector<8x384xf32> -> vector<8x384xf32>
    %1245 = vector.extract_strided_slice %1240 {offsets = [0, 0], sizes = [8, 256], strides = [1, 1]} : vector<8x384xf32> to vector<8x256xf32>
    %1246 = vector.extract_strided_slice %1244 {offsets = [0, 0], sizes = [8, 256], strides = [1, 1]} : vector<8x384xf32> to vector<8x256xf32>
    %1247 = arith.addf %1245, %1246 : vector<8x256xf32>
    %cst_579 = arith.constant 5.000000e-01 : f32
    %1248 = vector.broadcast %cst_579 : f32 to vector<8x256xf32>
    %1249 = arith.mulf %1248, %1247 : vector<8x256xf32>
    %1250 = math.tanh %1249 : vector<8x256xf32>
    %cst_580 = arith.constant 1.000000e+00 : f32
    %1251 = vector.broadcast %cst_580 : f32 to vector<8x256xf32>
    %1252 = arith.addf %1250, %1251 : vector<8x256xf32>
    %cst_581 = arith.constant 5.000000e-01 : f32
    %1253 = vector.broadcast %cst_581 : f32 to vector<8x256xf32>
    %1254 = arith.mulf %1253, %1252 : vector<8x256xf32>
    %1255 = vector.extract_strided_slice %1254 {offsets = [0, 0], sizes = [8, 128], strides = [1, 1]} : vector<8x256xf32> to vector<8x128xf32>
    %1256 = vector.extract_strided_slice %1254 {offsets = [0, 128], sizes = [8, 128], strides = [1, 1]} : vector<8x256xf32> to vector<8x128xf32>
    %1257 = vector.extract_strided_slice %1240 {offsets = [0, 256], sizes = [8, 128], strides = [1, 1]} : vector<8x384xf32> to vector<8x128xf32>
    %1258 = vector.extract_strided_slice %1244 {offsets = [0, 256], sizes = [8, 128], strides = [1, 1]} : vector<8x384xf32> to vector<8x128xf32>
    %c3_582 = arith.constant 3 : index
    %c0_583 = arith.constant 0 : index
    %c0_584 = arith.constant 0 : index
    %1259 = vector.load %arg6[%c3_582, %c0_583, %c0_584] : memref<5x1x128xf32, #tpu.memory_space<vmem>>, vector<1x1x128xf32>
    %1260 = vector.shape_cast %1259 : vector<1x1x128xf32> to vector<1x128xf32>
    %1261 = vector.broadcast %1260 : vector<1x128xf32> to vector<8x128xf32>
    %1262 = arith.addf %1258, %1261 : vector<8x128xf32>
    %1263 = arith.mulf %1255, %1262 : vector<8x128xf32>
    %1264 = arith.addf %1257, %1263 : vector<8x128xf32>
    %1265 = math.tanh %1264 : vector<8x128xf32>
    %cst_585 = arith.constant 1.000000e+00 : f32
    %1266 = vector.broadcast %cst_585 : f32 to vector<8x128xf32>
    %1267 = arith.subf %1266, %1256 : vector<8x128xf32>
    %1268 = arith.mulf %1267, %1265 : vector<8x128xf32>
    %1269 = arith.mulf %1256, %1156 : vector<8x128xf32>
    %1270 = arith.addf %1268, %1269 : vector<8x128xf32>
    %1271 = arith.truncf %1156 : vector<8x128xf32> to vector<8x128xbf16>
    %c3_586 = arith.constant 3 : index
    %c0_587 = arith.constant 0 : index
    %c0_588 = arith.constant 0 : index
    %1272 = vector.load %arg3[%c3_586, %c0_587, %c0_588] : memref<4x128x384xbf16, #tpu.memory_space<vmem>>, vector<1x128x384xbf16>
    %1273 = vector.shape_cast %1272 : vector<1x128x384xbf16> to vector<128x384xbf16>
    %cst_589 = arith.constant dense<0.000000e+00> : vector<8x384xf32>
    %1274 = tpu.matmul %1271, %1273, %cst_589 {dimension_numbers = #tpu.dot_dimension_numbers<[1], [0], [0], [1], [0, 0, 1, 1], [], []>} : vector<8x128xbf16>, vector<128x384xbf16>, vector<8x384xf32> -> vector<8x384xf32>
    %c4_590 = arith.constant 4 : index
    %c0_591 = arith.constant 0 : index
    %c0_592 = arith.constant 0 : index
    %1275 = vector.load %arg5[%c4_590, %c0_591, %c0_592] : memref<5x1x384xf32, #tpu.memory_space<vmem>>, vector<1x1x384xf32>
    %1276 = vector.shape_cast %1275 : vector<1x1x384xf32> to vector<1x384xf32>
    %1277 = vector.broadcast %1276 : vector<1x384xf32> to vector<8x384xf32>
    %1278 = arith.addf %1274, %1277 : vector<8x384xf32>
    %1279 = arith.truncf %1194 : vector<8x128xf32> to vector<8x128xbf16>
    %c4_593 = arith.constant 4 : index
    %c0_594 = arith.constant 0 : index
    %c0_595 = arith.constant 0 : index
    %1280 = vector.load %arg4[%c4_593, %c0_594, %c0_595] : memref<5x128x384xbf16, #tpu.memory_space<vmem>>, vector<1x128x384xbf16>
    %1281 = vector.shape_cast %1280 : vector<1x128x384xbf16> to vector<128x384xbf16>
    %cst_596 = arith.constant dense<0.000000e+00> : vector<8x384xf32>
    %1282 = tpu.matmul %1279, %1281, %cst_596 {dimension_numbers = #tpu.dot_dimension_numbers<[1], [0], [0], [1], [0, 0, 1, 1], [], []>} : vector<8x128xbf16>, vector<128x384xbf16>, vector<8x384xf32> -> vector<8x384xf32>
    %1283 = vector.extract_strided_slice %1278 {offsets = [0, 0], sizes = [8, 256], strides = [1, 1]} : vector<8x384xf32> to vector<8x256xf32>
    %1284 = vector.extract_strided_slice %1282 {offsets = [0, 0], sizes = [8, 256], strides = [1, 1]} : vector<8x384xf32> to vector<8x256xf32>
    %1285 = arith.addf %1283, %1284 : vector<8x256xf32>
    %cst_597 = arith.constant 5.000000e-01 : f32
    %1286 = vector.broadcast %cst_597 : f32 to vector<8x256xf32>
    %1287 = arith.mulf %1286, %1285 : vector<8x256xf32>
    %1288 = math.tanh %1287 : vector<8x256xf32>
    %cst_598 = arith.constant 1.000000e+00 : f32
    %1289 = vector.broadcast %cst_598 : f32 to vector<8x256xf32>
    %1290 = arith.addf %1288, %1289 : vector<8x256xf32>
    %cst_599 = arith.constant 5.000000e-01 : f32
    %1291 = vector.broadcast %cst_599 : f32 to vector<8x256xf32>
    %1292 = arith.mulf %1291, %1290 : vector<8x256xf32>
    %1293 = vector.extract_strided_slice %1292 {offsets = [0, 0], sizes = [8, 128], strides = [1, 1]} : vector<8x256xf32> to vector<8x128xf32>
    %1294 = vector.extract_strided_slice %1292 {offsets = [0, 128], sizes = [8, 128], strides = [1, 1]} : vector<8x256xf32> to vector<8x128xf32>
    %1295 = vector.extract_strided_slice %1278 {offsets = [0, 256], sizes = [8, 128], strides = [1, 1]} : vector<8x384xf32> to vector<8x128xf32>
    %1296 = vector.extract_strided_slice %1282 {offsets = [0, 256], sizes = [8, 128], strides = [1, 1]} : vector<8x384xf32> to vector<8x128xf32>
    %c4_600 = arith.constant 4 : index
    %c0_601 = arith.constant 0 : index
    %c0_602 = arith.constant 0 : index
    %1297 = vector.load %arg6[%c4_600, %c0_601, %c0_602] : memref<5x1x128xf32, #tpu.memory_space<vmem>>, vector<1x1x128xf32>
    %1298 = vector.shape_cast %1297 : vector<1x1x128xf32> to vector<1x128xf32>
    %1299 = vector.broadcast %1298 : vector<1x128xf32> to vector<8x128xf32>
    %1300 = arith.addf %1296, %1299 : vector<8x128xf32>
    %1301 = arith.mulf %1293, %1300 : vector<8x128xf32>
    %1302 = arith.addf %1295, %1301 : vector<8x128xf32>
    %1303 = math.tanh %1302 : vector<8x128xf32>
    %cst_603 = arith.constant 1.000000e+00 : f32
    %1304 = vector.broadcast %cst_603 : f32 to vector<8x128xf32>
    %1305 = arith.subf %1304, %1294 : vector<8x128xf32>
    %1306 = arith.mulf %1305, %1303 : vector<8x128xf32>
    %1307 = arith.mulf %1294, %1194 : vector<8x128xf32>
    %1308 = arith.addf %1306, %1307 : vector<8x128xf32>
    %1309 = arith.truncf %1232 : vector<8x128xf32> to vector<8x128xbf16>
    %c2_604 = arith.constant 2 : index
    %c0_605 = arith.constant 0 : index
    %c0_606 = arith.constant 0 : index
    %1310 = vector.load %arg3[%c2_604, %c0_605, %c0_606] : memref<4x128x384xbf16, #tpu.memory_space<vmem>>, vector<1x128x384xbf16>
    %1311 = vector.shape_cast %1310 : vector<1x128x384xbf16> to vector<128x384xbf16>
    %cst_607 = arith.constant dense<0.000000e+00> : vector<8x384xf32>
    %1312 = tpu.matmul %1309, %1311, %cst_607 {dimension_numbers = #tpu.dot_dimension_numbers<[1], [0], [0], [1], [0, 0, 1, 1], [], []>} : vector<8x128xbf16>, vector<128x384xbf16>, vector<8x384xf32> -> vector<8x384xf32>
    %c3_608 = arith.constant 3 : index
    %c0_609 = arith.constant 0 : index
    %c0_610 = arith.constant 0 : index
    %1313 = vector.load %arg5[%c3_608, %c0_609, %c0_610] : memref<5x1x384xf32, #tpu.memory_space<vmem>>, vector<1x1x384xf32>
    %1314 = vector.shape_cast %1313 : vector<1x1x384xf32> to vector<1x384xf32>
    %1315 = vector.broadcast %1314 : vector<1x384xf32> to vector<8x384xf32>
    %1316 = arith.addf %1312, %1315 : vector<8x384xf32>
    %1317 = arith.truncf %1270 : vector<8x128xf32> to vector<8x128xbf16>
    %c3_611 = arith.constant 3 : index
    %c0_612 = arith.constant 0 : index
    %c0_613 = arith.constant 0 : index
    %1318 = vector.load %arg4[%c3_611, %c0_612, %c0_613] : memref<5x128x384xbf16, #tpu.memory_space<vmem>>, vector<1x128x384xbf16>
    %1319 = vector.shape_cast %1318 : vector<1x128x384xbf16> to vector<128x384xbf16>
    %cst_614 = arith.constant dense<0.000000e+00> : vector<8x384xf32>
    %1320 = tpu.matmul %1317, %1319, %cst_614 {dimension_numbers = #tpu.dot_dimension_numbers<[1], [0], [0], [1], [0, 0, 1, 1], [], []>} : vector<8x128xbf16>, vector<128x384xbf16>, vector<8x384xf32> -> vector<8x384xf32>
    %1321 = vector.extract_strided_slice %1316 {offsets = [0, 0], sizes = [8, 256], strides = [1, 1]} : vector<8x384xf32> to vector<8x256xf32>
    %1322 = vector.extract_strided_slice %1320 {offsets = [0, 0], sizes = [8, 256], strides = [1, 1]} : vector<8x384xf32> to vector<8x256xf32>
    %1323 = arith.addf %1321, %1322 : vector<8x256xf32>
    %cst_615 = arith.constant 5.000000e-01 : f32
    %1324 = vector.broadcast %cst_615 : f32 to vector<8x256xf32>
    %1325 = arith.mulf %1324, %1323 : vector<8x256xf32>
    %1326 = math.tanh %1325 : vector<8x256xf32>
    %cst_616 = arith.constant 1.000000e+00 : f32
    %1327 = vector.broadcast %cst_616 : f32 to vector<8x256xf32>
    %1328 = arith.addf %1326, %1327 : vector<8x256xf32>
    %cst_617 = arith.constant 5.000000e-01 : f32
    %1329 = vector.broadcast %cst_617 : f32 to vector<8x256xf32>
    %1330 = arith.mulf %1329, %1328 : vector<8x256xf32>
    %1331 = vector.extract_strided_slice %1330 {offsets = [0, 0], sizes = [8, 128], strides = [1, 1]} : vector<8x256xf32> to vector<8x128xf32>
    %1332 = vector.extract_strided_slice %1330 {offsets = [0, 128], sizes = [8, 128], strides = [1, 1]} : vector<8x256xf32> to vector<8x128xf32>
    %1333 = vector.extract_strided_slice %1316 {offsets = [0, 256], sizes = [8, 128], strides = [1, 1]} : vector<8x384xf32> to vector<8x128xf32>
    %1334 = vector.extract_strided_slice %1320 {offsets = [0, 256], sizes = [8, 128], strides = [1, 1]} : vector<8x384xf32> to vector<8x128xf32>
    %c3_618 = arith.constant 3 : index
    %c0_619 = arith.constant 0 : index
    %c0_620 = arith.constant 0 : index
    %1335 = vector.load %arg6[%c3_618, %c0_619, %c0_620] : memref<5x1x128xf32, #tpu.memory_space<vmem>>, vector<1x1x128xf32>
    %1336 = vector.shape_cast %1335 : vector<1x1x128xf32> to vector<1x128xf32>
    %1337 = vector.broadcast %1336 : vector<1x128xf32> to vector<8x128xf32>
    %1338 = arith.addf %1334, %1337 : vector<8x128xf32>
    %1339 = arith.mulf %1331, %1338 : vector<8x128xf32>
    %1340 = arith.addf %1333, %1339 : vector<8x128xf32>
    %1341 = math.tanh %1340 : vector<8x128xf32>
    %cst_621 = arith.constant 1.000000e+00 : f32
    %1342 = vector.broadcast %cst_621 : f32 to vector<8x128xf32>
    %1343 = arith.subf %1342, %1332 : vector<8x128xf32>
    %1344 = arith.mulf %1343, %1341 : vector<8x128xf32>
    %1345 = arith.mulf %1332, %1270 : vector<8x128xf32>
    %1346 = arith.addf %1344, %1345 : vector<8x128xf32>
    %1347 = arith.truncf %1270 : vector<8x128xf32> to vector<8x128xbf16>
    %c3_622 = arith.constant 3 : index
    %c0_623 = arith.constant 0 : index
    %c0_624 = arith.constant 0 : index
    %1348 = vector.load %arg3[%c3_622, %c0_623, %c0_624] : memref<4x128x384xbf16, #tpu.memory_space<vmem>>, vector<1x128x384xbf16>
    %1349 = vector.shape_cast %1348 : vector<1x128x384xbf16> to vector<128x384xbf16>
    %cst_625 = arith.constant dense<0.000000e+00> : vector<8x384xf32>
    %1350 = tpu.matmul %1347, %1349, %cst_625 {dimension_numbers = #tpu.dot_dimension_numbers<[1], [0], [0], [1], [0, 0, 1, 1], [], []>} : vector<8x128xbf16>, vector<128x384xbf16>, vector<8x384xf32> -> vector<8x384xf32>
    %c4_626 = arith.constant 4 : index
    %c0_627 = arith.constant 0 : index
    %c0_628 = arith.constant 0 : index
    %1351 = vector.load %arg5[%c4_626, %c0_627, %c0_628] : memref<5x1x384xf32, #tpu.memory_space<vmem>>, vector<1x1x384xf32>
    %1352 = vector.shape_cast %1351 : vector<1x1x384xf32> to vector<1x384xf32>
    %1353 = vector.broadcast %1352 : vector<1x384xf32> to vector<8x384xf32>
    %1354 = arith.addf %1350, %1353 : vector<8x384xf32>
    %1355 = arith.truncf %1308 : vector<8x128xf32> to vector<8x128xbf16>
    %c4_629 = arith.constant 4 : index
    %c0_630 = arith.constant 0 : index
    %c0_631 = arith.constant 0 : index
    %1356 = vector.load %arg4[%c4_629, %c0_630, %c0_631] : memref<5x128x384xbf16, #tpu.memory_space<vmem>>, vector<1x128x384xbf16>
    %1357 = vector.shape_cast %1356 : vector<1x128x384xbf16> to vector<128x384xbf16>
    %cst_632 = arith.constant dense<0.000000e+00> : vector<8x384xf32>
    %1358 = tpu.matmul %1355, %1357, %cst_632 {dimension_numbers = #tpu.dot_dimension_numbers<[1], [0], [0], [1], [0, 0, 1, 1], [], []>} : vector<8x128xbf16>, vector<128x384xbf16>, vector<8x384xf32> -> vector<8x384xf32>
    %1359 = vector.extract_strided_slice %1354 {offsets = [0, 0], sizes = [8, 256], strides = [1, 1]} : vector<8x384xf32> to vector<8x256xf32>
    %1360 = vector.extract_strided_slice %1358 {offsets = [0, 0], sizes = [8, 256], strides = [1, 1]} : vector<8x384xf32> to vector<8x256xf32>
    %1361 = arith.addf %1359, %1360 : vector<8x256xf32>
    %cst_633 = arith.constant 5.000000e-01 : f32
    %1362 = vector.broadcast %cst_633 : f32 to vector<8x256xf32>
    %1363 = arith.mulf %1362, %1361 : vector<8x256xf32>
    %1364 = math.tanh %1363 : vector<8x256xf32>
    %cst_634 = arith.constant 1.000000e+00 : f32
    %1365 = vector.broadcast %cst_634 : f32 to vector<8x256xf32>
    %1366 = arith.addf %1364, %1365 : vector<8x256xf32>
    %cst_635 = arith.constant 5.000000e-01 : f32
    %1367 = vector.broadcast %cst_635 : f32 to vector<8x256xf32>
    %1368 = arith.mulf %1367, %1366 : vector<8x256xf32>
    %1369 = vector.extract_strided_slice %1368 {offsets = [0, 0], sizes = [8, 128], strides = [1, 1]} : vector<8x256xf32> to vector<8x128xf32>
    %1370 = vector.extract_strided_slice %1368 {offsets = [0, 128], sizes = [8, 128], strides = [1, 1]} : vector<8x256xf32> to vector<8x128xf32>
    %1371 = vector.extract_strided_slice %1354 {offsets = [0, 256], sizes = [8, 128], strides = [1, 1]} : vector<8x384xf32> to vector<8x128xf32>
    %1372 = vector.extract_strided_slice %1358 {offsets = [0, 256], sizes = [8, 128], strides = [1, 1]} : vector<8x384xf32> to vector<8x128xf32>
    %c4_636 = arith.constant 4 : index
    %c0_637 = arith.constant 0 : index
    %c0_638 = arith.constant 0 : index
    %1373 = vector.load %arg6[%c4_636, %c0_637, %c0_638] : memref<5x1x128xf32, #tpu.memory_space<vmem>>, vector<1x1x128xf32>
    %1374 = vector.shape_cast %1373 : vector<1x1x128xf32> to vector<1x128xf32>
    %1375 = vector.broadcast %1374 : vector<1x128xf32> to vector<8x128xf32>
    %1376 = arith.addf %1372, %1375 : vector<8x128xf32>
    %1377 = arith.mulf %1369, %1376 : vector<8x128xf32>
    %1378 = arith.addf %1371, %1377 : vector<8x128xf32>
    %1379 = math.tanh %1378 : vector<8x128xf32>
    %cst_639 = arith.constant 1.000000e+00 : f32
    %1380 = vector.broadcast %cst_639 : f32 to vector<8x128xf32>
    %1381 = arith.subf %1380, %1370 : vector<8x128xf32>
    %1382 = arith.mulf %1381, %1379 : vector<8x128xf32>
    %1383 = arith.mulf %1370, %1308 : vector<8x128xf32>
    %1384 = arith.addf %1382, %1383 : vector<8x128xf32>
    %1385 = arith.truncf %1346 : vector<8x128xf32> to vector<8x128xbf16>
    %c3_640 = arith.constant 3 : index
    %c0_641 = arith.constant 0 : index
    %c0_642 = arith.constant 0 : index
    %1386 = vector.load %arg3[%c3_640, %c0_641, %c0_642] : memref<4x128x384xbf16, #tpu.memory_space<vmem>>, vector<1x128x384xbf16>
    %1387 = vector.shape_cast %1386 : vector<1x128x384xbf16> to vector<128x384xbf16>
    %cst_643 = arith.constant dense<0.000000e+00> : vector<8x384xf32>
    %1388 = tpu.matmul %1385, %1387, %cst_643 {dimension_numbers = #tpu.dot_dimension_numbers<[1], [0], [0], [1], [0, 0, 1, 1], [], []>} : vector<8x128xbf16>, vector<128x384xbf16>, vector<8x384xf32> -> vector<8x384xf32>
    %c4_644 = arith.constant 4 : index
    %c0_645 = arith.constant 0 : index
    %c0_646 = arith.constant 0 : index
    %1389 = vector.load %arg5[%c4_644, %c0_645, %c0_646] : memref<5x1x384xf32, #tpu.memory_space<vmem>>, vector<1x1x384xf32>
    %1390 = vector.shape_cast %1389 : vector<1x1x384xf32> to vector<1x384xf32>
    %1391 = vector.broadcast %1390 : vector<1x384xf32> to vector<8x384xf32>
    %1392 = arith.addf %1388, %1391 : vector<8x384xf32>
    %1393 = arith.truncf %1384 : vector<8x128xf32> to vector<8x128xbf16>
    %c4_647 = arith.constant 4 : index
    %c0_648 = arith.constant 0 : index
    %c0_649 = arith.constant 0 : index
    %1394 = vector.load %arg4[%c4_647, %c0_648, %c0_649] : memref<5x128x384xbf16, #tpu.memory_space<vmem>>, vector<1x128x384xbf16>
    %1395 = vector.shape_cast %1394 : vector<1x128x384xbf16> to vector<128x384xbf16>
    %cst_650 = arith.constant dense<0.000000e+00> : vector<8x384xf32>
    %1396 = tpu.matmul %1393, %1395, %cst_650 {dimension_numbers = #tpu.dot_dimension_numbers<[1], [0], [0], [1], [0, 0, 1, 1], [], []>} : vector<8x128xbf16>, vector<128x384xbf16>, vector<8x384xf32> -> vector<8x384xf32>
    %1397 = vector.extract_strided_slice %1392 {offsets = [0, 0], sizes = [8, 256], strides = [1, 1]} : vector<8x384xf32> to vector<8x256xf32>
    %1398 = vector.extract_strided_slice %1396 {offsets = [0, 0], sizes = [8, 256], strides = [1, 1]} : vector<8x384xf32> to vector<8x256xf32>
    %1399 = arith.addf %1397, %1398 : vector<8x256xf32>
    %cst_651 = arith.constant 5.000000e-01 : f32
    %1400 = vector.broadcast %cst_651 : f32 to vector<8x256xf32>
    %1401 = arith.mulf %1400, %1399 : vector<8x256xf32>
    %1402 = math.tanh %1401 : vector<8x256xf32>
    %cst_652 = arith.constant 1.000000e+00 : f32
    %1403 = vector.broadcast %cst_652 : f32 to vector<8x256xf32>
    %1404 = arith.addf %1402, %1403 : vector<8x256xf32>
    %cst_653 = arith.constant 5.000000e-01 : f32
    %1405 = vector.broadcast %cst_653 : f32 to vector<8x256xf32>
    %1406 = arith.mulf %1405, %1404 : vector<8x256xf32>
    %1407 = vector.extract_strided_slice %1406 {offsets = [0, 0], sizes = [8, 128], strides = [1, 1]} : vector<8x256xf32> to vector<8x128xf32>
    %1408 = vector.extract_strided_slice %1406 {offsets = [0, 128], sizes = [8, 128], strides = [1, 1]} : vector<8x256xf32> to vector<8x128xf32>
    %1409 = vector.extract_strided_slice %1392 {offsets = [0, 256], sizes = [8, 128], strides = [1, 1]} : vector<8x384xf32> to vector<8x128xf32>
    %1410 = vector.extract_strided_slice %1396 {offsets = [0, 256], sizes = [8, 128], strides = [1, 1]} : vector<8x384xf32> to vector<8x128xf32>
    %c4_654 = arith.constant 4 : index
    %c0_655 = arith.constant 0 : index
    %c0_656 = arith.constant 0 : index
    %1411 = vector.load %arg6[%c4_654, %c0_655, %c0_656] : memref<5x1x128xf32, #tpu.memory_space<vmem>>, vector<1x1x128xf32>
    %1412 = vector.shape_cast %1411 : vector<1x1x128xf32> to vector<1x128xf32>
    %1413 = vector.broadcast %1412 : vector<1x128xf32> to vector<8x128xf32>
    %1414 = arith.addf %1410, %1413 : vector<8x128xf32>
    %1415 = arith.mulf %1407, %1414 : vector<8x128xf32>
    %1416 = arith.addf %1409, %1415 : vector<8x128xf32>
    %1417 = math.tanh %1416 : vector<8x128xf32>
    %cst_657 = arith.constant 1.000000e+00 : f32
    %1418 = vector.broadcast %cst_657 : f32 to vector<8x128xf32>
    %1419 = arith.subf %1418, %1408 : vector<8x128xf32>
    %1420 = arith.mulf %1419, %1417 : vector<8x128xf32>
    %1421 = arith.mulf %1408, %1384 : vector<8x128xf32>
    %1422 = arith.addf %1420, %1421 : vector<8x128xf32>
    %c0_658 = arith.constant 0 : index
    %c0_659 = arith.constant 0 : index
    %1423 = vector.load %arg7[%c0_658, %c0_659] : memref<128x128xf32, #tpu.memory_space<vmem>>, vector<128x128xf32>
    %cst_660 = arith.constant dense<0.000000e+00> : vector<8x128xf32>
    %1424 = tpu.matmul %1422, %1423, %cst_660 {dimension_numbers = #tpu.dot_dimension_numbers<[1], [0], [0], [1], [0, 0, 1, 1], [], []>} : vector<8x128xf32>, vector<128x128xf32>, vector<8x128xf32> -> vector<8x128xf32>
    %c0_661 = arith.constant 0 : index
    %c0_662 = arith.constant 0 : index
    %1425 = vector.load %arg8[%c0_661, %c0_662] : memref<1x128xf32, #tpu.memory_space<vmem>>, vector<1x128xf32>
    %1426 = vector.broadcast %1425 : vector<1x128xf32> to vector<8x128xf32>
    %1427 = arith.addf %1424, %1426 : vector<8x128xf32>
    %c0_663 = arith.constant 0 : index
    %c0_664 = arith.constant 0 : index
    %1428 = vector.load %arg9[%c0_663, %c0_664] : memref<8x128xf32, #tpu.memory_space<vmem>>, vector<8x128xf32>
    tpu.vector_store %arg9[%c0_663, %c0_664], %1427 {strides = array<i32>} : memref<8x128xf32, #tpu.memory_space<vmem>>, vector<8x128xf32>,
    return
  }
  func.func @transform_0(%arg0: i32) -> (i32, i32, i32) {
    %c0_i32 = arith.constant 0 : i32
    %c0_i32_0 = arith.constant 0 : i32
    %c0_i32_1 = arith.constant 0 : i32
    return %c0_i32, %arg0, %c0_i32_0 : i32, i32, i32
  }
  func.func @transform_1(%arg0: i32) -> (i32, i32) {
    %c0_i32 = arith.constant 0 : i32
    %c0_i32_0 = arith.constant 0 : i32
    %c0_i32_1 = arith.constant 0 : i32
    return %c0_i32, %c0_i32_0 : i32, i32
  }
  func.func @transform_2(%arg0: i32) -> (i32, i32, i32) {
    %c0_i32 = arith.constant 0 : i32
    %c0_i32_0 = arith.constant 0 : i32
    %c0_i32_1 = arith.constant 0 : i32
    %c0_i32_2 = arith.constant 0 : i32
    return %c0_i32, %c0_i32_0, %c0_i32_1 : i32, i32, i32
  }
  func.func @transform_3(%arg0: i32) -> (i32, i32, i32) {
    %c0_i32 = arith.constant 0 : i32
    %c0_i32_0 = arith.constant 0 : i32
    %c0_i32_1 = arith.constant 0 : i32
    %c0_i32_2 = arith.constant 0 : i32
    return %c0_i32, %c0_i32_0, %c0_i32_1 : i32, i32, i32
  }
  func.func @transform_4(%arg0: i32) -> (i32, i32, i32) {
    %c0_i32 = arith.constant 0 : i32
    %c0_i32_0 = arith.constant 0 : i32
    %c0_i32_1 = arith.constant 0 : i32
    %c0_i32_2 = arith.constant 0 : i32
    return %c0_i32, %c0_i32_0, %c0_i32_1 : i32, i32, i32
  }
  func.func @transform_5(%arg0: i32) -> (i32, i32, i32) {
    %c0_i32 = arith.constant 0 : i32
    %c0_i32_0 = arith.constant 0 : i32
    %c0_i32_1 = arith.constant 0 : i32
    %c0_i32_2 = arith.constant 0 : i32
    return %c0_i32, %c0_i32_0, %c0_i32_1 : i32, i32, i32
  }
  func.func @transform_6(%arg0: i32) -> (i32, i32) {
    %c0_i32 = arith.constant 0 : i32
    %c0_i32_0 = arith.constant 0 : i32
    %c0_i32_1 = arith.constant 0 : i32
    return %c0_i32, %c0_i32_0 : i32, i32
  }
  func.func @transform_7(%arg0: i32) -> (i32, i32) {
    %c0_i32 = arith.constant 0 : i32
    %c0_i32_0 = arith.constant 0 : i32
    %c0_i32_1 = arith.constant 0 : i32
    return %c0_i32, %c0_i32_0 : i32, i32
  }
  func.func @transform_8(%arg0: i32) -> (i32, i32) {
    %c0_i32 = arith.constant 0 : i32
    %c0_i32_0 = arith.constant 0 : i32
    return %arg0, %c0_i32 : i32, i32
  }
}

</mosaic_0001>

<llo_original>
// kernel: ner_forward.1
$region0: #{ner_forward.1}
  #allocation0 [shape = 'u32[]', space=smem, size = 0x4, offset = 0x4, fixed_abs, tag = 'smem constant byte address 0x4 - core index']
  #allocation1 [shape = 'u32[144,128]{1,0:T(1,128)}', space=vmem, size = 0x12000, scoped, tag = 'internal scratch']
  #allocation2 [shape = 'f32[64,384]{1,0:T(8,128)}', space=vmem, size = 0x18000, scoped, tag = 'scratch operand']
  %s0 = inlined_call_operand.vmem [shape: f32[8,8,128], index: 0, kind: input, shape index: {}]
  %s1 = inlined_call_operand.vmem [shape: f32[128,384], index: 1, kind: input, shape index: {}]
  %s2 = inlined_call_operand.vmem [shape: bf16[4,128,384], index: 2, kind: input, shape index: {}]
  %s3 = inlined_call_operand.vmem [shape: bf16[5,128,384], index: 3, kind: input, shape index: {}]
  %s4 = inlined_call_operand.vmem [shape: f32[5,1,384], index: 4, kind: input, shape index: {}]
  %s5 = inlined_call_operand.vmem [shape: f32[5,1,128], index: 5, kind: input, shape index: {}]
  %s6 = inlined_call_operand.vmem [shape: f32[128,128], index: 6, kind: input, shape index: {}]
  %s7 = inlined_call_operand.vmem [shape: f32[1,128], index: 7, kind: input, shape index: {}]
  %s8 = inlined_call_operand.vmem [shape: f32[8,128], index: 8, kind: output, shape index: {}]
  %s9 = sld [smem:[#allocation0]]
  $region42: #{ner_forward.1} parent=0
    _
  %s11 = ssub.s32 1, %s9
  %s12 = scalar_select 0, %s11, %s9
  // Predicated region
  $region2: #{ner_forward.1} parent=0 // pred_check
    _
  $region3: #{ner_forward.1} parent=0 // pred_check_branch
    %14 = sbr.rel (0) target = $region5
  $region4: #{ner_forward.1} parent=0 // pred_region
    _
  $region5: #{ner_forward.1} parent=0 // pred_fallthru
    _
  // Predicated region
  $region6: #{ner_forward.1} parent=0 // pred_check
    _
  $region7: #{ner_forward.1} parent=0 // pred_check_branch
    %16 = sbr.rel (0) target = $region9
  $region8: #{ner_forward.1} parent=0 // pred_region
    _
  $region9: #{ner_forward.1} parent=0 // pred_fallthru
    _
  // Predicated region
  $region10: #{ner_forward.1} parent=0 // pred_check
    _
  $region11: #{ner_forward.1} parent=0 // pred_check_branch
    %18 = sbr.rel (0) target = $region13
  $region12: #{ner_forward.1} parent=0 // pred_region
    _
  $region13: #{ner_forward.1} parent=0 // pred_fallthru
    _
  // Predicated region
  $region14: #{ner_forward.1} parent=0 // pred_check
    _
  $region15: #{ner_forward.1} parent=0 // pred_check_branch
    %20 = sbr.rel (0) target = $region17
  $region16: #{ner_forward.1} parent=0 // pred_region
    _
  $region17: #{ner_forward.1} parent=0 // pred_fallthru
    _
  // Predicated region
  $region18: #{ner_forward.1} parent=0 // pred_check
    _
  $region19: #{ner_forward.1} parent=0 // pred_check_branch
    %22 = sbr.rel (0) target = $region21
  $region20: #{ner_forward.1} parent=0 // pred_region
    _
  $region21: #{ner_forward.1} parent=0 // pred_fallthru
    _
  // Predicated region
  $region22: #{ner_forward.1} parent=0 // pred_check
    _
  $region23: #{ner_forward.1} parent=0 // pred_check_branch
    %24 = sbr.rel (0) target = $region25
  $region24: #{ner_forward.1} parent=0 // pred_region
    _
  $region25: #{ner_forward.1} parent=0 // pred_fallthru
    _
  // Predicated region
  $region26: #{ner_forward.1} parent=0 // pred_check
    _
  $region27: #{ner_forward.1} parent=0 // pred_check_branch
    %26 = sbr.rel (0) target = $region29
  $region28: #{ner_forward.1} parent=0 // pred_region
    _
  $region29: #{ner_forward.1} parent=0 // pred_fallthru
    _
  // Predicated region
  $region30: #{ner_forward.1} parent=0 // pred_check
    _
  $region31: #{ner_forward.1} parent=0 // pred_check_branch
    %28 = sbr.rel (0) target = $region33
  $region32: #{ner_forward.1} parent=0 // pred_region
    _
  $region33: #{ner_forward.1} parent=0 // pred_fallthru
    _
  %v30 = vld [vmem:[%s0] sm:$0xff]
  %v31 = vld [vmem:[%s0 + $0x8] sm:$0xff]
  %v32 = vld [vmem:[%s0 + $0x10] sm:$0xff]
  %v33 = vld [vmem:[%s0 + $0x18] sm:$0xff]
  %v34 = vld [vmem:[%s0 + $0x20] sm:$0xff]
  %v35 = vld [vmem:[%s0 + $0x28] sm:$0xff]
  %v36 = vld [vmem:[%s0 + $0x30] sm:$0xff]
  %v37 = vld [vmem:[%s0 + $0x38] sm:$0xff]
  %v38 = vld [vmem:[%s1] sm:$0xff]
  %v39 = vld [vmem:[%s1 + $0x8] sm:$0xff]
  %v40 = vld [vmem:[%s1 + $0x10] sm:$0xff]
  %v41 = vld [vmem:[%s1 + $0x18] sm:$0xff]
  %v42 = vld [vmem:[%s1 + $0x20] sm:$0xff]
  %v43 = vld [vmem:[%s1 + $0x28] sm:$0xff]
  %v44 = vld [vmem:[%s1 + $0x30] sm:$0xff]
  %v45 = vld [vmem:[%s1 + $0x38] sm:$0xff]
  %v46 = vld [vmem:[%s1 + $0x40] sm:$0xff]
  %v47 = vld [vmem:[%s1 + $0x48] sm:$0xff]
  %v48 = vld [vmem:[%s1 + $0x50] sm:$0xff]
  %v49 = vld [vmem:[%s1 + $0x58] sm:$0xff]
  %v50 = vld [vmem:[%s1 + $0x60] sm:$0xff]
  %v51 = vld [vmem:[%s1 + $0x68] sm:$0xff]
  %v52 = vld [vmem:[%s1 + $0x70] sm:$0xff]
  %v53 = vld [vmem:[%s1 + $0x78] sm:$0xff]
  %v54 = vld [vmem:[%s1 + $0x80] sm:$0xff]
  %v55 = vld [vmem:[%s1 + $0x88] sm:$0xff]
  %v56 = vld [vmem:[%s1 + $0x90] sm:$0xff]
  %v57 = vld [vmem:[%s1 + $0x98] sm:$0xff]
  %v58 = vld [vmem:[%s1 + $0xa0] sm:$0xff]
  %v59 = vld [vmem:[%s1 + $0xa8] sm:$0xff]
  %v60 = vld [vmem:[%s1 + $0xb0] sm:$0xff]
  %v61 = vld [vmem:[%s1 + $0xb8] sm:$0xff]
  %v62 = vld [vmem:[%s1 + $0xc0] sm:$0xff]
  %v63 = vld [vmem:[%s1 + $0xc8] sm:$0xff]
  %v64 = vld [vmem:[%s1 + $0xd0] sm:$0xff]
  %v65 = vld [vmem:[%s1 + $0xd8] sm:$0xff]
  %v66 = vld [vmem:[%s1 + $0xe0] sm:$0xff]
  %v67 = vld [vmem:[%s1 + $0xe8] sm:$0xff]
  %v68 = vld [vmem:[%s1 + $0xf0] sm:$0xff]
  %v69 = vld [vmem:[%s1 + $0xf8] sm:$0xff]
  %v70 = vld [vmem:[%s1 + $0x100] sm:$0xff]
  %v71 = vld [vmem:[%s1 + $0x108] sm:$0xff]
  %v72 = vld [vmem:[%s1 + $0x110] sm:$0xff]
  %v73 = vld [vmem:[%s1 + $0x118] sm:$0xff]
  %v74 = vld [vmem:[%s1 + $0x120] sm:$0xff]
  %v75 = vld [vmem:[%s1 + $0x128] sm:$0xff]
  %v76 = vld [vmem:[%s1 + $0x130] sm:$0xff]
  %v77 = vld [vmem:[%s1 + $0x138] sm:$0xff]
  %v78 = vld [vmem:[%s1 + $0x140] sm:$0xff]
  %v79 = vld [vmem:[%s1 + $0x148] sm:$0xff]
  %v80 = vld [vmem:[%s1 + $0x150] sm:$0xff]
  %v81 = vld [vmem:[%s1 + $0x158] sm:$0xff]
  %v82 = vld [vmem:[%s1 + $0x160] sm:$0xff]
  %v83 = vld [vmem:[%s1 + $0x168] sm:$0xff]
  %v84 = vld [vmem:[%s1 + $0x170] sm:$0xff]
  %v85 = vld [vmem:[%s1 + $0x178] sm:$0xff]
  %v86 = vld [vmem:[%s4] sm:$0x7]
  %v88 = vlaneseq
  %v89 = vshrl.u32 %v88, 7
  %v90 = vsub.s32 0, %v89
  %v91 = vrot.slane %v86, %v90
  %v92 = vlaneseq
  %v93 = vshrl.u32 %v92, 7
  %v94 = vsub.s32 1, %v93
  %v95 = vrot.slane %v86, %v94
  %v96 = vlaneseq
  %v97 = vshrl.u32 %v96, 7
  %v98 = vsub.s32 2, %v97
  %v99 = vrot.slane %v86, %v98
  %103 = vmatprep.subr.mxu0 %v39
  %104 = vmatpush1.msra.mxu0 %v38
  %105 = vmatprep.subr.mxu0 %v42
  %106 = vmatpush1.msra.mxu0 %v41
  %107 = vmatprep.subr.mxu0 %v45
  %108 = vmatpush1.msra.mxu0 %v44
  %109 = vmatprep.subr.mxu0 %v48
  %110 = vmatpush1.msra.mxu0 %v47
  %111 = vmatprep.subr.mxu0 %v51
  %112 = vmatpush1.msra.mxu0 %v50
  %113 = vmatprep.subr.mxu0 %v54
  %114 = vmatpush1.msra.mxu0 %v53
  %115 = vmatprep.subr.mxu0 %v57
  %116 = vmatpush1.msra.mxu0 %v56
  %117 = vmatprep.subr.mxu0 %v60
  %118 = vmatpush1.msra.mxu0 %v59
  %119 = vmatprep.subr.mxu0 %v63
  %120 = vmatpush1.msra.mxu0 %v62
  %121 = vmatprep.subr.mxu0 %v66
  %122 = vmatpush1.msra.mxu0 %v65
  %123 = vmatprep.subr.mxu0 %v69
  %124 = vmatpush1.msra.mxu0 %v68
  %125 = vmatprep.subr.mxu0 %v72
  %126 = vmatpush1.msra.mxu0 %v71
  %127 = vmatprep.subr.mxu0 %v75
  %128 = vmatpush1.msra.mxu0 %v74
  %129 = vmatprep.subr.mxu0 %v78
  %130 = vmatpush1.msra.mxu0 %v77
  %131 = vmatprep.subr.mxu0 %v81
  %132 = vmatpush1.msra.mxu0 %v80
  %133 = vmatprep.subr.mxu0 %v84
  %134 = vmatpush1.msra.mxu0 %v83
  %135 = vmatprep.subr.mxu0 0.0
  %136 = vmatpush1.msra.mxu0 0.0
  %137 = vmatprep.subr.mxu0 0.0
  %138 = vmatpush1.msra.mxu0 0.0
  %139 = vmatprep.subr.mxu0 0.0
  %140 = vmatpush1.msra.mxu0 0.0
  %141 = vmatprep.subr.mxu0 0.0
  %142 = vmatpush1.msra.mxu0 0.0
  %143 = vmatprep.subr.mxu0 0.0
  %144 = vmatpush1.msra.mxu0 0.0
  %145 = vmatprep.subr.mxu0 0.0
  %146 = vmatpush1.msra.mxu0 0.0
  %147 = vmatprep.subr.mxu0 0.0
  %148 = vmatpush1.msra.mxu0 0.0
  %149 = vmatprep.subr.mxu0 0.0
  %150 = vmatpush1.msra.mxu0 0.0
  %151 = vmatprep.subr.mxu0 0.0
  %152 = vmatpush1.msra.mxu0 0.0
  %153 = vmatprep.subr.mxu0 0.0
  %154 = vmatpush1.msra.mxu0 0.0
  %155 = vmatprep.subr.mxu0 0.0
  %156 = vmatpush1.msra.mxu0 0.0
  %157 = vmatprep.subr.mxu0 0.0
  %158 = vmatpush1.msra.mxu0 0.0
  %159 = vmatprep.subr.mxu0 0.0
  %160 = vmatpush1.msra.mxu0 0.0
  %161 = vmatprep.subr.mxu0 0.0
  %162 = vmatpush1.msra.mxu0 0.0
  %163 = vmatprep.subr.mxu0 0.0
  %164 = vmatpush1.msra.mxu0 0.0
  %165 = vmatprep.subr.mxu0 0.0
  %166 = vmatpush1.msra.mxu0 0.0
  %167 = vmatprep.mubr.f32.mxu0 0.0
  %168 = vmatmul.mubr.f32.gmra.mrb[0].mxu0 %v30
  %v169 = vpop.f32.mrb[0].mxu0
  %v170 = vadd.f32 %v91, %v169
  %v171 = vpop.f32.mrb[0].mxu0
  %v172 = vadd.f32 %v95, %v171
  %173 = vmatprep.mubr.f32.mxu0 0.0
  %174 = vmatmul.mubr.f32.gmra.mrb[0].mxu0 %v31
  %v175 = vpop.f32.mrb[0].mxu0
  %v176 = vadd.f32 %v91, %v175
  %v177 = vpop.f32.mrb[0].mxu0
  %v178 = vadd.f32 %v95, %v177
  %179 = vmatprep.mubr.f32.mxu0 0.0
  %180 = vmatmul.mubr.f32.gmra.mrb[0].mxu0 %v32
  %v181 = vpop.f32.mrb[0].mxu0
  %v182 = vadd.f32 %v91, %v181
  %v183 = vpop.f32.mrb[0].mxu0
  %v184 = vadd.f32 %v95, %v183
  %185 = vmatprep.mubr.f32.mxu0 0.0
  %186 = vmatmul.mubr.f32.gmra.mrb[0].mxu0 %v33
  %v187 = vpop.f32.mrb[0].mxu0
  %v188 = vadd.f32 %v91, %v187
  %v189 = vpop.f32.mrb[0].mxu0
  %v190 = vadd.f32 %v95, %v189
  %191 = vmatprep.mubr.f32.mxu0 0.0
  %192 = vmatmul.mubr.f32.gmra.mrb[0].mxu0 %v34
  %v193 = vpop.f32.mrb[0].mxu0
  %v194 = vadd.f32 %v91, %v193
  %v195 = vpop.f32.mrb[0].mxu0
  %v196 = vadd.f32 %v95, %v195
  %197 = vmatprep.mubr.f32.mxu0 0.0
  %198 = vmatmul.mubr.f32.gmra.mrb[0].mxu0 %v35
  %v199 = vpop.f32.mrb[0].mxu0
  %v200 = vadd.f32 %v91, %v199
  %v201 = vpop.f32.mrb[0].mxu0
  %v202 = vadd.f32 %v95, %v201
  %203 = vmatprep.mubr.f32.mxu0 0.0
  %204 = vmatmul.mubr.f32.gmra.mrb[0].mxu0 %v36
  %v205 = vpop.f32.mrb[0].mxu0
  %v206 = vadd.f32 %v91, %v205
  %v207 = vpop.f32.mrb[0].mxu0
  %v208 = vadd.f32 %v95, %v207
  %209 = vmatprep.mubr.f32.mxu0 0.0
  %210 = vmatmul.mubr.f32.gmra.mrb[0].mxu0 %v37
  %v211 = vpop.f32.mrb[0].mxu0
  %v212 = vadd.f32 %v91, %v211
  %v213 = vpop.f32.mrb[0].mxu0
  %v214 = vadd.f32 %v95, %v213
  %215 = vdwg.mxu0
  %216 = vmatprep.subr.mxu0 0.0
  %217 = vmatpush1.msra.mxu0 %v40
  %218 = vmatprep.subr.mxu0 0.0
  %219 = vmatpush1.msra.mxu0 %v43
  %220 = vmatprep.subr.mxu0 0.0
  %221 = vmatpush1.msra.mxu0 %v46
  %222 = vmatprep.subr.mxu0 0.0
  %223 = vmatpush1.msra.mxu0 %v49
  %224 = vmatprep.subr.mxu0 0.0
  %225 = vmatpush1.msra.mxu0 %v52
  %226 = vmatprep.subr.mxu0 0.0
  %227 = vmatpush1.msra.mxu0 %v55
  %228 = vmatprep.subr.mxu0 0.0
  %229 = vmatpush1.msra.mxu0 %v58
  %230 = vmatprep.subr.mxu0 0.0
  %231 = vmatpush1.msra.mxu0 %v61
  %232 = vmatprep.subr.mxu0 0.0
  %233 = vmatpush1.msra.mxu0 %v64
  %234 = vmatprep.subr.mxu0 0.0
  %235 = vmatpush1.msra.mxu0 %v67
  %236 = vmatprep.subr.mxu0 0.0
  %237 = vmatpush1.msra.mxu0 %v70
  %238 = vmatprep.subr.mxu0 0.0
  %239 = vmatpush1.msra.mxu0 %v73
  %240 = vmatprep.subr.mxu0 0.0
  %241 = vmatpush1.msra.mxu0 %v76
  %242 = vmatprep.subr.mxu0 0.0
  %243 = vmatpush1.msra.mxu0 %v79
  %244 = vmatprep.subr.mxu0 0.0
  %245 = vmatpush1.msra.mxu0 %v82
  %246 = vmatprep.subr.mxu0 0.0
  %247 = vmatpush1.msra.mxu0 %v85
  %248 = vmatprep.subr.mxu0 0.0
  %249 = vmatpush1.msra.mxu0 0.0
  %250 = vmatprep.subr.mxu0 0.0
  %251 = vmatpush1.msra.mxu0 0.0
  %252 = vmatprep.subr.mxu0 0.0
  %253 = vmatpush1.msra.mxu0 0.0
  %254 = vmatprep.subr.mxu0 0.0
  %255 = vmatpush1.msra.mxu0 0.0
  %256 = vmatprep.subr.mxu0 0.0
  %257 = vmatpush1.msra.mxu0 0.0
  %258 = vmatprep.subr.mxu0 0.0
  %259 = vmatpush1.msra.mxu0 0.0
  %260 = vmatprep.subr.mxu0 0.0
  %261 = vmatpush1.msra.mxu0 0.0
  %262 = vmatprep.subr.mxu0 0.0
  %263 = vmatpush1.msra.mxu0 0.0
  %264 = vmatprep.subr.mxu0 0.0
  %265 = vmatpush1.msra.mxu0 0.0
  %266 = vmatprep.subr.mxu0 0.0
  %267 = vmatpush1.msra.mxu0 0.0
  %268 = vmatprep.subr.mxu0 0.0
  %269 = vmatpush1.msra.mxu0 0.0
  %270 = vmatprep.subr.mxu0 0.0
  %271 = vmatpush1.msra.mxu0 0.0
  %272 = vmatprep.subr.mxu0 0.0
  %273 = vmatpush1.msra.mxu0 0.0
  %274 = vmatprep.subr.mxu0 0.0
  %275 = vmatpush1.msra.mxu0 0.0
  %276 = vmatprep.subr.mxu0 0.0
  %277 = vmatpush1.msra.mxu0 0.0
  %278 = vmatprep.subr.mxu0 0.0
  %279 = vmatpush1.msra.mxu0 0.0
  %280 = vmatprep.mubr.f32.mxu0 0.0
  %281 = vmatmul.mubr.f32.gmra.mrb[0].mxu0 %v30
  %v282 = vpop.f32.mrb[0].mxu0
  %v283 = vadd.f32 %v99, %v282
  %v284 = vpop.f32.mrb[0].mxu0
  %285 = vmatprep.mubr.f32.mxu0 0.0
  %286 = vmatmul.mubr.f32.gmra.mrb[0].mxu0 %v31
  %v287 = vpop.f32.mrb[0].mxu0
  %v288 = vadd.f32 %v99, %v287
  %v289 = vpop.f32.mrb[0].mxu0
  %290 = vmatprep.mubr.f32.mxu0 0.0
  %291 = vmatmul.mubr.f32.gmra.mrb[0].mxu0 %v32
  %v292 = vpop.f32.mrb[0].mxu0
  %v293 = vadd.f32 %v99, %v292
  %v294 = vpop.f32.mrb[0].mxu0
  %295 = vmatprep.mubr.f32.mxu0 0.0
  %296 = vmatmul.mubr.f32.gmra.mrb[0].mxu0 %v33
  %v297 = vpop.f32.mrb[0].mxu0
  %v298 = vadd.f32 %v99, %v297
  %v299 = vpop.f32.mrb[0].mxu0
  %300 = vmatprep.mubr.f32.mxu0 0.0
  %301 = vmatmul.mubr.f32.gmra.mrb[0].mxu0 %v34
  %v302 = vpop.f32.mrb[0].mxu0
  %v303 = vadd.f32 %v99, %v302
  %v304 = vpop.f32.mrb[0].mxu0
  %305 = vmatprep.mubr.f32.mxu0 0.0
  %306 = vmatmul.mubr.f32.gmra.mrb[0].mxu0 %v35
  %v307 = vpop.f32.mrb[0].mxu0
  %v308 = vadd.f32 %v99, %v307
  %v309 = vpop.f32.mrb[0].mxu0
  %310 = vmatprep.mubr.f32.mxu0 0.0
  %311 = vmatmul.mubr.f32.gmra.mrb[0].mxu0 %v36
  %v312 = vpop.f32.mrb[0].mxu0
  %v313 = vadd.f32 %v99, %v312
  %v314 = vpop.f32.mrb[0].mxu0
  %315 = vmatprep.mubr.f32.mxu0 0.0
  %316 = vmatmul.mubr.f32.gmra.mrb[0].mxu0 %v37
  %v317 = vpop.f32.mrb[0].mxu0
  %v318 = vadd.f32 %v99, %v317
  %v319 = vpop.f32.mrb[0].mxu0
  %320 = vdwg.mxu0
  %321 = vst [vmem:[#allocation2] sm:$0xff] %v170
  %322 = vst [vmem:[#allocation2 + $0x8] sm:$0xff] %v172
  %323 = vst [vmem:[#allocation2 + $0x10] sm:$0xff] %v283
  %324 = vst [vmem:[#allocation2 + $0x18] sm:$0xff] %v176
  %325 = vst [vmem:[#allocation2 + $0x20] sm:$0xff] %v178
  %326 = vst [vmem:[#allocation2 + $0x28] sm:$0xff] %v288
  %327 = vst [vmem:[#allocation2 + $0x30] sm:$0xff] %v182
  %328 = vst [vmem:[#allocation2 + $0x38] sm:$0xff] %v184
  %329 = vst [vmem:[#allocation2 + $0x40] sm:$0xff] %v293
  %330 = vst [vmem:[#allocation2 + $0x48] sm:$0xff] %v188
  %331 = vst [vmem:[#allocation2 + $0x50] sm:$0xff] %v190
  %332 = vst [vmem:[#allocation2 + $0x58] sm:$0xff] %v298
  %333 = vst [vmem:[#allocation2 + $0x60] sm:$0xff] %v194
  %334 = vst [vmem:[#allocation2 + $0x68] sm:$0xff] %v196
  %335 = vst [vmem:[#allocation2 + $0x70] sm:$0xff] %v303
  %336 = vst [vmem:[#allocation2 + $0x78] sm:$0xff] %v200
  %337 = vst [vmem:[#allocation2 + $0x80] sm:$0xff] %v202
  %338 = vst [vmem:[#allocation2 + $0x88] sm:$0xff] %v308
  %339 = vst [vmem:[#allocation2 + $0x90] sm:$0xff] %v206
  %340 = vst [vmem:[#allocation2 + $0x98] sm:$0xff] %v208
  %341 = vst [vmem:[#allocation2 + $0xa0] sm:$0xff] %v313
  %342 = vst [vmem:[#allocation2 + $0xa8] sm:$0xff] %v212
  %343 = vst [vmem:[#allocation2 + $0xb0] sm:$0xff] %v214
  %344 = vst [vmem:[#allocation2 + $0xb8] sm:$0xff] %v318
  %v345 = vld [vmem:[#allocation2] sm:$0xff]
  %v346 = vld [vmem:[#allocation2 + $0x8] sm:$0xff]
  %v347 = vld [vmem:[#allocation2 + $0x10] sm:$0xff]
  %v348 = vmul.f32 %v345, 0.5
  %v349 = vmul.f32 %v346, 0.5
  %v350 = vtanh.pop %v348
  %v351 = vtanh.pop %v349
  %v352 = vadd.f32 %v350, 1.0
  %v353 = vadd.f32 %v351, 1.0
  %v354 = vmul.f32 %v352, 0.5
  %v355 = vmul.f32 %v353, 0.5
  %v356 = vld [vmem:[%s5] sm:$0x1]
  %v358 = vlaneseq
  %v359 = vshrl.u32 %v358, 7
  %v360 = vsub.s32 0, %v359
  %v361 = vrot.slane %v356, %v360
  %v363 = vmul.f32 %v354, %v361
  %v364 = vadd.f32 %v347, %v363
  %v365 = vtanh.pop %v364
  %v366 = vsub.f32 1.0, %v355
  %v367 = vmul.f32 %v366, %v365
  %v368 = vld [vmem:[#allocation2 + $0x18] sm:$0xff]
  %v369 = vld [vmem:[#allocation2 + $0x20] sm:$0xff]
  %v370 = vld [vmem:[#allocation2 + $0x28] sm:$0xff]
  %v371 = vpack.c.bf16 %v367, %v367
  %v372 = vld [vmem:[%s3] sm:$0xff]
  %v373 = vld [vmem:[%s3 + $0x8] sm:$0xf]
  %v374 = vld [vmem:[%s3 + $0xc] sm:$0xff]
  %v375 = vld [vmem:[%s3 + $0x14] sm:$0xf]
  %v376 = vld [vmem:[%s3 + $0x18] sm:$0xff]
  %v377 = vld [vmem:[%s3 + $0x20] sm:$0xf]
  %v378 = vld [vmem:[%s3 + $0x24] sm:$0xff]
  %v379 = vld [vmem:[%s3 + $0x2c] sm:$0xf]
  %v380 = vld [vmem:[%s3 + $0x30] sm:$0xff]
  %v381 = vld [vmem:[%s3 + $0x38] sm:$0xf]
  %v382 = vld [vmem:[%s3 + $0x3c] sm:$0xff]
  %v383 = vld [vmem:[%s3 + $0x44] sm:$0xf]
  %v384 = vld [vmem:[%s3 + $0x48] sm:$0xff]
  %v385 = vld [vmem:[%s3 + $0x50] sm:$0xf]
  %v386 = vld [vmem:[%s3 + $0x54] sm:$0xff]
  %v387 = vld [vmem:[%s3 + $0x5c] sm:$0xf]
  %v388 = vld [vmem:[%s3 + $0x60] sm:$0xff]
  %v389 = vld [vmem:[%s3 + $0x68] sm:$0xf]
  %v390 = vld [vmem:[%s3 + $0x6c] sm:$0xff]
  %v391 = vld [vmem:[%s3 + $0x74] sm:$0xf]
  %v392 = vld [vmem:[%s3 + $0x78] sm:$0xff]
  %v393 = vld [vmem:[%s3 + $0x80] sm:$0xf]
  %v394 = vld [vmem:[%s3 + $0x84] sm:$0xff]
  %v395 = vld [vmem:[%s3 + $0x8c] sm:$0xf]
  %v396 = vld [vmem:[%s3 + $0x90] sm:$0xff]
  %v397 = vld [vmem:[%s3 + $0x98] sm:$0xf]
  %v398 = vld [vmem:[%s3 + $0x9c] sm:$0xff]
  %v399 = vld [vmem:[%s3 + $0xa4] sm:$0xf]
  %v400 = vld [vmem:[%s3 + $0xa8] sm:$0xff]
  %v401 = vld [vmem:[%s3 + $0xb0] sm:$0xf]
  %v402 = vld [vmem:[%s3 + $0xb4] sm:$0xff]
  %v403 = vld [vmem:[%s3 + $0xbc] sm:$0xf]
  %v436 = vunpack.c.l.b16 %v372
  %v437 = vunpack.c.h.b16 %v372
  %v438 = vunpack.c.l.b16 %v373
  %v439 = vunpack.c.l.b16 %v374
  %v440 = vunpack.c.h.b16 %v374
  %v441 = vunpack.c.l.b16 %v375
  %v442 = vunpack.c.l.b16 %v376
  %v443 = vunpack.c.h.b16 %v376
  %v444 = vunpack.c.l.b16 %v377
  %v445 = vunpack.c.l.b16 %v378
  %v446 = vunpack.c.h.b16 %v378
  %v447 = vunpack.c.l.b16 %v379
  %v448 = vunpack.c.l.b16 %v380
  %v449 = vunpack.c.h.b16 %v380
  %v450 = vunpack.c.l.b16 %v381
  %v451 = vunpack.c.l.b16 %v382
  %v452 = vunpack.c.h.b16 %v382
  %v453 = vunpack.c.l.b16 %v383
  %v454 = vunpack.c.l.b16 %v384
  %v455 = vunpack.c.h.b16 %v384
  %v456 = vunpack.c.l.b16 %v385
  %v457 = vunpack.c.l.b16 %v386
  %v458 = vunpack.c.h.b16 %v386
  %v459 = vunpack.c.l.b16 %v387
  %v460 = vunpack.c.l.b16 %v388
  %v461 = vunpack.c.h.b16 %v388
  %v462 = vunpack.c.l.b16 %v389
  %v463 = vunpack.c.l.b16 %v390
  %v464 = vunpack.c.h.b16 %v390
  %v465 = vunpack.c.l.b16 %v391
  %v466 = vunpack.c.l.b16 %v392
  %v467 = vunpack.c.h.b16 %v392
  %v468 = vunpack.c.l.b16 %v393
  %v469 = vunpack.c.l.b16 %v394
  %v470 = vunpack.c.h.b16 %v394
  %v471 = vunpack.c.l.b16 %v395
  %v472 = vunpack.c.l.b16 %v396
  %v473 = vunpack.c.h.b16 %v396
  %v474 = vunpack.c.l.b16 %v397
  %v475 = vunpack.c.l.b16 %v398
  %v476 = vunpack.c.h.b16 %v398
  %v477 = vunpack.c.l.b16 %v399
  %v478 = vunpack.c.l.b16 %v400
  %v479 = vunpack.c.h.b16 %v400
  %v480 = vunpack.c.l.b16 %v401
  %v481 = vunpack.c.l.b16 %v402
  %v482 = vunpack.c.h.b16 %v402
  %v483 = vunpack.c.l.b16 %v403
  %v484 = vpack.c.b16 %v439, %v436
  %v485 = vpack.c.b16 %v440, %v437
  %v486 = vpack.c.b16 %v441, %v438
  %v487 = vpack.c.b16 %v445, %v442
  %v488 = vpack.c.b16 %v446, %v443
  %v489 = vpack.c.b16 %v447, %v444
  %v490 = vpack.c.b16 %v451, %v448
  %v491 = vpack.c.b16 %v452, %v449
  %v492 = vpack.c.b16 %v453, %v450
  %v493 = vpack.c.b16 %v457, %v454
  %v494 = vpack.c.b16 %v458, %v455
  %v495 = vpack.c.b16 %v459, %v456
  %v496 = vpack.c.b16 %v463, %v460
  %v497 = vpack.c.b16 %v464, %v461
  %v498 = vpack.c.b16 %v465, %v462
  %v499 = vpack.c.b16 %v469, %v466
  %v500 = vpack.c.b16 %v470, %v467
  %v501 = vpack.c.b16 %v471, %v468
  %v502 = vpack.c.b16 %v475, %v472
  %v503 = vpack.c.b16 %v476, %v473
  %v504 = vpack.c.b16 %v477, %v474
  %v505 = vpack.c.b16 %v481, %v478
  %v506 = vpack.c.b16 %v482, %v479
  %v507 = vpack.c.b16 %v483, %v480
  %532 = vmatprep.subr.bf16.mxu0 %v485
  %533 = vmatpush1.bf16.msra.mxu0 %v484
  %534 = vmatprep.subr.bf16.mxu0 %v488
  %535 = vmatpush1.bf16.msra.mxu0 %v487
  %536 = vmatprep.subr.bf16.mxu0 %v491
  %537 = vmatpush1.bf16.msra.mxu0 %v490
  %538 = vmatprep.subr.bf16.mxu0 %v494
  %539 = vmatpush1.bf16.msra.mxu0 %v493
  %540 = vmatprep.subr.bf16.mxu0 %v497
  %541 = vmatpush1.bf16.msra.mxu0 %v496
  %542 = vmatprep.subr.bf16.mxu0 %v500
  %543 = vmatpush1.bf16.msra.mxu0 %v499
  %544 = vmatprep.subr.bf16.mxu0 %v503
  %545 = vmatpush1.bf16.msra.mxu0 %v502
  %546 = vmatprep.subr.bf16.mxu0 %v506
  %547 = vmatpush1.bf16.msra.mxu0 %v505
  %548 = vmatprep.subr.bf16.mxu0 0
  %549 = vmatpush1.bf16.msra.mxu0 0
  %550 = vmatprep.subr.bf16.mxu0 0
  %551 = vmatpush1.bf16.msra.mxu0 0
  %552 = vmatprep.subr.bf16.mxu0 0
  %553 = vmatpush1.bf16.msra.mxu0 0
  %554 = vmatprep.subr.bf16.mxu0 0
  %555 = vmatpush1.bf16.msra.mxu0 0
  %556 = vmatprep.subr.bf16.mxu0 0
  %557 = vmatpush1.bf16.msra.mxu0 0
  %558 = vmatprep.subr.bf16.mxu0 0
  %559 = vmatpush1.bf16.msra.mxu0 0
  %560 = vmatprep.subr.bf16.mxu0 0
  %561 = vmatpush1.bf16.msra.mxu0 0
  %562 = vmatprep.subr.bf16.mxu0 0
  %563 = vmatpush1.bf16.msra.mxu0 0
  %564 = vmatprep.mubr.bf16.mxu0 0
  %565 = vmatmul.mubr.bf16.gmra.mrb[0].mxu0 %v371
  %v566 = vpop.f32.mrb[0].mxu0
  %v567 = vadd.f32 0.0, %v566
  %v568 = vpop.f32.mrb[0].mxu0
  %v569 = vadd.f32 0.0, %v568
  %v570 = vpop.f32.mrb[0].mxu0
  %v571 = vpop.f32.mrb[0].mxu0
  %572 = vdwg.mxu0
  %573 = vmatprep.subr.bf16.mxu0 0
  %574 = vmatpush1.bf16.msra.mxu0 %v486
  %575 = vmatprep.subr.bf16.mxu0 0
  %576 = vmatpush1.bf16.msra.mxu0 %v489
  %577 = vmatprep.subr.bf16.mxu0 0
  %578 = vmatpush1.bf16.msra.mxu0 %v492
  %579 = vmatprep.subr.bf16.mxu0 0
  %580 = vmatpush1.bf16.msra.mxu0 %v495
  %581 = vmatprep.subr.bf16.mxu0 0
  %582 = vmatpush1.bf16.msra.mxu0 %v498
  %583 = vmatprep.subr.bf16.mxu0 0
  %584 = vmatpush1.bf16.msra.mxu0 %v501
  %585 = vmatprep.subr.bf16.mxu0 0
  %586 = vmatpush1.bf16.msra.mxu0 %v504
  %587 = vmatprep.subr.bf16.mxu0 0
  %588 = vmatpush1.bf16.msra.mxu0 %v507
  %589 = vmatprep.subr.bf16.mxu0 0
  %590 = vmatpush1.bf16.msra.mxu0 0
  %591 = vmatprep.subr.bf16.mxu0 0
  %592 = vmatpush1.bf16.msra.mxu0 0
  %593 = vmatprep.subr.bf16.mxu0 0
  %594 = vmatpush1.bf16.msra.mxu0 0
  %595 = vmatprep.subr.bf16.mxu0 0
  %596 = vmatpush1.bf16.msra.mxu0 0
  %597 = vmatprep.subr.bf16.mxu0 0
  %598 = vmatpush1.bf16.msra.mxu0 0
  %599 = vmatprep.subr.bf16.mxu0 0
  %600 = vmatpush1.bf16.msra.mxu0 0
  %601 = vmatprep.subr.bf16.mxu0 0
  %602 = vmatpush1.bf16.msra.mxu0 0
  %603 = vmatprep.subr.bf16.mxu0 0
  %604 = vmatpush1.bf16.msra.mxu0 0
  %605 = vmatprep.mubr.bf16.mxu0 0
  %606 = vmatmul.mubr.bf16.gmra.mrb[0].mxu0 %v371
  %v607 = vpop.f32.mrb[0].mxu0
  %v608 = vadd.f32 0.0, %v607
  %v609 = vpop.f32.mrb[0].mxu0
  %v610 = vpop.f32.mrb[0].mxu0
  %v611 = vpop.f32.mrb[0].mxu0
  %612 = vdwg.mxu0
  %v613 = vadd.f32 %v368, %v567
  %v614 = vadd.f32 %v369, %v569
  %v615 = vmul.f32 %v613, 0.5
  %v616 = vmul.f32 %v614, 0.5
  %v617 = vtanh.pop %v615
  %v618 = vtanh.pop %v616
  %v619 = vadd.f32 %v617, 1.0
  %v620 = vadd.f32 %v618, 1.0
  %v621 = vmul.f32 %v619, 0.5
  %v622 = vmul.f32 %v620, 0.5
  %v623 = vadd.f32 %v608, %v361
  %v624 = vmul.f32 %v621, %v623
  %v625 = vadd.f32 %v370, %v624
  %v626 = vtanh.pop %v625
  %v627 = vsub.f32 1.0, %v622
  %v628 = vmul.f32 %v627, %v626
  %v629 = vmul.f32 %v622, %v367
  %v630 = vadd.f32 %v628, %v629
  %v631 = vld [vmem:[%s2] sm:$0xff]
  %v632 = vld [vmem:[%s2 + $0x8] sm:$0xf]
  %v633 = vld [vmem:[%s2 + $0xc] sm:$0xff]
  %v634 = vld [vmem:[%s2 + $0x14] sm:$0xf]
  %v635 = vld [vmem:[%s2 + $0x18] sm:$0xff]
  %v636 = vld [vmem:[%s2 + $0x20] sm:$0xf]
  %v637 = vld [vmem:[%s2 + $0x24] sm:$0xff]
  %v638 = vld [vmem:[%s2 + $0x2c] sm:$0xf]
  %v639 = vld [vmem:[%s2 + $0x30] sm:$0xff]
  %v640 = vld [vmem:[%s2 + $0x38] sm:$0xf]
  %v641 = vld [vmem:[%s2 + $0x3c] sm:$0xff]
  %v642 = vld [vmem:[%s2 + $0x44] sm:$0xf]
  %v643 = vld [vmem:[%s2 + $0x48] sm:$0xff]
  %v644 = vld [vmem:[%s2 + $0x50] sm:$0xf]
  %v645 = vld [vmem:[%s2 + $0x54] sm:$0xff]
  %v646 = vld [vmem:[%s2 + $0x5c] sm:$0xf]
  %v647 = vld [vmem:[%s2 + $0x60] sm:$0xff]
  %v648 = vld [vmem:[%s2 + $0x68] sm:$0xf]
  %v649 = vld [vmem:[%s2 + $0x6c] sm:$0xff]
  %v650 = vld [vmem:[%s2 + $0x74] sm:$0xf]
  %v651 = vld [vmem:[%s2 + $0x78] sm:$0xff]
  %v652 = vld [vmem:[%s2 + $0x80] sm:$0xf]
  %v653 = vld [vmem:[%s2 + $0x84] sm:$0xff]
  %v654 = vld [vmem:[%s2 + $0x8c] sm:$0xf]
  %v655 = vld [vmem:[%s2 + $0x90] sm:$0xff]
  %v656 = vld [vmem:[%s2 + $0x98] sm:$0xf]
  %v657 = vld [vmem:[%s2 + $0x9c] sm:$0xff]
  %v658 = vld [vmem:[%s2 + $0xa4] sm:$0xf]
  %v659 = vld [vmem:[%s2 + $0xa8] sm:$0xff]
  %v660 = vld [vmem:[%s2 + $0xb0] sm:$0xf]
  %v661 = vld [vmem:[%s2 + $0xb4] sm:$0xff]
  %v662 = vld [vmem:[%s2 + $0xbc] sm:$0xf]
  %s663 = scalar_lea.vmem %s4, 3
  %v664 = vld [vmem:[%s663] sm:$0x7]
  %v666 = vlaneseq
  %v667 = vshrl.u32 %v666, 7
  %v668 = vsub.s32 0, %v667
  %v669 = vrot.slane %v664, %v668
  %v670 = vlaneseq
  %v671 = vshrl.u32 %v670, 7
  %v672 = vsub.s32 1, %v671
  %v673 = vrot.slane %v664, %v672
  %v674 = vlaneseq
  %v675 = vshrl.u32 %v674, 7
  %v676 = vsub.s32 2, %v675
  %v677 = vrot.slane %v664, %v676
  %v713 = vunpack.c.l.b16 %v631
  %v714 = vunpack.c.h.b16 %v631
  %v715 = vunpack.c.l.b16 %v632
  %v716 = vunpack.c.l.b16 %v633
  %v717 = vunpack.c.h.b16 %v633
  %v718 = vunpack.c.l.b16 %v634
  %v719 = vunpack.c.l.b16 %v635
  %v720 = vunpack.c.h.b16 %v635
  %v721 = vunpack.c.l.b16 %v636
  %v722 = vunpack.c.l.b16 %v637
  %v723 = vunpack.c.h.b16 %v637
  %v724 = vunpack.c.l.b16 %v638
  %v725 = vunpack.c.l.b16 %v639
  %v726 = vunpack.c.h.b16 %v639
  %v727 = vunpack.c.l.b16 %v640
  %v728 = vunpack.c.l.b16 %v641
  %v729 = vunpack.c.h.b16 %v641
  %v730 = vunpack.c.l.b16 %v642
  %v731 = vunpack.c.l.b16 %v643
  %v732 = vunpack.c.h.b16 %v643
  %v733 = vunpack.c.l.b16 %v644
  %v734 = vunpack.c.l.b16 %v645
  %v735 = vunpack.c.h.b16 %v645
  %v736 = vunpack.c.l.b16 %v646
  %v737 = vunpack.c.l.b16 %v647
  %v738 = vunpack.c.h.b16 %v647
  %v739 = vunpack.c.l.b16 %v648
  %v740 = vunpack.c.l.b16 %v649
  %v741 = vunpack.c.h.b16 %v649
  %v742 = vunpack.c.l.b16 %v650
  %v743 = vunpack.c.l.b16 %v651
  %v744 = vunpack.c.h.b16 %v651
  %v745 = vunpack.c.l.b16 %v652
  %v746 = vunpack.c.l.b16 %v653
  %v747 = vunpack.c.h.b16 %v653
  %v748 = vunpack.c.l.b16 %v654
  %v749 = vunpack.c.l.b16 %v655
  %v750 = vunpack.c.h.b16 %v655
  %v751 = vunpack.c.l.b16 %v656
  %v752 = vunpack.c.l.b16 %v657
  %v753 = vunpack.c.h.b16 %v657
  %v754 = vunpack.c.l.b16 %v658
  %v755 = vunpack.c.l.b16 %v659
  %v756 = vunpack.c.h.b16 %v659
  %v757 = vunpack.c.l.b16 %v660
  %v758 = vunpack.c.l.b16 %v661
  %v759 = vunpack.c.h.b16 %v661
  %v760 = vunpack.c.l.b16 %v662
  %v761 = vpack.c.b16 %v716, %v713
  %v762 = vpack.c.b16 %v717, %v714
  %v763 = vpack.c.b16 %v718, %v715
  %v764 = vpack.c.b16 %v722, %v719
  %v765 = vpack.c.b16 %v723, %v720
  %v766 = vpack.c.b16 %v724, %v721
  %v767 = vpack.c.b16 %v728, %v725
  %v768 = vpack.c.b16 %v729, %v726
  %v769 = vpack.c.b16 %v730, %v727
  %v770 = vpack.c.b16 %v734, %v731
  %v771 = vpack.c.b16 %v735, %v732
  %v772 = vpack.c.b16 %v736, %v733
  %v773 = vpack.c.b16 %v740, %v737
  %v774 = vpack.c.b16 %v741, %v738
  %v775 = vpack.c.b16 %v742, %v739
  %v776 = vpack.c.b16 %v746, %v743
  %v777 = vpack.c.b16 %v747, %v744
  %v778 = vpack.c.b16 %v748, %v745
  %v779 = vpack.c.b16 %v752, %v749
  %v780 = vpack.c.b16 %v753, %v750
  %v781 = vpack.c.b16 %v754, %v751
  %v782 = vpack.c.b16 %v758, %v755
  %v783 = vpack.c.b16 %v759, %v756
  %v784 = vpack.c.b16 %v760, %v757
  %809 = vmatprep.subr.bf16.mxu0 %v762
  %810 = vmatpush1.bf16.msra.mxu0 %v761
  %811 = vmatprep.subr.bf16.mxu0 %v765
  %812 = vmatpush1.bf16.msra.mxu0 %v764
  %813 = vmatprep.subr.bf16.mxu0 %v768
  %814 = vmatpush1.bf16.msra.mxu0 %v767
  %815 = vmatprep.subr.bf16.mxu0 %v771
  %816 = vmatpush1.bf16.msra.mxu0 %v770
  %817 = vmatprep.subr.bf16.mxu0 %v774
  %818 = vmatpush1.bf16.msra.mxu0 %v773
  %819 = vmatprep.subr.bf16.mxu0 %v777
  %820 = vmatpush1.bf16.msra.mxu0 %v776
  %821 = vmatprep.subr.bf16.mxu0 %v780
  %822 = vmatpush1.bf16.msra.mxu0 %v779
  %823 = vmatprep.subr.bf16.mxu0 %v783
  %824 = vmatpush1.bf16.msra.mxu0 %v782
  %825 = vmatprep.subr.bf16.mxu0 0
  %826 = vmatpush1.bf16.msra.mxu0 0
  %827 = vmatprep.subr.bf16.mxu0 0
  %828 = vmatpush1.bf16.msra.mxu0 0
  %829 = vmatprep.subr.bf16.mxu0 0
  %830 = vmatpush1.bf16.msra.mxu0 0
  %831 = vmatprep.subr.bf16.mxu0 0
  %832 = vmatpush1.bf16.msra.mxu0 0
  %833 = vmatprep.subr.bf16.mxu0 0
  %834 = vmatpush1.bf16.msra.mxu0 0
  %835 = vmatprep.subr.bf16.mxu0 0
  %836 = vmatpush1.bf16.msra.mxu0 0
  %837 = vmatprep.subr.bf16.mxu0 0
  %838 = vmatpush1.bf16.msra.mxu0 0
  %839 = vmatprep.subr.bf16.mxu0 0
  %840 = vmatpush1.bf16.msra.mxu0 0
  %841 = vmatprep.mubr.bf16.mxu0 0
  %842 = vmatmul.mubr.bf16.gmra.mrb[0].mxu0 %v371
  %v843 = vpop.f32.mrb[0].mxu0
  %v844 = vadd.f32 %v669, %v843
  %v845 = vpop.f32.mrb[0].mxu0
  %v846 = vadd.f32 %v673, %v845
  %v847 = vpop.f32.mrb[0].mxu0
  %v848 = vpop.f32.mrb[0].mxu0
  %849 = vdwg.mxu0
  %850 = vmatprep.subr.bf16.mxu0 0
  %851 = vmatpush1.bf16.msra.mxu0 %v763
  %852 = vmatprep.subr.bf16.mxu0 0
  %853 = vmatpush1.bf16.msra.mxu0 %v766
  %854 = vmatprep.subr.bf16.mxu0 0
  %855 = vmatpush1.bf16.msra.mxu0 %v769
  %856 = vmatprep.subr.bf16.mxu0 0
  %857 = vmatpush1.bf16.msra.mxu0 %v772
  %858 = vmatprep.subr.bf16.mxu0 0
  %859 = vmatpush1.bf16.msra.mxu0 %v775
  %860 = vmatprep.subr.bf16.mxu0 0
  %861 = vmatpush1.bf16.msra.mxu0 %v778
  %862 = vmatprep.subr.bf16.mxu0 0
  %863 = vmatpush1.bf16.msra.mxu0 %v781
  %864 = vmatprep.subr.bf16.mxu0 0
  %865 = vmatpush1.bf16.msra.mxu0 %v784
  %866 = vmatprep.subr.bf16.mxu0 0
  %867 = vmatpush1.bf16.msra.mxu0 0
  %868 = vmatprep.subr.bf16.mxu0 0
  %869 = vmatpush1.bf16.msra.mxu0 0
  %870 = vmatprep.subr.bf16.mxu0 0
  %871 = vmatpush1.bf16.msra.mxu0 0
  %872 = vmatprep.subr.bf16.mxu0 0
  %873 = vmatpush1.bf16.msra.mxu0 0
  %874 = vmatprep.subr.bf16.mxu0 0
  %875 = vmatpush1.bf16.msra.mxu0 0
  %876 = vmatprep.subr.bf16.mxu0 0
  %877 = vmatpush1.bf16.msra.mxu0 0
  %878 = vmatprep.subr.bf16.mxu0 0
  %879 = vmatpush1.bf16.msra.mxu0 0
  %880 = vmatprep.subr.bf16.mxu0 0
  %881 = vmatpush1.bf16.msra.mxu0 0
  %882 = vmatprep.mubr.bf16.mxu0 0
  %883 = vmatmul.mubr.bf16.gmra.mrb[0].mxu0 %v371
  %v884 = vpop.f32.mrb[0].mxu0
  %v885 = vadd.f32 %v677, %v884
  %v886 = vpop.f32.mrb[0].mxu0
  %v887 = vpop.f32.mrb[0].mxu0
  %v888 = vpop.f32.mrb[0].mxu0
  %889 = vdwg.mxu0
  %v890 = vmul.f32 %v844, 0.5
  %v891 = vmul.f32 %v846, 0.5
  %v892 = vtanh.pop %v890
  %v893 = vtanh.pop %v891
  %v894 = vadd.f32 %v892, 1.0
  %v895 = vadd.f32 %v893, 1.0
  %v896 = vmul.f32 %v894, 0.5
  %v897 = vmul.f32 %v895, 0.5
  %s898 = scalar_lea.vmem %s5, 1
  %v899 = vld [vmem:[%s898] sm:$0x1]
  %v901 = vlaneseq
  %v902 = vshrl.u32 %v901, 7
  %v903 = vsub.s32 0, %v902
  %v904 = vrot.slane %v899, %v903
  %v906 = vmul.f32 %v896, %v904
  %v907 = vadd.f32 %v885, %v906
  %v908 = vtanh.pop %v907
  %v909 = vsub.f32 1.0, %v897
  %v910 = vmul.f32 %v909, %v908
  %v911 = vld [vmem:[#allocation2 + $0x30] sm:$0xff]
  %v912 = vld [vmem:[#allocation2 + $0x38] sm:$0xff]
  %v913 = vld [vmem:[#allocation2 + $0x40] sm:$0xff]
  %v914 = vpack.c.bf16 %v630, %v630
  %915 = vmatprep.subr.bf16.mxu0 %v485
  %916 = vmatpush1.bf16.msra.mxu0 %v484
  %917 = vmatprep.subr.bf16.mxu0 %v488
  %918 = vmatpush1.bf16.msra.mxu0 %v487
  %919 = vmatprep.subr.bf16.mxu0 %v491
  %920 = vmatpush1.bf16.msra.mxu0 %v490
  %921 = vmatprep.subr.bf16.mxu0 %v494
  %922 = vmatpush1.bf16.msra.mxu0 %v493
  %923 = vmatprep.subr.bf16.mxu0 %v497
  %924 = vmatpush1.bf16.msra.mxu0 %v496
  %925 = vmatprep.subr.bf16.mxu0 %v500
  %926 = vmatpush1.bf16.msra.mxu0 %v499
  %927 = vmatprep.subr.bf16.mxu0 %v503
  %928 = vmatpush1.bf16.msra.mxu0 %v502
  %929 = vmatprep.subr.bf16.mxu0 %v506
  %930 = vmatpush1.bf16.msra.mxu0 %v505
  %931 = vmatprep.subr.bf16.mxu0 0
  %932 = vmatpush1.bf16.msra.mxu0 0
  %933 = vmatprep.subr.bf16.mxu0 0
  %934 = vmatpush1.bf16.msra.mxu0 0
  %935 = vmatprep.subr.bf16.mxu0 0
  %936 = vmatpush1.bf16.msra.mxu0 0
  %937 = vmatprep.subr.bf16.mxu0 0
  %938 = vmatpush1.bf16.msra.mxu0 0
  %939 = vmatprep.subr.bf16.mxu0 0
  %940 = vmatpush1.bf16.msra.mxu0 0
  %941 = vmatprep.subr.bf16.mxu0 0
  %942 = vmatpush1.bf16.msra.mxu0 0
  %943 = vmatprep.subr.bf16.mxu0 0
  %944 = vmatpush1.bf16.msra.mxu0 0
  %945 = vmatprep.subr.bf16.mxu0 0
  %946 = vmatpush1.bf16.msra.mxu0 0
  %947 = vmatprep.mubr.bf16.mxu0 0
  %948 = vmatmul.mubr.bf16.gmra.mrb[0].mxu0 %v914
  %v949 = vpop.f32.mrb[0].mxu0
  %v950 = vadd.f32 0.0, %v949
  %v951 = vpop.f32.mrb[0].mxu0
  %v952 = vadd.f32 0.0, %v951
  %v953 = vpop.f32.mrb[0].mxu0
  %v954 = vpop.f32.mrb[0].mxu0
  %955 = vdwg.mxu0
  %956 = vmatprep.subr.bf16.mxu0 0
  %957 = vmatpush1.bf16.msra.mxu0 %v486
  %958 = vmatprep.subr.bf16.mxu0 0
  %959 = vmatpush1.bf16.msra.mxu0 %v489
  %960 = vmatprep.subr.bf16.mxu0 0
  %961 = vmatpush1.bf16.msra.mxu0 %v492
  %962 = vmatprep.subr.bf16.mxu0 0
  %963 = vmatpush1.bf16.msra.mxu0 %v495
  %964 = vmatprep.subr.bf16.mxu0 0
  %965 = vmatpush1.bf16.msra.mxu0 %v498
  %966 = vmatprep.subr.bf16.mxu0 0
  %967 = vmatpush1.bf16.msra.mxu0 %v501
  %968 = vmatprep.subr.bf16.mxu0 0
  %969 = vmatpush1.bf16.msra.mxu0 %v504
  %970 = vmatprep.subr.bf16.mxu0 0
  %971 = vmatpush1.bf16.msra.mxu0 %v507
  %972 = vmatprep.subr.bf16.mxu0 0
  %973 = vmatpush1.bf16.msra.mxu0 0
  %974 = vmatprep.subr.bf16.mxu0 0
  %975 = vmatpush1.bf16.msra.mxu0 0
  %976 = vmatprep.subr.bf16.mxu0 0
  %977 = vmatpush1.bf16.msra.mxu0 0
  %978 = vmatprep.subr.bf16.mxu0 0
  %979 = vmatpush1.bf16.msra.mxu0 0
  %980 = vmatprep.subr.bf16.mxu0 0
  %981 = vmatpush1.bf16.msra.mxu0 0
  %982 = vmatprep.subr.bf16.mxu0 0
  %983 = vmatpush1.bf16.msra.mxu0 0
  %984 = vmatprep.subr.bf16.mxu0 0
  %985 = vmatpush1.bf16.msra.mxu0 0
  %986 = vmatprep.subr.bf16.mxu0 0
  %987 = vmatpush1.bf16.msra.mxu0 0
  %988 = vmatprep.mubr.bf16.mxu0 0
  %989 = vmatmul.mubr.bf16.gmra.mrb[0].mxu0 %v914
  %v990 = vpop.f32.mrb[0].mxu0
  %v991 = vadd.f32 0.0, %v990
  %v992 = vpop.f32.mrb[0].mxu0
  %v993 = vpop.f32.mrb[0].mxu0
  %v994 = vpop.f32.mrb[0].mxu0
  %995 = vdwg.mxu0
  %v996 = vadd.f32 %v911, %v950
  %v997 = vadd.f32 %v912, %v952
  %v998 = vmul.f32 %v996, 0.5
  %v999 = vmul.f32 %v997, 0.5
  %v1000 = vtanh.pop %v998
  %v1001 = vtanh.pop %v999
  %v1002 = vadd.f32 %v1000, 1.0
  %v1003 = vadd.f32 %v1001, 1.0
  %v1004 = vmul.f32 %v1002, 0.5
  %v1005 = vmul.f32 %v1003, 0.5
  %v1006 = vadd.f32 %v991, %v361
  %v1007 = vmul.f32 %v1004, %v1006
  %v1008 = vadd.f32 %v913, %v1007
  %v1009 = vtanh.pop %v1008
  %v1010 = vsub.f32 1.0, %v1005
  %v1011 = vmul.f32 %v1010, %v1009
  %v1012 = vmul.f32 %v1005, %v630
  %v1013 = vadd.f32 %v1011, %v1012
  %1014 = vmatprep.subr.bf16.mxu0 %v762
  %1015 = vmatpush1.bf16.msra.mxu0 %v761
  %1016 = vmatprep.subr.bf16.mxu0 %v765
  %1017 = vmatpush1.bf16.msra.mxu0 %v764
  %1018 = vmatprep.subr.bf16.mxu0 %v768
  %1019 = vmatpush1.bf16.msra.mxu0 %v767
  %1020 = vmatprep.subr.bf16.mxu0 %v771
  %1021 = vmatpush1.bf16.msra.mxu0 %v770
  %1022 = vmatprep.subr.bf16.mxu0 %v774
  %1023 = vmatpush1.bf16.msra.mxu0 %v773
  %1024 = vmatprep.subr.bf16.mxu0 %v777
  %1025 = vmatpush1.bf16.msra.mxu0 %v776
  %1026 = vmatprep.subr.bf16.mxu0 %v780
  %1027 = vmatpush1.bf16.msra.mxu0 %v779
  %1028 = vmatprep.subr.bf16.mxu0 %v783
  %1029 = vmatpush1.bf16.msra.mxu0 %v782
  %1030 = vmatprep.subr.bf16.mxu0 0
  %1031 = vmatpush1.bf16.msra.mxu0 0
  %1032 = vmatprep.subr.bf16.mxu0 0
  %1033 = vmatpush1.bf16.msra.mxu0 0
  %1034 = vmatprep.subr.bf16.mxu0 0
  %1035 = vmatpush1.bf16.msra.mxu0 0
  %1036 = vmatprep.subr.bf16.mxu0 0
  %1037 = vmatpush1.bf16.msra.mxu0 0
  %1038 = vmatprep.subr.bf16.mxu0 0
  %1039 = vmatpush1.bf16.msra.mxu0 0
  %1040 = vmatprep.subr.bf16.mxu0 0
  %1041 = vmatpush1.bf16.msra.mxu0 0
  %1042 = vmatprep.subr.bf16.mxu0 0
  %1043 = vmatpush1.bf16.msra.mxu0 0
  %1044 = vmatprep.subr.bf16.mxu0 0
  %1045 = vmatpush1.bf16.msra.mxu0 0
  %1046 = vmatprep.mubr.bf16.mxu0 0
  %1047 = vmatmul.mubr.bf16.gmra.mrb[0].mxu0 %v914
  %v1048 = vpop.f32.mrb[0].mxu0
  %v1049 = vadd.f32 %v669, %v1048
  %v1050 = vpop.f32.mrb[0].mxu0
  %v1051 = vadd.f32 %v673, %v1050
  %v1052 = vpop.f32.mrb[0].mxu0
  %v1053 = vpop.f32.mrb[0].mxu0
  %1054 = vdwg.mxu0
  %1055 = vmatprep.subr.bf16.mxu0 0
  %1056 = vmatpush1.bf16.msra.mxu0 %v763
  %1057 = vmatprep.subr.bf16.mxu0 0
  %1058 = vmatpush1.bf16.msra.mxu0 %v766
  %1059 = vmatprep.subr.bf16.mxu0 0
  %1060 = vmatpush1.bf16.msra.mxu0 %v769
  %1061 = vmatprep.subr.bf16.mxu0 0
  %1062 = vmatpush1.bf16.msra.mxu0 %v772
  %1063 = vmatprep.subr.bf16.mxu0 0
  %1064 = vmatpush1.bf16.msra.mxu0 %v775
  %1065 = vmatprep.subr.bf16.mxu0 0
  %1066 = vmatpush1.bf16.msra.mxu0 %v778
  %1067 = vmatprep.subr.bf16.mxu0 0
  %1068 = vmatpush1.bf16.msra.mxu0 %v781
  %1069 = vmatprep.subr.bf16.mxu0 0
  %1070 = vmatpush1.bf16.msra.mxu0 %v784
  %1071 = vmatprep.subr.bf16.mxu0 0
  %1072 = vmatpush1.bf16.msra.mxu0 0
  %1073 = vmatprep.subr.bf16.mxu0 0
  %1074 = vmatpush1.bf16.msra.mxu0 0
  %1075 = vmatprep.subr.bf16.mxu0 0
  %1076 = vmatpush1.bf16.msra.mxu0 0
  %1077 = vmatprep.subr.bf16.mxu0 0
  %1078 = vmatpush1.bf16.msra.mxu0 0
  %1079 = vmatprep.subr.bf16.mxu0 0
  %1080 = vmatpush1.bf16.msra.mxu0 0
  %1081 = vmatprep.subr.bf16.mxu0 0
  %1082 = vmatpush1.bf16.msra.mxu0 0
  %1083 = vmatprep.subr.bf16.mxu0 0
  %1084 = vmatpush1.bf16.msra.mxu0 0
  %1085 = vmatprep.subr.bf16.mxu0 0
  %1086 = vmatpush1.bf16.msra.mxu0 0
  %1087 = vmatprep.mubr.bf16.mxu0 0
  %1088 = vmatmul.mubr.bf16.gmra.mrb[0].mxu0 %v914
  %v1089 = vpop.f32.mrb[0].mxu0
  %v1090 = vadd.f32 %v677, %v1089
  %v1091 = vpop.f32.mrb[0].mxu0
  %v1092 = vpop.f32.mrb[0].mxu0
  %v1093 = vpop.f32.mrb[0].mxu0
  %1094 = vdwg.mxu0
  %v1095 = vpack.c.bf16 %v910, %v910
  %s1096 = scalar_lea.vmem %s3, 192
  %v1097 = vld [vmem:[%s1096] sm:$0xff]
  %v1098 = vld [vmem:[%s1096 + $0x8] sm:$0xf]
  %v1099 = vld [vmem:[%s1096 + $0xc] sm:$0xff]
  %v1100 = vld [vmem:[%s1096 + $0x14] sm:$0xf]
  %v1101 = vld [vmem:[%s1096 + $0x18] sm:$0xff]
  %v1102 = vld [vmem:[%s1096 + $0x20] sm:$0xf]
  %v1103 = vld [vmem:[%s1096 + $0x24] sm:$0xff]
  %v1104 = vld [vmem:[%s1096 + $0x2c] sm:$0xf]
  %v1105 = vld [vmem:[%s1096 + $0x30] sm:$0xff]
  %v1106 = vld [vmem:[%s1096 + $0x38] sm:$0xf]
  %v1107 = vld [vmem:[%s1096 + $0x3c] sm:$0xff]
  %v1108 = vld [vmem:[%s1096 + $0x44] sm:$0xf]
  %v1109 = vld [vmem:[%s1096 + $0x48] sm:$0xff]
  %v1110 = vld [vmem:[%s1096 + $0x50] sm:$0xf]
  %v1111 = vld [vmem:[%s1096 + $0x54] sm:$0xff]
  %v1112 = vld [vmem:[%s1096 + $0x5c] sm:$0xf]
  %v1113 = vld [vmem:[%s1096 + $0x60] sm:$0xff]
  %v1114 = vld [vmem:[%s1096 + $0x68] sm:$0xf]
  %v1115 = vld [vmem:[%s1096 + $0x6c] sm:$0xff]
  %v1116 = vld [vmem:[%s1096 + $0x74] sm:$0xf]
  %v1117 = vld [vmem:[%s1096 + $0x78] sm:$0xff]
  %v1118 = vld [vmem:[%s1096 + $0x80] sm:$0xf]
  %v1119 = vld [vmem:[%s1096 + $0x84] sm:$0xff]
  %v1120 = vld [vmem:[%s1096 + $0x8c] sm:$0xf]
  %v1121 = vld [vmem:[%s1096 + $0x90] sm:$0xff]
  %v1122 = vld [vmem:[%s1096 + $0x98] sm:$0xf]
  %v1123 = vld [vmem:[%s1096 + $0x9c] sm:$0xff]
  %v1124 = vld [vmem:[%s1096 + $0xa4] sm:$0xf]
  %v1125 = vld [vmem:[%s1096 + $0xa8] sm:$0xff]
  %v1126 = vld [vmem:[%s1096 + $0xb0] sm:$0xf]
  %v1127 = vld [vmem:[%s1096 + $0xb4] sm:$0xff]
  %v1128 = vld [vmem:[%s1096 + $0xbc] sm:$0xf]
  %v1161 = vunpack.c.l.b16 %v1097
  %v1162 = vunpack.c.h.b16 %v1097
  %v1163 = vunpack.c.l.b16 %v1098
  %v1164 = vunpack.c.l.b16 %v1099
  %v1165 = vunpack.c.h.b16 %v1099
  %v1166 = vunpack.c.l.b16 %v1100
  %v1167 = vunpack.c.l.b16 %v1101
  %v1168 = vunpack.c.h.b16 %v1101
  %v1169 = vunpack.c.l.b16 %v1102
  %v1170 = vunpack.c.l.b16 %v1103
  %v1171 = vunpack.c.h.b16 %v1103
  %v1172 = vunpack.c.l.b16 %v1104
  %v1173 = vunpack.c.l.b16 %v1105
  %v1174 = vunpack.c.h.b16 %v1105
  %v1175 = vunpack.c.l.b16 %v1106
  %v1176 = vunpack.c.l.b16 %v1107
  %v1177 = vunpack.c.h.b16 %v1107
  %v1178 = vunpack.c.l.b16 %v1108
  %v1179 = vunpack.c.l.b16 %v1109
  %v1180 = vunpack.c.h.b16 %v1109
  %v1181 = vunpack.c.l.b16 %v1110
  %v1182 = vunpack.c.l.b16 %v1111
  %v1183 = vunpack.c.h.b16 %v1111
  %v1184 = vunpack.c.l.b16 %v1112
  %v1185 = vunpack.c.l.b16 %v1113
  %v1186 = vunpack.c.h.b16 %v1113
  %v1187 = vunpack.c.l.b16 %v1114
  %v1188 = vunpack.c.l.b16 %v1115
  %v1189 = vunpack.c.h.b16 %v1115
  %v1190 = vunpack.c.l.b16 %v1116
  %v1191 = vunpack.c.l.b16 %v1117
  %v1192 = vunpack.c.h.b16 %v1117
  %v1193 = vunpack.c.l.b16 %v1118
  %v1194 = vunpack.c.l.b16 %v1119
  %v1195 = vunpack.c.h.b16 %v1119
  %v1196 = vunpack.c.l.b16 %v1120
  %v1197 = vunpack.c.l.b16 %v1121
  %v1198 = vunpack.c.h.b16 %v1121
  %v1199 = vunpack.c.l.b16 %v1122
  %v1200 = vunpack.c.l.b16 %v1123
  %v1201 = vunpack.c.h.b16 %v1123
  %v1202 = vunpack.c.l.b16 %v1124
  %v1203 = vunpack.c.l.b16 %v1125
  %v1204 = vunpack.c.h.b16 %v1125
  %v1205 = vunpack.c.l.b16 %v1126
  %v1206 = vunpack.c.l.b16 %v1127
  %v1207 = vunpack.c.h.b16 %v1127
  %v1208 = vunpack.c.l.b16 %v1128
  %v1209 = vpack.c.b16 %v1164, %v1161
  %v1210 = vpack.c.b16 %v1165, %v1162
  %v1211 = vpack.c.b16 %v1166, %v1163
  %v1212 = vpack.c.b16 %v1170, %v1167
  %v1213 = vpack.c.b16 %v1171, %v1168
  %v1214 = vpack.c.b16 %v1172, %v1169
  %v1215 = vpack.c.b16 %v1176, %v1173
  %v1216 = vpack.c.b16 %v1177, %v1174
  %v1217 = vpack.c.b16 %v1178, %v1175
  %v1218 = vpack.c.b16 %v1182, %v1179
  %v1219 = vpack.c.b16 %v1183, %v1180
  %v1220 = vpack.c.b16 %v1184, %v1181
  %v1221 = vpack.c.b16 %v1188, %v1185
  %v1222 = vpack.c.b16 %v1189, %v1186
  %v1223 = vpack.c.b16 %v1190, %v1187
  %v1224 = vpack.c.b16 %v1194, %v1191
  %v1225 = vpack.c.b16 %v1195, %v1192
  %v1226 = vpack.c.b16 %v1196, %v1193
  %v1227 = vpack.c.b16 %v1200, %v1197
  %v1228 = vpack.c.b16 %v1201, %v1198
  %v1229 = vpack.c.b16 %v1202, %v1199
  %v1230 = vpack.c.b16 %v1206, %v1203
  %v1231 = vpack.c.b16 %v1207, %v1204
  %v1232 = vpack.c.b16 %v1208, %v1205
  %1257 = vmatprep.subr.bf16.mxu0 %v1210
  %1258 = vmatpush1.bf16.msra.mxu0 %v1209
  %1259 = vmatprep.subr.bf16.mxu0 %v1213
  %1260 = vmatpush1.bf16.msra.mxu0 %v1212
  %1261 = vmatprep.subr.bf16.mxu0 %v1216
  %1262 = vmatpush1.bf16.msra.mxu0 %v1215
  %1263 = vmatprep.subr.bf16.mxu0 %v1219
  %1264 = vmatpush1.bf16.msra.mxu0 %v1218
  %1265 = vmatprep.subr.bf16.mxu0 %v1222
  %1266 = vmatpush1.bf16.msra.mxu0 %v1221
  %1267 = vmatprep.subr.bf16.mxu0 %v1225
  %1268 = vmatpush1.bf16.msra.mxu0 %v1224
  %1269 = vmatprep.subr.bf16.mxu0 %v1228
  %1270 = vmatpush1.bf16.msra.mxu0 %v1227
  %1271 = vmatprep.subr.bf16.mxu0 %v1231
  %1272 = vmatpush1.bf16.msra.mxu0 %v1230
  %1273 = vmatprep.subr.bf16.mxu0 0
  %1274 = vmatpush1.bf16.msra.mxu0 0
  %1275 = vmatprep.subr.bf16.mxu0 0
  %1276 = vmatpush1.bf16.msra.mxu0 0
  %1277 = vmatprep.subr.bf16.mxu0 0
  %1278 = vmatpush1.bf16.msra.mxu0 0
  %1279 = vmatprep.subr.bf16.mxu0 0
  %1280 = vmatpush1.bf16.msra.mxu0 0
  %1281 = vmatprep.subr.bf16.mxu0 0
  %1282 = vmatpush1.bf16.msra.mxu0 0
  %1283 = vmatprep.subr.bf16.mxu0 0
  %1284 = vmatpush1.bf16.msra.mxu0 0
  %1285 = vmatprep.subr.bf16.mxu0 0
  %1286 = vmatpush1.bf16.msra.mxu0 0
  %1287 = vmatprep.subr.bf16.mxu0 0
  %1288 = vmatpush1.bf16.msra.mxu0 0
  %1289 = vmatprep.mubr.bf16.mxu0 0
  %1290 = vmatmul.mubr.bf16.gmra.mrb[0].mxu0 %v1095
  %v1291 = vpop.f32.mrb[0].mxu0
  %v1292 = vadd.f32 0.0, %v1291
  %v1293 = vpop.f32.mrb[0].mxu0
  %v1294 = vadd.f32 0.0, %v1293
  %v1295 = vpop.f32.mrb[0].mxu0
  %v1296 = vpop.f32.mrb[0].mxu0
  %1297 = vdwg.mxu0
  %1298 = vmatprep.subr.bf16.mxu0 0
  %1299 = vmatpush1.bf16.msra.mxu0 %v1211
  %1300 = vmatprep.subr.bf16.mxu0 0
  %1301 = vmatpush1.bf16.msra.mxu0 %v1214
  %1302 = vmatprep.subr.bf16.mxu0 0
  %1303 = vmatpush1.bf16.msra.mxu0 %v1217
  %1304 = vmatprep.subr.bf16.mxu0 0
  %1305 = vmatpush1.bf16.msra.mxu0 %v1220
  %1306 = vmatprep.subr.bf16.mxu0 0
  %1307 = vmatpush1.bf16.msra.mxu0 %v1223
  %1308 = vmatprep.subr.bf16.mxu0 0
  %1309 = vmatpush1.bf16.msra.mxu0 %v1226
  %1310 = vmatprep.subr.bf16.mxu0 0
  %1311 = vmatpush1.bf16.msra.mxu0 %v1229
  %1312 = vmatprep.subr.bf16.mxu0 0
  %1313 = vmatpush1.bf16.msra.mxu0 %v1232
  %1314 = vmatprep.subr.bf16.mxu0 0
  %1315 = vmatpush1.bf16.msra.mxu0 0
  %1316 = vmatprep.subr.bf16.mxu0 0
  %1317 = vmatpush1.bf16.msra.mxu0 0
  %1318 = vmatprep.subr.bf16.mxu0 0
  %1319 = vmatpush1.bf16.msra.mxu0 0
  %1320 = vmatprep.subr.bf16.mxu0 0
  %1321 = vmatpush1.bf16.msra.mxu0 0
  %1322 = vmatprep.subr.bf16.mxu0 0
  %1323 = vmatpush1.bf16.msra.mxu0 0
  %1324 = vmatprep.subr.bf16.mxu0 0
  %1325 = vmatpush1.bf16.msra.mxu0 0
  %1326 = vmatprep.subr.bf16.mxu0 0
  %1327 = vmatpush1.bf16.msra.mxu0 0
  %1328 = vmatprep.subr.bf16.mxu0 0
  %1329 = vmatpush1.bf16.msra.mxu0 0
  %1330 = vmatprep.mubr.bf16.mxu0 0
  %1331 = vmatmul.mubr.bf16.gmra.mrb[0].mxu0 %v1095
  %v1332 = vpop.f32.mrb[0].mxu0
  %v1333 = vadd.f32 0.0, %v1332
  %v1334 = vpop.f32.mrb[0].mxu0
  %v1335 = vpop.f32.mrb[0].mxu0
  %v1336 = vpop.f32.mrb[0].mxu0
  %1337 = vdwg.mxu0
  %v1338 = vadd.f32 %v1049, %v1292
  %v1339 = vadd.f32 %v1051, %v1294
  %v1340 = vmul.f32 %v1338, 0.5
  %v1341 = vmul.f32 %v1339, 0.5
  %v1342 = vtanh.pop %v1340
  %v1343 = vtanh.pop %v1341
  %v1344 = vadd.f32 %v1342, 1.0
  %v1345 = vadd.f32 %v1343, 1.0
  %v1346 = vmul.f32 %v1344, 0.5
  %v1347 = vmul.f32 %v1345, 0.5
  %v1348 = vadd.f32 %v1333, %v904
  %v1349 = vmul.f32 %v1346, %v1348
  %v1350 = vadd.f32 %v1090, %v1349
  %v1351 = vtanh.pop %v1350
  %v1352 = vsub.f32 1.0, %v1347
  %v1353 = vmul.f32 %v1352, %v1351
  %v1354 = vmul.f32 %v1347, %v910
  %v1355 = vadd.f32 %v1353, %v1354
  %s1356 = scalar_lea.vmem %s2, 192
  %v1357 = vld [vmem:[%s1356] sm:$0xff]
  %v1358 = vld [vmem:[%s1356 + $0x8] sm:$0xf]
  %v1359 = vld [vmem:[%s1356 + $0xc] sm:$0xff]
  %v1360 = vld [vmem:[%s1356 + $0x14] sm:$0xf]
  %v1361 = vld [vmem:[%s1356 + $0x18] sm:$0xff]
  %v1362 = vld [vmem:[%s1356 + $0x20] sm:$0xf]
  %v1363 = vld [vmem:[%s1356 + $0x24] sm:$0xff]
  %v1364 = vld [vmem:[%s1356 + $0x2c] sm:$0xf]
  %v1365 = vld [vmem:[%s1356 + $0x30] sm:$0xff]
  %v1366 = vld [vmem:[%s1356 + $0x38] sm:$0xf]
  %v1367 = vld [vmem:[%s1356 + $0x3c] sm:$0xff]
  %v1368 = vld [vmem:[%s1356 + $0x44] sm:$0xf]
  %v1369 = vld [vmem:[%s1356 + $0x48] sm:$0xff]
  %v1370 = vld [vmem:[%s1356 + $0x50] sm:$0xf]
  %v1371 = vld [vmem:[%s1356 + $0x54] sm:$0xff]
  %v1372 = vld [vmem:[%s1356 + $0x5c] sm:$0xf]
  %v1373 = vld [vmem:[%s1356 + $0x60] sm:$0xff]
  %v1374 = vld [vmem:[%s1356 + $0x68] sm:$0xf]
  %v1375 = vld [vmem:[%s1356 + $0x6c] sm:$0xff]
  %v1376 = vld [vmem:[%s1356 + $0x74] sm:$0xf]
  %v1377 = vld [vmem:[%s1356 + $0x78] sm:$0xff]
  %v1378 = vld [vmem:[%s1356 + $0x80] sm:$0xf]
  %v1379 = vld [vmem:[%s1356 + $0x84] sm:$0xff]
  %v1380 = vld [vmem:[%s1356 + $0x8c] sm:$0xf]
  %v1381 = vld [vmem:[%s1356 + $0x90] sm:$0xff]
  %v1382 = vld [vmem:[%s1356 + $0x98] sm:$0xf]
  %v1383 = vld [vmem:[%s1356 + $0x9c] sm:$0xff]
  %v1384 = vld [vmem:[%s1356 + $0xa4] sm:$0xf]
  %v1385 = vld [vmem:[%s1356 + $0xa8] sm:$0xff]
  %v1386 = vld [vmem:[%s1356 + $0xb0] sm:$0xf]
  %v1387 = vld [vmem:[%s1356 + $0xb4] sm:$0xff]
  %v1388 = vld [vmem:[%s1356 + $0xbc] sm:$0xf]
  %s1389 = scalar_lea.vmem %s4, 6
  %v1390 = vld [vmem:[%s1389] sm:$0x7]
  %v1392 = vlaneseq
  %v1393 = vshrl.u32 %v1392, 7
  %v1394 = vsub.s32 0, %v1393
  %v1395 = vrot.slane %v1390, %v1394
  %v1396 = vlaneseq
  %v1397 = vshrl.u32 %v1396, 7
  %v1398 = vsub.s32 1, %v1397
  %v1399 = vrot.slane %v1390, %v1398
  %v1400 = vlaneseq
  %v1401 = vshrl.u32 %v1400, 7
  %v1402 = vsub.s32 2, %v1401
  %v1403 = vrot.slane %v1390, %v1402
  %v1439 = vunpack.c.l.b16 %v1357
  %v1440 = vunpack.c.h.b16 %v1357
  %v1441 = vunpack.c.l.b16 %v1358
  %v1442 = vunpack.c.l.b16 %v1359
  %v1443 = vunpack.c.h.b16 %v1359
  %v1444 = vunpack.c.l.b16 %v1360
  %v1445 = vunpack.c.l.b16 %v1361
  %v1446 = vunpack.c.h.b16 %v1361
  %v1447 = vunpack.c.l.b16 %v1362
  %v1448 = vunpack.c.l.b16 %v1363
  %v1449 = vunpack.c.h.b16 %v1363
  %v1450 = vunpack.c.l.b16 %v1364
  %v1451 = vunpack.c.l.b16 %v1365
  %v1452 = vunpack.c.h.b16 %v1365
  %v1453 = vunpack.c.l.b16 %v1366
  %v1454 = vunpack.c.l.b16 %v1367
  %v1455 = vunpack.c.h.b16 %v1367
  %v1456 = vunpack.c.l.b16 %v1368
  %v1457 = vunpack.c.l.b16 %v1369
  %v1458 = vunpack.c.h.b16 %v1369
  %v1459 = vunpack.c.l.b16 %v1370
  %v1460 = vunpack.c.l.b16 %v1371
  %v1461 = vunpack.c.h.b16 %v1371
  %v1462 = vunpack.c.l.b16 %v1372
  %v1463 = vunpack.c.l.b16 %v1373
  %v1464 = vunpack.c.h.b16 %v1373
  %v1465 = vunpack.c.l.b16 %v1374
  %v1466 = vunpack.c.l.b16 %v1375
  %v1467 = vunpack.c.h.b16 %v1375
  %v1468 = vunpack.c.l.b16 %v1376
  %v1469 = vunpack.c.l.b16 %v1377
  %v1470 = vunpack.c.h.b16 %v1377
  %v1471 = vunpack.c.l.b16 %v1378
  %v1472 = vunpack.c.l.b16 %v1379
  %v1473 = vunpack.c.h.b16 %v1379
  %v1474 = vunpack.c.l.b16 %v1380
  %v1475 = vunpack.c.l.b16 %v1381
  %v1476 = vunpack.c.h.b16 %v1381
  %v1477 = vunpack.c.l.b16 %v1382
  %v1478 = vunpack.c.l.b16 %v1383
  %v1479 = vunpack.c.h.b16 %v1383
  %v1480 = vunpack.c.l.b16 %v1384
  %v1481 = vunpack.c.l.b16 %v1385
  %v1482 = vunpack.c.h.b16 %v1385
  %v1483 = vunpack.c.l.b16 %v1386
  %v1484 = vunpack.c.l.b16 %v1387
  %v1485 = vunpack.c.h.b16 %v1387
  %v1486 = vunpack.c.l.b16 %v1388
  %v1487 = vpack.c.b16 %v1442, %v1439
  %v1488 = vpack.c.b16 %v1443, %v1440
  %v1489 = vpack.c.b16 %v1444, %v1441
  %v1490 = vpack.c.b16 %v1448, %v1445
  %v1491 = vpack.c.b16 %v1449, %v1446
  %v1492 = vpack.c.b16 %v1450, %v1447
  %v1493 = vpack.c.b16 %v1454, %v1451
  %v1494 = vpack.c.b16 %v1455, %v1452
  %v1495 = vpack.c.b16 %v1456, %v1453
  %v1496 = vpack.c.b16 %v1460, %v1457
  %v1497 = vpack.c.b16 %v1461, %v1458
  %v1498 = vpack.c.b16 %v1462, %v1459
  %v1499 = vpack.c.b16 %v1466, %v1463
  %v1500 = vpack.c.b16 %v1467, %v1464
  %v1501 = vpack.c.b16 %v1468, %v1465
  %v1502 = vpack.c.b16 %v1472, %v1469
  %v1503 = vpack.c.b16 %v1473, %v1470
  %v1504 = vpack.c.b16 %v1474, %v1471
  %v1505 = vpack.c.b16 %v1478, %v1475
  %v1506 = vpack.c.b16 %v1479, %v1476
  %v1507 = vpack.c.b16 %v1480, %v1477
  %v1508 = vpack.c.b16 %v1484, %v1481
  %v1509 = vpack.c.b16 %v1485, %v1482
  %v1510 = vpack.c.b16 %v1486, %v1483
  %1535 = vmatprep.subr.bf16.mxu0 %v1488
  %1536 = vmatpush1.bf16.msra.mxu0 %v1487
  %1537 = vmatprep.subr.bf16.mxu0 %v1491
  %1538 = vmatpush1.bf16.msra.mxu0 %v1490
  %1539 = vmatprep.subr.bf16.mxu0 %v1494
  %1540 = vmatpush1.bf16.msra.mxu0 %v1493
  %1541 = vmatprep.subr.bf16.mxu0 %v1497
  %1542 = vmatpush1.bf16.msra.mxu0 %v1496
  %1543 = vmatprep.subr.bf16.mxu0 %v1500
  %1544 = vmatpush1.bf16.msra.mxu0 %v1499
  %1545 = vmatprep.subr.bf16.mxu0 %v1503
  %1546 = vmatpush1.bf16.msra.mxu0 %v1502
  %1547 = vmatprep.subr.bf16.mxu0 %v1506
  %1548 = vmatpush1.bf16.msra.mxu0 %v1505
  %1549 = vmatprep.subr.bf16.mxu0 %v1509
  %1550 = vmatpush1.bf16.msra.mxu0 %v1508
  %1551 = vmatprep.subr.bf16.mxu0 0
  %1552 = vmatpush1.bf16.msra.mxu0 0
  %1553 = vmatprep.subr.bf16.mxu0 0
  %1554 = vmatpush1.bf16.msra.mxu0 0
  %1555 = vmatprep.subr.bf16.mxu0 0
  %1556 = vmatpush1.bf16.msra.mxu0 0
  %1557 = vmatprep.subr.bf16.mxu0 0
  %1558 = vmatpush1.bf16.msra.mxu0 0
  %1559 = vmatprep.subr.bf16.mxu0 0
  %1560 = vmatpush1.bf16.msra.mxu0 0
  %1561 = vmatprep.subr.bf16.mxu0 0
  %1562 = vmatpush1.bf16.msra.mxu0 0
  %1563 = vmatprep.subr.bf16.mxu0 0
  %1564 = vmatpush1.bf16.msra.mxu0 0
  %1565 = vmatprep.subr.bf16.mxu0 0
  %1566 = vmatpush1.bf16.msra.mxu0 0
  %1567 = vmatprep.mubr.bf16.mxu0 0
  %1568 = vmatmul.mubr.bf16.gmra.mrb[0].mxu0 %v1095
  %v1569 = vpop.f32.mrb[0].mxu0
  %v1570 = vadd.f32 %v1395, %v1569
  %v1571 = vpop.f32.mrb[0].mxu0
  %v1572 = vadd.f32 %v1399, %v1571
  %v1573 = vpop.f32.mrb[0].mxu0
  %v1574 = vpop.f32.mrb[0].mxu0
  %1575 = vdwg.mxu0
  %1576 = vmatprep.subr.bf16.mxu0 0
  %1577 = vmatpush1.bf16.msra.mxu0 %v1489
  %1578 = vmatprep.subr.bf16.mxu0 0
  %1579 = vmatpush1.bf16.msra.mxu0 %v1492
  %1580 = vmatprep.subr.bf16.mxu0 0
  %1581 = vmatpush1.bf16.msra.mxu0 %v1495
  %1582 = vmatprep.subr.bf16.mxu0 0
  %1583 = vmatpush1.bf16.msra.mxu0 %v1498
  %1584 = vmatprep.subr.bf16.mxu0 0
  %1585 = vmatpush1.bf16.msra.mxu0 %v1501
  %1586 = vmatprep.subr.bf16.mxu0 0
  %1587 = vmatpush1.bf16.msra.mxu0 %v1504
  %1588 = vmatprep.subr.bf16.mxu0 0
  %1589 = vmatpush1.bf16.msra.mxu0 %v1507
  %1590 = vmatprep.subr.bf16.mxu0 0
  %1591 = vmatpush1.bf16.msra.mxu0 %v1510
  %1592 = vmatprep.subr.bf16.mxu0 0
  %1593 = vmatpush1.bf16.msra.mxu0 0
  %1594 = vmatprep.subr.bf16.mxu0 0
  %1595 = vmatpush1.bf16.msra.mxu0 0
  %1596 = vmatprep.subr.bf16.mxu0 0
  %1597 = vmatpush1.bf16.msra.mxu0 0
  %1598 = vmatprep.subr.bf16.mxu0 0
  %1599 = vmatpush1.bf16.msra.mxu0 0
  %1600 = vmatprep.subr.bf16.mxu0 0
  %1601 = vmatpush1.bf16.msra.mxu0 0
  %1602 = vmatprep.subr.bf16.mxu0 0
  %1603 = vmatpush1.bf16.msra.mxu0 0
  %1604 = vmatprep.subr.bf16.mxu0 0
  %1605 = vmatpush1.bf16.msra.mxu0 0
  %1606 = vmatprep.subr.bf16.mxu0 0
  %1607 = vmatpush1.bf16.msra.mxu0 0
  %1608 = vmatprep.mubr.bf16.mxu0 0
  %1609 = vmatmul.mubr.bf16.gmra.mrb[0].mxu0 %v1095
  %v1610 = vpop.f32.mrb[0].mxu0
  %v1611 = vadd.f32 %v1403, %v1610
  %v1612 = vpop.f32.mrb[0].mxu0
  %v1613 = vpop.f32.mrb[0].mxu0
  %v1614 = vpop.f32.mrb[0].mxu0
  %1615 = vdwg.mxu0
  %v1616 = vmul.f32 %v1570, 0.5
  %v1617 = vmul.f32 %v1572, 0.5
  %v1618 = vtanh.pop %v1616
  %v1619 = vtanh.pop %v1617
  %v1620 = vadd.f32 %v1618, 1.0
  %v1621 = vadd.f32 %v1619, 1.0
  %v1622 = vmul.f32 %v1620, 0.5
  %v1623 = vmul.f32 %v1621, 0.5
  %s1624 = scalar_lea.vmem %s5, 2
  %v1625 = vld [vmem:[%s1624] sm:$0x1]
  %v1627 = vlaneseq
  %v1628 = vshrl.u32 %v1627, 7
  %v1629 = vsub.s32 0, %v1628
  %v1630 = vrot.slane %v1625, %v1629
  %v1632 = vmul.f32 %v1622, %v1630
  %v1633 = vadd.f32 %v1611, %v1632
  %v1634 = vtanh.pop %v1633
  %v1635 = vsub.f32 1.0, %v1623
  %v1636 = vmul.f32 %v1635, %v1634
  %v1637 = vld [vmem:[#allocation2 + $0x48] sm:$0xff]
  %v1638 = vld [vmem:[#allocation2 + $0x50] sm:$0xff]
  %v1639 = vld [vmem:[#allocation2 + $0x58] sm:$0xff]
  %v1640 = vpack.c.bf16 %v1013, %v1013
  %1641 = vmatprep.subr.bf16.mxu0 %v485
  %1642 = vmatpush1.bf16.msra.mxu0 %v484
  %1643 = vmatprep.subr.bf16.mxu0 %v488
  %1644 = vmatpush1.bf16.msra.mxu0 %v487
  %1645 = vmatprep.subr.bf16.mxu0 %v491
  %1646 = vmatpush1.bf16.msra.mxu0 %v490
  %1647 = vmatprep.subr.bf16.mxu0 %v494
  %1648 = vmatpush1.bf16.msra.mxu0 %v493
  %1649 = vmatprep.subr.bf16.mxu0 %v497
  %1650 = vmatpush1.bf16.msra.mxu0 %v496
  %1651 = vmatprep.subr.bf16.mxu0 %v500
  %1652 = vmatpush1.bf16.msra.mxu0 %v499
  %1653 = vmatprep.subr.bf16.mxu0 %v503
  %1654 = vmatpush1.bf16.msra.mxu0 %v502
  %1655 = vmatprep.subr.bf16.mxu0 %v506
  %1656 = vmatpush1.bf16.msra.mxu0 %v505
  %1657 = vmatprep.subr.bf16.mxu0 0
  %1658 = vmatpush1.bf16.msra.mxu0 0
  %1659 = vmatprep.subr.bf16.mxu0 0
  %1660 = vmatpush1.bf16.msra.mxu0 0
  %1661 = vmatprep.subr.bf16.mxu0 0
  %1662 = vmatpush1.bf16.msra.mxu0 0
  %1663 = vmatprep.subr.bf16.mxu0 0
  %1664 = vmatpush1.bf16.msra.mxu0 0
  %1665 = vmatprep.subr.bf16.mxu0 0
  %1666 = vmatpush1.bf16.msra.mxu0 0
  %1667 = vmatprep.subr.bf16.mxu0 0
  %1668 = vmatpush1.bf16.msra.mxu0 0
  %1669 = vmatprep.subr.bf16.mxu0 0
  %1670 = vmatpush1.bf16.msra.mxu0 0
  %1671 = vmatprep.subr.bf16.mxu0 0
  %1672 = vmatpush1.bf16.msra.mxu0 0
  %1673 = vmatprep.mubr.bf16.mxu0 0
  %1674 = vmatmul.mubr.bf16.gmra.mrb[0].mxu0 %v1640
  %v1675 = vpop.f32.mrb[0].mxu0
  %v1676 = vadd.f32 0.0, %v1675
  %v1677 = vpop.f32.mrb[0].mxu0
  %v1678 = vadd.f32 0.0, %v1677
  %v1679 = vpop.f32.mrb[0].mxu0
  %v1680 = vpop.f32.mrb[0].mxu0
  %1681 = vdwg.mxu0
  %1682 = vmatprep.subr.bf16.mxu0 0
  %1683 = vmatpush1.bf16.msra.mxu0 %v486
  %1684 = vmatprep.subr.bf16.mxu0 0
  %1685 = vmatpush1.bf16.msra.mxu0 %v489
  %1686 = vmatprep.subr.bf16.mxu0 0
  %1687 = vmatpush1.bf16.msra.mxu0 %v492
  %1688 = vmatprep.subr.bf16.mxu0 0
  %1689 = vmatpush1.bf16.msra.mxu0 %v495
  %1690 = vmatprep.subr.bf16.mxu0 0
  %1691 = vmatpush1.bf16.msra.mxu0 %v498
  %1692 = vmatprep.subr.bf16.mxu0 0
  %1693 = vmatpush1.bf16.msra.mxu0 %v501
  %1694 = vmatprep.subr.bf16.mxu0 0
  %1695 = vmatpush1.bf16.msra.mxu0 %v504
  %1696 = vmatprep.subr.bf16.mxu0 0
  %1697 = vmatpush1.bf16.msra.mxu0 %v507
  %1698 = vmatprep.subr.bf16.mxu0 0
  %1699 = vmatpush1.bf16.msra.mxu0 0
  %1700 = vmatprep.subr.bf16.mxu0 0
  %1701 = vmatpush1.bf16.msra.mxu0 0
  %1702 = vmatprep.subr.bf16.mxu0 0
  %1703 = vmatpush1.bf16.msra.mxu0 0
  %1704 = vmatprep.subr.bf16.mxu0 0
  %1705 = vmatpush1.bf16.msra.mxu0 0
  %1706 = vmatprep.subr.bf16.mxu0 0
  %1707 = vmatpush1.bf16.msra.mxu0 0
  %1708 = vmatprep.subr.bf16.mxu0 0
  %1709 = vmatpush1.bf16.msra.mxu0 0
  %1710 = vmatprep.subr.bf16.mxu0 0
  %1711 = vmatpush1.bf16.msra.mxu0 0
  %1712 = vmatprep.subr.bf16.mxu0 0
  %1713 = vmatpush1.bf16.msra.mxu0 0
  %1714 = vmatprep.mubr.bf16.mxu0 0
  %1715 = vmatmul.mubr.bf16.gmra.mrb[0].mxu0 %v1640
  %v1716 = vpop.f32.mrb[0].mxu0
  %v1717 = vadd.f32 0.0, %v1716
  %v1718 = vpop.f32.mrb[0].mxu0
  %v1719 = vpop.f32.mrb[0].mxu0
  %v1720 = vpop.f32.mrb[0].mxu0
  %1721 = vdwg.mxu0
  %v1722 = vadd.f32 %v1637, %v1676
  %v1723 = vadd.f32 %v1638, %v1678
  %v1724 = vmul.f32 %v1722, 0.5
  %v1725 = vmul.f32 %v1723, 0.5
  %v1726 = vtanh.pop %v1724
  %v1727 = vtanh.pop %v1725
  %v1728 = vadd.f32 %v1726, 1.0
  %v1729 = vadd.f32 %v1727, 1.0
  %v1730 = vmul.f32 %v1728, 0.5
  %v1731 = vmul.f32 %v1729, 0.5
  %v1732 = vadd.f32 %v1717, %v361
  %v1733 = vmul.f32 %v1730, %v1732
  %v1734 = vadd.f32 %v1639, %v1733
  %v1735 = vtanh.pop %v1734
  %v1736 = vsub.f32 1.0, %v1731
  %v1737 = vmul.f32 %v1736, %v1735
  %v1738 = vmul.f32 %v1731, %v1013
  %v1739 = vadd.f32 %v1737, %v1738
  %1740 = vmatprep.subr.bf16.mxu0 %v762
  %1741 = vmatpush1.bf16.msra.mxu0 %v761
  %1742 = vmatprep.subr.bf16.mxu0 %v765
  %1743 = vmatpush1.bf16.msra.mxu0 %v764
  %1744 = vmatprep.subr.bf16.mxu0 %v768
  %1745 = vmatpush1.bf16.msra.mxu0 %v767
  %1746 = vmatprep.subr.bf16.mxu0 %v771
  %1747 = vmatpush1.bf16.msra.mxu0 %v770
  %1748 = vmatprep.subr.bf16.mxu0 %v774
  %1749 = vmatpush1.bf16.msra.mxu0 %v773
  %1750 = vmatprep.subr.bf16.mxu0 %v777
  %1751 = vmatpush1.bf16.msra.mxu0 %v776
  %1752 = vmatprep.subr.bf16.mxu0 %v780
  %1753 = vmatpush1.bf16.msra.mxu0 %v779
  %1754 = vmatprep.subr.bf16.mxu0 %v783
  %1755 = vmatpush1.bf16.msra.mxu0 %v782
  %1756 = vmatprep.subr.bf16.mxu0 0
  %1757 = vmatpush1.bf16.msra.mxu0 0
  %1758 = vmatprep.subr.bf16.mxu0 0
  %1759 = vmatpush1.bf16.msra.mxu0 0
  %1760 = vmatprep.subr.bf16.mxu0 0
  %1761 = vmatpush1.bf16.msra.mxu0 0
  %1762 = vmatprep.subr.bf16.mxu0 0
  %1763 = vmatpush1.bf16.msra.mxu0 0
  %1764 = vmatprep.subr.bf16.mxu0 0
  %1765 = vmatpush1.bf16.msra.mxu0 0
  %1766 = vmatprep.subr.bf16.mxu0 0
  %1767 = vmatpush1.bf16.msra.mxu0 0
  %1768 = vmatprep.subr.bf16.mxu0 0
  %1769 = vmatpush1.bf16.msra.mxu0 0
  %1770 = vmatprep.subr.bf16.mxu0 0
  %1771 = vmatpush1.bf16.msra.mxu0 0
  %1772 = vmatprep.mubr.bf16.mxu0 0
  %1773 = vmatmul.mubr.bf16.gmra.mrb[0].mxu0 %v1640
  %v1774 = vpop.f32.mrb[0].mxu0
  %v1775 = vadd.f32 %v669, %v1774
  %v1776 = vpop.f32.mrb[0].mxu0
  %v1777 = vadd.f32 %v673, %v1776
  %v1778 = vpop.f32.mrb[0].mxu0
  %v1779 = vpop.f32.mrb[0].mxu0
  %1780 = vdwg.mxu0
  %1781 = vmatprep.subr.bf16.mxu0 0
  %1782 = vmatpush1.bf16.msra.mxu0 %v763
  %1783 = vmatprep.subr.bf16.mxu0 0
  %1784 = vmatpush1.bf16.msra.mxu0 %v766
  %1785 = vmatprep.subr.bf16.mxu0 0
  %1786 = vmatpush1.bf16.msra.mxu0 %v769
  %1787 = vmatprep.subr.bf16.mxu0 0
  %1788 = vmatpush1.bf16.msra.mxu0 %v772
  %1789 = vmatprep.subr.bf16.mxu0 0
  %1790 = vmatpush1.bf16.msra.mxu0 %v775
  %1791 = vmatprep.subr.bf16.mxu0 0
  %1792 = vmatpush1.bf16.msra.mxu0 %v778
  %1793 = vmatprep.subr.bf16.mxu0 0
  %1794 = vmatpush1.bf16.msra.mxu0 %v781
  %1795 = vmatprep.subr.bf16.mxu0 0
  %1796 = vmatpush1.bf16.msra.mxu0 %v784
  %1797 = vmatprep.subr.bf16.mxu0 0
  %1798 = vmatpush1.bf16.msra.mxu0 0
  %1799 = vmatprep.subr.bf16.mxu0 0
  %1800 = vmatpush1.bf16.msra.mxu0 0
  %1801 = vmatprep.subr.bf16.mxu0 0
  %1802 = vmatpush1.bf16.msra.mxu0 0
  %1803 = vmatprep.subr.bf16.mxu0 0
  %1804 = vmatpush1.bf16.msra.mxu0 0
  %1805 = vmatprep.subr.bf16.mxu0 0
  %1806 = vmatpush1.bf16.msra.mxu0 0
  %1807 = vmatprep.subr.bf16.mxu0 0
  %1808 = vmatpush1.bf16.msra.mxu0 0
  %1809 = vmatprep.subr.bf16.mxu0 0
  %1810 = vmatpush1.bf16.msra.mxu0 0
  %1811 = vmatprep.subr.bf16.mxu0 0
  %1812 = vmatpush1.bf16.msra.mxu0 0
  %1813 = vmatprep.mubr.bf16.mxu0 0
  %1814 = vmatmul.mubr.bf16.gmra.mrb[0].mxu0 %v1640
  %v1815 = vpop.f32.mrb[0].mxu0
  %v1816 = vadd.f32 %v677, %v1815
  %v1817 = vpop.f32.mrb[0].mxu0
  %v1818 = vpop.f32.mrb[0].mxu0
  %v1819 = vpop.f32.mrb[0].mxu0
  %1820 = vdwg.mxu0
  %v1821 = vpack.c.bf16 %v1355, %v1355
  %1822 = vmatprep.subr.bf16.mxu0 %v1210
  %1823 = vmatpush1.bf16.msra.mxu0 %v1209
  %1824 = vmatprep.subr.bf16.mxu0 %v1213
  %1825 = vmatpush1.bf16.msra.mxu0 %v1212
  %1826 = vmatprep.subr.bf16.mxu0 %v1216
  %1827 = vmatpush1.bf16.msra.mxu0 %v1215
  %1828 = vmatprep.subr.bf16.mxu0 %v1219
  %1829 = vmatpush1.bf16.msra.mxu0 %v1218
  %1830 = vmatprep.subr.bf16.mxu0 %v1222
  %1831 = vmatpush1.bf16.msra.mxu0 %v1221
  %1832 = vmatprep.subr.bf16.mxu0 %v1225
  %1833 = vmatpush1.bf16.msra.mxu0 %v1224
  %1834 = vmatprep.subr.bf16.mxu0 %v1228
  %1835 = vmatpush1.bf16.msra.mxu0 %v1227
  %1836 = vmatprep.subr.bf16.mxu0 %v1231
  %1837 = vmatpush1.bf16.msra.mxu0 %v1230
  %1838 = vmatprep.subr.bf16.mxu0 0
  %1839 = vmatpush1.bf16.msra.mxu0 0
  %1840 = vmatprep.subr.bf16.mxu0 0
  %1841 = vmatpush1.bf16.msra.mxu0 0
  %1842 = vmatprep.subr.bf16.mxu0 0
  %1843 = vmatpush1.bf16.msra.mxu0 0
  %1844 = vmatprep.subr.bf16.mxu0 0
  %1845 = vmatpush1.bf16.msra.mxu0 0
  %1846 = vmatprep.subr.bf16.mxu0 0
  %1847 = vmatpush1.bf16.msra.mxu0 0
  %1848 = vmatprep.subr.bf16.mxu0 0
  %1849 = vmatpush1.bf16.msra.mxu0 0
  %1850 = vmatprep.subr.bf16.mxu0 0
  %1851 = vmatpush1.bf16.msra.mxu0 0
  %1852 = vmatprep.subr.bf16.mxu0 0
  %1853 = vmatpush1.bf16.msra.mxu0 0
  %1854 = vmatprep.mubr.bf16.mxu0 0
  %1855 = vmatmul.mubr.bf16.gmra.mrb[0].mxu0 %v1821
  %v1856 = vpop.f32.mrb[0].mxu0
  %v1857 = vadd.f32 0.0, %v1856
  %v1858 = vpop.f32.mrb[0].mxu0
  %v1859 = vadd.f32 0.0, %v1858
  %v1860 = vpop.f32.mrb[0].mxu0
  %v1861 = vpop.f32.mrb[0].mxu0
  %1862 = vdwg.mxu0
  %1863 = vmatprep.subr.bf16.mxu0 0
  %1864 = vmatpush1.bf16.msra.mxu0 %v1211
  %1865 = vmatprep.subr.bf16.mxu0 0
  %1866 = vmatpush1.bf16.msra.mxu0 %v1214
  %1867 = vmatprep.subr.bf16.mxu0 0
  %1868 = vmatpush1.bf16.msra.mxu0 %v1217
  %1869 = vmatprep.subr.bf16.mxu0 0
  %1870 = vmatpush1.bf16.msra.mxu0 %v1220
  %1871 = vmatprep.subr.bf16.mxu0 0
  %1872 = vmatpush1.bf16.msra.mxu0 %v1223
  %1873 = vmatprep.subr.bf16.mxu0 0
  %1874 = vmatpush1.bf16.msra.mxu0 %v1226
  %1875 = vmatprep.subr.bf16.mxu0 0
  %1876 = vmatpush1.bf16.msra.mxu0 %v1229
  %1877 = vmatprep.subr.bf16.mxu0 0
  %1878 = vmatpush1.bf16.msra.mxu0 %v1232
  %1879 = vmatprep.subr.bf16.mxu0 0
  %1880 = vmatpush1.bf16.msra.mxu0 0
  %1881 = vmatprep.subr.bf16.mxu0 0
  %1882 = vmatpush1.bf16.msra.mxu0 0
  %1883 = vmatprep.subr.bf16.mxu0 0
  %1884 = vmatpush1.bf16.msra.mxu0 0
  %1885 = vmatprep.subr.bf16.mxu0 0
  %1886 = vmatpush1.bf16.msra.mxu0 0
  %1887 = vmatprep.subr.bf16.mxu0 0
  %1888 = vmatpush1.bf16.msra.mxu0 0
  %1889 = vmatprep.subr.bf16.mxu0 0
  %1890 = vmatpush1.bf16.msra.mxu0 0
  %1891 = vmatprep.subr.bf16.mxu0 0
  %1892 = vmatpush1.bf16.msra.mxu0 0
  %1893 = vmatprep.subr.bf16.mxu0 0
  %1894 = vmatpush1.bf16.msra.mxu0 0
  %1895 = vmatprep.mubr.bf16.mxu0 0
  %1896 = vmatmul.mubr.bf16.gmra.mrb[0].mxu0 %v1821
  %v1897 = vpop.f32.mrb[0].mxu0
  %v1898 = vadd.f32 0.0, %v1897
  %v1899 = vpop.f32.mrb[0].mxu0
  %v1900 = vpop.f32.mrb[0].mxu0
  %v1901 = vpop.f32.mrb[0].mxu0
  %1902 = vdwg.mxu0
  %v1903 = vadd.f32 %v1775, %v1857
  %v1904 = vadd.f32 %v1777, %v1859
  %v1905 = vmul.f32 %v1903, 0.5
  %v1906 = vmul.f32 %v1904, 0.5
  %v1907 = vtanh.pop %v1905
  %v1908 = vtanh.pop %v1906
  %v1909 = vadd.f32 %v1907, 1.0
  %v1910 = vadd.f32 %v1908, 1.0
  %v1911 = vmul.f32 %v1909, 0.5
  %v1912 = vmul.f32 %v1910, 0.5
  %v1913 = vadd.f32 %v1898, %v904
  %v1914 = vmul.f32 %v1911, %v1913
  %v1915 = vadd.f32 %v1816, %v1914
  %v1916 = vtanh.pop %v1915
  %v1917 = vsub.f32 1.0, %v1912
  %v1918 = vmul.f32 %v1917, %v1916
  %v1919 = vmul.f32 %v1912, %v1355
  %v1920 = vadd.f32 %v1918, %v1919
  %1921 = vmatprep.subr.bf16.mxu0 %v1488
  %1922 = vmatpush1.bf16.msra.mxu0 %v1487
  %1923 = vmatprep.subr.bf16.mxu0 %v1491
  %1924 = vmatpush1.bf16.msra.mxu0 %v1490
  %1925 = vmatprep.subr.bf16.mxu0 %v1494
  %1926 = vmatpush1.bf16.msra.mxu0 %v1493
  %1927 = vmatprep.subr.bf16.mxu0 %v1497
  %1928 = vmatpush1.bf16.msra.mxu0 %v1496
  %1929 = vmatprep.subr.bf16.mxu0 %v1500
  %1930 = vmatpush1.bf16.msra.mxu0 %v1499
  %1931 = vmatprep.subr.bf16.mxu0 %v1503
  %1932 = vmatpush1.bf16.msra.mxu0 %v1502
  %1933 = vmatprep.subr.bf16.mxu0 %v1506
  %1934 = vmatpush1.bf16.msra.mxu0 %v1505
  %1935 = vmatprep.subr.bf16.mxu0 %v1509
  %1936 = vmatpush1.bf16.msra.mxu0 %v1508
  %1937 = vmatprep.subr.bf16.mxu0 0
  %1938 = vmatpush1.bf16.msra.mxu0 0
  %1939 = vmatprep.subr.bf16.mxu0 0
  %1940 = vmatpush1.bf16.msra.mxu0 0
  %1941 = vmatprep.subr.bf16.mxu0 0
  %1942 = vmatpush1.bf16.msra.mxu0 0
  %1943 = vmatprep.subr.bf16.mxu0 0
  %1944 = vmatpush1.bf16.msra.mxu0 0
  %1945 = vmatprep.subr.bf16.mxu0 0
  %1946 = vmatpush1.bf16.msra.mxu0 0
  %1947 = vmatprep.subr.bf16.mxu0 0
  %1948 = vmatpush1.bf16.msra.mxu0 0
  %1949 = vmatprep.subr.bf16.mxu0 0
  %1950 = vmatpush1.bf16.msra.mxu0 0
  %1951 = vmatprep.subr.bf16.mxu0 0
  %1952 = vmatpush1.bf16.msra.mxu0 0
  %1953 = vmatprep.mubr.bf16.mxu0 0
  %1954 = vmatmul.mubr.bf16.gmra.mrb[0].mxu0 %v1821
  %v1955 = vpop.f32.mrb[0].mxu0
  %v1956 = vadd.f32 %v1395, %v1955
  %v1957 = vpop.f32.mrb[0].mxu0
  %v1958 = vadd.f32 %v1399, %v1957
  %v1959 = vpop.f32.mrb[0].mxu0
  %v1960 = vpop.f32.mrb[0].mxu0
  %1961 = vdwg.mxu0
  %1962 = vmatprep.subr.bf16.mxu0 0
  %1963 = vmatpush1.bf16.msra.mxu0 %v1489
  %1964 = vmatprep.subr.bf16.mxu0 0
  %1965 = vmatpush1.bf16.msra.mxu0 %v1492
  %1966 = vmatprep.subr.bf16.mxu0 0
  %1967 = vmatpush1.bf16.msra.mxu0 %v1495
  %1968 = vmatprep.subr.bf16.mxu0 0
  %1969 = vmatpush1.bf16.msra.mxu0 %v1498
  %1970 = vmatprep.subr.bf16.mxu0 0
  %1971 = vmatpush1.bf16.msra.mxu0 %v1501
  %1972 = vmatprep.subr.bf16.mxu0 0
  %1973 = vmatpush1.bf16.msra.mxu0 %v1504
  %1974 = vmatprep.subr.bf16.mxu0 0
  %1975 = vmatpush1.bf16.msra.mxu0 %v1507
  %1976 = vmatprep.subr.bf16.mxu0 0
  %1977 = vmatpush1.bf16.msra.mxu0 %v1510
  %1978 = vmatprep.subr.bf16.mxu0 0
  %1979 = vmatpush1.bf16.msra.mxu0 0
  %1980 = vmatprep.subr.bf16.mxu0 0
  %1981 = vmatpush1.bf16.msra.mxu0 0
  %1982 = vmatprep.subr.bf16.mxu0 0
  %1983 = vmatpush1.bf16.msra.mxu0 0
  %1984 = vmatprep.subr.bf16.mxu0 0
  %1985 = vmatpush1.bf16.msra.mxu0 0
  %1986 = vmatprep.subr.bf16.mxu0 0
  %1987 = vmatpush1.bf16.msra.mxu0 0
  %1988 = vmatprep.subr.bf16.mxu0 0
  %1989 = vmatpush1.bf16.msra.mxu0 0
  %1990 = vmatprep.subr.bf16.mxu0 0
  %1991 = vmatpush1.bf16.msra.mxu0 0
  %1992 = vmatprep.subr.bf16.mxu0 0
  %1993 = vmatpush1.bf16.msra.mxu0 0
  %1994 = vmatprep.mubr.bf16.mxu0 0
  %1995 = vmatmul.mubr.bf16.gmra.mrb[0].mxu0 %v1821
  %v1996 = vpop.f32.mrb[0].mxu0
  %v1997 = vadd.f32 %v1403, %v1996
  %v1998 = vpop.f32.mrb[0].mxu0
  %v1999 = vpop.f32.mrb[0].mxu0
  %v2000 = vpop.f32.mrb[0].mxu0
  %2001 = vdwg.mxu0
  %v2002 = vpack.c.bf16 %v1636, %v1636
  %s2003 = scalar_lea.vmem %s3, 384
  %v2004 = vld [vmem:[%s2003] sm:$0xff]
  %v2005 = vld [vmem:[%s2003 + $0x8] sm:$0xf]
  %v2006 = vld [vmem:[%s2003 + $0xc] sm:$0xff]
  %v2007 = vld [vmem:[%s2003 + $0x14] sm:$0xf]
  %v2008 = vld [vmem:[%s2003 + $0x18] sm:$0xff]
  %v2009 = vld [vmem:[%s2003 + $0x20] sm:$0xf]
  %v2010 = vld [vmem:[%s2003 + $0x24] sm:$0xff]
  %v2011 = vld [vmem:[%s2003 + $0x2c] sm:$0xf]
  %v2012 = vld [vmem:[%s2003 + $0x30] sm:$0xff]
  %v2013 = vld [vmem:[%s2003 + $0x38] sm:$0xf]
  %v2014 = vld [vmem:[%s2003 + $0x3c] sm:$0xff]
  %v2015 = vld [vmem:[%s2003 + $0x44] sm:$0xf]
  %v2016 = vld [vmem:[%s2003 + $0x48] sm:$0xff]
  %v2017 = vld [vmem:[%s2003 + $0x50] sm:$0xf]
  %v2018 = vld [vmem:[%s2003 + $0x54] sm:$0xff]
  %v2019 = vld [vmem:[%s2003 + $0x5c] sm:$0xf]
  %v2020 = vld [vmem:[%s2003 + $0x60] sm:$0xff]
  %v2021 = vld [vmem:[%s2003 + $0x68] sm:$0xf]
  %v2022 = vld [vmem:[%s2003 + $0x6c] sm:$0xff]
  %v2023 = vld [vmem:[%s2003 + $0x74] sm:$0xf]
  %v2024 = vld [vmem:[%s2003 + $0x78] sm:$0xff]
  %v2025 = vld [vmem:[%s2003 + $0x80] sm:$0xf]
  %v2026 = vld [vmem:[%s2003 + $0x84] sm:$0xff]
  %v2027 = vld [vmem:[%s2003 + $0x8c] sm:$0xf]
  %v2028 = vld [vmem:[%s2003 + $0x90] sm:$0xff]
  %v2029 = vld [vmem:[%s2003 + $0x98] sm:$0xf]
  %v2030 = vld [vmem:[%s2003 + $0x9c] sm:$0xff]
  %v2031 = vld [vmem:[%s2003 + $0xa4] sm:$0xf]
  %v2032 = vld [vmem:[%s2003 + $0xa8] sm:$0xff]
  %v2033 = vld [vmem:[%s2003 + $0xb0] sm:$0xf]
  %v2034 = vld [vmem:[%s2003 + $0xb4] sm:$0xff]
  %v2035 = vld [vmem:[%s2003 + $0xbc] sm:$0xf]
  %v2068 = vunpack.c.l.b16 %v2004
  %v2069 = vunpack.c.h.b16 %v2004
  %v2070 = vunpack.c.l.b16 %v2005
  %v2071 = vunpack.c.l.b16 %v2006
  %v2072 = vunpack.c.h.b16 %v2006
  %v2073 = vunpack.c.l.b16 %v2007
  %v2074 = vunpack.c.l.b16 %v2008
  %v2075 = vunpack.c.h.b16 %v2008
  %v2076 = vunpack.c.l.b16 %v2009
  %v2077 = vunpack.c.l.b16 %v2010
  %v2078 = vunpack.c.h.b16 %v2010
  %v2079 = vunpack.c.l.b16 %v2011
  %v2080 = vunpack.c.l.b16 %v2012
  %v2081 = vunpack.c.h.b16 %v2012
  %v2082 = vunpack.c.l.b16 %v2013
  %v2083 = vunpack.c.l.b16 %v2014
  %v2084 = vunpack.c.h.b16 %v2014
  %v2085 = vunpack.c.l.b16 %v2015
  %v2086 = vunpack.c.l.b16 %v2016
  %v2087 = vunpack.c.h.b16 %v2016
  %v2088 = vunpack.c.l.b16 %v2017
  %v2089 = vunpack.c.l.b16 %v2018
  %v2090 = vunpack.c.h.b16 %v2018
  %v2091 = vunpack.c.l.b16 %v2019
  %v2092 = vunpack.c.l.b16 %v2020
  %v2093 = vunpack.c.h.b16 %v2020
  %v2094 = vunpack.c.l.b16 %v2021
  %v2095 = vunpack.c.l.b16 %v2022
  %v2096 = vunpack.c.h.b16 %v2022
  %v2097 = vunpack.c.l.b16 %v2023
  %v2098 = vunpack.c.l.b16 %v2024
  %v2099 = vunpack.c.h.b16 %v2024
  %v2100 = vunpack.c.l.b16 %v2025
  %v2101 = vunpack.c.l.b16 %v2026
  %v2102 = vunpack.c.h.b16 %v2026
  %v2103 = vunpack.c.l.b16 %v2027
  %v2104 = vunpack.c.l.b16 %v2028
  %v2105 = vunpack.c.h.b16 %v2028
  %v2106 = vunpack.c.l.b16 %v2029
  %v2107 = vunpack.c.l.b16 %v2030
  %v2108 = vunpack.c.h.b16 %v2030
  %v2109 = vunpack.c.l.b16 %v2031
  %v2110 = vunpack.c.l.b16 %v2032
  %v2111 = vunpack.c.h.b16 %v2032
  %v2112 = vunpack.c.l.b16 %v2033
  %v2113 = vunpack.c.l.b16 %v2034
  %v2114 = vunpack.c.h.b16 %v2034
  %v2115 = vunpack.c.l.b16 %v2035
  %v2116 = vpack.c.b16 %v2071, %v2068
  %v2117 = vpack.c.b16 %v2072, %v2069
  %v2118 = vpack.c.b16 %v2073, %v2070
  %v2119 = vpack.c.b16 %v2077, %v2074
  %v2120 = vpack.c.b16 %v2078, %v2075
  %v2121 = vpack.c.b16 %v2079, %v2076
  %v2122 = vpack.c.b16 %v2083, %v2080
  %v2123 = vpack.c.b16 %v2084, %v2081
  %v2124 = vpack.c.b16 %v2085, %v2082
  %v2125 = vpack.c.b16 %v2089, %v2086
  %v2126 = vpack.c.b16 %v2090, %v2087
  %v2127 = vpack.c.b16 %v2091, %v2088
  %v2128 = vpack.c.b16 %v2095, %v2092
  %v2129 = vpack.c.b16 %v2096, %v2093
  %v2130 = vpack.c.b16 %v2097, %v2094
  %v2131 = vpack.c.b16 %v2101, %v2098
  %v2132 = vpack.c.b16 %v2102, %v2099
  %v2133 = vpack.c.b16 %v2103, %v2100
  %v2134 = vpack.c.b16 %v2107, %v2104
  %v2135 = vpack.c.b16 %v2108, %v2105
  %v2136 = vpack.c.b16 %v2109, %v2106
  %v2137 = vpack.c.b16 %v2113, %v2110
  %v2138 = vpack.c.b16 %v2114, %v2111
  %v2139 = vpack.c.b16 %v2115, %v2112
  %2164 = vmatprep.subr.bf16.mxu0 %v2117
  %2165 = vmatpush1.bf16.msra.mxu0 %v2116
  %2166 = vmatprep.subr.bf16.mxu0 %v2120
  %2167 = vmatpush1.bf16.msra.mxu0 %v2119
  %2168 = vmatprep.subr.bf16.mxu0 %v2123
  %2169 = vmatpush1.bf16.msra.mxu0 %v2122
  %2170 = vmatprep.subr.bf16.mxu0 %v2126
  %2171 = vmatpush1.bf16.msra.mxu0 %v2125
  %2172 = vmatprep.subr.bf16.mxu0 %v2129
  %2173 = vmatpush1.bf16.msra.mxu0 %v2128
  %2174 = vmatprep.subr.bf16.mxu0 %v2132
  %2175 = vmatpush1.bf16.msra.mxu0 %v2131
  %2176 = vmatprep.subr.bf16.mxu0 %v2135
  %2177 = vmatpush1.bf16.msra.mxu0 %v2134
  %2178 = vmatprep.subr.bf16.mxu0 %v2138
  %2179 = vmatpush1.bf16.msra.mxu0 %v2137
  %2180 = vmatprep.subr.bf16.mxu0 0
  %2181 = vmatpush1.bf16.msra.mxu0 0
  %2182 = vmatprep.subr.bf16.mxu0 0
  %2183 = vmatpush1.bf16.msra.mxu0 0
  %2184 = vmatprep.subr.bf16.mxu0 0
  %2185 = vmatpush1.bf16.msra.mxu0 0
  %2186 = vmatprep.subr.bf16.mxu0 0
  %2187 = vmatpush1.bf16.msra.mxu0 0
  %2188 = vmatprep.subr.bf16.mxu0 0
  %2189 = vmatpush1.bf16.msra.mxu0 0
  %2190 = vmatprep.subr.bf16.mxu0 0
  %2191 = vmatpush1.bf16.msra.mxu0 0
  %2192 = vmatprep.subr.bf16.mxu0 0
  %2193 = vmatpush1.bf16.msra.mxu0 0
  %2194 = vmatprep.subr.bf16.mxu0 0
  %2195 = vmatpush1.bf16.msra.mxu0 0
  %2196 = vmatprep.mubr.bf16.mxu0 0
  %2197 = vmatmul.mubr.bf16.gmra.mrb[0].mxu0 %v2002
  %v2198 = vpop.f32.mrb[0].mxu0
  %v2199 = vadd.f32 0.0, %v2198
  %v2200 = vpop.f32.mrb[0].mxu0
  %v2201 = vadd.f32 0.0, %v2200
  %v2202 = vpop.f32.mrb[0].mxu0
  %v2203 = vpop.f32.mrb[0].mxu0
  %2204 = vdwg.mxu0
  %2205 = vmatprep.subr.bf16.mxu0 0
  %2206 = vmatpush1.bf16.msra.mxu0 %v2118
  %2207 = vmatprep.subr.bf16.mxu0 0
  %2208 = vmatpush1.bf16.msra.mxu0 %v2121
  %2209 = vmatprep.subr.bf16.mxu0 0
  %2210 = vmatpush1.bf16.msra.mxu0 %v2124
  %2211 = vmatprep.subr.bf16.mxu0 0
  %2212 = vmatpush1.bf16.msra.mxu0 %v2127
  %2213 = vmatprep.subr.bf16.mxu0 0
  %2214 = vmatpush1.bf16.msra.mxu0 %v2130
  %2215 = vmatprep.subr.bf16.mxu0 0
  %2216 = vmatpush1.bf16.msra.mxu0 %v2133
  %2217 = vmatprep.subr.bf16.mxu0 0
  %2218 = vmatpush1.bf16.msra.mxu0 %v2136
  %2219 = vmatprep.subr.bf16.mxu0 0
  %2220 = vmatpush1.bf16.msra.mxu0 %v2139
  %2221 = vmatprep.subr.bf16.mxu0 0
  %2222 = vmatpush1.bf16.msra.mxu0 0
  %2223 = vmatprep.subr.bf16.mxu0 0
  %2224 = vmatpush1.bf16.msra.mxu0 0
  %2225 = vmatprep.subr.bf16.mxu0 0
  %2226 = vmatpush1.bf16.msra.mxu0 0
  %2227 = vmatprep.subr.bf16.mxu0 0
  %2228 = vmatpush1.bf16.msra.mxu0 0
  %2229 = vmatprep.subr.bf16.mxu0 0
  %2230 = vmatpush1.bf16.msra.mxu0 0
  %2231 = vmatprep.subr.bf16.mxu0 0
  %2232 = vmatpush1.bf16.msra.mxu0 0
  %2233 = vmatprep.subr.bf16.mxu0 0
  %2234 = vmatpush1.bf16.msra.mxu0 0
  %2235 = vmatprep.subr.bf16.mxu0 0
  %2236 = vmatpush1.bf16.msra.mxu0 0
  %2237 = vmatprep.mubr.bf16.mxu0 0
  %2238 = vmatmul.mubr.bf16.gmra.mrb[0].mxu0 %v2002
  %v2239 = vpop.f32.mrb[0].mxu0
  %v2240 = vadd.f32 0.0, %v2239
  %v2241 = vpop.f32.mrb[0].mxu0
  %v2242 = vpop.f32.mrb[0].mxu0
  %v2243 = vpop.f32.mrb[0].mxu0
  %2244 = vdwg.mxu0
  %v2245 = vadd.f32 %v1956, %v2199
  %v2246 = vadd.f32 %v1958, %v2201
  %v2247 = vmul.f32 %v2245, 0.5
  %v2248 = vmul.f32 %v2246, 0.5
  %v2249 = vtanh.pop %v2247
  %v2250 = vtanh.pop %v2248
  %v2251 = vadd.f32 %v2249, 1.0
  %v2252 = vadd.f32 %v2250, 1.0
  %v2253 = vmul.f32 %v2251, 0.5
  %v2254 = vmul.f32 %v2252, 0.5
  %v2255 = vadd.f32 %v2240, %v1630
  %v2256 = vmul.f32 %v2253, %v2255
  %v2257 = vadd.f32 %v1997, %v2256
  %v2258 = vtanh.pop %v2257
  %v2259 = vsub.f32 1.0, %v2254
  %v2260 = vmul.f32 %v2259, %v2258
  %v2261 = vmul.f32 %v2254, %v1636
  %v2262 = vadd.f32 %v2260, %v2261
  %s2263 = scalar_lea.vmem %s2, 384
  %v2264 = vld [vmem:[%s2263] sm:$0xff]
  %v2265 = vld [vmem:[%s2263 + $0x8] sm:$0xf]
  %v2266 = vld [vmem:[%s2263 + $0xc] sm:$0xff]
  %v2267 = vld [vmem:[%s2263 + $0x14] sm:$0xf]
  %v2268 = vld [vmem:[%s2263 + $0x18] sm:$0xff]
  %v2269 = vld [vmem:[%s2263 + $0x20] sm:$0xf]
  %v2270 = vld [vmem:[%s2263 + $0x24] sm:$0xff]
  %v2271 = vld [vmem:[%s2263 + $0x2c] sm:$0xf]
  %v2272 = vld [vmem:[%s2263 + $0x30] sm:$0xff]
  %v2273 = vld [vmem:[%s2263 + $0x38] sm:$0xf]
  %v2274 = vld [vmem:[%s2263 + $0x3c] sm:$0xff]
  %v2275 = vld [vmem:[%s2263 + $0x44] sm:$0xf]
  %v2276 = vld [vmem:[%s2263 + $0x48] sm:$0xff]
  %v2277 = vld [vmem:[%s2263 + $0x50] sm:$0xf]
  %v2278 = vld [vmem:[%s2263 + $0x54] sm:$0xff]
  %v2279 = vld [vmem:[%s2263 + $0x5c] sm:$0xf]
  %v2280 = vld [vmem:[%s2263 + $0x60] sm:$0xff]
  %v2281 = vld [vmem:[%s2263 + $0x68] sm:$0xf]
  %v2282 = vld [vmem:[%s2263 + $0x6c] sm:$0xff]
  %v2283 = vld [vmem:[%s2263 + $0x74] sm:$0xf]
  %v2284 = vld [vmem:[%s2263 + $0x78] sm:$0xff]
  %v2285 = vld [vmem:[%s2263 + $0x80] sm:$0xf]
  %v2286 = vld [vmem:[%s2263 + $0x84] sm:$0xff]
  %v2287 = vld [vmem:[%s2263 + $0x8c] sm:$0xf]
  %v2288 = vld [vmem:[%s2263 + $0x90] sm:$0xff]
  %v2289 = vld [vmem:[%s2263 + $0x98] sm:$0xf]
  %v2290 = vld [vmem:[%s2263 + $0x9c] sm:$0xff]
  %v2291 = vld [vmem:[%s2263 + $0xa4] sm:$0xf]
  %v2292 = vld [vmem:[%s2263 + $0xa8] sm:$0xff]
  %v2293 = vld [vmem:[%s2263 + $0xb0] sm:$0xf]
  %v2294 = vld [vmem:[%s2263 + $0xb4] sm:$0xff]
  %v2295 = vld [vmem:[%s2263 + $0xbc] sm:$0xf]
  %s2296 = scalar_lea.vmem %s4, 9
  %v2297 = vld [vmem:[%s2296] sm:$0x7]
  %v2299 = vlaneseq
  %v2300 = vshrl.u32 %v2299, 7
  %v2301 = vsub.s32 0, %v2300
  %v2302 = vrot.slane %v2297, %v2301
  %v2303 = vlaneseq
  %v2304 = vshrl.u32 %v2303, 7
  %v2305 = vsub.s32 1, %v2304
  %v2306 = vrot.slane %v2297, %v2305
  %v2307 = vlaneseq
  %v2308 = vshrl.u32 %v2307, 7
  %v2309 = vsub.s32 2, %v2308
  %v2310 = vrot.slane %v2297, %v2309
  %v2346 = vunpack.c.l.b16 %v2264
  %v2347 = vunpack.c.h.b16 %v2264
  %v2348 = vunpack.c.l.b16 %v2265
  %v2349 = vunpack.c.l.b16 %v2266
  %v2350 = vunpack.c.h.b16 %v2266
  %v2351 = vunpack.c.l.b16 %v2267
  %v2352 = vunpack.c.l.b16 %v2268
  %v2353 = vunpack.c.h.b16 %v2268
  %v2354 = vunpack.c.l.b16 %v2269
  %v2355 = vunpack.c.l.b16 %v2270
  %v2356 = vunpack.c.h.b16 %v2270
  %v2357 = vunpack.c.l.b16 %v2271
  %v2358 = vunpack.c.l.b16 %v2272
  %v2359 = vunpack.c.h.b16 %v2272
  %v2360 = vunpack.c.l.b16 %v2273
  %v2361 = vunpack.c.l.b16 %v2274
  %v2362 = vunpack.c.h.b16 %v2274
  %v2363 = vunpack.c.l.b16 %v2275
  %v2364 = vunpack.c.l.b16 %v2276
  %v2365 = vunpack.c.h.b16 %v2276
  %v2366 = vunpack.c.l.b16 %v2277
  %v2367 = vunpack.c.l.b16 %v2278
  %v2368 = vunpack.c.h.b16 %v2278
  %v2369 = vunpack.c.l.b16 %v2279
  %v2370 = vunpack.c.l.b16 %v2280
  %v2371 = vunpack.c.h.b16 %v2280
  %v2372 = vunpack.c.l.b16 %v2281
  %v2373 = vunpack.c.l.b16 %v2282
  %v2374 = vunpack.c.h.b16 %v2282
  %v2375 = vunpack.c.l.b16 %v2283
  %v2376 = vunpack.c.l.b16 %v2284
  %v2377 = vunpack.c.h.b16 %v2284
  %v2378 = vunpack.c.l.b16 %v2285
  %v2379 = vunpack.c.l.b16 %v2286
  %v2380 = vunpack.c.h.b16 %v2286
  %v2381 = vunpack.c.l.b16 %v2287
  %v2382 = vunpack.c.l.b16 %v2288
  %v2383 = vunpack.c.h.b16 %v2288
  %v2384 = vunpack.c.l.b16 %v2289
  %v2385 = vunpack.c.l.b16 %v2290
  %v2386 = vunpack.c.h.b16 %v2290
  %v2387 = vunpack.c.l.b16 %v2291
  %v2388 = vunpack.c.l.b16 %v2292
  %v2389 = vunpack.c.h.b16 %v2292
  %v2390 = vunpack.c.l.b16 %v2293
  %v2391 = vunpack.c.l.b16 %v2294
  %v2392 = vunpack.c.h.b16 %v2294
  %v2393 = vunpack.c.l.b16 %v2295
  %v2394 = vpack.c.b16 %v2349, %v2346
  %v2395 = vpack.c.b16 %v2350, %v2347
  %v2396 = vpack.c.b16 %v2351, %v2348
  %v2397 = vpack.c.b16 %v2355, %v2352
  %v2398 = vpack.c.b16 %v2356, %v2353
  %v2399 = vpack.c.b16 %v2357, %v2354
  %v2400 = vpack.c.b16 %v2361, %v2358
  %v2401 = vpack.c.b16 %v2362, %v2359
  %v2402 = vpack.c.b16 %v2363, %v2360
  %v2403 = vpack.c.b16 %v2367, %v2364
  %v2404 = vpack.c.b16 %v2368, %v2365
  %v2405 = vpack.c.b16 %v2369, %v2366
  %v2406 = vpack.c.b16 %v2373, %v2370
  %v2407 = vpack.c.b16 %v2374, %v2371
  %v2408 = vpack.c.b16 %v2375, %v2372
  %v2409 = vpack.c.b16 %v2379, %v2376
  %v2410 = vpack.c.b16 %v2380, %v2377
  %v2411 = vpack.c.b16 %v2381, %v2378
  %v2412 = vpack.c.b16 %v2385, %v2382
  %v2413 = vpack.c.b16 %v2386, %v2383
  %v2414 = vpack.c.b16 %v2387, %v2384
  %v2415 = vpack.c.b16 %v2391, %v2388
  %v2416 = vpack.c.b16 %v2392, %v2389
  %v2417 = vpack.c.b16 %v2393, %v2390
  %2442 = vmatprep.subr.bf16.mxu0 %v2395
  %2443 = vmatpush1.bf16.msra.mxu0 %v2394
  %2444 = vmatprep.subr.bf16.mxu0 %v2398
  %2445 = vmatpush1.bf16.msra.mxu0 %v2397
  %2446 = vmatprep.subr.bf16.mxu0 %v2401
  %2447 = vmatpush1.bf16.msra.mxu0 %v2400
  %2448 = vmatprep.subr.bf16.mxu0 %v2404
  %2449 = vmatpush1.bf16.msra.mxu0 %v2403
  %2450 = vmatprep.subr.bf16.mxu0 %v2407
  %2451 = vmatpush1.bf16.msra.mxu0 %v2406
  %2452 = vmatprep.subr.bf16.mxu0 %v2410
  %2453 = vmatpush1.bf16.msra.mxu0 %v2409
  %2454 = vmatprep.subr.bf16.mxu0 %v2413
  %2455 = vmatpush1.bf16.msra.mxu0 %v2412
  %2456 = vmatprep.subr.bf16.mxu0 %v2416
  %2457 = vmatpush1.bf16.msra.mxu0 %v2415
  %2458 = vmatprep.subr.bf16.mxu0 0
  %2459 = vmatpush1.bf16.msra.mxu0 0
  %2460 = vmatprep.subr.bf16.mxu0 0
  %2461 = vmatpush1.bf16.msra.mxu0 0
  %2462 = vmatprep.subr.bf16.mxu0 0
  %2463 = vmatpush1.bf16.msra.mxu0 0
  %2464 = vmatprep.subr.bf16.mxu0 0
  %2465 = vmatpush1.bf16.msra.mxu0 0
  %2466 = vmatprep.subr.bf16.mxu0 0
  %2467 = vmatpush1.bf16.msra.mxu0 0
  %2468 = vmatprep.subr.bf16.mxu0 0
  %2469 = vmatpush1.bf16.msra.mxu0 0
  %2470 = vmatprep.subr.bf16.mxu0 0
  %2471 = vmatpush1.bf16.msra.mxu0 0
  %2472 = vmatprep.subr.bf16.mxu0 0
  %2473 = vmatpush1.bf16.msra.mxu0 0
  %2474 = vmatprep.mubr.bf16.mxu0 0
  %2475 = vmatmul.mubr.bf16.gmra.mrb[0].mxu0 %v2002
  %v2476 = vpop.f32.mrb[0].mxu0
  %v2477 = vadd.f32 %v2302, %v2476
  %v2478 = vpop.f32.mrb[0].mxu0
  %v2479 = vadd.f32 %v2306, %v2478
  %v2480 = vpop.f32.mrb[0].mxu0
  %v2481 = vpop.f32.mrb[0].mxu0
  %2482 = vdwg.mxu0
  %2483 = vmatprep.subr.bf16.mxu0 0
  %2484 = vmatpush1.bf16.msra.mxu0 %v2396
  %2485 = vmatprep.subr.bf16.mxu0 0
  %2486 = vmatpush1.bf16.msra.mxu0 %v2399
  %2487 = vmatprep.subr.bf16.mxu0 0
  %2488 = vmatpush1.bf16.msra.mxu0 %v2402
  %2489 = vmatprep.subr.bf16.mxu0 0
  %2490 = vmatpush1.bf16.msra.mxu0 %v2405
  %2491 = vmatprep.subr.bf16.mxu0 0
  %2492 = vmatpush1.bf16.msra.mxu0 %v2408
  %2493 = vmatprep.subr.bf16.mxu0 0
  %2494 = vmatpush1.bf16.msra.mxu0 %v2411
  %2495 = vmatprep.subr.bf16.mxu0 0
  %2496 = vmatpush1.bf16.msra.mxu0 %v2414
  %2497 = vmatprep.subr.bf16.mxu0 0
  %2498 = vmatpush1.bf16.msra.mxu0 %v2417
  %2499 = vmatprep.subr.bf16.mxu0 0
  %2500 = vmatpush1.bf16.msra.mxu0 0
  %2501 = vmatprep.subr.bf16.mxu0 0
  %2502 = vmatpush1.bf16.msra.mxu0 0
  %2503 = vmatprep.subr.bf16.mxu0 0
  %2504 = vmatpush1.bf16.msra.mxu0 0
  %2505 = vmatprep.subr.bf16.mxu0 0
  %2506 = vmatpush1.bf16.msra.mxu0 0
  %2507 = vmatprep.subr.bf16.mxu0 0
  %2508 = vmatpush1.bf16.msra.mxu0 0
  %2509 = vmatprep.subr.bf16.mxu0 0
  %2510 = vmatpush1.bf16.msra.mxu0 0
  %2511 = vmatprep.subr.bf16.mxu0 0
  %2512 = vmatpush1.bf16.msra.mxu0 0
  %2513 = vmatprep.subr.bf16.mxu0 0
  %2514 = vmatpush1.bf16.msra.mxu0 0
  %2515 = vmatprep.mubr.bf16.mxu0 0
  %2516 = vmatmul.mubr.bf16.gmra.mrb[0].mxu0 %v2002
  %v2517 = vpop.f32.mrb[0].mxu0
  %v2518 = vadd.f32 %v2310, %v2517
  %v2519 = vpop.f32.mrb[0].mxu0
  %v2520 = vpop.f32.mrb[0].mxu0
  %v2521 = vpop.f32.mrb[0].mxu0
  %2522 = vdwg.mxu0
  %v2523 = vmul.f32 %v2477, 0.5
  %v2524 = vmul.f32 %v2479, 0.5
  %v2525 = vtanh.pop %v2523
  %v2526 = vtanh.pop %v2524
  %v2527 = vadd.f32 %v2525, 1.0
  %v2528 = vadd.f32 %v2526, 1.0
  %v2529 = vmul.f32 %v2527, 0.5
  %v2530 = vmul.f32 %v2528, 0.5
  %s2531 = scalar_lea.vmem %s5, 3
  %v2532 = vld [vmem:[%s2531] sm:$0x1]
  %v2534 = vlaneseq
  %v2535 = vshrl.u32 %v2534, 7
  %v2536 = vsub.s32 0, %v2535
  %v2537 = vrot.slane %v2532, %v2536
  %v2539 = vmul.f32 %v2529, %v2537
  %v2540 = vadd.f32 %v2518, %v2539
  %v2541 = vtanh.pop %v2540
  %v2542 = vsub.f32 1.0, %v2530
  %v2543 = vmul.f32 %v2542, %v2541
  %v2544 = vld [vmem:[#allocation2 + $0x60] sm:$0xff]
  %v2545 = vld [vmem:[#allocation2 + $0x68] sm:$0xff]
  %v2546 = vld [vmem:[#allocation2 + $0x70] sm:$0xff]
  %v2547 = vpack.c.bf16 %v1739, %v1739
  %2548 = vmatprep.subr.bf16.mxu0 %v485
  %2549 = vmatpush1.bf16.msra.mxu0 %v484
  %2550 = vmatprep.subr.bf16.mxu0 %v488
  %2551 = vmatpush1.bf16.msra.mxu0 %v487
  %2552 = vmatprep.subr.bf16.mxu0 %v491
  %2553 = vmatpush1.bf16.msra.mxu0 %v490
  %2554 = vmatprep.subr.bf16.mxu0 %v494
  %2555 = vmatpush1.bf16.msra.mxu0 %v493
  %2556 = vmatprep.subr.bf16.mxu0 %v497
  %2557 = vmatpush1.bf16.msra.mxu0 %v496
  %2558 = vmatprep.subr.bf16.mxu0 %v500
  %2559 = vmatpush1.bf16.msra.mxu0 %v499
  %2560 = vmatprep.subr.bf16.mxu0 %v503
  %2561 = vmatpush1.bf16.msra.mxu0 %v502
  %2562 = vmatprep.subr.bf16.mxu0 %v506
  %2563 = vmatpush1.bf16.msra.mxu0 %v505
  %2564 = vmatprep.subr.bf16.mxu0 0
  %2565 = vmatpush1.bf16.msra.mxu0 0
  %2566 = vmatprep.subr.bf16.mxu0 0
  %2567 = vmatpush1.bf16.msra.mxu0 0
  %2568 = vmatprep.subr.bf16.mxu0 0
  %2569 = vmatpush1.bf16.msra.mxu0 0
  %2570 = vmatprep.subr.bf16.mxu0 0
  %2571 = vmatpush1.bf16.msra.mxu0 0
  %2572 = vmatprep.subr.bf16.mxu0 0
  %2573 = vmatpush1.bf16.msra.mxu0 0
  %2574 = vmatprep.subr.bf16.mxu0 0
  %2575 = vmatpush1.bf16.msra.mxu0 0
  %2576 = vmatprep.subr.bf16.mxu0 0
  %2577 = vmatpush1.bf16.msra.mxu0 0
  %2578 = vmatprep.subr.bf16.mxu0 0
  %2579 = vmatpush1.bf16.msra.mxu0 0
  %2580 = vmatprep.mubr.bf16.mxu0 0
  %2581 = vmatmul.mubr.bf16.gmra.mrb[0].mxu0 %v2547
  %v2582 = vpop.f32.mrb[0].mxu0
  %v2583 = vadd.f32 0.0, %v2582
  %v2584 = vpop.f32.mrb[0].mxu0
  %v2585 = vadd.f32 0.0, %v2584
  %v2586 = vpop.f32.mrb[0].mxu0
  %v2587 = vpop.f32.mrb[0].mxu0
  %2588 = vdwg.mxu0
  %2589 = vmatprep.subr.bf16.mxu0 0
  %2590 = vmatpush1.bf16.msra.mxu0 %v486
  %2591 = vmatprep.subr.bf16.mxu0 0
  %2592 = vmatpush1.bf16.msra.mxu0 %v489
  %2593 = vmatprep.subr.bf16.mxu0 0
  %2594 = vmatpush1.bf16.msra.mxu0 %v492
  %2595 = vmatprep.subr.bf16.mxu0 0
  %2596 = vmatpush1.bf16.msra.mxu0 %v495
  %2597 = vmatprep.subr.bf16.mxu0 0
  %2598 = vmatpush1.bf16.msra.mxu0 %v498
  %2599 = vmatprep.subr.bf16.mxu0 0
  %2600 = vmatpush1.bf16.msra.mxu0 %v501
  %2601 = vmatprep.subr.bf16.mxu0 0
  %2602 = vmatpush1.bf16.msra.mxu0 %v504
  %2603 = vmatprep.subr.bf16.mxu0 0
  %2604 = vmatpush1.bf16.msra.mxu0 %v507
  %2605 = vmatprep.subr.bf16.mxu0 0
  %2606 = vmatpush1.bf16.msra.mxu0 0
  %2607 = vmatprep.subr.bf16.mxu0 0
  %2608 = vmatpush1.bf16.msra.mxu0 0
  %2609 = vmatprep.subr.bf16.mxu0 0
  %2610 = vmatpush1.bf16.msra.mxu0 0
  %2611 = vmatprep.subr.bf16.mxu0 0
  %2612 = vmatpush1.bf16.msra.mxu0 0
  %2613 = vmatprep.subr.bf16.mxu0 0
  %2614 = vmatpush1.bf16.msra.mxu0 0
  %2615 = vmatprep.subr.bf16.mxu0 0
  %2616 = vmatpush1.bf16.msra.mxu0 0
  %2617 = vmatprep.subr.bf16.mxu0 0
  %2618 = vmatpush1.bf16.msra.mxu0 0
  %2619 = vmatprep.subr.bf16.mxu0 0
  %2620 = vmatpush1.bf16.msra.mxu0 0
  %2621 = vmatprep.mubr.bf16.mxu0 0
  %2622 = vmatmul.mubr.bf16.gmra.mrb[0].mxu0 %v2547
  %v2623 = vpop.f32.mrb[0].mxu0
  %v2624 = vadd.f32 0.0, %v2623
  %v2625 = vpop.f32.mrb[0].mxu0
  %v2626 = vpop.f32.mrb[0].mxu0
  %v2627 = vpop.f32.mrb[0].mxu0
  %2628 = vdwg.mxu0
  %v2629 = vadd.f32 %v2544, %v2583
  %v2630 = vadd.f32 %v2545, %v2585
  %v2631 = vmul.f32 %v2629, 0.5
  %v2632 = vmul.f32 %v2630, 0.5
  %v2633 = vtanh.pop %v2631
  %v2634 = vtanh.pop %v2632
  %v2635 = vadd.f32 %v2633, 1.0
  %v2636 = vadd.f32 %v2634, 1.0
  %v2637 = vmul.f32 %v2635, 0.5
  %v2638 = vmul.f32 %v2636, 0.5
  %v2639 = vadd.f32 %v2624, %v361
  %v2640 = vmul.f32 %v2637, %v2639
  %v2641 = vadd.f32 %v2546, %v2640
  %v2642 = vtanh.pop %v2641
  %v2643 = vsub.f32 1.0, %v2638
  %v2644 = vmul.f32 %v2643, %v2642
  %v2645 = vmul.f32 %v2638, %v1739
  %v2646 = vadd.f32 %v2644, %v2645
  %2647 = vmatprep.subr.bf16.mxu0 %v762
  %2648 = vmatpush1.bf16.msra.mxu0 %v761
  %2649 = vmatprep.subr.bf16.mxu0 %v765
  %2650 = vmatpush1.bf16.msra.mxu0 %v764
  %2651 = vmatprep.subr.bf16.mxu0 %v768
  %2652 = vmatpush1.bf16.msra.mxu0 %v767
  %2653 = vmatprep.subr.bf16.mxu0 %v771
  %2654 = vmatpush1.bf16.msra.mxu0 %v770
  %2655 = vmatprep.subr.bf16.mxu0 %v774
  %2656 = vmatpush1.bf16.msra.mxu0 %v773
  %2657 = vmatprep.subr.bf16.mxu0 %v777
  %2658 = vmatpush1.bf16.msra.mxu0 %v776
  %2659 = vmatprep.subr.bf16.mxu0 %v780
  %2660 = vmatpush1.bf16.msra.mxu0 %v779
  %2661 = vmatprep.subr.bf16.mxu0 %v783
  %2662 = vmatpush1.bf16.msra.mxu0 %v782
  %2663 = vmatprep.subr.bf16.mxu0 0
  %2664 = vmatpush1.bf16.msra.mxu0 0
  %2665 = vmatprep.subr.bf16.mxu0 0
  %2666 = vmatpush1.bf16.msra.mxu0 0
  %2667 = vmatprep.subr.bf16.mxu0 0
  %2668 = vmatpush1.bf16.msra.mxu0 0
  %2669 = vmatprep.subr.bf16.mxu0 0
  %2670 = vmatpush1.bf16.msra.mxu0 0
  %2671 = vmatprep.subr.bf16.mxu0 0
  %2672 = vmatpush1.bf16.msra.mxu0 0
  %2673 = vmatprep.subr.bf16.mxu0 0
  %2674 = vmatpush1.bf16.msra.mxu0 0
  %2675 = vmatprep.subr.bf16.mxu0 0
  %2676 = vmatpush1.bf16.msra.mxu0 0
  %2677 = vmatprep.subr.bf16.mxu0 0
  %2678 = vmatpush1.bf16.msra.mxu0 0
  %2679 = vmatprep.mubr.bf16.mxu0 0
  %2680 = vmatmul.mubr.bf16.gmra.mrb[0].mxu0 %v2547
  %v2681 = vpop.f32.mrb[0].mxu0
  %v2682 = vadd.f32 %v669, %v2681
  %v2683 = vpop.f32.mrb[0].mxu0
  %v2684 = vadd.f32 %v673, %v2683
  %v2685 = vpop.f32.mrb[0].mxu0
  %v2686 = vpop.f32.mrb[0].mxu0
  %2687 = vdwg.mxu0
  %2688 = vmatprep.subr.bf16.mxu0 0
  %2689 = vmatpush1.bf16.msra.mxu0 %v763
  %2690 = vmatprep.subr.bf16.mxu0 0
  %2691 = vmatpush1.bf16.msra.mxu0 %v766
  %2692 = vmatprep.subr.bf16.mxu0 0
  %2693 = vmatpush1.bf16.msra.mxu0 %v769
  %2694 = vmatprep.subr.bf16.mxu0 0
  %2695 = vmatpush1.bf16.msra.mxu0 %v772
  %2696 = vmatprep.subr.bf16.mxu0 0
  %2697 = vmatpush1.bf16.msra.mxu0 %v775
  %2698 = vmatprep.subr.bf16.mxu0 0
  %2699 = vmatpush1.bf16.msra.mxu0 %v778
  %2700 = vmatprep.subr.bf16.mxu0 0
  %2701 = vmatpush1.bf16.msra.mxu0 %v781
  %2702 = vmatprep.subr.bf16.mxu0 0
  %2703 = vmatpush1.bf16.msra.mxu0 %v784
  %2704 = vmatprep.subr.bf16.mxu0 0
  %2705 = vmatpush1.bf16.msra.mxu0 0
  %2706 = vmatprep.subr.bf16.mxu0 0
  %2707 = vmatpush1.bf16.msra.mxu0 0
  %2708 = vmatprep.subr.bf16.mxu0 0
  %2709 = vmatpush1.bf16.msra.mxu0 0
  %2710 = vmatprep.subr.bf16.mxu0 0
  %2711 = vmatpush1.bf16.msra.mxu0 0
  %2712 = vmatprep.subr.bf16.mxu0 0
  %2713 = vmatpush1.bf16.msra.mxu0 0
  %2714 = vmatprep.subr.bf16.mxu0 0
  %2715 = vmatpush1.bf16.msra.mxu0 0
  %2716 = vmatprep.subr.bf16.mxu0 0
  %2717 = vmatpush1.bf16.msra.mxu0 0
  %2718 = vmatprep.subr.bf16.mxu0 0
  %2719 = vmatpush1.bf16.msra.mxu0 0
  %2720 = vmatprep.mubr.bf16.mxu0 0
  %2721 = vmatmul.mubr.bf16.gmra.mrb[0].mxu0 %v2547
  %v2722 = vpop.f32.mrb[0].mxu0
  %v2723 = vadd.f32 %v677, %v2722
  %v2724 = vpop.f32.mrb[0].mxu0
  %v2725 = vpop.f32.mrb[0].mxu0
  %v2726 = vpop.f32.mrb[0].mxu0
  %2727 = vdwg.mxu0
  %v2728 = vpack.c.bf16 %v1920, %v1920
  %2729 = vmatprep.subr.bf16.mxu0 %v1210
  %2730 = vmatpush1.bf16.msra.mxu0 %v1209
  %2731 = vmatprep.subr.bf16.mxu0 %v1213
  %2732 = vmatpush1.bf16.msra.mxu0 %v1212
  %2733 = vmatprep.subr.bf16.mxu0 %v1216
  %2734 = vmatpush1.bf16.msra.mxu0 %v1215
  %2735 = vmatprep.subr.bf16.mxu0 %v1219
  %2736 = vmatpush1.bf16.msra.mxu0 %v1218
  %2737 = vmatprep.subr.bf16.mxu0 %v1222
  %2738 = vmatpush1.bf16.msra.mxu0 %v1221
  %2739 = vmatprep.subr.bf16.mxu0 %v1225
  %2740 = vmatpush1.bf16.msra.mxu0 %v1224
  %2741 = vmatprep.subr.bf16.mxu0 %v1228
  %2742 = vmatpush1.bf16.msra.mxu0 %v1227
  %2743 = vmatprep.subr.bf16.mxu0 %v1231
  %2744 = vmatpush1.bf16.msra.mxu0 %v1230
  %2745 = vmatprep.subr.bf16.mxu0 0
  %2746 = vmatpush1.bf16.msra.mxu0 0
  %2747 = vmatprep.subr.bf16.mxu0 0
  %2748 = vmatpush1.bf16.msra.mxu0 0
  %2749 = vmatprep.subr.bf16.mxu0 0
  %2750 = vmatpush1.bf16.msra.mxu0 0
  %2751 = vmatprep.subr.bf16.mxu0 0
  %2752 = vmatpush1.bf16.msra.mxu0 0
  %2753 = vmatprep.subr.bf16.mxu0 0
  %2754 = vmatpush1.bf16.msra.mxu0 0
  %2755 = vmatprep.subr.bf16.mxu0 0
  %2756 = vmatpush1.bf16.msra.mxu0 0
  %2757 = vmatprep.subr.bf16.mxu0 0
  %2758 = vmatpush1.bf16.msra.mxu0 0
  %2759 = vmatprep.subr.bf16.mxu0 0
  %2760 = vmatpush1.bf16.msra.mxu0 0
  %2761 = vmatprep.mubr.bf16.mxu0 0
  %2762 = vmatmul.mubr.bf16.gmra.mrb[0].mxu0 %v2728
  %v2763 = vpop.f32.mrb[0].mxu0
  %v2764 = vadd.f32 0.0, %v2763
  %v2765 = vpop.f32.mrb[0].mxu0
  %v2766 = vadd.f32 0.0, %v2765
  %v2767 = vpop.f32.mrb[0].mxu0
  %v2768 = vpop.f32.mrb[0].mxu0
  %2769 = vdwg.mxu0
  %2770 = vmatprep.subr.bf16.mxu0 0
  %2771 = vmatpush1.bf16.msra.mxu0 %v1211
  %2772 = vmatprep.subr.bf16.mxu0 0
  %2773 = vmatpush1.bf16.msra.mxu0 %v1214
  %2774 = vmatprep.subr.bf16.mxu0 0
  %2775 = vmatpush1.bf16.msra.mxu0 %v1217
  %2776 = vmatprep.subr.bf16.mxu0 0
  %2777 = vmatpush1.bf16.msra.mxu0 %v1220
  %2778 = vmatprep.subr.bf16.mxu0 0
  %2779 = vmatpush1.bf16.msra.mxu0 %v1223
  %2780 = vmatprep.subr.bf16.mxu0 0
  %2781 = vmatpush1.bf16.msra.mxu0 %v1226
  %2782 = vmatprep.subr.bf16.mxu0 0
  %2783 = vmatpush1.bf16.msra.mxu0 %v1229
  %2784 = vmatprep.subr.bf16.mxu0 0
  %2785 = vmatpush1.bf16.msra.mxu0 %v1232
  %2786 = vmatprep.subr.bf16.mxu0 0
  %2787 = vmatpush1.bf16.msra.mxu0 0
  %2788 = vmatprep.subr.bf16.mxu0 0
  %2789 = vmatpush1.bf16.msra.mxu0 0
  %2790 = vmatprep.subr.bf16.mxu0 0
  %2791 = vmatpush1.bf16.msra.mxu0 0
  %2792 = vmatprep.subr.bf16.mxu0 0
  %2793 = vmatpush1.bf16.msra.mxu0 0
  %2794 = vmatprep.subr.bf16.mxu0 0
  %2795 = vmatpush1.bf16.msra.mxu0 0
  %2796 = vmatprep.subr.bf16.mxu0 0
  %2797 = vmatpush1.bf16.msra.mxu0 0
  %2798 = vmatprep.subr.bf16.mxu0 0
  %2799 = vmatpush1.bf16.msra.mxu0 0
  %2800 = vmatprep.subr.bf16.mxu0 0
  %2801 = vmatpush1.bf16.msra.mxu0 0
  %2802 = vmatprep.mubr.bf16.mxu0 0
  %2803 = vmatmul.mubr.bf16.gmra.mrb[0].mxu0 %v2728
  %v2804 = vpop.f32.mrb[0].mxu0
  %v2805 = vadd.f32 0.0, %v2804
  %v2806 = vpop.f32.mrb[0].mxu0
  %v2807 = vpop.f32.mrb[0].mxu0
  %v2808 = vpop.f32.mrb[0].mxu0
  %2809 = vdwg.mxu0
  %v2810 = vadd.f32 %v2682, %v2764
  %v2811 = vadd.f32 %v2684, %v2766
  %v2812 = vmul.f32 %v2810, 0.5
  %v2813 = vmul.f32 %v2811, 0.5
  %v2814 = vtanh.pop %v2812
  %v2815 = vtanh.pop %v2813
  %v2816 = vadd.f32 %v2814, 1.0
  %v2817 = vadd.f32 %v2815, 1.0
  %v2818 = vmul.f32 %v2816, 0.5
  %v2819 = vmul.f32 %v2817, 0.5
  %v2820 = vadd.f32 %v2805, %v904
  %v2821 = vmul.f32 %v2818, %v2820
  %v2822 = vadd.f32 %v2723, %v2821
  %v2823 = vtanh.pop %v2822
  %v2824 = vsub.f32 1.0, %v2819
  %v2825 = vmul.f32 %v2824, %v2823
  %v2826 = vmul.f32 %v2819, %v1920
  %v2827 = vadd.f32 %v2825, %v2826
  %2828 = vmatprep.subr.bf16.mxu0 %v1488
  %2829 = vmatpush1.bf16.msra.mxu0 %v1487
  %2830 = vmatprep.subr.bf16.mxu0 %v1491
  %2831 = vmatpush1.bf16.msra.mxu0 %v1490
  %2832 = vmatprep.subr.bf16.mxu0 %v1494
  %2833 = vmatpush1.bf16.msra.mxu0 %v1493
  %2834 = vmatprep.subr.bf16.mxu0 %v1497
  %2835 = vmatpush1.bf16.msra.mxu0 %v1496
  %2836 = vmatprep.subr.bf16.mxu0 %v1500
  %2837 = vmatpush1.bf16.msra.mxu0 %v1499
  %2838 = vmatprep.subr.bf16.mxu0 %v1503
  %2839 = vmatpush1.bf16.msra.mxu0 %v1502
  %2840 = vmatprep.subr.bf16.mxu0 %v1506
  %2841 = vmatpush1.bf16.msra.mxu0 %v1505
  %2842 = vmatprep.subr.bf16.mxu0 %v1509
  %2843 = vmatpush1.bf16.msra.mxu0 %v1508
  %2844 = vmatprep.subr.bf16.mxu0 0
  %2845 = vmatpush1.bf16.msra.mxu0 0
  %2846 = vmatprep.subr.bf16.mxu0 0
  %2847 = vmatpush1.bf16.msra.mxu0 0
  %2848 = vmatprep.subr.bf16.mxu0 0
  %2849 = vmatpush1.bf16.msra.mxu0 0
  %2850 = vmatprep.subr.bf16.mxu0 0
  %2851 = vmatpush1.bf16.msra.mxu0 0
  %2852 = vmatprep.subr.bf16.mxu0 0
  %2853 = vmatpush1.bf16.msra.mxu0 0
  %2854 = vmatprep.subr.bf16.mxu0 0
  %2855 = vmatpush1.bf16.msra.mxu0 0
  %2856 = vmatprep.subr.bf16.mxu0 0
  %2857 = vmatpush1.bf16.msra.mxu0 0
  %2858 = vmatprep.subr.bf16.mxu0 0
  %2859 = vmatpush1.bf16.msra.mxu0 0
  %2860 = vmatprep.mubr.bf16.mxu0 0
  %2861 = vmatmul.mubr.bf16.gmra.mrb[0].mxu0 %v2728
  %v2862 = vpop.f32.mrb[0].mxu0
  %v2863 = vadd.f32 %v1395, %v2862
  %v2864 = vpop.f32.mrb[0].mxu0
  %v2865 = vadd.f32 %v1399, %v2864
  %v2866 = vpop.f32.mrb[0].mxu0
  %v2867 = vpop.f32.mrb[0].mxu0
  %2868 = vdwg.mxu0
  %2869 = vmatprep.subr.bf16.mxu0 0
  %2870 = vmatpush1.bf16.msra.mxu0 %v1489
  %2871 = vmatprep.subr.bf16.mxu0 0
  %2872 = vmatpush1.bf16.msra.mxu0 %v1492
  %2873 = vmatprep.subr.bf16.mxu0 0
  %2874 = vmatpush1.bf16.msra.mxu0 %v1495
  %2875 = vmatprep.subr.bf16.mxu0 0
  %2876 = vmatpush1.bf16.msra.mxu0 %v1498
  %2877 = vmatprep.subr.bf16.mxu0 0
  %2878 = vmatpush1.bf16.msra.mxu0 %v1501
  %2879 = vmatprep.subr.bf16.mxu0 0
  %2880 = vmatpush1.bf16.msra.mxu0 %v1504
  %2881 = vmatprep.subr.bf16.mxu0 0
  %2882 = vmatpush1.bf16.msra.mxu0 %v1507
  %2883 = vmatprep.subr.bf16.mxu0 0
  %2884 = vmatpush1.bf16.msra.mxu0 %v1510
  %2885 = vmatprep.subr.bf16.mxu0 0
  %2886 = vmatpush1.bf16.msra.mxu0 0
  %2887 = vmatprep.subr.bf16.mxu0 0
  %2888 = vmatpush1.bf16.msra.mxu0 0
  %2889 = vmatprep.subr.bf16.mxu0 0
  %2890 = vmatpush1.bf16.msra.mxu0 0
  %2891 = vmatprep.subr.bf16.mxu0 0
  %2892 = vmatpush1.bf16.msra.mxu0 0
  %2893 = vmatprep.subr.bf16.mxu0 0
  %2894 = vmatpush1.bf16.msra.mxu0 0
  %2895 = vmatprep.subr.bf16.mxu0 0
  %2896 = vmatpush1.bf16.msra.mxu0 0
  %2897 = vmatprep.subr.bf16.mxu0 0
  %2898 = vmatpush1.bf16.msra.mxu0 0
  %2899 = vmatprep.subr.bf16.mxu0 0
  %2900 = vmatpush1.bf16.msra.mxu0 0
  %2901 = vmatprep.mubr.bf16.mxu0 0
  %2902 = vmatmul.mubr.bf16.gmra.mrb[0].mxu0 %v2728
  %v2903 = vpop.f32.mrb[0].mxu0
  %v2904 = vadd.f32 %v1403, %v2903
  %v2905 = vpop.f32.mrb[0].mxu0
  %v2906 = vpop.f32.mrb[0].mxu0
  %v2907 = vpop.f32.mrb[0].mxu0
  %2908 = vdwg.mxu0
  %v2909 = vpack.c.bf16 %v2262, %v2262
  %2910 = vmatprep.subr.bf16.mxu0 %v2117
  %2911 = vmatpush1.bf16.msra.mxu0 %v2116
  %2912 = vmatprep.subr.bf16.mxu0 %v2120
  %2913 = vmatpush1.bf16.msra.mxu0 %v2119
  %2914 = vmatprep.subr.bf16.mxu0 %v2123
  %2915 = vmatpush1.bf16.msra.mxu0 %v2122
  %2916 = vmatprep.subr.bf16.mxu0 %v2126
  %2917 = vmatpush1.bf16.msra.mxu0 %v2125
  %2918 = vmatprep.subr.bf16.mxu0 %v2129
  %2919 = vmatpush1.bf16.msra.mxu0 %v2128
  %2920 = vmatprep.subr.bf16.mxu0 %v2132
  %2921 = vmatpush1.bf16.msra.mxu0 %v2131
  %2922 = vmatprep.subr.bf16.mxu0 %v2135
  %2923 = vmatpush1.bf16.msra.mxu0 %v2134
  %2924 = vmatprep.subr.bf16.mxu0 %v2138
  %2925 = vmatpush1.bf16.msra.mxu0 %v2137
  %2926 = vmatprep.subr.bf16.mxu0 0
  %2927 = vmatpush1.bf16.msra.mxu0 0
  %2928 = vmatprep.subr.bf16.mxu0 0
  %2929 = vmatpush1.bf16.msra.mxu0 0
  %2930 = vmatprep.subr.bf16.mxu0 0
  %2931 = vmatpush1.bf16.msra.mxu0 0
  %2932 = vmatprep.subr.bf16.mxu0 0
  %2933 = vmatpush1.bf16.msra.mxu0 0
  %2934 = vmatprep.subr.bf16.mxu0 0
  %2935 = vmatpush1.bf16.msra.mxu0 0
  %2936 = vmatprep.subr.bf16.mxu0 0
  %2937 = vmatpush1.bf16.msra.mxu0 0
  %2938 = vmatprep.subr.bf16.mxu0 0
  %2939 = vmatpush1.bf16.msra.mxu0 0
  %2940 = vmatprep.subr.bf16.mxu0 0
  %2941 = vmatpush1.bf16.msra.mxu0 0
  %2942 = vmatprep.mubr.bf16.mxu0 0
  %2943 = vmatmul.mubr.bf16.gmra.mrb[0].mxu0 %v2909
  %v2944 = vpop.f32.mrb[0].mxu0
  %v2945 = vadd.f32 0.0, %v2944
  %v2946 = vpop.f32.mrb[0].mxu0
  %v2947 = vadd.f32 0.0, %v2946
  %v2948 = vpop.f32.mrb[0].mxu0
  %v2949 = vpop.f32.mrb[0].mxu0
  %2950 = vdwg.mxu0
  %2951 = vmatprep.subr.bf16.mxu0 0
  %2952 = vmatpush1.bf16.msra.mxu0 %v2118
  %2953 = vmatprep.subr.bf16.mxu0 0
  %2954 = vmatpush1.bf16.msra.mxu0 %v2121
  %2955 = vmatprep.subr.bf16.mxu0 0
  %2956 = vmatpush1.bf16.msra.mxu0 %v2124
  %2957 = vmatprep.subr.bf16.mxu0 0
  %2958 = vmatpush1.bf16.msra.mxu0 %v2127
  %2959 = vmatprep.subr.bf16.mxu0 0
  %2960 = vmatpush1.bf16.msra.mxu0 %v2130
  %2961 = vmatprep.subr.bf16.mxu0 0
  %2962 = vmatpush1.bf16.msra.mxu0 %v2133
  %2963 = vmatprep.subr.bf16.mxu0 0
  %2964 = vmatpush1.bf16.msra.mxu0 %v2136
  %2965 = vmatprep.subr.bf16.mxu0 0
  %2966 = vmatpush1.bf16.msra.mxu0 %v2139
  %2967 = vmatprep.subr.bf16.mxu0 0
  %2968 = vmatpush1.bf16.msra.mxu0 0
  %2969 = vmatprep.subr.bf16.mxu0 0
  %2970 = vmatpush1.bf16.msra.mxu0 0
  %2971 = vmatprep.subr.bf16.mxu0 0
  %2972 = vmatpush1.bf16.msra.mxu0 0
  %2973 = vmatprep.subr.bf16.mxu0 0
  %2974 = vmatpush1.bf16.msra.mxu0 0
  %2975 = vmatprep.subr.bf16.mxu0 0
  %2976 = vmatpush1.bf16.msra.mxu0 0
  %2977 = vmatprep.subr.bf16.mxu0 0
  %2978 = vmatpush1.bf16.msra.mxu0 0
  %2979 = vmatprep.subr.bf16.mxu0 0
  %2980 = vmatpush1.bf16.msra.mxu0 0
  %2981 = vmatprep.subr.bf16.mxu0 0
  %2982 = vmatpush1.bf16.msra.mxu0 0
  %2983 = vmatprep.mubr.bf16.mxu0 0
  %2984 = vmatmul.mubr.bf16.gmra.mrb[0].mxu0 %v2909
  %v2985 = vpop.f32.mrb[0].mxu0
  %v2986 = vadd.f32 0.0, %v2985
  %v2987 = vpop.f32.mrb[0].mxu0
  %v2988 = vpop.f32.mrb[0].mxu0
  %v2989 = vpop.f32.mrb[0].mxu0
  %2990 = vdwg.mxu0
  %v2991 = vadd.f32 %v2863, %v2945
  %v2992 = vadd.f32 %v2865, %v2947
  %v2993 = vmul.f32 %v2991, 0.5
  %v2994 = vmul.f32 %v2992, 0.5
  %v2995 = vtanh.pop %v2993
  %v2996 = vtanh.pop %v2994
  %v2997 = vadd.f32 %v2995, 1.0
  %v2998 = vadd.f32 %v2996, 1.0
  %v2999 = vmul.f32 %v2997, 0.5
  %v3000 = vmul.f32 %v2998, 0.5
  %v3001 = vadd.f32 %v2986, %v1630
  %v3002 = vmul.f32 %v2999, %v3001
  %v3003 = vadd.f32 %v2904, %v3002
  %v3004 = vtanh.pop %v3003
  %v3005 = vsub.f32 1.0, %v3000
  %v3006 = vmul.f32 %v3005, %v3004
  %v3007 = vmul.f32 %v3000, %v2262
  %v3008 = vadd.f32 %v3006, %v3007
  %3009 = vmatprep.subr.bf16.mxu0 %v2395
  %3010 = vmatpush1.bf16.msra.mxu0 %v2394
  %3011 = vmatprep.subr.bf16.mxu0 %v2398
  %3012 = vmatpush1.bf16.msra.mxu0 %v2397
  %3013 = vmatprep.subr.bf16.mxu0 %v2401
  %3014 = vmatpush1.bf16.msra.mxu0 %v2400
  %3015 = vmatprep.subr.bf16.mxu0 %v2404
  %3016 = vmatpush1.bf16.msra.mxu0 %v2403
  %3017 = vmatprep.subr.bf16.mxu0 %v2407
  %3018 = vmatpush1.bf16.msra.mxu0 %v2406
  %3019 = vmatprep.subr.bf16.mxu0 %v2410
  %3020 = vmatpush1.bf16.msra.mxu0 %v2409
  %3021 = vmatprep.subr.bf16.mxu0 %v2413
  %3022 = vmatpush1.bf16.msra.mxu0 %v2412
  %3023 = vmatprep.subr.bf16.mxu0 %v2416
  %3024 = vmatpush1.bf16.msra.mxu0 %v2415
  %3025 = vmatprep.subr.bf16.mxu0 0
  %3026 = vmatpush1.bf16.msra.mxu0 0
  %3027 = vmatprep.subr.bf16.mxu0 0
  %3028 = vmatpush1.bf16.msra.mxu0 0
  %3029 = vmatprep.subr.bf16.mxu0 0
  %3030 = vmatpush1.bf16.msra.mxu0 0
  %3031 = vmatprep.subr.bf16.mxu0 0
  %3032 = vmatpush1.bf16.msra.mxu0 0
  %3033 = vmatprep.subr.bf16.mxu0 0
  %3034 = vmatpush1.bf16.msra.mxu0 0
  %3035 = vmatprep.subr.bf16.mxu0 0
  %3036 = vmatpush1.bf16.msra.mxu0 0
  %3037 = vmatprep.subr.bf16.mxu0 0
  %3038 = vmatpush1.bf16.msra.mxu0 0
  %3039 = vmatprep.subr.bf16.mxu0 0
  %3040 = vmatpush1.bf16.msra.mxu0 0
  %3041 = vmatprep.mubr.bf16.mxu0 0
  %3042 = vmatmul.mubr.bf16.gmra.mrb[0].mxu0 %v2909
  %v3043 = vpop.f32.mrb[0].mxu0
  %v3044 = vadd.f32 %v2302, %v3043
  %v3045 = vpop.f32.mrb[0].mxu0
  %v3046 = vadd.f32 %v2306, %v3045
  %v3047 = vpop.f32.mrb[0].mxu0
  %v3048 = vpop.f32.mrb[0].mxu0
  %3049 = vdwg.mxu0
  %3050 = vmatprep.subr.bf16.mxu0 0
  %3051 = vmatpush1.bf16.msra.mxu0 %v2396
  %3052 = vmatprep.subr.bf16.mxu0 0
  %3053 = vmatpush1.bf16.msra.mxu0 %v2399
  %3054 = vmatprep.subr.bf16.mxu0 0
  %3055 = vmatpush1.bf16.msra.mxu0 %v2402
  %3056 = vmatprep.subr.bf16.mxu0 0
  %3057 = vmatpush1.bf16.msra.mxu0 %v2405
  %3058 = vmatprep.subr.bf16.mxu0 0
  %3059 = vmatpush1.bf16.msra.mxu0 %v2408
  %3060 = vmatprep.subr.bf16.mxu0 0
  %3061 = vmatpush1.bf16.msra.mxu0 %v2411
  %3062 = vmatprep.subr.bf16.mxu0 0
  %3063 = vmatpush1.bf16.msra.mxu0 %v2414
  %3064 = vmatprep.subr.bf16.mxu0 0
  %3065 = vmatpush1.bf16.msra.mxu0 %v2417
  %3066 = vmatprep.subr.bf16.mxu0 0
  %3067 = vmatpush1.bf16.msra.mxu0 0
  %3068 = vmatprep.subr.bf16.mxu0 0
  %3069 = vmatpush1.bf16.msra.mxu0 0
  %3070 = vmatprep.subr.bf16.mxu0 0
  %3071 = vmatpush1.bf16.msra.mxu0 0
  %3072 = vmatprep.subr.bf16.mxu0 0
  %3073 = vmatpush1.bf16.msra.mxu0 0
  %3074 = vmatprep.subr.bf16.mxu0 0
  %3075 = vmatpush1.bf16.msra.mxu0 0
  %3076 = vmatprep.subr.bf16.mxu0 0
  %3077 = vmatpush1.bf16.msra.mxu0 0
  %3078 = vmatprep.subr.bf16.mxu0 0
  %3079 = vmatpush1.bf16.msra.mxu0 0
  %3080 = vmatprep.subr.bf16.mxu0 0
  %3081 = vmatpush1.bf16.msra.mxu0 0
  %3082 = vmatprep.mubr.bf16.mxu0 0
  %3083 = vmatmul.mubr.bf16.gmra.mrb[0].mxu0 %v2909
  %v3084 = vpop.f32.mrb[0].mxu0
  %v3085 = vadd.f32 %v2310, %v3084
  %v3086 = vpop.f32.mrb[0].mxu0
  %v3087 = vpop.f32.mrb[0].mxu0
  %v3088 = vpop.f32.mrb[0].mxu0
  %3089 = vdwg.mxu0
  %v3090 = vpack.c.bf16 %v2543, %v2543
  %s3091 = scalar_lea.vmem %s3, 576
  %v3092 = vld [vmem:[%s3091] sm:$0xff]
  %v3093 = vld [vmem:[%s3091 + $0x8] sm:$0xf]
  %v3094 = vld [vmem:[%s3091 + $0xc] sm:$0xff]
  %v3095 = vld [vmem:[%s3091 + $0x14] sm:$0xf]
  %v3096 = vld [vmem:[%s3091 + $0x18] sm:$0xff]
  %v3097 = vld [vmem:[%s3091 + $0x20] sm:$0xf]
  %v3098 = vld [vmem:[%s3091 + $0x24] sm:$0xff]
  %v3099 = vld [vmem:[%s3091 + $0x2c] sm:$0xf]
  %v3100 = vld [vmem:[%s3091 + $0x30] sm:$0xff]
  %v3101 = vld [vmem:[%s3091 + $0x38] sm:$0xf]
  %v3102 = vld [vmem:[%s3091 + $0x3c] sm:$0xff]
  %v3103 = vld [vmem:[%s3091 + $0x44] sm:$0xf]
  %v3104 = vld [vmem:[%s3091 + $0x48] sm:$0xff]
  %v3105 = vld [vmem:[%s3091 + $0x50] sm:$0xf]
  %v3106 = vld [vmem:[%s3091 + $0x54] sm:$0xff]
  %v3107 = vld [vmem:[%s3091 + $0x5c] sm:$0xf]
  %v3108 = vld [vmem:[%s3091 + $0x60] sm:$0xff]
  %v3109 = vld [vmem:[%s3091 + $0x68] sm:$0xf]
  %v3110 = vld [vmem:[%s3091 + $0x6c] sm:$0xff]
  %v3111 = vld [vmem:[%s3091 + $0x74] sm:$0xf]
  %v3112 = vld [vmem:[%s3091 + $0x78] sm:$0xff]
  %v3113 = vld [vmem:[%s3091 + $0x80] sm:$0xf]
  %v3114 = vld [vmem:[%s3091 + $0x84] sm:$0xff]
  %v3115 = vld [vmem:[%s3091 + $0x8c] sm:$0xf]
  %v3116 = vld [vmem:[%s3091 + $0x90] sm:$0xff]
  %v3117 = vld [vmem:[%s3091 + $0x98] sm:$0xf]
  %v3118 = vld [vmem:[%s3091 + $0x9c] sm:$0xff]
  %v3119 = vld [vmem:[%s3091 + $0xa4] sm:$0xf]
  %v3120 = vld [vmem:[%s3091 + $0xa8] sm:$0xff]
  %v3121 = vld [vmem:[%s3091 + $0xb0] sm:$0xf]
  %v3122 = vld [vmem:[%s3091 + $0xb4] sm:$0xff]
  %v3123 = vld [vmem:[%s3091 + $0xbc] sm:$0xf]
  %v3156 = vunpack.c.l.b16 %v3092
  %v3157 = vunpack.c.h.b16 %v3092
  %v3158 = vunpack.c.l.b16 %v3093
  %v3159 = vunpack.c.l.b16 %v3094
  %v3160 = vunpack.c.h.b16 %v3094
  %v3161 = vunpack.c.l.b16 %v3095
  %v3162 = vunpack.c.l.b16 %v3096
  %v3163 = vunpack.c.h.b16 %v3096
  %v3164 = vunpack.c.l.b16 %v3097
  %v3165 = vunpack.c.l.b16 %v3098
  %v3166 = vunpack.c.h.b16 %v3098
  %v3167 = vunpack.c.l.b16 %v3099
  %v3168 = vunpack.c.l.b16 %v3100
  %v3169 = vunpack.c.h.b16 %v3100
  %v3170 = vunpack.c.l.b16 %v3101
  %v3171 = vunpack.c.l.b16 %v3102
  %v3172 = vunpack.c.h.b16 %v3102
  %v3173 = vunpack.c.l.b16 %v3103
  %v3174 = vunpack.c.l.b16 %v3104
  %v3175 = vunpack.c.h.b16 %v3104
  %v3176 = vunpack.c.l.b16 %v3105
  %v3177 = vunpack.c.l.b16 %v3106
  %v3178 = vunpack.c.h.b16 %v3106
  %v3179 = vunpack.c.l.b16 %v3107
  %v3180 = vunpack.c.l.b16 %v3108
  %v3181 = vunpack.c.h.b16 %v3108
  %v3182 = vunpack.c.l.b16 %v3109
  %v3183 = vunpack.c.l.b16 %v3110
  %v3184 = vunpack.c.h.b16 %v3110
  %v3185 = vunpack.c.l.b16 %v3111
  %v3186 = vunpack.c.l.b16 %v3112
  %v3187 = vunpack.c.h.b16 %v3112
  %v3188 = vunpack.c.l.b16 %v3113
  %v3189 = vunpack.c.l.b16 %v3114
  %v3190 = vunpack.c.h.b16 %v3114
  %v3191 = vunpack.c.l.b16 %v3115
  %v3192 = vunpack.c.l.b16 %v3116
  %v3193 = vunpack.c.h.b16 %v3116
  %v3194 = vunpack.c.l.b16 %v3117
  %v3195 = vunpack.c.l.b16 %v3118
  %v3196 = vunpack.c.h.b16 %v3118
  %v3197 = vunpack.c.l.b16 %v3119
  %v3198 = vunpack.c.l.b16 %v3120
  %v3199 = vunpack.c.h.b16 %v3120
  %v3200 = vunpack.c.l.b16 %v3121
  %v3201 = vunpack.c.l.b16 %v3122
  %v3202 = vunpack.c.h.b16 %v3122
  %v3203 = vunpack.c.l.b16 %v3123
  %v3204 = vpack.c.b16 %v3159, %v3156
  %v3205 = vpack.c.b16 %v3160, %v3157
  %v3206 = vpack.c.b16 %v3161, %v3158
  %v3207 = vpack.c.b16 %v3165, %v3162
  %v3208 = vpack.c.b16 %v3166, %v3163
  %v3209 = vpack.c.b16 %v3167, %v3164
  %v3210 = vpack.c.b16 %v3171, %v3168
  %v3211 = vpack.c.b16 %v3172, %v3169
  %v3212 = vpack.c.b16 %v3173, %v3170
  %v3213 = vpack.c.b16 %v3177, %v3174
  %v3214 = vpack.c.b16 %v3178, %v3175
  %v3215 = vpack.c.b16 %v3179, %v3176
  %v3216 = vpack.c.b16 %v3183, %v3180
  %v3217 = vpack.c.b16 %v3184, %v3181
  %v3218 = vpack.c.b16 %v3185, %v3182
  %v3219 = vpack.c.b16 %v3189, %v3186
  %v3220 = vpack.c.b16 %v3190, %v3187
  %v3221 = vpack.c.b16 %v3191, %v3188
  %v3222 = vpack.c.b16 %v3195, %v3192
  %v3223 = vpack.c.b16 %v3196, %v3193
  %v3224 = vpack.c.b16 %v3197, %v3194
  %v3225 = vpack.c.b16 %v3201, %v3198
  %v3226 = vpack.c.b16 %v3202, %v3199
  %v3227 = vpack.c.b16 %v3203, %v3200
  %3252 = vmatprep.subr.bf16.mxu0 %v3205
  %3253 = vmatpush1.bf16.msra.mxu0 %v3204
  %3254 = vmatprep.subr.bf16.mxu0 %v3208
  %3255 = vmatpush1.bf16.msra.mxu0 %v3207
  %3256 = vmatprep.subr.bf16.mxu0 %v3211
  %3257 = vmatpush1.bf16.msra.mxu0 %v3210
  %3258 = vmatprep.subr.bf16.mxu0 %v3214
  %3259 = vmatpush1.bf16.msra.mxu0 %v3213
  %3260 = vmatprep.subr.bf16.mxu0 %v3217
  %3261 = vmatpush1.bf16.msra.mxu0 %v3216
  %3262 = vmatprep.subr.bf16.mxu0 %v3220
  %3263 = vmatpush1.bf16.msra.mxu0 %v3219
  %3264 = vmatprep.subr.bf16.mxu0 %v3223
  %3265 = vmatpush1.bf16.msra.mxu0 %v3222
  %3266 = vmatprep.subr.bf16.mxu0 %v3226
  %3267 = vmatpush1.bf16.msra.mxu0 %v3225
  %3268 = vmatprep.subr.bf16.mxu0 0
  %3269 = vmatpush1.bf16.msra.mxu0 0
  %3270 = vmatprep.subr.bf16.mxu0 0
  %3271 = vmatpush1.bf16.msra.mxu0 0
  %3272 = vmatprep.subr.bf16.mxu0 0
  %3273 = vmatpush1.bf16.msra.mxu0 0
  %3274 = vmatprep.subr.bf16.mxu0 0
  %3275 = vmatpush1.bf16.msra.mxu0 0
  %3276 = vmatprep.subr.bf16.mxu0 0
  %3277 = vmatpush1.bf16.msra.mxu0 0
  %3278 = vmatprep.subr.bf16.mxu0 0
  %3279 = vmatpush1.bf16.msra.mxu0 0
  %3280 = vmatprep.subr.bf16.mxu0 0
  %3281 = vmatpush1.bf16.msra.mxu0 0
  %3282 = vmatprep.subr.bf16.mxu0 0
  %3283 = vmatpush1.bf16.msra.mxu0 0
  %3284 = vmatprep.mubr.bf16.mxu0 0
  %3285 = vmatmul.mubr.bf16.gmra.mrb[0].mxu0 %v3090
  %v3286 = vpop.f32.mrb[0].mxu0
  %v3287 = vadd.f32 0.0, %v3286
  %v3288 = vpop.f32.mrb[0].mxu0
  %v3289 = vadd.f32 0.0, %v3288
  %v3290 = vpop.f32.mrb[0].mxu0
  %v3291 = vpop.f32.mrb[0].mxu0
  %3292 = vdwg.mxu0
  %3293 = vmatprep.subr.bf16.mxu0 0
  %3294 = vmatpush1.bf16.msra.mxu0 %v3206
  %3295 = vmatprep.subr.bf16.mxu0 0
  %3296 = vmatpush1.bf16.msra.mxu0 %v3209
  %3297 = vmatprep.subr.bf16.mxu0 0
  %3298 = vmatpush1.bf16.msra.mxu0 %v3212
  %3299 = vmatprep.subr.bf16.mxu0 0
  %3300 = vmatpush1.bf16.msra.mxu0 %v3215
  %3301 = vmatprep.subr.bf16.mxu0 0
  %3302 = vmatpush1.bf16.msra.mxu0 %v3218
  %3303 = vmatprep.subr.bf16.mxu0 0
  %3304 = vmatpush1.bf16.msra.mxu0 %v3221
  %3305 = vmatprep.subr.bf16.mxu0 0
  %3306 = vmatpush1.bf16.msra.mxu0 %v3224
  %3307 = vmatprep.subr.bf16.mxu0 0
  %3308 = vmatpush1.bf16.msra.mxu0 %v3227
  %3309 = vmatprep.subr.bf16.mxu0 0
  %3310 = vmatpush1.bf16.msra.mxu0 0
  %3311 = vmatprep.subr.bf16.mxu0 0
  %3312 = vmatpush1.bf16.msra.mxu0 0
  %3313 = vmatprep.subr.bf16.mxu0 0
  %3314 = vmatpush1.bf16.msra.mxu0 0
  %3315 = vmatprep.subr.bf16.mxu0 0
  %3316 = vmatpush1.bf16.msra.mxu0 0
  %3317 = vmatprep.subr.bf16.mxu0 0
  %3318 = vmatpush1.bf16.msra.mxu0 0
  %3319 = vmatprep.subr.bf16.mxu0 0
  %3320 = vmatpush1.bf16.msra.mxu0 0
  %3321 = vmatprep.subr.bf16.mxu0 0
  %3322 = vmatpush1.bf16.msra.mxu0 0
  %3323 = vmatprep.subr.bf16.mxu0 0
  %3324 = vmatpush1.bf16.msra.mxu0 0
  %3325 = vmatprep.mubr.bf16.mxu0 0
  %3326 = vmatmul.mubr.bf16.gmra.mrb[0].mxu0 %v3090
  %v3327 = vpop.f32.mrb[0].mxu0
  %v3328 = vadd.f32 0.0, %v3327
  %v3329 = vpop.f32.mrb[0].mxu0
  %v3330 = vpop.f32.mrb[0].mxu0
  %v3331 = vpop.f32.mrb[0].mxu0
  %3332 = vdwg.mxu0
  %v3333 = vadd.f32 %v3044, %v3287
  %v3334 = vadd.f32 %v3046, %v3289
  %v3335 = vmul.f32 %v3333, 0.5
  %v3336 = vmul.f32 %v3334, 0.5
  %v3337 = vtanh.pop %v3335
  %v3338 = vtanh.pop %v3336
  %v3339 = vadd.f32 %v3337, 1.0
  %v3340 = vadd.f32 %v3338, 1.0
  %v3341 = vmul.f32 %v3339, 0.5
  %v3342 = vmul.f32 %v3340, 0.5
  %v3343 = vadd.f32 %v3328, %v2537
  %v3344 = vmul.f32 %v3341, %v3343
  %v3345 = vadd.f32 %v3085, %v3344
  %v3346 = vtanh.pop %v3345
  %v3347 = vsub.f32 1.0, %v3342
  %v3348 = vmul.f32 %v3347, %v3346
  %v3349 = vmul.f32 %v3342, %v2543
  %v3350 = vadd.f32 %v3348, %v3349
  %s3351 = scalar_lea.vmem %s2, 576
  %v3352 = vld [vmem:[%s3351] sm:$0xff]
  %v3353 = vld [vmem:[%s3351 + $0x8] sm:$0xf]
  %v3354 = vld [vmem:[%s3351 + $0xc] sm:$0xff]
  %v3355 = vld [vmem:[%s3351 + $0x14] sm:$0xf]
  %v3356 = vld [vmem:[%s3351 + $0x18] sm:$0xff]
  %v3357 = vld [vmem:[%s3351 + $0x20] sm:$0xf]
  %v3358 = vld [vmem:[%s3351 + $0x24] sm:$0xff]
  %v3359 = vld [vmem:[%s3351 + $0x2c] sm:$0xf]
  %v3360 = vld [vmem:[%s3351 + $0x30] sm:$0xff]
  %v3361 = vld [vmem:[%s3351 + $0x38] sm:$0xf]
  %v3362 = vld [vmem:[%s3351 + $0x3c] sm:$0xff]
  %v3363 = vld [vmem:[%s3351 + $0x44] sm:$0xf]
  %v3364 = vld [vmem:[%s3351 + $0x48] sm:$0xff]
  %v3365 = vld [vmem:[%s3351 + $0x50] sm:$0xf]
  %v3366 = vld [vmem:[%s3351 + $0x54] sm:$0xff]
  %v3367 = vld [vmem:[%s3351 + $0x5c] sm:$0xf]
  %v3368 = vld [vmem:[%s3351 + $0x60] sm:$0xff]
  %v3369 = vld [vmem:[%s3351 + $0x68] sm:$0xf]
  %v3370 = vld [vmem:[%s3351 + $0x6c] sm:$0xff]
  %v3371 = vld [vmem:[%s3351 + $0x74] sm:$0xf]
  %v3372 = vld [vmem:[%s3351 + $0x78] sm:$0xff]
  %v3373 = vld [vmem:[%s3351 + $0x80] sm:$0xf]
  %v3374 = vld [vmem:[%s3351 + $0x84] sm:$0xff]
  %v3375 = vld [vmem:[%s3351 + $0x8c] sm:$0xf]
  %v3376 = vld [vmem:[%s3351 + $0x90] sm:$0xff]
  %v3377 = vld [vmem:[%s3351 + $0x98] sm:$0xf]
  %v3378 = vld [vmem:[%s3351 + $0x9c] sm:$0xff]
  %v3379 = vld [vmem:[%s3351 + $0xa4] sm:$0xf]
  %v3380 = vld [vmem:[%s3351 + $0xa8] sm:$0xff]
  %v3381 = vld [vmem:[%s3351 + $0xb0] sm:$0xf]
  %v3382 = vld [vmem:[%s3351 + $0xb4] sm:$0xff]
  %v3383 = vld [vmem:[%s3351 + $0xbc] sm:$0xf]
  %s3384 = scalar_lea.vmem %s4, 12
  %v3385 = vld [vmem:[%s3384] sm:$0x7]
  %v3387 = vlaneseq
  %v3388 = vshrl.u32 %v3387, 7
  %v3389 = vsub.s32 0, %v3388
  %v3390 = vrot.slane %v3385, %v3389
  %v3391 = vlaneseq
  %v3392 = vshrl.u32 %v3391, 7
  %v3393 = vsub.s32 1, %v3392
  %v3394 = vrot.slane %v3385, %v3393
  %v3395 = vlaneseq
  %v3396 = vshrl.u32 %v3395, 7
  %v3397 = vsub.s32 2, %v3396
  %v3398 = vrot.slane %v3385, %v3397
  %v3434 = vunpack.c.l.b16 %v3352
  %v3435 = vunpack.c.h.b16 %v3352
  %v3436 = vunpack.c.l.b16 %v3353
  %v3437 = vunpack.c.l.b16 %v3354
  %v3438 = vunpack.c.h.b16 %v3354
  %v3439 = vunpack.c.l.b16 %v3355
  %v3440 = vunpack.c.l.b16 %v3356
  %v3441 = vunpack.c.h.b16 %v3356
  %v3442 = vunpack.c.l.b16 %v3357
  %v3443 = vunpack.c.l.b16 %v3358
  %v3444 = vunpack.c.h.b16 %v3358
  %v3445 = vunpack.c.l.b16 %v3359
  %v3446 = vunpack.c.l.b16 %v3360
  %v3447 = vunpack.c.h.b16 %v3360
  %v3448 = vunpack.c.l.b16 %v3361
  %v3449 = vunpack.c.l.b16 %v3362
  %v3450 = vunpack.c.h.b16 %v3362
  %v3451 = vunpack.c.l.b16 %v3363
  %v3452 = vunpack.c.l.b16 %v3364
  %v3453 = vunpack.c.h.b16 %v3364
  %v3454 = vunpack.c.l.b16 %v3365
  %v3455 = vunpack.c.l.b16 %v3366
  %v3456 = vunpack.c.h.b16 %v3366
  %v3457 = vunpack.c.l.b16 %v3367
  %v3458 = vunpack.c.l.b16 %v3368
  %v3459 = vunpack.c.h.b16 %v3368
  %v3460 = vunpack.c.l.b16 %v3369
  %v3461 = vunpack.c.l.b16 %v3370
  %v3462 = vunpack.c.h.b16 %v3370
  %v3463 = vunpack.c.l.b16 %v3371
  %v3464 = vunpack.c.l.b16 %v3372
  %v3465 = vunpack.c.h.b16 %v3372
  %v3466 = vunpack.c.l.b16 %v3373
  %v3467 = vunpack.c.l.b16 %v3374
  %v3468 = vunpack.c.h.b16 %v3374
  %v3469 = vunpack.c.l.b16 %v3375
  %v3470 = vunpack.c.l.b16 %v3376
  %v3471 = vunpack.c.h.b16 %v3376
  %v3472 = vunpack.c.l.b16 %v3377
  %v3473 = vunpack.c.l.b16 %v3378
  %v3474 = vunpack.c.h.b16 %v3378
  %v3475 = vunpack.c.l.b16 %v3379
  %v3476 = vunpack.c.l.b16 %v3380
  %v3477 = vunpack.c.h.b16 %v3380
  %v3478 = vunpack.c.l.b16 %v3381
  %v3479 = vunpack.c.l.b16 %v3382
  %v3480 = vunpack.c.h.b16 %v3382
  %v3481 = vunpack.c.l.b16 %v3383
  %v3482 = vpack.c.b16 %v3437, %v3434
  %v3483 = vpack.c.b16 %v3438, %v3435
  %v3484 = vpack.c.b16 %v3439, %v3436
  %v3485 = vpack.c.b16 %v3443, %v3440
  %v3486 = vpack.c.b16 %v3444, %v3441
  %v3487 = vpack.c.b16 %v3445, %v3442
  %v3488 = vpack.c.b16 %v3449, %v3446
  %v3489 = vpack.c.b16 %v3450, %v3447
  %v3490 = vpack.c.b16 %v3451, %v3448
  %v3491 = vpack.c.b16 %v3455, %v3452
  %v3492 = vpack.c.b16 %v3456, %v3453
  %v3493 = vpack.c.b16 %v3457, %v3454
  %v3494 = vpack.c.b16 %v3461, %v3458
  %v3495 = vpack.c.b16 %v3462, %v3459
  %v3496 = vpack.c.b16 %v3463, %v3460
  %v3497 = vpack.c.b16 %v3467, %v3464
  %v3498 = vpack.c.b16 %v3468, %v3465
  %v3499 = vpack.c.b16 %v3469, %v3466
  %v3500 = vpack.c.b16 %v3473, %v3470
  %v3501 = vpack.c.b16 %v3474, %v3471
  %v3502 = vpack.c.b16 %v3475, %v3472
  %v3503 = vpack.c.b16 %v3479, %v3476
  %v3504 = vpack.c.b16 %v3480, %v3477
  %v3505 = vpack.c.b16 %v3481, %v3478
  %3530 = vmatprep.subr.bf16.mxu0 %v3483
  %3531 = vmatpush1.bf16.msra.mxu0 %v3482
  %3532 = vmatprep.subr.bf16.mxu0 %v3486
  %3533 = vmatpush1.bf16.msra.mxu0 %v3485
  %3534 = vmatprep.subr.bf16.mxu0 %v3489
  %3535 = vmatpush1.bf16.msra.mxu0 %v3488
  %3536 = vmatprep.subr.bf16.mxu0 %v3492
  %3537 = vmatpush1.bf16.msra.mxu0 %v3491
  %3538 = vmatprep.subr.bf16.mxu0 %v3495
  %3539 = vmatpush1.bf16.msra.mxu0 %v3494
  %3540 = vmatprep.subr.bf16.mxu0 %v3498
  %3541 = vmatpush1.bf16.msra.mxu0 %v3497
  %3542 = vmatprep.subr.bf16.mxu0 %v3501
  %3543 = vmatpush1.bf16.msra.mxu0 %v3500
  %3544 = vmatprep.subr.bf16.mxu0 %v3504
  %3545 = vmatpush1.bf16.msra.mxu0 %v3503
  %3546 = vmatprep.subr.bf16.mxu0 0
  %3547 = vmatpush1.bf16.msra.mxu0 0
  %3548 = vmatprep.subr.bf16.mxu0 0
  %3549 = vmatpush1.bf16.msra.mxu0 0
  %3550 = vmatprep.subr.bf16.mxu0 0
  %3551 = vmatpush1.bf16.msra.mxu0 0
  %3552 = vmatprep.subr.bf16.mxu0 0
  %3553 = vmatpush1.bf16.msra.mxu0 0
  %3554 = vmatprep.subr.bf16.mxu0 0
  %3555 = vmatpush1.bf16.msra.mxu0 0
  %3556 = vmatprep.subr.bf16.mxu0 0
  %3557 = vmatpush1.bf16.msra.mxu0 0
  %3558 = vmatprep.subr.bf16.mxu0 0
  %3559 = vmatpush1.bf16.msra.mxu0 0
  %3560 = vmatprep.subr.bf16.mxu0 0
  %3561 = vmatpush1.bf16.msra.mxu0 0
  %3562 = vmatprep.mubr.bf16.mxu0 0
  %3563 = vmatmul.mubr.bf16.gmra.mrb[0].mxu0 %v3090
  %v3564 = vpop.f32.mrb[0].mxu0
  %v3565 = vadd.f32 %v3390, %v3564
  %v3566 = vpop.f32.mrb[0].mxu0
  %v3567 = vadd.f32 %v3394, %v3566
  %v3568 = vpop.f32.mrb[0].mxu0
  %v3569 = vpop.f32.mrb[0].mxu0
  %3570 = vdwg.mxu0
  %3571 = vmatprep.subr.bf16.mxu0 0
  %3572 = vmatpush1.bf16.msra.mxu0 %v3484
  %3573 = vmatprep.subr.bf16.mxu0 0
  %3574 = vmatpush1.bf16.msra.mxu0 %v3487
  %3575 = vmatprep.subr.bf16.mxu0 0
  %3576 = vmatpush1.bf16.msra.mxu0 %v3490
  %3577 = vmatprep.subr.bf16.mxu0 0
  %3578 = vmatpush1.bf16.msra.mxu0 %v3493
  %3579 = vmatprep.subr.bf16.mxu0 0
  %3580 = vmatpush1.bf16.msra.mxu0 %v3496
  %3581 = vmatprep.subr.bf16.mxu0 0
  %3582 = vmatpush1.bf16.msra.mxu0 %v3499
  %3583 = vmatprep.subr.bf16.mxu0 0
  %3584 = vmatpush1.bf16.msra.mxu0 %v3502
  %3585 = vmatprep.subr.bf16.mxu0 0
  %3586 = vmatpush1.bf16.msra.mxu0 %v3505
  %3587 = vmatprep.subr.bf16.mxu0 0
  %3588 = vmatpush1.bf16.msra.mxu0 0
  %3589 = vmatprep.subr.bf16.mxu0 0
  %3590 = vmatpush1.bf16.msra.mxu0 0
  %3591 = vmatprep.subr.bf16.mxu0 0
  %3592 = vmatpush1.bf16.msra.mxu0 0
  %3593 = vmatprep.subr.bf16.mxu0 0
  %3594 = vmatpush1.bf16.msra.mxu0 0
  %3595 = vmatprep.subr.bf16.mxu0 0
  %3596 = vmatpush1.bf16.msra.mxu0 0
  %3597 = vmatprep.subr.bf16.mxu0 0
  %3598 = vmatpush1.bf16.msra.mxu0 0
  %3599 = vmatprep.subr.bf16.mxu0 0
  %3600 = vmatpush1.bf16.msra.mxu0 0
  %3601 = vmatprep.subr.bf16.mxu0 0
  %3602 = vmatpush1.bf16.msra.mxu0 0
  %3603 = vmatprep.mubr.bf16.mxu0 0
  %3604 = vmatmul.mubr.bf16.gmra.mrb[0].mxu0 %v3090
  %v3605 = vpop.f32.mrb[0].mxu0
  %v3606 = vadd.f32 %v3398, %v3605
  %v3607 = vpop.f32.mrb[0].mxu0
  %v3608 = vpop.f32.mrb[0].mxu0
  %v3609 = vpop.f32.mrb[0].mxu0
  %3610 = vdwg.mxu0
  %v3611 = vmul.f32 %v3565, 0.5
  %v3612 = vmul.f32 %v3567, 0.5
  %v3613 = vtanh.pop %v3611
  %v3614 = vtanh.pop %v3612
  %v3615 = vadd.f32 %v3613, 1.0
  %v3616 = vadd.f32 %v3614, 1.0
  %v3617 = vmul.f32 %v3615, 0.5
  %v3618 = vmul.f32 %v3616, 0.5
  %s3619 = scalar_lea.vmem %s5, 4
  %v3620 = vld [vmem:[%s3619] sm:$0x1]
  %v3622 = vlaneseq
  %v3623 = vshrl.u32 %v3622, 7
  %v3624 = vsub.s32 0, %v3623
  %v3625 = vrot.slane %v3620, %v3624
  %v3627 = vmul.f32 %v3617, %v3625
  %v3628 = vadd.f32 %v3606, %v3627
  %v3629 = vtanh.pop %v3628
  %v3630 = vsub.f32 1.0, %v3618
  %v3631 = vmul.f32 %v3630, %v3629
  %v3632 = vld [vmem:[#allocation2 + $0x78] sm:$0xff]
  %v3633 = vld [vmem:[#allocation2 + $0x80] sm:$0xff]
  %v3634 = vld [vmem:[#allocation2 + $0x88] sm:$0xff]
  %v3635 = vpack.c.bf16 %v2646, %v2646
  %3636 = vmatprep.subr.bf16.mxu0 %v485
  %3637 = vmatpush1.bf16.msra.mxu0 %v484
  %3638 = vmatprep.subr.bf16.mxu0 %v488
  %3639 = vmatpush1.bf16.msra.mxu0 %v487
  %3640 = vmatprep.subr.bf16.mxu0 %v491
  %3641 = vmatpush1.bf16.msra.mxu0 %v490
  %3642 = vmatprep.subr.bf16.mxu0 %v494
  %3643 = vmatpush1.bf16.msra.mxu0 %v493
  %3644 = vmatprep.subr.bf16.mxu0 %v497
  %3645 = vmatpush1.bf16.msra.mxu0 %v496
  %3646 = vmatprep.subr.bf16.mxu0 %v500
  %3647 = vmatpush1.bf16.msra.mxu0 %v499
  %3648 = vmatprep.subr.bf16.mxu0 %v503
  %3649 = vmatpush1.bf16.msra.mxu0 %v502
  %3650 = vmatprep.subr.bf16.mxu0 %v506
  %3651 = vmatpush1.bf16.msra.mxu0 %v505
  %3652 = vmatprep.subr.bf16.mxu0 0
  %3653 = vmatpush1.bf16.msra.mxu0 0
  %3654 = vmatprep.subr.bf16.mxu0 0
  %3655 = vmatpush1.bf16.msra.mxu0 0
  %3656 = vmatprep.subr.bf16.mxu0 0
  %3657 = vmatpush1.bf16.msra.mxu0 0
  %3658 = vmatprep.subr.bf16.mxu0 0
  %3659 = vmatpush1.bf16.msra.mxu0 0
  %3660 = vmatprep.subr.bf16.mxu0 0
  %3661 = vmatpush1.bf16.msra.mxu0 0
  %3662 = vmatprep.subr.bf16.mxu0 0
  %3663 = vmatpush1.bf16.msra.mxu0 0
  %3664 = vmatprep.subr.bf16.mxu0 0
  %3665 = vmatpush1.bf16.msra.mxu0 0
  %3666 = vmatprep.subr.bf16.mxu0 0
  %3667 = vmatpush1.bf16.msra.mxu0 0
  %3668 = vmatprep.mubr.bf16.mxu0 0
  %3669 = vmatmul.mubr.bf16.gmra.mrb[0].mxu0 %v3635
  %v3670 = vpop.f32.mrb[0].mxu0
  %v3671 = vadd.f32 0.0, %v3670
  %v3672 = vpop.f32.mrb[0].mxu0
  %v3673 = vadd.f32 0.0, %v3672
  %v3674 = vpop.f32.mrb[0].mxu0
  %v3675 = vpop.f32.mrb[0].mxu0
  %3676 = vdwg.mxu0
  %3677 = vmatprep.subr.bf16.mxu0 0
  %3678 = vmatpush1.bf16.msra.mxu0 %v486
  %3679 = vmatprep.subr.bf16.mxu0 0
  %3680 = vmatpush1.bf16.msra.mxu0 %v489
  %3681 = vmatprep.subr.bf16.mxu0 0
  %3682 = vmatpush1.bf16.msra.mxu0 %v492
  %3683 = vmatprep.subr.bf16.mxu0 0
  %3684 = vmatpush1.bf16.msra.mxu0 %v495
  %3685 = vmatprep.subr.bf16.mxu0 0
  %3686 = vmatpush1.bf16.msra.mxu0 %v498
  %3687 = vmatprep.subr.bf16.mxu0 0
  %3688 = vmatpush1.bf16.msra.mxu0 %v501
  %3689 = vmatprep.subr.bf16.mxu0 0
  %3690 = vmatpush1.bf16.msra.mxu0 %v504
  %3691 = vmatprep.subr.bf16.mxu0 0
  %3692 = vmatpush1.bf16.msra.mxu0 %v507
  %3693 = vmatprep.subr.bf16.mxu0 0
  %3694 = vmatpush1.bf16.msra.mxu0 0
  %3695 = vmatprep.subr.bf16.mxu0 0
  %3696 = vmatpush1.bf16.msra.mxu0 0
  %3697 = vmatprep.subr.bf16.mxu0 0
  %3698 = vmatpush1.bf16.msra.mxu0 0
  %3699 = vmatprep.subr.bf16.mxu0 0
  %3700 = vmatpush1.bf16.msra.mxu0 0
  %3701 = vmatprep.subr.bf16.mxu0 0
  %3702 = vmatpush1.bf16.msra.mxu0 0
  %3703 = vmatprep.subr.bf16.mxu0 0
  %3704 = vmatpush1.bf16.msra.mxu0 0
  %3705 = vmatprep.subr.bf16.mxu0 0
  %3706 = vmatpush1.bf16.msra.mxu0 0
  %3707 = vmatprep.subr.bf16.mxu0 0
  %3708 = vmatpush1.bf16.msra.mxu0 0
  %3709 = vmatprep.mubr.bf16.mxu0 0
  %3710 = vmatmul.mubr.bf16.gmra.mrb[0].mxu0 %v3635
  %v3711 = vpop.f32.mrb[0].mxu0
  %v3712 = vadd.f32 0.0, %v3711
  %v3713 = vpop.f32.mrb[0].mxu0
  %v3714 = vpop.f32.mrb[0].mxu0
  %v3715 = vpop.f32.mrb[0].mxu0
  %3716 = vdwg.mxu0
  %v3717 = vadd.f32 %v3632, %v3671
  %v3718 = vadd.f32 %v3633, %v3673
  %v3719 = vmul.f32 %v3717, 0.5
  %v3720 = vmul.f32 %v3718, 0.5
  %v3721 = vtanh.pop %v3719
  %v3722 = vtanh.pop %v3720
  %v3723 = vadd.f32 %v3721, 1.0
  %v3724 = vadd.f32 %v3722, 1.0
  %v3725 = vmul.f32 %v3723, 0.5
  %v3726 = vmul.f32 %v3724, 0.5
  %v3727 = vadd.f32 %v3712, %v361
  %v3728 = vmul.f32 %v3725, %v3727
  %v3729 = vadd.f32 %v3634, %v3728
  %v3730 = vtanh.pop %v3729
  %v3731 = vsub.f32 1.0, %v3726
  %v3732 = vmul.f32 %v3731, %v3730
  %v3733 = vmul.f32 %v3726, %v2646
  %v3734 = vadd.f32 %v3732, %v3733
  %3735 = vmatprep.subr.bf16.mxu0 %v762
  %3736 = vmatpush1.bf16.msra.mxu0 %v761
  %3737 = vmatprep.subr.bf16.mxu0 %v765
  %3738 = vmatpush1.bf16.msra.mxu0 %v764
  %3739 = vmatprep.subr.bf16.mxu0 %v768
  %3740 = vmatpush1.bf16.msra.mxu0 %v767
  %3741 = vmatprep.subr.bf16.mxu0 %v771
  %3742 = vmatpush1.bf16.msra.mxu0 %v770
  %3743 = vmatprep.subr.bf16.mxu0 %v774
  %3744 = vmatpush1.bf16.msra.mxu0 %v773
  %3745 = vmatprep.subr.bf16.mxu0 %v777
  %3746 = vmatpush1.bf16.msra.mxu0 %v776
  %3747 = vmatprep.subr.bf16.mxu0 %v780
  %3748 = vmatpush1.bf16.msra.mxu0 %v779
  %3749 = vmatprep.subr.bf16.mxu0 %v783
  %3750 = vmatpush1.bf16.msra.mxu0 %v782
  %3751 = vmatprep.subr.bf16.mxu0 0
  %3752 = vmatpush1.bf16.msra.mxu0 0
  %3753 = vmatprep.subr.bf16.mxu0 0
  %3754 = vmatpush1.bf16.msra.mxu0 0
  %3755 = vmatprep.subr.bf16.mxu0 0
  %3756 = vmatpush1.bf16.msra.mxu0 0
  %3757 = vmatprep.subr.bf16.mxu0 0
  %3758 = vmatpush1.bf16.msra.mxu0 0
  %3759 = vmatprep.subr.bf16.mxu0 0
  %3760 = vmatpush1.bf16.msra.mxu0 0
  %3761 = vmatprep.subr.bf16.mxu0 0
  %3762 = vmatpush1.bf16.msra.mxu0 0
  %3763 = vmatprep.subr.bf16.mxu0 0
  %3764 = vmatpush1.bf16.msra.mxu0 0
  %3765 = vmatprep.subr.bf16.mxu0 0
  %3766 = vmatpush1.bf16.msra.mxu0 0
  %3767 = vmatprep.mubr.bf16.mxu0 0
  %3768 = vmatmul.mubr.bf16.gmra.mrb[0].mxu0 %v3635
  %v3769 = vpop.f32.mrb[0].mxu0
  %v3770 = vadd.f32 %v669, %v3769
  %v3771 = vpop.f32.mrb[0].mxu0
  %v3772 = vadd.f32 %v673, %v3771
  %v3773 = vpop.f32.mrb[0].mxu0
  %v3774 = vpop.f32.mrb[0].mxu0
  %3775 = vdwg.mxu0
  %3776 = vmatprep.subr.bf16.mxu0 0
  %3777 = vmatpush1.bf16.msra.mxu0 %v763
  %3778 = vmatprep.subr.bf16.mxu0 0
  %3779 = vmatpush1.bf16.msra.mxu0 %v766
  %3780 = vmatprep.subr.bf16.mxu0 0
  %3781 = vmatpush1.bf16.msra.mxu0 %v769
  %3782 = vmatprep.subr.bf16.mxu0 0
  %3783 = vmatpush1.bf16.msra.mxu0 %v772
  %3784 = vmatprep.subr.bf16.mxu0 0
  %3785 = vmatpush1.bf16.msra.mxu0 %v775
  %3786 = vmatprep.subr.bf16.mxu0 0
  %3787 = vmatpush1.bf16.msra.mxu0 %v778
  %3788 = vmatprep.subr.bf16.mxu0 0
  %3789 = vmatpush1.bf16.msra.mxu0 %v781
  %3790 = vmatprep.subr.bf16.mxu0 0
  %3791 = vmatpush1.bf16.msra.mxu0 %v784
  %3792 = vmatprep.subr.bf16.mxu0 0
  %3793 = vmatpush1.bf16.msra.mxu0 0
  %3794 = vmatprep.subr.bf16.mxu0 0
  %3795 = vmatpush1.bf16.msra.mxu0 0
  %3796 = vmatprep.subr.bf16.mxu0 0
  %3797 = vmatpush1.bf16.msra.mxu0 0
  %3798 = vmatprep.subr.bf16.mxu0 0
  %3799 = vmatpush1.bf16.msra.mxu0 0
  %3800 = vmatprep.subr.bf16.mxu0 0
  %3801 = vmatpush1.bf16.msra.mxu0 0
  %3802 = vmatprep.subr.bf16.mxu0 0
  %3803 = vmatpush1.bf16.msra.mxu0 0
  %3804 = vmatprep.subr.bf16.mxu0 0
  %3805 = vmatpush1.bf16.msra.mxu0 0
  %3806 = vmatprep.subr.bf16.mxu0 0
  %3807 = vmatpush1.bf16.msra.mxu0 0
  %3808 = vmatprep.mubr.bf16.mxu0 0
  %3809 = vmatmul.mubr.bf16.gmra.mrb[0].mxu0 %v3635
  %v3810 = vpop.f32.mrb[0].mxu0
  %v3811 = vadd.f32 %v677, %v3810
  %v3812 = vpop.f32.mrb[0].mxu0
  %v3813 = vpop.f32.mrb[0].mxu0
  %v3814 = vpop.f32.mrb[0].mxu0
  %3815 = vdwg.mxu0
  %v3816 = vpack.c.bf16 %v2827, %v2827
  %3817 = vmatprep.subr.bf16.mxu0 %v1210
  %3818 = vmatpush1.bf16.msra.mxu0 %v1209
  %3819 = vmatprep.subr.bf16.mxu0 %v1213
  %3820 = vmatpush1.bf16.msra.mxu0 %v1212
  %3821 = vmatprep.subr.bf16.mxu0 %v1216
  %3822 = vmatpush1.bf16.msra.mxu0 %v1215
  %3823 = vmatprep.subr.bf16.mxu0 %v1219
  %3824 = vmatpush1.bf16.msra.mxu0 %v1218
  %3825 = vmatprep.subr.bf16.mxu0 %v1222
  %3826 = vmatpush1.bf16.msra.mxu0 %v1221
  %3827 = vmatprep.subr.bf16.mxu0 %v1225
  %3828 = vmatpush1.bf16.msra.mxu0 %v1224
  %3829 = vmatprep.subr.bf16.mxu0 %v1228
  %3830 = vmatpush1.bf16.msra.mxu0 %v1227
  %3831 = vmatprep.subr.bf16.mxu0 %v1231
  %3832 = vmatpush1.bf16.msra.mxu0 %v1230
  %3833 = vmatprep.subr.bf16.mxu0 0
  %3834 = vmatpush1.bf16.msra.mxu0 0
  %3835 = vmatprep.subr.bf16.mxu0 0
  %3836 = vmatpush1.bf16.msra.mxu0 0
  %3837 = vmatprep.subr.bf16.mxu0 0
  %3838 = vmatpush1.bf16.msra.mxu0 0
  %3839 = vmatprep.subr.bf16.mxu0 0
  %3840 = vmatpush1.bf16.msra.mxu0 0
  %3841 = vmatprep.subr.bf16.mxu0 0
  %3842 = vmatpush1.bf16.msra.mxu0 0
  %3843 = vmatprep.subr.bf16.mxu0 0
  %3844 = vmatpush1.bf16.msra.mxu0 0
  %3845 = vmatprep.subr.bf16.mxu0 0
  %3846 = vmatpush1.bf16.msra.mxu0 0
  %3847 = vmatprep.subr.bf16.mxu0 0
  %3848 = vmatpush1.bf16.msra.mxu0 0
  %3849 = vmatprep.mubr.bf16.mxu0 0
  %3850 = vmatmul.mubr.bf16.gmra.mrb[0].mxu0 %v3816
  %v3851 = vpop.f32.mrb[0].mxu0
  %v3852 = vadd.f32 0.0, %v3851
  %v3853 = vpop.f32.mrb[0].mxu0
  %v3854 = vadd.f32 0.0, %v3853
  %v3855 = vpop.f32.mrb[0].mxu0
  %v3856 = vpop.f32.mrb[0].mxu0
  %3857 = vdwg.mxu0
  %3858 = vmatprep.subr.bf16.mxu0 0
  %3859 = vmatpush1.bf16.msra.mxu0 %v1211
  %3860 = vmatprep.subr.bf16.mxu0 0
  %3861 = vmatpush1.bf16.msra.mxu0 %v1214
  %3862 = vmatprep.subr.bf16.mxu0 0
  %3863 = vmatpush1.bf16.msra.mxu0 %v1217
  %3864 = vmatprep.subr.bf16.mxu0 0
  %3865 = vmatpush1.bf16.msra.mxu0 %v1220
  %3866 = vmatprep.subr.bf16.mxu0 0
  %3867 = vmatpush1.bf16.msra.mxu0 %v1223
  %3868 = vmatprep.subr.bf16.mxu0 0
  %3869 = vmatpush1.bf16.msra.mxu0 %v1226
  %3870 = vmatprep.subr.bf16.mxu0 0
  %3871 = vmatpush1.bf16.msra.mxu0 %v1229
  %3872 = vmatprep.subr.bf16.mxu0 0
  %3873 = vmatpush1.bf16.msra.mxu0 %v1232
  %3874 = vmatprep.subr.bf16.mxu0 0
  %3875 = vmatpush1.bf16.msra.mxu0 0
  %3876 = vmatprep.subr.bf16.mxu0 0
  %3877 = vmatpush1.bf16.msra.mxu0 0
  %3878 = vmatprep.subr.bf16.mxu0 0
  %3879 = vmatpush1.bf16.msra.mxu0 0
  %3880 = vmatprep.subr.bf16.mxu0 0
  %3881 = vmatpush1.bf16.msra.mxu0 0
  %3882 = vmatprep.subr.bf16.mxu0 0
  %3883 = vmatpush1.bf16.msra.mxu0 0
  %3884 = vmatprep.subr.bf16.mxu0 0
  %3885 = vmatpush1.bf16.msra.mxu0 0
  %3886 = vmatprep.subr.bf16.mxu0 0
  %3887 = vmatpush1.bf16.msra.mxu0 0
  %3888 = vmatprep.subr.bf16.mxu0 0
  %3889 = vmatpush1.bf16.msra.mxu0 0
  %3890 = vmatprep.mubr.bf16.mxu0 0
  %3891 = vmatmul.mubr.bf16.gmra.mrb[0].mxu0 %v3816
  %v3892 = vpop.f32.mrb[0].mxu0
  %v3893 = vadd.f32 0.0, %v3892
  %v3894 = vpop.f32.mrb[0].mxu0
  %v3895 = vpop.f32.mrb[0].mxu0
  %v3896 = vpop.f32.mrb[0].mxu0
  %3897 = vdwg.mxu0
  %v3898 = vadd.f32 %v3770, %v3852
  %v3899 = vadd.f32 %v3772, %v3854
  %v3900 = vmul.f32 %v3898, 0.5
  %v3901 = vmul.f32 %v3899, 0.5
  %v3902 = vtanh.pop %v3900
  %v3903 = vtanh.pop %v3901
  %v3904 = vadd.f32 %v3902, 1.0
  %v3905 = vadd.f32 %v3903, 1.0
  %v3906 = vmul.f32 %v3904, 0.5
  %v3907 = vmul.f32 %v3905, 0.5
  %v3908 = vadd.f32 %v3893, %v904
  %v3909 = vmul.f32 %v3906, %v3908
  %v3910 = vadd.f32 %v3811, %v3909
  %v3911 = vtanh.pop %v3910
  %v3912 = vsub.f32 1.0, %v3907
  %v3913 = vmul.f32 %v3912, %v3911
  %v3914 = vmul.f32 %v3907, %v2827
  %v3915 = vadd.f32 %v3913, %v3914
  %3916 = vmatprep.subr.bf16.mxu0 %v1488
  %3917 = vmatpush1.bf16.msra.mxu0 %v1487
  %3918 = vmatprep.subr.bf16.mxu0 %v1491
  %3919 = vmatpush1.bf16.msra.mxu0 %v1490
  %3920 = vmatprep.subr.bf16.mxu0 %v1494
  %3921 = vmatpush1.bf16.msra.mxu0 %v1493
  %3922 = vmatprep.subr.bf16.mxu0 %v1497
  %3923 = vmatpush1.bf16.msra.mxu0 %v1496
  %3924 = vmatprep.subr.bf16.mxu0 %v1500
  %3925 = vmatpush1.bf16.msra.mxu0 %v1499
  %3926 = vmatprep.subr.bf16.mxu0 %v1503
  %3927 = vmatpush1.bf16.msra.mxu0 %v1502
  %3928 = vmatprep.subr.bf16.mxu0 %v1506
  %3929 = vmatpush1.bf16.msra.mxu0 %v1505
  %3930 = vmatprep.subr.bf16.mxu0 %v1509
  %3931 = vmatpush1.bf16.msra.mxu0 %v1508
  %3932 = vmatprep.subr.bf16.mxu0 0
  %3933 = vmatpush1.bf16.msra.mxu0 0
  %3934 = vmatprep.subr.bf16.mxu0 0
  %3935 = vmatpush1.bf16.msra.mxu0 0
  %3936 = vmatprep.subr.bf16.mxu0 0
  %3937 = vmatpush1.bf16.msra.mxu0 0
  %3938 = vmatprep.subr.bf16.mxu0 0
  %3939 = vmatpush1.bf16.msra.mxu0 0
  %3940 = vmatprep.subr.bf16.mxu0 0
  %3941 = vmatpush1.bf16.msra.mxu0 0
  %3942 = vmatprep.subr.bf16.mxu0 0
  %3943 = vmatpush1.bf16.msra.mxu0 0
  %3944 = vmatprep.subr.bf16.mxu0 0
  %3945 = vmatpush1.bf16.msra.mxu0 0
  %3946 = vmatprep.subr.bf16.mxu0 0
  %3947 = vmatpush1.bf16.msra.mxu0 0
  %3948 = vmatprep.mubr.bf16.mxu0 0
  %3949 = vmatmul.mubr.bf16.gmra.mrb[0].mxu0 %v3816
  %v3950 = vpop.f32.mrb[0].mxu0
  %v3951 = vadd.f32 %v1395, %v3950
  %v3952 = vpop.f32.mrb[0].mxu0
  %v3953 = vadd.f32 %v1399, %v3952
  %v3954 = vpop.f32.mrb[0].mxu0
  %v3955 = vpop.f32.mrb[0].mxu0
  %3956 = vdwg.mxu0
  %3957 = vmatprep.subr.bf16.mxu0 0
  %3958 = vmatpush1.bf16.msra.mxu0 %v1489
  %3959 = vmatprep.subr.bf16.mxu0 0
  %3960 = vmatpush1.bf16.msra.mxu0 %v1492
  %3961 = vmatprep.subr.bf16.mxu0 0
  %3962 = vmatpush1.bf16.msra.mxu0 %v1495
  %3963 = vmatprep.subr.bf16.mxu0 0
  %3964 = vmatpush1.bf16.msra.mxu0 %v1498
  %3965 = vmatprep.subr.bf16.mxu0 0
  %3966 = vmatpush1.bf16.msra.mxu0 %v1501
  %3967 = vmatprep.subr.bf16.mxu0 0
  %3968 = vmatpush1.bf16.msra.mxu0 %v1504
  %3969 = vmatprep.subr.bf16.mxu0 0
  %3970 = vmatpush1.bf16.msra.mxu0 %v1507
  %3971 = vmatprep.subr.bf16.mxu0 0
  %3972 = vmatpush1.bf16.msra.mxu0 %v1510
  %3973 = vmatprep.subr.bf16.mxu0 0
  %3974 = vmatpush1.bf16.msra.mxu0 0
  %3975 = vmatprep.subr.bf16.mxu0 0
  %3976 = vmatpush1.bf16.msra.mxu0 0
  %3977 = vmatprep.subr.bf16.mxu0 0
  %3978 = vmatpush1.bf16.msra.mxu0 0
  %3979 = vmatprep.subr.bf16.mxu0 0
  %3980 = vmatpush1.bf16.msra.mxu0 0
  %3981 = vmatprep.subr.bf16.mxu0 0
  %3982 = vmatpush1.bf16.msra.mxu0 0
  %3983 = vmatprep.subr.bf16.mxu0 0
  %3984 = vmatpush1.bf16.msra.mxu0 0
  %3985 = vmatprep.subr.bf16.mxu0 0
  %3986 = vmatpush1.bf16.msra.mxu0 0
  %3987 = vmatprep.subr.bf16.mxu0 0
  %3988 = vmatpush1.bf16.msra.mxu0 0
  %3989 = vmatprep.mubr.bf16.mxu0 0
  %3990 = vmatmul.mubr.bf16.gmra.mrb[0].mxu0 %v3816
  %v3991 = vpop.f32.mrb[0].mxu0
  %v3992 = vadd.f32 %v1403, %v3991
  %v3993 = vpop.f32.mrb[0].mxu0
  %v3994 = vpop.f32.mrb[0].mxu0
  %v3995 = vpop.f32.mrb[0].mxu0
  %3996 = vdwg.mxu0
  %v3997 = vpack.c.bf16 %v3008, %v3008
  %3998 = vmatprep.subr.bf16.mxu0 %v2117
  %3999 = vmatpush1.bf16.msra.mxu0 %v2116
  %4000 = vmatprep.subr.bf16.mxu0 %v2120
  %4001 = vmatpush1.bf16.msra.mxu0 %v2119
  %4002 = vmatprep.subr.bf16.mxu0 %v2123
  %4003 = vmatpush1.bf16.msra.mxu0 %v2122
  %4004 = vmatprep.subr.bf16.mxu0 %v2126
  %4005 = vmatpush1.bf16.msra.mxu0 %v2125
  %4006 = vmatprep.subr.bf16.mxu0 %v2129
  %4007 = vmatpush1.bf16.msra.mxu0 %v2128
  %4008 = vmatprep.subr.bf16.mxu0 %v2132
  %4009 = vmatpush1.bf16.msra.mxu0 %v2131
  %4010 = vmatprep.subr.bf16.mxu0 %v2135
  %4011 = vmatpush1.bf16.msra.mxu0 %v2134
  %4012 = vmatprep.subr.bf16.mxu0 %v2138
  %4013 = vmatpush1.bf16.msra.mxu0 %v2137
  %4014 = vmatprep.subr.bf16.mxu0 0
  %4015 = vmatpush1.bf16.msra.mxu0 0
  %4016 = vmatprep.subr.bf16.mxu0 0
  %4017 = vmatpush1.bf16.msra.mxu0 0
  %4018 = vmatprep.subr.bf16.mxu0 0
  %4019 = vmatpush1.bf16.msra.mxu0 0
  %4020 = vmatprep.subr.bf16.mxu0 0
  %4021 = vmatpush1.bf16.msra.mxu0 0
  %4022 = vmatprep.subr.bf16.mxu0 0
  %4023 = vmatpush1.bf16.msra.mxu0 0
  %4024 = vmatprep.subr.bf16.mxu0 0
  %4025 = vmatpush1.bf16.msra.mxu0 0
  %4026 = vmatprep.subr.bf16.mxu0 0
  %4027 = vmatpush1.bf16.msra.mxu0 0
  %4028 = vmatprep.subr.bf16.mxu0 0
  %4029 = vmatpush1.bf16.msra.mxu0 0
  %4030 = vmatprep.mubr.bf16.mxu0 0
  %4031 = vmatmul.mubr.bf16.gmra.mrb[0].mxu0 %v3997
  %v4032 = vpop.f32.mrb[0].mxu0
  %v4033 = vadd.f32 0.0, %v4032
  %v4034 = vpop.f32.mrb[0].mxu0
  %v4035 = vadd.f32 0.0, %v4034
  %v4036 = vpop.f32.mrb[0].mxu0
  %v4037 = vpop.f32.mrb[0].mxu0
  %4038 = vdwg.mxu0
  %4039 = vmatprep.subr.bf16.mxu0 0
  %4040 = vmatpush1.bf16.msra.mxu0 %v2118
  %4041 = vmatprep.subr.bf16.mxu0 0
  %4042 = vmatpush1.bf16.msra.mxu0 %v2121
  %4043 = vmatprep.subr.bf16.mxu0 0
  %4044 = vmatpush1.bf16.msra.mxu0 %v2124
  %4045 = vmatprep.subr.bf16.mxu0 0
  %4046 = vmatpush1.bf16.msra.mxu0 %v2127
  %4047 = vmatprep.subr.bf16.mxu0 0
  %4048 = vmatpush1.bf16.msra.mxu0 %v2130
  %4049 = vmatprep.subr.bf16.mxu0 0
  %4050 = vmatpush1.bf16.msra.mxu0 %v2133
  %4051 = vmatprep.subr.bf16.mxu0 0
  %4052 = vmatpush1.bf16.msra.mxu0 %v2136
  %4053 = vmatprep.subr.bf16.mxu0 0
  %4054 = vmatpush1.bf16.msra.mxu0 %v2139
  %4055 = vmatprep.subr.bf16.mxu0 0
  %4056 = vmatpush1.bf16.msra.mxu0 0
  %4057 = vmatprep.subr.bf16.mxu0 0
  %4058 = vmatpush1.bf16.msra.mxu0 0
  %4059 = vmatprep.subr.bf16.mxu0 0
  %4060 = vmatpush1.bf16.msra.mxu0 0
  %4061 = vmatprep.subr.bf16.mxu0 0
  %4062 = vmatpush1.bf16.msra.mxu0 0
  %4063 = vmatprep.subr.bf16.mxu0 0
  %4064 = vmatpush1.bf16.msra.mxu0 0
  %4065 = vmatprep.subr.bf16.mxu0 0
  %4066 = vmatpush1.bf16.msra.mxu0 0
  %4067 = vmatprep.subr.bf16.mxu0 0
  %4068 = vmatpush1.bf16.msra.mxu0 0
  %4069 = vmatprep.subr.bf16.mxu0 0
  %4070 = vmatpush1.bf16.msra.mxu0 0
  %4071 = vmatprep.mubr.bf16.mxu0 0
  %4072 = vmatmul.mubr.bf16.gmra.mrb[0].mxu0 %v3997
  %v4073 = vpop.f32.mrb[0].mxu0
  %v4074 = vadd.f32 0.0, %v4073
  %v4075 = vpop.f32.mrb[0].mxu0
  %v4076 = vpop.f32.mrb[0].mxu0
  %v4077 = vpop.f32.mrb[0].mxu0
  %4078 = vdwg.mxu0
  %v4079 = vadd.f32 %v3951, %v4033
  %v4080 = vadd.f32 %v3953, %v4035
  %v4081 = vmul.f32 %v4079, 0.5
  %v4082 = vmul.f32 %v4080, 0.5
  %v4083 = vtanh.pop %v4081
  %v4084 = vtanh.pop %v4082
  %v4085 = vadd.f32 %v4083, 1.0
  %v4086 = vadd.f32 %v4084, 1.0
  %v4087 = vmul.f32 %v4085, 0.5
  %v4088 = vmul.f32 %v4086, 0.5
  %v4089 = vadd.f32 %v4074, %v1630
  %v4090 = vmul.f32 %v4087, %v4089
  %v4091 = vadd.f32 %v3992, %v4090
  %v4092 = vtanh.pop %v4091
  %v4093 = vsub.f32 1.0, %v4088
  %v4094 = vmul.f32 %v4093, %v4092
  %v4095 = vmul.f32 %v4088, %v3008
  %v4096 = vadd.f32 %v4094, %v4095
  %4097 = vmatprep.subr.bf16.mxu0 %v2395
  %4098 = vmatpush1.bf16.msra.mxu0 %v2394
  %4099 = vmatprep.subr.bf16.mxu0 %v2398
  %4100 = vmatpush1.bf16.msra.mxu0 %v2397
  %4101 = vmatprep.subr.bf16.mxu0 %v2401
  %4102 = vmatpush1.bf16.msra.mxu0 %v2400
  %4103 = vmatprep.subr.bf16.mxu0 %v2404
  %4104 = vmatpush1.bf16.msra.mxu0 %v2403
  %4105 = vmatprep.subr.bf16.mxu0 %v2407
  %4106 = vmatpush1.bf16.msra.mxu0 %v2406
  %4107 = vmatprep.subr.bf16.mxu0 %v2410
  %4108 = vmatpush1.bf16.msra.mxu0 %v2409
  %4109 = vmatprep.subr.bf16.mxu0 %v2413
  %4110 = vmatpush1.bf16.msra.mxu0 %v2412
  %4111 = vmatprep.subr.bf16.mxu0 %v2416
  %4112 = vmatpush1.bf16.msra.mxu0 %v2415
  %4113 = vmatprep.subr.bf16.mxu0 0
  %4114 = vmatpush1.bf16.msra.mxu0 0
  %4115 = vmatprep.subr.bf16.mxu0 0
  %4116 = vmatpush1.bf16.msra.mxu0 0
  %4117 = vmatprep.subr.bf16.mxu0 0
  %4118 = vmatpush1.bf16.msra.mxu0 0
  %4119 = vmatprep.subr.bf16.mxu0 0
  %4120 = vmatpush1.bf16.msra.mxu0 0
  %4121 = vmatprep.subr.bf16.mxu0 0
  %4122 = vmatpush1.bf16.msra.mxu0 0
  %4123 = vmatprep.subr.bf16.mxu0 0
  %4124 = vmatpush1.bf16.msra.mxu0 0
  %4125 = vmatprep.subr.bf16.mxu0 0
  %4126 = vmatpush1.bf16.msra.mxu0 0
  %4127 = vmatprep.subr.bf16.mxu0 0
  %4128 = vmatpush1.bf16.msra.mxu0 0
  %4129 = vmatprep.mubr.bf16.mxu0 0
  %4130 = vmatmul.mubr.bf16.gmra.mrb[0].mxu0 %v3997
  %v4131 = vpop.f32.mrb[0].mxu0
  %v4132 = vadd.f32 %v2302, %v4131
  %v4133 = vpop.f32.mrb[0].mxu0
  %v4134 = vadd.f32 %v2306, %v4133
  %v4135 = vpop.f32.mrb[0].mxu0
  %v4136 = vpop.f32.mrb[0].mxu0
  %4137 = vdwg.mxu0
  %4138 = vmatprep.subr.bf16.mxu0 0
  %4139 = vmatpush1.bf16.msra.mxu0 %v2396
  %4140 = vmatprep.subr.bf16.mxu0 0
  %4141 = vmatpush1.bf16.msra.mxu0 %v2399
  %4142 = vmatprep.subr.bf16.mxu0 0
  %4143 = vmatpush1.bf16.msra.mxu0 %v2402
  %4144 = vmatprep.subr.bf16.mxu0 0
  %4145 = vmatpush1.bf16.msra.mxu0 %v2405
  %4146 = vmatprep.subr.bf16.mxu0 0
  %4147 = vmatpush1.bf16.msra.mxu0 %v2408
  %4148 = vmatprep.subr.bf16.mxu0 0
  %4149 = vmatpush1.bf16.msra.mxu0 %v2411
  %4150 = vmatprep.subr.bf16.mxu0 0
  %4151 = vmatpush1.bf16.msra.mxu0 %v2414
  %4152 = vmatprep.subr.bf16.mxu0 0
  %4153 = vmatpush1.bf16.msra.mxu0 %v2417
  %4154 = vmatprep.subr.bf16.mxu0 0
  %4155 = vmatpush1.bf16.msra.mxu0 0
  %4156 = vmatprep.subr.bf16.mxu0 0
  %4157 = vmatpush1.bf16.msra.mxu0 0
  %4158 = vmatprep.subr.bf16.mxu0 0
  %4159 = vmatpush1.bf16.msra.mxu0 0
  %4160 = vmatprep.subr.bf16.mxu0 0
  %4161 = vmatpush1.bf16.msra.mxu0 0
  %4162 = vmatprep.subr.bf16.mxu0 0
  %4163 = vmatpush1.bf16.msra.mxu0 0
  %4164 = vmatprep.subr.bf16.mxu0 0
  %4165 = vmatpush1.bf16.msra.mxu0 0
  %4166 = vmatprep.subr.bf16.mxu0 0
  %4167 = vmatpush1.bf16.msra.mxu0 0
  %4168 = vmatprep.subr.bf16.mxu0 0
  %4169 = vmatpush1.bf16.msra.mxu0 0
  %4170 = vmatprep.mubr.bf16.mxu0 0
  %4171 = vmatmul.mubr.bf16.gmra.mrb[0].mxu0 %v3997
  %v4172 = vpop.f32.mrb[0].mxu0
  %v4173 = vadd.f32 %v2310, %v4172
  %v4174 = vpop.f32.mrb[0].mxu0
  %v4175 = vpop.f32.mrb[0].mxu0
  %v4176 = vpop.f32.mrb[0].mxu0
  %4177 = vdwg.mxu0
  %v4178 = vpack.c.bf16 %v3350, %v3350
  %4179 = vmatprep.subr.bf16.mxu0 %v3205
  %4180 = vmatpush1.bf16.msra.mxu0 %v3204
  %4181 = vmatprep.subr.bf16.mxu0 %v3208
  %4182 = vmatpush1.bf16.msra.mxu0 %v3207
  %4183 = vmatprep.subr.bf16.mxu0 %v3211
  %4184 = vmatpush1.bf16.msra.mxu0 %v3210
  %4185 = vmatprep.subr.bf16.mxu0 %v3214
  %4186 = vmatpush1.bf16.msra.mxu0 %v3213
  %4187 = vmatprep.subr.bf16.mxu0 %v3217
  %4188 = vmatpush1.bf16.msra.mxu0 %v3216
  %4189 = vmatprep.subr.bf16.mxu0 %v3220
  %4190 = vmatpush1.bf16.msra.mxu0 %v3219
  %4191 = vmatprep.subr.bf16.mxu0 %v3223
  %4192 = vmatpush1.bf16.msra.mxu0 %v3222
  %4193 = vmatprep.subr.bf16.mxu0 %v3226
  %4194 = vmatpush1.bf16.msra.mxu0 %v3225
  %4195 = vmatprep.subr.bf16.mxu0 0
  %4196 = vmatpush1.bf16.msra.mxu0 0
  %4197 = vmatprep.subr.bf16.mxu0 0
  %4198 = vmatpush1.bf16.msra.mxu0 0
  %4199 = vmatprep.subr.bf16.mxu0 0
  %4200 = vmatpush1.bf16.msra.mxu0 0
  %4201 = vmatprep.subr.bf16.mxu0 0
  %4202 = vmatpush1.bf16.msra.mxu0 0
  %4203 = vmatprep.subr.bf16.mxu0 0
  %4204 = vmatpush1.bf16.msra.mxu0 0
  %4205 = vmatprep.subr.bf16.mxu0 0
  %4206 = vmatpush1.bf16.msra.mxu0 0
  %4207 = vmatprep.subr.bf16.mxu0 0
  %4208 = vmatpush1.bf16.msra.mxu0 0
  %4209 = vmatprep.subr.bf16.mxu0 0
  %4210 = vmatpush1.bf16.msra.mxu0 0
  %4211 = vmatprep.mubr.bf16.mxu0 0
  %4212 = vmatmul.mubr.bf16.gmra.mrb[0].mxu0 %v4178
  %v4213 = vpop.f32.mrb[0].mxu0
  %v4214 = vadd.f32 0.0, %v4213
  %v4215 = vpop.f32.mrb[0].mxu0
  %v4216 = vadd.f32 0.0, %v4215
  %v4217 = vpop.f32.mrb[0].mxu0
  %v4218 = vpop.f32.mrb[0].mxu0
  %4219 = vdwg.mxu0
  %4220 = vmatprep.subr.bf16.mxu0 0
  %4221 = vmatpush1.bf16.msra.mxu0 %v3206
  %4222 = vmatprep.subr.bf16.mxu0 0
  %4223 = vmatpush1.bf16.msra.mxu0 %v3209
  %4224 = vmatprep.subr.bf16.mxu0 0
  %4225 = vmatpush1.bf16.msra.mxu0 %v3212
  %4226 = vmatprep.subr.bf16.mxu0 0
  %4227 = vmatpush1.bf16.msra.mxu0 %v3215
  %4228 = vmatprep.subr.bf16.mxu0 0
  %4229 = vmatpush1.bf16.msra.mxu0 %v3218
  %4230 = vmatprep.subr.bf16.mxu0 0
  %4231 = vmatpush1.bf16.msra.mxu0 %v3221
  %4232 = vmatprep.subr.bf16.mxu0 0
  %4233 = vmatpush1.bf16.msra.mxu0 %v3224
  %4234 = vmatprep.subr.bf16.mxu0 0
  %4235 = vmatpush1.bf16.msra.mxu0 %v3227
  %4236 = vmatprep.subr.bf16.mxu0 0
  %4237 = vmatpush1.bf16.msra.mxu0 0
  %4238 = vmatprep.subr.bf16.mxu0 0
  %4239 = vmatpush1.bf16.msra.mxu0 0
  %4240 = vmatprep.subr.bf16.mxu0 0
  %4241 = vmatpush1.bf16.msra.mxu0 0
  %4242 = vmatprep.subr.bf16.mxu0 0
  %4243 = vmatpush1.bf16.msra.mxu0 0
  %4244 = vmatprep.subr.bf16.mxu0 0
  %4245 = vmatpush1.bf16.msra.mxu0 0
  %4246 = vmatprep.subr.bf16.mxu0 0
  %4247 = vmatpush1.bf16.msra.mxu0 0
  %4248 = vmatprep.subr.bf16.mxu0 0
  %4249 = vmatpush1.bf16.msra.mxu0 0
  %4250 = vmatprep.subr.bf16.mxu0 0
  %4251 = vmatpush1.bf16.msra.mxu0 0
  %4252 = vmatprep.mubr.bf16.mxu0 0
  %4253 = vmatmul.mubr.bf16.gmra.mrb[0].mxu0 %v4178
  %v4254 = vpop.f32.mrb[0].mxu0
  %v4255 = vadd.f32 0.0, %v4254
  %v4256 = vpop.f32.mrb[0].mxu0
  %v4257 = vpop.f32.mrb[0].mxu0
  %v4258 = vpop.f32.mrb[0].mxu0
  %4259 = vdwg.mxu0
  %v4260 = vadd.f32 %v4132, %v4214
  %v4261 = vadd.f32 %v4134, %v4216
  %v4262 = vmul.f32 %v4260, 0.5
  %v4263 = vmul.f32 %v4261, 0.5
  %v4264 = vtanh.pop %v4262
  %v4265 = vtanh.pop %v4263
  %v4266 = vadd.f32 %v4264, 1.0
  %v4267 = vadd.f32 %v4265, 1.0
  %v4268 = vmul.f32 %v4266, 0.5
  %v4269 = vmul.f32 %v4267, 0.5
  %v4270 = vadd.f32 %v4255, %v2537
  %v4271 = vmul.f32 %v4268, %v4270
  %v4272 = vadd.f32 %v4173, %v4271
  %v4273 = vtanh.pop %v4272
  %v4274 = vsub.f32 1.0, %v4269
  %v4275 = vmul.f32 %v4274, %v4273
  %v4276 = vmul.f32 %v4269, %v3350
  %v4277 = vadd.f32 %v4275, %v4276
  %4278 = vmatprep.subr.bf16.mxu0 %v3483
  %4279 = vmatpush1.bf16.msra.mxu0 %v3482
  %4280 = vmatprep.subr.bf16.mxu0 %v3486
  %4281 = vmatpush1.bf16.msra.mxu0 %v3485
  %4282 = vmatprep.subr.bf16.mxu0 %v3489
  %4283 = vmatpush1.bf16.msra.mxu0 %v3488
  %4284 = vmatprep.subr.bf16.mxu0 %v3492
  %4285 = vmatpush1.bf16.msra.mxu0 %v3491
  %4286 = vmatprep.subr.bf16.mxu0 %v3495
  %4287 = vmatpush1.bf16.msra.mxu0 %v3494
  %4288 = vmatprep.subr.bf16.mxu0 %v3498
  %4289 = vmatpush1.bf16.msra.mxu0 %v3497
  %4290 = vmatprep.subr.bf16.mxu0 %v3501
  %4291 = vmatpush1.bf16.msra.mxu0 %v3500
  %4292 = vmatprep.subr.bf16.mxu0 %v3504
  %4293 = vmatpush1.bf16.msra.mxu0 %v3503
  %4294 = vmatprep.subr.bf16.mxu0 0
  %4295 = vmatpush1.bf16.msra.mxu0 0
  %4296 = vmatprep.subr.bf16.mxu0 0
  %4297 = vmatpush1.bf16.msra.mxu0 0
  %4298 = vmatprep.subr.bf16.mxu0 0
  %4299 = vmatpush1.bf16.msra.mxu0 0
  %4300 = vmatprep.subr.bf16.mxu0 0
  %4301 = vmatpush1.bf16.msra.mxu0 0
  %4302 = vmatprep.subr.bf16.mxu0 0
  %4303 = vmatpush1.bf16.msra.mxu0 0
  %4304 = vmatprep.subr.bf16.mxu0 0
  %4305 = vmatpush1.bf16.msra.mxu0 0
  %4306 = vmatprep.subr.bf16.mxu0 0
  %4307 = vmatpush1.bf16.msra.mxu0 0
  %4308 = vmatprep.subr.bf16.mxu0 0
  %4309 = vmatpush1.bf16.msra.mxu0 0
  %4310 = vmatprep.mubr.bf16.mxu0 0
  %4311 = vmatmul.mubr.bf16.gmra.mrb[0].mxu0 %v4178
  %v4312 = vpop.f32.mrb[0].mxu0
  %v4313 = vadd.f32 %v3390, %v4312
  %v4314 = vpop.f32.mrb[0].mxu0
  %v4315 = vadd.f32 %v3394, %v4314
  %v4316 = vpop.f32.mrb[0].mxu0
  %v4317 = vpop.f32.mrb[0].mxu0
  %4318 = vdwg.mxu0
  %4319 = vmatprep.subr.bf16.mxu0 0
  %4320 = vmatpush1.bf16.msra.mxu0 %v3484
  %4321 = vmatprep.subr.bf16.mxu0 0
  %4322 = vmatpush1.bf16.msra.mxu0 %v3487
  %4323 = vmatprep.subr.bf16.mxu0 0
  %4324 = vmatpush1.bf16.msra.mxu0 %v3490
  %4325 = vmatprep.subr.bf16.mxu0 0
  %4326 = vmatpush1.bf16.msra.mxu0 %v3493
  %4327 = vmatprep.subr.bf16.mxu0 0
  %4328 = vmatpush1.bf16.msra.mxu0 %v3496
  %4329 = vmatprep.subr.bf16.mxu0 0
  %4330 = vmatpush1.bf16.msra.mxu0 %v3499
  %4331 = vmatprep.subr.bf16.mxu0 0
  %4332 = vmatpush1.bf16.msra.mxu0 %v3502
  %4333 = vmatprep.subr.bf16.mxu0 0
  %4334 = vmatpush1.bf16.msra.mxu0 %v3505
  %4335 = vmatprep.subr.bf16.mxu0 0
  %4336 = vmatpush1.bf16.msra.mxu0 0
  %4337 = vmatprep.subr.bf16.mxu0 0
  %4338 = vmatpush1.bf16.msra.mxu0 0
  %4339 = vmatprep.subr.bf16.mxu0 0
  %4340 = vmatpush1.bf16.msra.mxu0 0
  %4341 = vmatprep.subr.bf16.mxu0 0
  %4342 = vmatpush1.bf16.msra.mxu0 0
  %4343 = vmatprep.subr.bf16.mxu0 0
  %4344 = vmatpush1.bf16.msra.mxu0 0
  %4345 = vmatprep.subr.bf16.mxu0 0
  %4346 = vmatpush1.bf16.msra.mxu0 0
  %4347 = vmatprep.subr.bf16.mxu0 0
  %4348 = vmatpush1.bf16.msra.mxu0 0
  %4349 = vmatprep.subr.bf16.mxu0 0
  %4350 = vmatpush1.bf16.msra.mxu0 0
  %4351 = vmatprep.mubr.bf16.mxu0 0
  %4352 = vmatmul.mubr.bf16.gmra.mrb[0].mxu0 %v4178
  %v4353 = vpop.f32.mrb[0].mxu0
  %v4354 = vadd.f32 %v3398, %v4353
  %v4355 = vpop.f32.mrb[0].mxu0
  %v4356 = vpop.f32.mrb[0].mxu0
  %v4357 = vpop.f32.mrb[0].mxu0
  %4358 = vdwg.mxu0
  %v4359 = vpack.c.bf16 %v3631, %v3631
  %s4360 = scalar_lea.vmem %s3, 768
  %v4361 = vld [vmem:[%s4360] sm:$0xff]
  %v4362 = vld [vmem:[%s4360 + $0x8] sm:$0xf]
  %v4363 = vld [vmem:[%s4360 + $0xc] sm:$0xff]
  %v4364 = vld [vmem:[%s4360 + $0x14] sm:$0xf]
  %v4365 = vld [vmem:[%s4360 + $0x18] sm:$0xff]
  %v4366 = vld [vmem:[%s4360 + $0x20] sm:$0xf]
  %v4367 = vld [vmem:[%s4360 + $0x24] sm:$0xff]
  %v4368 = vld [vmem:[%s4360 + $0x2c] sm:$0xf]
  %v4369 = vld [vmem:[%s4360 + $0x30] sm:$0xff]
  %v4370 = vld [vmem:[%s4360 + $0x38] sm:$0xf]
  %v4371 = vld [vmem:[%s4360 + $0x3c] sm:$0xff]
  %v4372 = vld [vmem:[%s4360 + $0x44] sm:$0xf]
  %v4373 = vld [vmem:[%s4360 + $0x48] sm:$0xff]
  %v4374 = vld [vmem:[%s4360 + $0x50] sm:$0xf]
  %v4375 = vld [vmem:[%s4360 + $0x54] sm:$0xff]
  %v4376 = vld [vmem:[%s4360 + $0x5c] sm:$0xf]
  %v4377 = vld [vmem:[%s4360 + $0x60] sm:$0xff]
  %v4378 = vld [vmem:[%s4360 + $0x68] sm:$0xf]
  %v4379 = vld [vmem:[%s4360 + $0x6c] sm:$0xff]
  %v4380 = vld [vmem:[%s4360 + $0x74] sm:$0xf]
  %v4381 = vld [vmem:[%s4360 + $0x78] sm:$0xff]
  %v4382 = vld [vmem:[%s4360 + $0x80] sm:$0xf]
  %v4383 = vld [vmem:[%s4360 + $0x84] sm:$0xff]
  %v4384 = vld [vmem:[%s4360 + $0x8c] sm:$0xf]
  %v4385 = vld [vmem:[%s4360 + $0x90] sm:$0xff]
  %v4386 = vld [vmem:[%s4360 + $0x98] sm:$0xf]
  %v4387 = vld [vmem:[%s4360 + $0x9c] sm:$0xff]
  %v4388 = vld [vmem:[%s4360 + $0xa4] sm:$0xf]
  %v4389 = vld [vmem:[%s4360 + $0xa8] sm:$0xff]
  %v4390 = vld [vmem:[%s4360 + $0xb0] sm:$0xf]
  %v4391 = vld [vmem:[%s4360 + $0xb4] sm:$0xff]
  %v4392 = vld [vmem:[%s4360 + $0xbc] sm:$0xf]
  %v4425 = vunpack.c.l.b16 %v4361
  %v4426 = vunpack.c.h.b16 %v4361
  %v4427 = vunpack.c.l.b16 %v4362
  %v4428 = vunpack.c.l.b16 %v4363
  %v4429 = vunpack.c.h.b16 %v4363
  %v4430 = vunpack.c.l.b16 %v4364
  %v4431 = vunpack.c.l.b16 %v4365
  %v4432 = vunpack.c.h.b16 %v4365
  %v4433 = vunpack.c.l.b16 %v4366
  %v4434 = vunpack.c.l.b16 %v4367
  %v4435 = vunpack.c.h.b16 %v4367
  %v4436 = vunpack.c.l.b16 %v4368
  %v4437 = vunpack.c.l.b16 %v4369
  %v4438 = vunpack.c.h.b16 %v4369
  %v4439 = vunpack.c.l.b16 %v4370
  %v4440 = vunpack.c.l.b16 %v4371
  %v4441 = vunpack.c.h.b16 %v4371
  %v4442 = vunpack.c.l.b16 %v4372
  %v4443 = vunpack.c.l.b16 %v4373
  %v4444 = vunpack.c.h.b16 %v4373
  %v4445 = vunpack.c.l.b16 %v4374
  %v4446 = vunpack.c.l.b16 %v4375
  %v4447 = vunpack.c.h.b16 %v4375
  %v4448 = vunpack.c.l.b16 %v4376
  %v4449 = vunpack.c.l.b16 %v4377
  %v4450 = vunpack.c.h.b16 %v4377
  %v4451 = vunpack.c.l.b16 %v4378
  %v4452 = vunpack.c.l.b16 %v4379
  %v4453 = vunpack.c.h.b16 %v4379
  %v4454 = vunpack.c.l.b16 %v4380
  %v4455 = vunpack.c.l.b16 %v4381
  %v4456 = vunpack.c.h.b16 %v4381
  %v4457 = vunpack.c.l.b16 %v4382
  %v4458 = vunpack.c.l.b16 %v4383
  %v4459 = vunpack.c.h.b16 %v4383
  %v4460 = vunpack.c.l.b16 %v4384
  %v4461 = vunpack.c.l.b16 %v4385
  %v4462 = vunpack.c.h.b16 %v4385
  %v4463 = vunpack.c.l.b16 %v4386
  %v4464 = vunpack.c.l.b16 %v4387
  %v4465 = vunpack.c.h.b16 %v4387
  %v4466 = vunpack.c.l.b16 %v4388
  %v4467 = vunpack.c.l.b16 %v4389
  %v4468 = vunpack.c.h.b16 %v4389
  %v4469 = vunpack.c.l.b16 %v4390
  %v4470 = vunpack.c.l.b16 %v4391
  %v4471 = vunpack.c.h.b16 %v4391
  %v4472 = vunpack.c.l.b16 %v4392
  %v4473 = vpack.c.b16 %v4428, %v4425
  %v4474 = vpack.c.b16 %v4429, %v4426
  %v4475 = vpack.c.b16 %v4430, %v4427
  %v4476 = vpack.c.b16 %v4434, %v4431
  %v4477 = vpack.c.b16 %v4435, %v4432
  %v4478 = vpack.c.b16 %v4436, %v4433
  %v4479 = vpack.c.b16 %v4440, %v4437
  %v4480 = vpack.c.b16 %v4441, %v4438
  %v4481 = vpack.c.b16 %v4442, %v4439
  %v4482 = vpack.c.b16 %v4446, %v4443
  %v4483 = vpack.c.b16 %v4447, %v4444
  %v4484 = vpack.c.b16 %v4448, %v4445
  %v4485 = vpack.c.b16 %v4452, %v4449
  %v4486 = vpack.c.b16 %v4453, %v4450
  %v4487 = vpack.c.b16 %v4454, %v4451
  %v4488 = vpack.c.b16 %v4458, %v4455
  %v4489 = vpack.c.b16 %v4459, %v4456
  %v4490 = vpack.c.b16 %v4460, %v4457
  %v4491 = vpack.c.b16 %v4464, %v4461
  %v4492 = vpack.c.b16 %v4465, %v4462
  %v4493 = vpack.c.b16 %v4466, %v4463
  %v4494 = vpack.c.b16 %v4470, %v4467
  %v4495 = vpack.c.b16 %v4471, %v4468
  %v4496 = vpack.c.b16 %v4472, %v4469
  %4521 = vmatprep.subr.bf16.mxu0 %v4474
  %4522 = vmatpush1.bf16.msra.mxu0 %v4473
  %4523 = vmatprep.subr.bf16.mxu0 %v4477
  %4524 = vmatpush1.bf16.msra.mxu0 %v4476
  %4525 = vmatprep.subr.bf16.mxu0 %v4480
  %4526 = vmatpush1.bf16.msra.mxu0 %v4479
  %4527 = vmatprep.subr.bf16.mxu0 %v4483
  %4528 = vmatpush1.bf16.msra.mxu0 %v4482
  %4529 = vmatprep.subr.bf16.mxu0 %v4486
  %4530 = vmatpush1.bf16.msra.mxu0 %v4485
  %4531 = vmatprep.subr.bf16.mxu0 %v4489
  %4532 = vmatpush1.bf16.msra.mxu0 %v4488
  %4533 = vmatprep.subr.bf16.mxu0 %v4492
  %4534 = vmatpush1.bf16.msra.mxu0 %v4491
  %4535 = vmatprep.subr.bf16.mxu0 %v4495
  %4536 = vmatpush1.bf16.msra.mxu0 %v4494
  %4537 = vmatprep.subr.bf16.mxu0 0
  %4538 = vmatpush1.bf16.msra.mxu0 0
  %4539 = vmatprep.subr.bf16.mxu0 0
  %4540 = vmatpush1.bf16.msra.mxu0 0
  %4541 = vmatprep.subr.bf16.mxu0 0
  %4542 = vmatpush1.bf16.msra.mxu0 0
  %4543 = vmatprep.subr.bf16.mxu0 0
  %4544 = vmatpush1.bf16.msra.mxu0 0
  %4545 = vmatprep.subr.bf16.mxu0 0
  %4546 = vmatpush1.bf16.msra.mxu0 0
  %4547 = vmatprep.subr.bf16.mxu0 0
  %4548 = vmatpush1.bf16.msra.mxu0 0
  %4549 = vmatprep.subr.bf16.mxu0 0
  %4550 = vmatpush1.bf16.msra.mxu0 0
  %4551 = vmatprep.subr.bf16.mxu0 0
  %4552 = vmatpush1.bf16.msra.mxu0 0
  %4553 = vmatprep.mubr.bf16.mxu0 0
  %4554 = vmatmul.mubr.bf16.gmra.mrb[0].mxu0 %v4359
  %v4555 = vpop.f32.mrb[0].mxu0
  %v4556 = vadd.f32 0.0, %v4555
  %v4557 = vpop.f32.mrb[0].mxu0
  %v4558 = vadd.f32 0.0, %v4557
  %v4559 = vpop.f32.mrb[0].mxu0
  %v4560 = vpop.f32.mrb[0].mxu0
  %4561 = vdwg.mxu0
  %4562 = vmatprep.subr.bf16.mxu0 0
  %4563 = vmatpush1.bf16.msra.mxu0 %v4475
  %4564 = vmatprep.subr.bf16.mxu0 0
  %4565 = vmatpush1.bf16.msra.mxu0 %v4478
  %4566 = vmatprep.subr.bf16.mxu0 0
  %4567 = vmatpush1.bf16.msra.mxu0 %v4481
  %4568 = vmatprep.subr.bf16.mxu0 0
  %4569 = vmatpush1.bf16.msra.mxu0 %v4484
  %4570 = vmatprep.subr.bf16.mxu0 0
  %4571 = vmatpush1.bf16.msra.mxu0 %v4487
  %4572 = vmatprep.subr.bf16.mxu0 0
  %4573 = vmatpush1.bf16.msra.mxu0 %v4490
  %4574 = vmatprep.subr.bf16.mxu0 0
  %4575 = vmatpush1.bf16.msra.mxu0 %v4493
  %4576 = vmatprep.subr.bf16.mxu0 0
  %4577 = vmatpush1.bf16.msra.mxu0 %v4496
  %4578 = vmatprep.subr.bf16.mxu0 0
  %4579 = vmatpush1.bf16.msra.mxu0 0
  %4580 = vmatprep.subr.bf16.mxu0 0
  %4581 = vmatpush1.bf16.msra.mxu0 0
  %4582 = vmatprep.subr.bf16.mxu0 0
  %4583 = vmatpush1.bf16.msra.mxu0 0
  %4584 = vmatprep.subr.bf16.mxu0 0
  %4585 = vmatpush1.bf16.msra.mxu0 0
  %4586 = vmatprep.subr.bf16.mxu0 0
  %4587 = vmatpush1.bf16.msra.mxu0 0
  %4588 = vmatprep.subr.bf16.mxu0 0
  %4589 = vmatpush1.bf16.msra.mxu0 0
  %4590 = vmatprep.subr.bf16.mxu0 0
  %4591 = vmatpush1.bf16.msra.mxu0 0
  %4592 = vmatprep.subr.bf16.mxu0 0
  %4593 = vmatpush1.bf16.msra.mxu0 0
  %4594 = vmatprep.mubr.bf16.mxu0 0
  %4595 = vmatmul.mubr.bf16.gmra.mrb[0].mxu0 %v4359
  %v4596 = vpop.f32.mrb[0].mxu0
  %v4597 = vadd.f32 0.0, %v4596
  %v4598 = vpop.f32.mrb[0].mxu0
  %v4599 = vpop.f32.mrb[0].mxu0
  %v4600 = vpop.f32.mrb[0].mxu0
  %4601 = vdwg.mxu0
  %v4602 = vadd.f32 %v4313, %v4556
  %v4603 = vadd.f32 %v4315, %v4558
  %v4604 = vmul.f32 %v4602, 0.5
  %v4605 = vmul.f32 %v4603, 0.5
  %v4606 = vtanh.pop %v4604
  %v4607 = vtanh.pop %v4605
  %v4608 = vadd.f32 %v4606, 1.0
  %v4609 = vadd.f32 %v4607, 1.0
  %v4610 = vmul.f32 %v4608, 0.5
  %v4611 = vmul.f32 %v4609, 0.5
  %v4612 = vadd.f32 %v4597, %v3625
  %v4613 = vmul.f32 %v4610, %v4612
  %v4614 = vadd.f32 %v4354, %v4613
  %v4615 = vtanh.pop %v4614
  %v4616 = vsub.f32 1.0, %v4611
  %v4617 = vmul.f32 %v4616, %v4615
  %v4618 = vmul.f32 %v4611, %v3631
  %v4619 = vadd.f32 %v4617, %v4618
  %v4620 = vld [vmem:[#allocation2 + $0x90] sm:$0xff]
  %v4621 = vld [vmem:[#allocation2 + $0x98] sm:$0xff]
  %v4622 = vld [vmem:[#allocation2 + $0xa0] sm:$0xff]
  %v4623 = vpack.c.bf16 %v3734, %v3734
  %4624 = vmatprep.subr.bf16.mxu0 %v485
  %4625 = vmatpush1.bf16.msra.mxu0 %v484
  %4626 = vmatprep.subr.bf16.mxu0 %v488
  %4627 = vmatpush1.bf16.msra.mxu0 %v487
  %4628 = vmatprep.subr.bf16.mxu0 %v491
  %4629 = vmatpush1.bf16.msra.mxu0 %v490
  %4630 = vmatprep.subr.bf16.mxu0 %v494
  %4631 = vmatpush1.bf16.msra.mxu0 %v493
  %4632 = vmatprep.subr.bf16.mxu0 %v497
  %4633 = vmatpush1.bf16.msra.mxu0 %v496
  %4634 = vmatprep.subr.bf16.mxu0 %v500
  %4635 = vmatpush1.bf16.msra.mxu0 %v499
  %4636 = vmatprep.subr.bf16.mxu0 %v503
  %4637 = vmatpush1.bf16.msra.mxu0 %v502
  %4638 = vmatprep.subr.bf16.mxu0 %v506
  %4639 = vmatpush1.bf16.msra.mxu0 %v505
  %4640 = vmatprep.subr.bf16.mxu0 0
  %4641 = vmatpush1.bf16.msra.mxu0 0
  %4642 = vmatprep.subr.bf16.mxu0 0
  %4643 = vmatpush1.bf16.msra.mxu0 0
  %4644 = vmatprep.subr.bf16.mxu0 0
  %4645 = vmatpush1.bf16.msra.mxu0 0
  %4646 = vmatprep.subr.bf16.mxu0 0
  %4647 = vmatpush1.bf16.msra.mxu0 0
  %4648 = vmatprep.subr.bf16.mxu0 0
  %4649 = vmatpush1.bf16.msra.mxu0 0
  %4650 = vmatprep.subr.bf16.mxu0 0
  %4651 = vmatpush1.bf16.msra.mxu0 0
  %4652 = vmatprep.subr.bf16.mxu0 0
  %4653 = vmatpush1.bf16.msra.mxu0 0
  %4654 = vmatprep.subr.bf16.mxu0 0
  %4655 = vmatpush1.bf16.msra.mxu0 0
  %4656 = vmatprep.mubr.bf16.mxu0 0
  %4657 = vmatmul.mubr.bf16.gmra.mrb[0].mxu0 %v4623
  %v4658 = vpop.f32.mrb[0].mxu0
  %v4659 = vadd.f32 0.0, %v4658
  %v4660 = vpop.f32.mrb[0].mxu0
  %v4661 = vadd.f32 0.0, %v4660
  %v4662 = vpop.f32.mrb[0].mxu0
  %v4663 = vpop.f32.mrb[0].mxu0
  %4664 = vdwg.mxu0
  %4665 = vmatprep.subr.bf16.mxu0 0
  %4666 = vmatpush1.bf16.msra.mxu0 %v486
  %4667 = vmatprep.subr.bf16.mxu0 0
  %4668 = vmatpush1.bf16.msra.mxu0 %v489
  %4669 = vmatprep.subr.bf16.mxu0 0
  %4670 = vmatpush1.bf16.msra.mxu0 %v492
  %4671 = vmatprep.subr.bf16.mxu0 0
  %4672 = vmatpush1.bf16.msra.mxu0 %v495
  %4673 = vmatprep.subr.bf16.mxu0 0
  %4674 = vmatpush1.bf16.msra.mxu0 %v498
  %4675 = vmatprep.subr.bf16.mxu0 0
  %4676 = vmatpush1.bf16.msra.mxu0 %v501
  %4677 = vmatprep.subr.bf16.mxu0 0
  %4678 = vmatpush1.bf16.msra.mxu0 %v504
  %4679 = vmatprep.subr.bf16.mxu0 0
  %4680 = vmatpush1.bf16.msra.mxu0 %v507
  %4681 = vmatprep.subr.bf16.mxu0 0
  %4682 = vmatpush1.bf16.msra.mxu0 0
  %4683 = vmatprep.subr.bf16.mxu0 0
  %4684 = vmatpush1.bf16.msra.mxu0 0
  %4685 = vmatprep.subr.bf16.mxu0 0
  %4686 = vmatpush1.bf16.msra.mxu0 0
  %4687 = vmatprep.subr.bf16.mxu0 0
  %4688 = vmatpush1.bf16.msra.mxu0 0
  %4689 = vmatprep.subr.bf16.mxu0 0
  %4690 = vmatpush1.bf16.msra.mxu0 0
  %4691 = vmatprep.subr.bf16.mxu0 0
  %4692 = vmatpush1.bf16.msra.mxu0 0
  %4693 = vmatprep.subr.bf16.mxu0 0
  %4694 = vmatpush1.bf16.msra.mxu0 0
  %4695 = vmatprep.subr.bf16.mxu0 0
  %4696 = vmatpush1.bf16.msra.mxu0 0
  %4697 = vmatprep.mubr.bf16.mxu0 0
  %4698 = vmatmul.mubr.bf16.gmra.mrb[0].mxu0 %v4623
  %v4699 = vpop.f32.mrb[0].mxu0
  %v4700 = vadd.f32 0.0, %v4699
  %v4701 = vpop.f32.mrb[0].mxu0
  %v4702 = vpop.f32.mrb[0].mxu0
  %v4703 = vpop.f32.mrb[0].mxu0
  %4704 = vdwg.mxu0
  %v4705 = vadd.f32 %v4620, %v4659
  %v4706 = vadd.f32 %v4621, %v4661
  %v4707 = vmul.f32 %v4705, 0.5
  %v4708 = vmul.f32 %v4706, 0.5
  %v4709 = vtanh.pop %v4707
  %v4710 = vtanh.pop %v4708
  %v4711 = vadd.f32 %v4709, 1.0
  %v4712 = vadd.f32 %v4710, 1.0
  %v4713 = vmul.f32 %v4711, 0.5
  %v4714 = vmul.f32 %v4712, 0.5
  %v4715 = vadd.f32 %v4700, %v361
  %v4716 = vmul.f32 %v4713, %v4715
  %v4717 = vadd.f32 %v4622, %v4716
  %v4718 = vtanh.pop %v4717
  %v4719 = vsub.f32 1.0, %v4714
  %v4720 = vmul.f32 %v4719, %v4718
  %v4721 = vmul.f32 %v4714, %v3734
  %v4722 = vadd.f32 %v4720, %v4721
  %4723 = vmatprep.subr.bf16.mxu0 %v762
  %4724 = vmatpush1.bf16.msra.mxu0 %v761
  %4725 = vmatprep.subr.bf16.mxu0 %v765
  %4726 = vmatpush1.bf16.msra.mxu0 %v764
  %4727 = vmatprep.subr.bf16.mxu0 %v768
  %4728 = vmatpush1.bf16.msra.mxu0 %v767
  %4729 = vmatprep.subr.bf16.mxu0 %v771
  %4730 = vmatpush1.bf16.msra.mxu0 %v770
  %4731 = vmatprep.subr.bf16.mxu0 %v774
  %4732 = vmatpush1.bf16.msra.mxu0 %v773
  %4733 = vmatprep.subr.bf16.mxu0 %v777
  %4734 = vmatpush1.bf16.msra.mxu0 %v776
  %4735 = vmatprep.subr.bf16.mxu0 %v780
  %4736 = vmatpush1.bf16.msra.mxu0 %v779
  %4737 = vmatprep.subr.bf16.mxu0 %v783
  %4738 = vmatpush1.bf16.msra.mxu0 %v782
  %4739 = vmatprep.subr.bf16.mxu0 0
  %4740 = vmatpush1.bf16.msra.mxu0 0
  %4741 = vmatprep.subr.bf16.mxu0 0
  %4742 = vmatpush1.bf16.msra.mxu0 0
  %4743 = vmatprep.subr.bf16.mxu0 0
  %4744 = vmatpush1.bf16.msra.mxu0 0
  %4745 = vmatprep.subr.bf16.mxu0 0
  %4746 = vmatpush1.bf16.msra.mxu0 0
  %4747 = vmatprep.subr.bf16.mxu0 0
  %4748 = vmatpush1.bf16.msra.mxu0 0
  %4749 = vmatprep.subr.bf16.mxu0 0
  %4750 = vmatpush1.bf16.msra.mxu0 0
  %4751 = vmatprep.subr.bf16.mxu0 0
  %4752 = vmatpush1.bf16.msra.mxu0 0
  %4753 = vmatprep.subr.bf16.mxu0 0
  %4754 = vmatpush1.bf16.msra.mxu0 0
  %4755 = vmatprep.mubr.bf16.mxu0 0
  %4756 = vmatmul.mubr.bf16.gmra.mrb[0].mxu0 %v4623
  %v4757 = vpop.f32.mrb[0].mxu0
  %v4758 = vadd.f32 %v669, %v4757
  %v4759 = vpop.f32.mrb[0].mxu0
  %v4760 = vadd.f32 %v673, %v4759
  %v4761 = vpop.f32.mrb[0].mxu0
  %v4762 = vpop.f32.mrb[0].mxu0
  %4763 = vdwg.mxu0
  %4764 = vmatprep.subr.bf16.mxu0 0
  %4765 = vmatpush1.bf16.msra.mxu0 %v763
  %4766 = vmatprep.subr.bf16.mxu0 0
  %4767 = vmatpush1.bf16.msra.mxu0 %v766
  %4768 = vmatprep.subr.bf16.mxu0 0
  %4769 = vmatpush1.bf16.msra.mxu0 %v769
  %4770 = vmatprep.subr.bf16.mxu0 0
  %4771 = vmatpush1.bf16.msra.mxu0 %v772
  %4772 = vmatprep.subr.bf16.mxu0 0
  %4773 = vmatpush1.bf16.msra.mxu0 %v775
  %4774 = vmatprep.subr.bf16.mxu0 0
  %4775 = vmatpush1.bf16.msra.mxu0 %v778
  %4776 = vmatprep.subr.bf16.mxu0 0
  %4777 = vmatpush1.bf16.msra.mxu0 %v781
  %4778 = vmatprep.subr.bf16.mxu0 0
  %4779 = vmatpush1.bf16.msra.mxu0 %v784
  %4780 = vmatprep.subr.bf16.mxu0 0
  %4781 = vmatpush1.bf16.msra.mxu0 0
  %4782 = vmatprep.subr.bf16.mxu0 0
  %4783 = vmatpush1.bf16.msra.mxu0 0
  %4784 = vmatprep.subr.bf16.mxu0 0
  %4785 = vmatpush1.bf16.msra.mxu0 0
  %4786 = vmatprep.subr.bf16.mxu0 0
  %4787 = vmatpush1.bf16.msra.mxu0 0
  %4788 = vmatprep.subr.bf16.mxu0 0
  %4789 = vmatpush1.bf16.msra.mxu0 0
  %4790 = vmatprep.subr.bf16.mxu0 0
  %4791 = vmatpush1.bf16.msra.mxu0 0
  %4792 = vmatprep.subr.bf16.mxu0 0
  %4793 = vmatpush1.bf16.msra.mxu0 0
  %4794 = vmatprep.subr.bf16.mxu0 0
  %4795 = vmatpush1.bf16.msra.mxu0 0
  %4796 = vmatprep.mubr.bf16.mxu0 0
  %4797 = vmatmul.mubr.bf16.gmra.mrb[0].mxu0 %v4623
  %v4798 = vpop.f32.mrb[0].mxu0
  %v4799 = vadd.f32 %v677, %v4798
  %v4800 = vpop.f32.mrb[0].mxu0
  %v4801 = vpop.f32.mrb[0].mxu0
  %v4802 = vpop.f32.mrb[0].mxu0
  %4803 = vdwg.mxu0
  %v4804 = vpack.c.bf16 %v3915, %v3915
  %4805 = vmatprep.subr.bf16.mxu0 %v1210
  %4806 = vmatpush1.bf16.msra.mxu0 %v1209
  %4807 = vmatprep.subr.bf16.mxu0 %v1213
  %4808 = vmatpush1.bf16.msra.mxu0 %v1212
  %4809 = vmatprep.subr.bf16.mxu0 %v1216
  %4810 = vmatpush1.bf16.msra.mxu0 %v1215
  %4811 = vmatprep.subr.bf16.mxu0 %v1219
  %4812 = vmatpush1.bf16.msra.mxu0 %v1218
  %4813 = vmatprep.subr.bf16.mxu0 %v1222
  %4814 = vmatpush1.bf16.msra.mxu0 %v1221
  %4815 = vmatprep.subr.bf16.mxu0 %v1225
  %4816 = vmatpush1.bf16.msra.mxu0 %v1224
  %4817 = vmatprep.subr.bf16.mxu0 %v1228
  %4818 = vmatpush1.bf16.msra.mxu0 %v1227
  %4819 = vmatprep.subr.bf16.mxu0 %v1231
  %4820 = vmatpush1.bf16.msra.mxu0 %v1230
  %4821 = vmatprep.subr.bf16.mxu0 0
  %4822 = vmatpush1.bf16.msra.mxu0 0
  %4823 = vmatprep.subr.bf16.mxu0 0
  %4824 = vmatpush1.bf16.msra.mxu0 0
  %4825 = vmatprep.subr.bf16.mxu0 0
  %4826 = vmatpush1.bf16.msra.mxu0 0
  %4827 = vmatprep.subr.bf16.mxu0 0
  %4828 = vmatpush1.bf16.msra.mxu0 0
  %4829 = vmatprep.subr.bf16.mxu0 0
  %4830 = vmatpush1.bf16.msra.mxu0 0
  %4831 = vmatprep.subr.bf16.mxu0 0
  %4832 = vmatpush1.bf16.msra.mxu0 0
  %4833 = vmatprep.subr.bf16.mxu0 0
  %4834 = vmatpush1.bf16.msra.mxu0 0
  %4835 = vmatprep.subr.bf16.mxu0 0
  %4836 = vmatpush1.bf16.msra.mxu0 0
  %4837 = vmatprep.mubr.bf16.mxu0 0
  %4838 = vmatmul.mubr.bf16.gmra.mrb[0].mxu0 %v4804
  %v4839 = vpop.f32.mrb[0].mxu0
  %v4840 = vadd.f32 0.0, %v4839
  %v4841 = vpop.f32.mrb[0].mxu0
  %v4842 = vadd.f32 0.0, %v4841
  %v4843 = vpop.f32.mrb[0].mxu0
  %v4844 = vpop.f32.mrb[0].mxu0
  %4845 = vdwg.mxu0
  %4846 = vmatprep.subr.bf16.mxu0 0
  %4847 = vmatpush1.bf16.msra.mxu0 %v1211
  %4848 = vmatprep.subr.bf16.mxu0 0
  %4849 = vmatpush1.bf16.msra.mxu0 %v1214
  %4850 = vmatprep.subr.bf16.mxu0 0
  %4851 = vmatpush1.bf16.msra.mxu0 %v1217
  %4852 = vmatprep.subr.bf16.mxu0 0
  %4853 = vmatpush1.bf16.msra.mxu0 %v1220
  %4854 = vmatprep.subr.bf16.mxu0 0
  %4855 = vmatpush1.bf16.msra.mxu0 %v1223
  %4856 = vmatprep.subr.bf16.mxu0 0
  %4857 = vmatpush1.bf16.msra.mxu0 %v1226
  %4858 = vmatprep.subr.bf16.mxu0 0
  %4859 = vmatpush1.bf16.msra.mxu0 %v1229
  %4860 = vmatprep.subr.bf16.mxu0 0
  %4861 = vmatpush1.bf16.msra.mxu0 %v1232
  %4862 = vmatprep.subr.bf16.mxu0 0
  %4863 = vmatpush1.bf16.msra.mxu0 0
  %4864 = vmatprep.subr.bf16.mxu0 0
  %4865 = vmatpush1.bf16.msra.mxu0 0
  %4866 = vmatprep.subr.bf16.mxu0 0
  %4867 = vmatpush1.bf16.msra.mxu0 0
  %4868 = vmatprep.subr.bf16.mxu0 0
  %4869 = vmatpush1.bf16.msra.mxu0 0
  %4870 = vmatprep.subr.bf16.mxu0 0
  %4871 = vmatpush1.bf16.msra.mxu0 0
  %4872 = vmatprep.subr.bf16.mxu0 0
  %4873 = vmatpush1.bf16.msra.mxu0 0
  %4874 = vmatprep.subr.bf16.mxu0 0
  %4875 = vmatpush1.bf16.msra.mxu0 0
  %4876 = vmatprep.subr.bf16.mxu0 0
  %4877 = vmatpush1.bf16.msra.mxu0 0
  %4878 = vmatprep.mubr.bf16.mxu0 0
  %4879 = vmatmul.mubr.bf16.gmra.mrb[0].mxu0 %v4804
  %v4880 = vpop.f32.mrb[0].mxu0
  %v4881 = vadd.f32 0.0, %v4880
  %v4882 = vpop.f32.mrb[0].mxu0
  %v4883 = vpop.f32.mrb[0].mxu0
  %v4884 = vpop.f32.mrb[0].mxu0
  %4885 = vdwg.mxu0
  %v4886 = vadd.f32 %v4758, %v4840
  %v4887 = vadd.f32 %v4760, %v4842
  %v4888 = vmul.f32 %v4886, 0.5
  %v4889 = vmul.f32 %v4887, 0.5
  %v4890 = vtanh.pop %v4888
  %v4891 = vtanh.pop %v4889
  %v4892 = vadd.f32 %v4890, 1.0
  %v4893 = vadd.f32 %v4891, 1.0
  %v4894 = vmul.f32 %v4892, 0.5
  %v4895 = vmul.f32 %v4893, 0.5
  %v4896 = vadd.f32 %v4881, %v904
  %v4897 = vmul.f32 %v4894, %v4896
  %v4898 = vadd.f32 %v4799, %v4897
  %v4899 = vtanh.pop %v4898
  %v4900 = vsub.f32 1.0, %v4895
  %v4901 = vmul.f32 %v4900, %v4899
  %v4902 = vmul.f32 %v4895, %v3915
  %v4903 = vadd.f32 %v4901, %v4902
  %4904 = vmatprep.subr.bf16.mxu0 %v1488
  %4905 = vmatpush1.bf16.msra.mxu0 %v1487
  %4906 = vmatprep.subr.bf16.mxu0 %v1491
  %4907 = vmatpush1.bf16.msra.mxu0 %v1490
  %4908 = vmatprep.subr.bf16.mxu0 %v1494
  %4909 = vmatpush1.bf16.msra.mxu0 %v1493
  %4910 = vmatprep.subr.bf16.mxu0 %v1497
  %4911 = vmatpush1.bf16.msra.mxu0 %v1496
  %4912 = vmatprep.subr.bf16.mxu0 %v1500
  %4913 = vmatpush1.bf16.msra.mxu0 %v1499
  %4914 = vmatprep.subr.bf16.mxu0 %v1503
  %4915 = vmatpush1.bf16.msra.mxu0 %v1502
  %4916 = vmatprep.subr.bf16.mxu0 %v1506
  %4917 = vmatpush1.bf16.msra.mxu0 %v1505
  %4918 = vmatprep.subr.bf16.mxu0 %v1509
  %4919 = vmatpush1.bf16.msra.mxu0 %v1508
  %4920 = vmatprep.subr.bf16.mxu0 0
  %4921 = vmatpush1.bf16.msra.mxu0 0
  %4922 = vmatprep.subr.bf16.mxu0 0
  %4923 = vmatpush1.bf16.msra.mxu0 0
  %4924 = vmatprep.subr.bf16.mxu0 0
  %4925 = vmatpush1.bf16.msra.mxu0 0
  %4926 = vmatprep.subr.bf16.mxu0 0
  %4927 = vmatpush1.bf16.msra.mxu0 0
  %4928 = vmatprep.subr.bf16.mxu0 0
  %4929 = vmatpush1.bf16.msra.mxu0 0
  %4930 = vmatprep.subr.bf16.mxu0 0
  %4931 = vmatpush1.bf16.msra.mxu0 0
  %4932 = vmatprep.subr.bf16.mxu0 0
  %4933 = vmatpush1.bf16.msra.mxu0 0
  %4934 = vmatprep.subr.bf16.mxu0 0
  %4935 = vmatpush1.bf16.msra.mxu0 0
  %4936 = vmatprep.mubr.bf16.mxu0 0
  %4937 = vmatmul.mubr.bf16.gmra.mrb[0].mxu0 %v4804
  %v4938 = vpop.f32.mrb[0].mxu0
  %v4939 = vadd.f32 %v1395, %v4938
  %v4940 = vpop.f32.mrb[0].mxu0
  %v4941 = vadd.f32 %v1399, %v4940
  %v4942 = vpop.f32.mrb[0].mxu0
  %v4943 = vpop.f32.mrb[0].mxu0
  %4944 = vdwg.mxu0
  %4945 = vmatprep.subr.bf16.mxu0 0
  %4946 = vmatpush1.bf16.msra.mxu0 %v1489
  %4947 = vmatprep.subr.bf16.mxu0 0
  %4948 = vmatpush1.bf16.msra.mxu0 %v1492
  %4949 = vmatprep.subr.bf16.mxu0 0
  %4950 = vmatpush1.bf16.msra.mxu0 %v1495
  %4951 = vmatprep.subr.bf16.mxu0 0
  %4952 = vmatpush1.bf16.msra.mxu0 %v1498
  %4953 = vmatprep.subr.bf16.mxu0 0
  %4954 = vmatpush1.bf16.msra.mxu0 %v1501
  %4955 = vmatprep.subr.bf16.mxu0 0
  %4956 = vmatpush1.bf16.msra.mxu0 %v1504
  %4957 = vmatprep.subr.bf16.mxu0 0
  %4958 = vmatpush1.bf16.msra.mxu0 %v1507
  %4959 = vmatprep.subr.bf16.mxu0 0
  %4960 = vmatpush1.bf16.msra.mxu0 %v1510
  %4961 = vmatprep.subr.bf16.mxu0 0
  %4962 = vmatpush1.bf16.msra.mxu0 0
  %4963 = vmatprep.subr.bf16.mxu0 0
  %4964 = vmatpush1.bf16.msra.mxu0 0
  %4965 = vmatprep.subr.bf16.mxu0 0
  %4966 = vmatpush1.bf16.msra.mxu0 0
  %4967 = vmatprep.subr.bf16.mxu0 0
  %4968 = vmatpush1.bf16.msra.mxu0 0
  %4969 = vmatprep.subr.bf16.mxu0 0
  %4970 = vmatpush1.bf16.msra.mxu0 0
  %4971 = vmatprep.subr.bf16.mxu0 0
  %4972 = vmatpush1.bf16.msra.mxu0 0
  %4973 = vmatprep.subr.bf16.mxu0 0
  %4974 = vmatpush1.bf16.msra.mxu0 0
  %4975 = vmatprep.subr.bf16.mxu0 0
  %4976 = vmatpush1.bf16.msra.mxu0 0
  %4977 = vmatprep.mubr.bf16.mxu0 0
  %4978 = vmatmul.mubr.bf16.gmra.mrb[0].mxu0 %v4804
  %v4979 = vpop.f32.mrb[0].mxu0
  %v4980 = vadd.f32 %v1403, %v4979
  %v4981 = vpop.f32.mrb[0].mxu0
  %v4982 = vpop.f32.mrb[0].mxu0
  %v4983 = vpop.f32.mrb[0].mxu0
  %4984 = vdwg.mxu0
  %v4985 = vpack.c.bf16 %v4096, %v4096
  %4986 = vmatprep.subr.bf16.mxu0 %v2117
  %4987 = vmatpush1.bf16.msra.mxu0 %v2116
  %4988 = vmatprep.subr.bf16.mxu0 %v2120
  %4989 = vmatpush1.bf16.msra.mxu0 %v2119
  %4990 = vmatprep.subr.bf16.mxu0 %v2123
  %4991 = vmatpush1.bf16.msra.mxu0 %v2122
  %4992 = vmatprep.subr.bf16.mxu0 %v2126
  %4993 = vmatpush1.bf16.msra.mxu0 %v2125
  %4994 = vmatprep.subr.bf16.mxu0 %v2129
  %4995 = vmatpush1.bf16.msra.mxu0 %v2128
  %4996 = vmatprep.subr.bf16.mxu0 %v2132
  %4997 = vmatpush1.bf16.msra.mxu0 %v2131
  %4998 = vmatprep.subr.bf16.mxu0 %v2135
  %4999 = vmatpush1.bf16.msra.mxu0 %v2134
  %5000 = vmatprep.subr.bf16.mxu0 %v2138
  %5001 = vmatpush1.bf16.msra.mxu0 %v2137
  %5002 = vmatprep.subr.bf16.mxu0 0
  %5003 = vmatpush1.bf16.msra.mxu0 0
  %5004 = vmatprep.subr.bf16.mxu0 0
  %5005 = vmatpush1.bf16.msra.mxu0 0
  %5006 = vmatprep.subr.bf16.mxu0 0
  %5007 = vmatpush1.bf16.msra.mxu0 0
  %5008 = vmatprep.subr.bf16.mxu0 0
  %5009 = vmatpush1.bf16.msra.mxu0 0
  %5010 = vmatprep.subr.bf16.mxu0 0
  %5011 = vmatpush1.bf16.msra.mxu0 0
  %5012 = vmatprep.subr.bf16.mxu0 0
  %5013 = vmatpush1.bf16.msra.mxu0 0
  %5014 = vmatprep.subr.bf16.mxu0 0
  %5015 = vmatpush1.bf16.msra.mxu0 0
  %5016 = vmatprep.subr.bf16.mxu0 0
  %5017 = vmatpush1.bf16.msra.mxu0 0
  %5018 = vmatprep.mubr.bf16.mxu0 0
  %5019 = vmatmul.mubr.bf16.gmra.mrb[0].mxu0 %v4985
  %v5020 = vpop.f32.mrb[0].mxu0
  %v5021 = vadd.f32 0.0, %v5020
  %v5022 = vpop.f32.mrb[0].mxu0
  %v5023 = vadd.f32 0.0, %v5022
  %v5024 = vpop.f32.mrb[0].mxu0
  %v5025 = vpop.f32.mrb[0].mxu0
  %5026 = vdwg.mxu0
  %5027 = vmatprep.subr.bf16.mxu0 0
  %5028 = vmatpush1.bf16.msra.mxu0 %v2118
  %5029 = vmatprep.subr.bf16.mxu0 0
  %5030 = vmatpush1.bf16.msra.mxu0 %v2121
  %5031 = vmatprep.subr.bf16.mxu0 0
  %5032 = vmatpush1.bf16.msra.mxu0 %v2124
  %5033 = vmatprep.subr.bf16.mxu0 0
  %5034 = vmatpush1.bf16.msra.mxu0 %v2127
  %5035 = vmatprep.subr.bf16.mxu0 0
  %5036 = vmatpush1.bf16.msra.mxu0 %v2130
  %5037 = vmatprep.subr.bf16.mxu0 0
  %5038 = vmatpush1.bf16.msra.mxu0 %v2133
  %5039 = vmatprep.subr.bf16.mxu0 0
  %5040 = vmatpush1.bf16.msra.mxu0 %v2136
  %5041 = vmatprep.subr.bf16.mxu0 0
  %5042 = vmatpush1.bf16.msra.mxu0 %v2139
  %5043 = vmatprep.subr.bf16.mxu0 0
  %5044 = vmatpush1.bf16.msra.mxu0 0
  %5045 = vmatprep.subr.bf16.mxu0 0
  %5046 = vmatpush1.bf16.msra.mxu0 0
  %5047 = vmatprep.subr.bf16.mxu0 0
  %5048 = vmatpush1.bf16.msra.mxu0 0
  %5049 = vmatprep.subr.bf16.mxu0 0
  %5050 = vmatpush1.bf16.msra.mxu0 0
  %5051 = vmatprep.subr.bf16.mxu0 0
  %5052 = vmatpush1.bf16.msra.mxu0 0
  %5053 = vmatprep.subr.bf16.mxu0 0
  %5054 = vmatpush1.bf16.msra.mxu0 0
  %5055 = vmatprep.subr.bf16.mxu0 0
  %5056 = vmatpush1.bf16.msra.mxu0 0
  %5057 = vmatprep.subr.bf16.mxu0 0
  %5058 = vmatpush1.bf16.msra.mxu0 0
  %5059 = vmatprep.mubr.bf16.mxu0 0
  %5060 = vmatmul.mubr.bf16.gmra.mrb[0].mxu0 %v4985
  %v5061 = vpop.f32.mrb[0].mxu0
  %v5062 = vadd.f32 0.0, %v5061
  %v5063 = vpop.f32.mrb[0].mxu0
  %v5064 = vpop.f32.mrb[0].mxu0
  %v5065 = vpop.f32.mrb[0].mxu0
  %5066 = vdwg.mxu0
  %v5067 = vadd.f32 %v4939, %v5021
  %v5068 = vadd.f32 %v4941, %v5023
  %v5069 = vmul.f32 %v5067, 0.5
  %v5070 = vmul.f32 %v5068, 0.5
  %v5071 = vtanh.pop %v5069
  %v5072 = vtanh.pop %v5070
  %v5073 = vadd.f32 %v5071, 1.0
  %v5074 = vadd.f32 %v5072, 1.0
  %v5075 = vmul.f32 %v5073, 0.5
  %v5076 = vmul.f32 %v5074, 0.5
  %v5077 = vadd.f32 %v5062, %v1630
  %v5078 = vmul.f32 %v5075, %v5077
  %v5079 = vadd.f32 %v4980, %v5078
  %v5080 = vtanh.pop %v5079
  %v5081 = vsub.f32 1.0, %v5076
  %v5082 = vmul.f32 %v5081, %v5080
  %v5083 = vmul.f32 %v5076, %v4096
  %v5084 = vadd.f32 %v5082, %v5083
  %5085 = vmatprep.subr.bf16.mxu0 %v2395
  %5086 = vmatpush1.bf16.msra.mxu0 %v2394
  %5087 = vmatprep.subr.bf16.mxu0 %v2398
  %5088 = vmatpush1.bf16.msra.mxu0 %v2397
  %5089 = vmatprep.subr.bf16.mxu0 %v2401
  %5090 = vmatpush1.bf16.msra.mxu0 %v2400
  %5091 = vmatprep.subr.bf16.mxu0 %v2404
  %5092 = vmatpush1.bf16.msra.mxu0 %v2403
  %5093 = vmatprep.subr.bf16.mxu0 %v2407
  %5094 = vmatpush1.bf16.msra.mxu0 %v2406
  %5095 = vmatprep.subr.bf16.mxu0 %v2410
  %5096 = vmatpush1.bf16.msra.mxu0 %v2409
  %5097 = vmatprep.subr.bf16.mxu0 %v2413
  %5098 = vmatpush1.bf16.msra.mxu0 %v2412
  %5099 = vmatprep.subr.bf16.mxu0 %v2416
  %5100 = vmatpush1.bf16.msra.mxu0 %v2415
  %5101 = vmatprep.subr.bf16.mxu0 0
  %5102 = vmatpush1.bf16.msra.mxu0 0
  %5103 = vmatprep.subr.bf16.mxu0 0
  %5104 = vmatpush1.bf16.msra.mxu0 0
  %5105 = vmatprep.subr.bf16.mxu0 0
  %5106 = vmatpush1.bf16.msra.mxu0 0
  %5107 = vmatprep.subr.bf16.mxu0 0
  %5108 = vmatpush1.bf16.msra.mxu0 0
  %5109 = vmatprep.subr.bf16.mxu0 0
  %5110 = vmatpush1.bf16.msra.mxu0 0
  %5111 = vmatprep.subr.bf16.mxu0 0
  %5112 = vmatpush1.bf16.msra.mxu0 0
  %5113 = vmatprep.subr.bf16.mxu0 0
  %5114 = vmatpush1.bf16.msra.mxu0 0
  %5115 = vmatprep.subr.bf16.mxu0 0
  %5116 = vmatpush1.bf16.msra.mxu0 0
  %5117 = vmatprep.mubr.bf16.mxu0 0
  %5118 = vmatmul.mubr.bf16.gmra.mrb[0].mxu0 %v4985
  %v5119 = vpop.f32.mrb[0].mxu0
  %v5120 = vadd.f32 %v2302, %v5119
  %v5121 = vpop.f32.mrb[0].mxu0
  %v5122 = vadd.f32 %v2306, %v5121
  %v5123 = vpop.f32.mrb[0].mxu0
  %v5124 = vpop.f32.mrb[0].mxu0
  %5125 = vdwg.mxu0
  %5126 = vmatprep.subr.bf16.mxu0 0
  %5127 = vmatpush1.bf16.msra.mxu0 %v2396
  %5128 = vmatprep.subr.bf16.mxu0 0
  %5129 = vmatpush1.bf16.msra.mxu0 %v2399
  %5130 = vmatprep.subr.bf16.mxu0 0
  %5131 = vmatpush1.bf16.msra.mxu0 %v2402
  %5132 = vmatprep.subr.bf16.mxu0 0
  %5133 = vmatpush1.bf16.msra.mxu0 %v2405
  %5134 = vmatprep.subr.bf16.mxu0 0
  %5135 = vmatpush1.bf16.msra.mxu0 %v2408
  %5136 = vmatprep.subr.bf16.mxu0 0
  %5137 = vmatpush1.bf16.msra.mxu0 %v2411
  %5138 = vmatprep.subr.bf16.mxu0 0
  %5139 = vmatpush1.bf16.msra.mxu0 %v2414
  %5140 = vmatprep.subr.bf16.mxu0 0
  %5141 = vmatpush1.bf16.msra.mxu0 %v2417
  %5142 = vmatprep.subr.bf16.mxu0 0
  %5143 = vmatpush1.bf16.msra.mxu0 0
  %5144 = vmatprep.subr.bf16.mxu0 0
  %5145 = vmatpush1.bf16.msra.mxu0 0
  %5146 = vmatprep.subr.bf16.mxu0 0
  %5147 = vmatpush1.bf16.msra.mxu0 0
  %5148 = vmatprep.subr.bf16.mxu0 0
  %5149 = vmatpush1.bf16.msra.mxu0 0
  %5150 = vmatprep.subr.bf16.mxu0 0
  %5151 = vmatpush1.bf16.msra.mxu0 0
  %5152 = vmatprep.subr.bf16.mxu0 0
  %5153 = vmatpush1.bf16.msra.mxu0 0
  %5154 = vmatprep.subr.bf16.mxu0 0
  %5155 = vmatpush1.bf16.msra.mxu0 0
  %5156 = vmatprep.subr.bf16.mxu0 0
  %5157 = vmatpush1.bf16.msra.mxu0 0
  %5158 = vmatprep.mubr.bf16.mxu0 0
  %5159 = vmatmul.mubr.bf16.gmra.mrb[0].mxu0 %v4985
  %v5160 = vpop.f32.mrb[0].mxu0
  %v5161 = vadd.f32 %v2310, %v5160
  %v5162 = vpop.f32.mrb[0].mxu0
  %v5163 = vpop.f32.mrb[0].mxu0
  %v5164 = vpop.f32.mrb[0].mxu0
  %5165 = vdwg.mxu0
  %v5166 = vpack.c.bf16 %v4277, %v4277
  %5167 = vmatprep.subr.bf16.mxu0 %v3205
  %5168 = vmatpush1.bf16.msra.mxu0 %v3204
  %5169 = vmatprep.subr.bf16.mxu0 %v3208
  %5170 = vmatpush1.bf16.msra.mxu0 %v3207
  %5171 = vmatprep.subr.bf16.mxu0 %v3211
  %5172 = vmatpush1.bf16.msra.mxu0 %v3210
  %5173 = vmatprep.subr.bf16.mxu0 %v3214
  %5174 = vmatpush1.bf16.msra.mxu0 %v3213
  %5175 = vmatprep.subr.bf16.mxu0 %v3217
  %5176 = vmatpush1.bf16.msra.mxu0 %v3216
  %5177 = vmatprep.subr.bf16.mxu0 %v3220
  %5178 = vmatpush1.bf16.msra.mxu0 %v3219
  %5179 = vmatprep.subr.bf16.mxu0 %v3223
  %5180 = vmatpush1.bf16.msra.mxu0 %v3222
  %5181 = vmatprep.subr.bf16.mxu0 %v3226
  %5182 = vmatpush1.bf16.msra.mxu0 %v3225
  %5183 = vmatprep.subr.bf16.mxu0 0
  %5184 = vmatpush1.bf16.msra.mxu0 0
  %5185 = vmatprep.subr.bf16.mxu0 0
  %5186 = vmatpush1.bf16.msra.mxu0 0
  %5187 = vmatprep.subr.bf16.mxu0 0
  %5188 = vmatpush1.bf16.msra.mxu0 0
  %5189 = vmatprep.subr.bf16.mxu0 0
  %5190 = vmatpush1.bf16.msra.mxu0 0
  %5191 = vmatprep.subr.bf16.mxu0 0
  %5192 = vmatpush1.bf16.msra.mxu0 0
  %5193 = vmatprep.subr.bf16.mxu0 0
  %5194 = vmatpush1.bf16.msra.mxu0 0
  %5195 = vmatprep.subr.bf16.mxu0 0
  %5196 = vmatpush1.bf16.msra.mxu0 0
  %5197 = vmatprep.subr.bf16.mxu0 0
  %5198 = vmatpush1.bf16.msra.mxu0 0
  %5199 = vmatprep.mubr.bf16.mxu0 0
  %5200 = vmatmul.mubr.bf16.gmra.mrb[0].mxu0 %v5166
  %v5201 = vpop.f32.mrb[0].mxu0
  %v5202 = vadd.f32 0.0, %v5201
  %v5203 = vpop.f32.mrb[0].mxu0
  %v5204 = vadd.f32 0.0, %v5203
  %v5205 = vpop.f32.mrb[0].mxu0
  %v5206 = vpop.f32.mrb[0].mxu0
  %5207 = vdwg.mxu0
  %5208 = vmatprep.subr.bf16.mxu0 0
  %5209 = vmatpush1.bf16.msra.mxu0 %v3206
  %5210 = vmatprep.subr.bf16.mxu0 0
  %5211 = vmatpush1.bf16.msra.mxu0 %v3209
  %5212 = vmatprep.subr.bf16.mxu0 0
  %5213 = vmatpush1.bf16.msra.mxu0 %v3212
  %5214 = vmatprep.subr.bf16.mxu0 0
  %5215 = vmatpush1.bf16.msra.mxu0 %v3215
  %5216 = vmatprep.subr.bf16.mxu0 0
  %5217 = vmatpush1.bf16.msra.mxu0 %v3218
  %5218 = vmatprep.subr.bf16.mxu0 0
  %5219 = vmatpush1.bf16.msra.mxu0 %v3221
  %5220 = vmatprep.subr.bf16.mxu0 0
  %5221 = vmatpush1.bf16.msra.mxu0 %v3224
  %5222 = vmatprep.subr.bf16.mxu0 0
  %5223 = vmatpush1.bf16.msra.mxu0 %v3227
  %5224 = vmatprep.subr.bf16.mxu0 0
  %5225 = vmatpush1.bf16.msra.mxu0 0
  %5226 = vmatprep.subr.bf16.mxu0 0
  %5227 = vmatpush1.bf16.msra.mxu0 0
  %5228 = vmatprep.subr.bf16.mxu0 0
  %5229 = vmatpush1.bf16.msra.mxu0 0
  %5230 = vmatprep.subr.bf16.mxu0 0
  %5231 = vmatpush1.bf16.msra.mxu0 0
  %5232 = vmatprep.subr.bf16.mxu0 0
  %5233 = vmatpush1.bf16.msra.mxu0 0
  %5234 = vmatprep.subr.bf16.mxu0 0
  %5235 = vmatpush1.bf16.msra.mxu0 0
  %5236 = vmatprep.subr.bf16.mxu0 0
  %5237 = vmatpush1.bf16.msra.mxu0 0
  %5238 = vmatprep.subr.bf16.mxu0 0
  %5239 = vmatpush1.bf16.msra.mxu0 0
  %5240 = vmatprep.mubr.bf16.mxu0 0
  %5241 = vmatmul.mubr.bf16.gmra.mrb[0].mxu0 %v5166
  %v5242 = vpop.f32.mrb[0].mxu0
  %v5243 = vadd.f32 0.0, %v5242
  %v5244 = vpop.f32.mrb[0].mxu0
  %v5245 = vpop.f32.mrb[0].mxu0
  %v5246 = vpop.f32.mrb[0].mxu0
  %5247 = vdwg.mxu0
  %v5248 = vadd.f32 %v5120, %v5202
  %v5249 = vadd.f32 %v5122, %v5204
  %v5250 = vmul.f32 %v5248, 0.5
  %v5251 = vmul.f32 %v5249, 0.5
  %v5252 = vtanh.pop %v5250
  %v5253 = vtanh.pop %v5251
  %v5254 = vadd.f32 %v5252, 1.0
  %v5255 = vadd.f32 %v5253, 1.0
  %v5256 = vmul.f32 %v5254, 0.5
  %v5257 = vmul.f32 %v5255, 0.5
  %v5258 = vadd.f32 %v5243, %v2537
  %v5259 = vmul.f32 %v5256, %v5258
  %v5260 = vadd.f32 %v5161, %v5259
  %v5261 = vtanh.pop %v5260
  %v5262 = vsub.f32 1.0, %v5257
  %v5263 = vmul.f32 %v5262, %v5261
  %v5264 = vmul.f32 %v5257, %v4277
  %v5265 = vadd.f32 %v5263, %v5264
  %5266 = vmatprep.subr.bf16.mxu0 %v3483
  %5267 = vmatpush1.bf16.msra.mxu0 %v3482
  %5268 = vmatprep.subr.bf16.mxu0 %v3486
  %5269 = vmatpush1.bf16.msra.mxu0 %v3485
  %5270 = vmatprep.subr.bf16.mxu0 %v3489
  %5271 = vmatpush1.bf16.msra.mxu0 %v3488
  %5272 = vmatprep.subr.bf16.mxu0 %v3492
  %5273 = vmatpush1.bf16.msra.mxu0 %v3491
  %5274 = vmatprep.subr.bf16.mxu0 %v3495
  %5275 = vmatpush1.bf16.msra.mxu0 %v3494
  %5276 = vmatprep.subr.bf16.mxu0 %v3498
  %5277 = vmatpush1.bf16.msra.mxu0 %v3497
  %5278 = vmatprep.subr.bf16.mxu0 %v3501
  %5279 = vmatpush1.bf16.msra.mxu0 %v3500
  %5280 = vmatprep.subr.bf16.mxu0 %v3504
  %5281 = vmatpush1.bf16.msra.mxu0 %v3503
  %5282 = vmatprep.subr.bf16.mxu0 0
  %5283 = vmatpush1.bf16.msra.mxu0 0
  %5284 = vmatprep.subr.bf16.mxu0 0
  %5285 = vmatpush1.bf16.msra.mxu0 0
  %5286 = vmatprep.subr.bf16.mxu0 0
  %5287 = vmatpush1.bf16.msra.mxu0 0
  %5288 = vmatprep.subr.bf16.mxu0 0
  %5289 = vmatpush1.bf16.msra.mxu0 0
  %5290 = vmatprep.subr.bf16.mxu0 0
  %5291 = vmatpush1.bf16.msra.mxu0 0
  %5292 = vmatprep.subr.bf16.mxu0 0
  %5293 = vmatpush1.bf16.msra.mxu0 0
  %5294 = vmatprep.subr.bf16.mxu0 0
  %5295 = vmatpush1.bf16.msra.mxu0 0
  %5296 = vmatprep.subr.bf16.mxu0 0
  %5297 = vmatpush1.bf16.msra.mxu0 0
  %5298 = vmatprep.mubr.bf16.mxu0 0
  %5299 = vmatmul.mubr.bf16.gmra.mrb[0].mxu0 %v5166
  %v5300 = vpop.f32.mrb[0].mxu0
  %v5301 = vadd.f32 %v3390, %v5300
  %v5302 = vpop.f32.mrb[0].mxu0
  %v5303 = vadd.f32 %v3394, %v5302
  %v5304 = vpop.f32.mrb[0].mxu0
  %v5305 = vpop.f32.mrb[0].mxu0
  %5306 = vdwg.mxu0
  %5307 = vmatprep.subr.bf16.mxu0 0
  %5308 = vmatpush1.bf16.msra.mxu0 %v3484
  %5309 = vmatprep.subr.bf16.mxu0 0
  %5310 = vmatpush1.bf16.msra.mxu0 %v3487
  %5311 = vmatprep.subr.bf16.mxu0 0
  %5312 = vmatpush1.bf16.msra.mxu0 %v3490
  %5313 = vmatprep.subr.bf16.mxu0 0
  %5314 = vmatpush1.bf16.msra.mxu0 %v3493
  %5315 = vmatprep.subr.bf16.mxu0 0
  %5316 = vmatpush1.bf16.msra.mxu0 %v3496
  %5317 = vmatprep.subr.bf16.mxu0 0
  %5318 = vmatpush1.bf16.msra.mxu0 %v3499
  %5319 = vmatprep.subr.bf16.mxu0 0
  %5320 = vmatpush1.bf16.msra.mxu0 %v3502
  %5321 = vmatprep.subr.bf16.mxu0 0
  %5322 = vmatpush1.bf16.msra.mxu0 %v3505
  %5323 = vmatprep.subr.bf16.mxu0 0
  %5324 = vmatpush1.bf16.msra.mxu0 0
  %5325 = vmatprep.subr.bf16.mxu0 0
  %5326 = vmatpush1.bf16.msra.mxu0 0
  %5327 = vmatprep.subr.bf16.mxu0 0
  %5328 = vmatpush1.bf16.msra.mxu0 0
  %5329 = vmatprep.subr.bf16.mxu0 0
  %5330 = vmatpush1.bf16.msra.mxu0 0
  %5331 = vmatprep.subr.bf16.mxu0 0
  %5332 = vmatpush1.bf16.msra.mxu0 0
  %5333 = vmatprep.subr.bf16.mxu0 0
  %5334 = vmatpush1.bf16.msra.mxu0 0
  %5335 = vmatprep.subr.bf16.mxu0 0
  %5336 = vmatpush1.bf16.msra.mxu0 0
  %5337 = vmatprep.subr.bf16.mxu0 0
  %5338 = vmatpush1.bf16.msra.mxu0 0
  %5339 = vmatprep.mubr.bf16.mxu0 0
  %5340 = vmatmul.mubr.bf16.gmra.mrb[0].mxu0 %v5166
  %v5341 = vpop.f32.mrb[0].mxu0
  %v5342 = vadd.f32 %v3398, %v5341
  %v5343 = vpop.f32.mrb[0].mxu0
  %v5344 = vpop.f32.mrb[0].mxu0
  %v5345 = vpop.f32.mrb[0].mxu0
  %5346 = vdwg.mxu0
  %v5347 = vpack.c.bf16 %v4619, %v4619
  %5348 = vmatprep.subr.bf16.mxu0 %v4474
  %5349 = vmatpush1.bf16.msra.mxu0 %v4473
  %5350 = vmatprep.subr.bf16.mxu0 %v4477
  %5351 = vmatpush1.bf16.msra.mxu0 %v4476
  %5352 = vmatprep.subr.bf16.mxu0 %v4480
  %5353 = vmatpush1.bf16.msra.mxu0 %v4479
  %5354 = vmatprep.subr.bf16.mxu0 %v4483
  %5355 = vmatpush1.bf16.msra.mxu0 %v4482
  %5356 = vmatprep.subr.bf16.mxu0 %v4486
  %5357 = vmatpush1.bf16.msra.mxu0 %v4485
  %5358 = vmatprep.subr.bf16.mxu0 %v4489
  %5359 = vmatpush1.bf16.msra.mxu0 %v4488
  %5360 = vmatprep.subr.bf16.mxu0 %v4492
  %5361 = vmatpush1.bf16.msra.mxu0 %v4491
  %5362 = vmatprep.subr.bf16.mxu0 %v4495
  %5363 = vmatpush1.bf16.msra.mxu0 %v4494
  %5364 = vmatprep.subr.bf16.mxu0 0
  %5365 = vmatpush1.bf16.msra.mxu0 0
  %5366 = vmatprep.subr.bf16.mxu0 0
  %5367 = vmatpush1.bf16.msra.mxu0 0
  %5368 = vmatprep.subr.bf16.mxu0 0
  %5369 = vmatpush1.bf16.msra.mxu0 0
  %5370 = vmatprep.subr.bf16.mxu0 0
  %5371 = vmatpush1.bf16.msra.mxu0 0
  %5372 = vmatprep.subr.bf16.mxu0 0
  %5373 = vmatpush1.bf16.msra.mxu0 0
  %5374 = vmatprep.subr.bf16.mxu0 0
  %5375 = vmatpush1.bf16.msra.mxu0 0
  %5376 = vmatprep.subr.bf16.mxu0 0
  %5377 = vmatpush1.bf16.msra.mxu0 0
  %5378 = vmatprep.subr.bf16.mxu0 0
  %5379 = vmatpush1.bf16.msra.mxu0 0
  %5380 = vmatprep.mubr.bf16.mxu0 0
  %5381 = vmatmul.mubr.bf16.gmra.mrb[0].mxu0 %v5347
  %v5382 = vpop.f32.mrb[0].mxu0
  %v5383 = vadd.f32 0.0, %v5382
  %v5384 = vpop.f32.mrb[0].mxu0
  %v5385 = vadd.f32 0.0, %v5384
  %v5386 = vpop.f32.mrb[0].mxu0
  %v5387 = vpop.f32.mrb[0].mxu0
  %5388 = vdwg.mxu0
  %5389 = vmatprep.subr.bf16.mxu0 0
  %5390 = vmatpush1.bf16.msra.mxu0 %v4475
  %5391 = vmatprep.subr.bf16.mxu0 0
  %5392 = vmatpush1.bf16.msra.mxu0 %v4478
  %5393 = vmatprep.subr.bf16.mxu0 0
  %5394 = vmatpush1.bf16.msra.mxu0 %v4481
  %5395 = vmatprep.subr.bf16.mxu0 0
  %5396 = vmatpush1.bf16.msra.mxu0 %v4484
  %5397 = vmatprep.subr.bf16.mxu0 0
  %5398 = vmatpush1.bf16.msra.mxu0 %v4487
  %5399 = vmatprep.subr.bf16.mxu0 0
  %5400 = vmatpush1.bf16.msra.mxu0 %v4490
  %5401 = vmatprep.subr.bf16.mxu0 0
  %5402 = vmatpush1.bf16.msra.mxu0 %v4493
  %5403 = vmatprep.subr.bf16.mxu0 0
  %5404 = vmatpush1.bf16.msra.mxu0 %v4496
  %5405 = vmatprep.subr.bf16.mxu0 0
  %5406 = vmatpush1.bf16.msra.mxu0 0
  %5407 = vmatprep.subr.bf16.mxu0 0
  %5408 = vmatpush1.bf16.msra.mxu0 0
  %5409 = vmatprep.subr.bf16.mxu0 0
  %5410 = vmatpush1.bf16.msra.mxu0 0
  %5411 = vmatprep.subr.bf16.mxu0 0
  %5412 = vmatpush1.bf16.msra.mxu0 0
  %5413 = vmatprep.subr.bf16.mxu0 0
  %5414 = vmatpush1.bf16.msra.mxu0 0
  %5415 = vmatprep.subr.bf16.mxu0 0
  %5416 = vmatpush1.bf16.msra.mxu0 0
  %5417 = vmatprep.subr.bf16.mxu0 0
  %5418 = vmatpush1.bf16.msra.mxu0 0
  %5419 = vmatprep.subr.bf16.mxu0 0
  %5420 = vmatpush1.bf16.msra.mxu0 0
  %5421 = vmatprep.mubr.bf16.mxu0 0
  %5422 = vmatmul.mubr.bf16.gmra.mrb[0].mxu0 %v5347
  %v5423 = vpop.f32.mrb[0].mxu0
  %v5424 = vadd.f32 0.0, %v5423
  %v5425 = vpop.f32.mrb[0].mxu0
  %v5426 = vpop.f32.mrb[0].mxu0
  %v5427 = vpop.f32.mrb[0].mxu0
  %5428 = vdwg.mxu0
  %v5429 = vadd.f32 %v5301, %v5383
  %v5430 = vadd.f32 %v5303, %v5385
  %v5431 = vmul.f32 %v5429, 0.5
  %v5432 = vmul.f32 %v5430, 0.5
  %v5433 = vtanh.pop %v5431
  %v5434 = vtanh.pop %v5432
  %v5435 = vadd.f32 %v5433, 1.0
  %v5436 = vadd.f32 %v5434, 1.0
  %v5437 = vmul.f32 %v5435, 0.5
  %v5438 = vmul.f32 %v5436, 0.5
  %v5439 = vadd.f32 %v5424, %v3625
  %v5440 = vmul.f32 %v5437, %v5439
  %v5441 = vadd.f32 %v5342, %v5440
  %v5442 = vtanh.pop %v5441
  %v5443 = vsub.f32 1.0, %v5438
  %v5444 = vmul.f32 %v5443, %v5442
  %v5445 = vmul.f32 %v5438, %v4619
  %v5446 = vadd.f32 %v5444, %v5445
  %v5447 = vld [vmem:[#allocation2 + $0xa8] sm:$0xff]
  %v5448 = vld [vmem:[#allocation2 + $0xb0] sm:$0xff]
  %v5449 = vld [vmem:[#allocation2 + $0xb8] sm:$0xff]
  %v5450 = vpack.c.bf16 %v4722, %v4722
  %5451 = vmatprep.subr.bf16.mxu0 %v485
  %5452 = vmatpush1.bf16.msra.mxu0 %v484
  %5453 = vmatprep.subr.bf16.mxu0 %v488
  %5454 = vmatpush1.bf16.msra.mxu0 %v487
  %5455 = vmatprep.subr.bf16.mxu0 %v491
  %5456 = vmatpush1.bf16.msra.mxu0 %v490
  %5457 = vmatprep.subr.bf16.mxu0 %v494
  %5458 = vmatpush1.bf16.msra.mxu0 %v493
  %5459 = vmatprep.subr.bf16.mxu0 %v497
  %5460 = vmatpush1.bf16.msra.mxu0 %v496
  %5461 = vmatprep.subr.bf16.mxu0 %v500
  %5462 = vmatpush1.bf16.msra.mxu0 %v499
  %5463 = vmatprep.subr.bf16.mxu0 %v503
  %5464 = vmatpush1.bf16.msra.mxu0 %v502
  %5465 = vmatprep.subr.bf16.mxu0 %v506
  %5466 = vmatpush1.bf16.msra.mxu0 %v505
  %5467 = vmatprep.subr.bf16.mxu0 0
  %5468 = vmatpush1.bf16.msra.mxu0 0
  %5469 = vmatprep.subr.bf16.mxu0 0
  %5470 = vmatpush1.bf16.msra.mxu0 0
  %5471 = vmatprep.subr.bf16.mxu0 0
  %5472 = vmatpush1.bf16.msra.mxu0 0
  %5473 = vmatprep.subr.bf16.mxu0 0
  %5474 = vmatpush1.bf16.msra.mxu0 0
  %5475 = vmatprep.subr.bf16.mxu0 0
  %5476 = vmatpush1.bf16.msra.mxu0 0
  %5477 = vmatprep.subr.bf16.mxu0 0
  %5478 = vmatpush1.bf16.msra.mxu0 0
  %5479 = vmatprep.subr.bf16.mxu0 0
  %5480 = vmatpush1.bf16.msra.mxu0 0
  %5481 = vmatprep.subr.bf16.mxu0 0
  %5482 = vmatpush1.bf16.msra.mxu0 0
  %5483 = vmatprep.mubr.bf16.mxu0 0
  %5484 = vmatmul.mubr.bf16.gmra.mrb[0].mxu0 %v5450
  %v5485 = vpop.f32.mrb[0].mxu0
  %v5486 = vadd.f32 0.0, %v5485
  %v5487 = vpop.f32.mrb[0].mxu0
  %v5488 = vadd.f32 0.0, %v5487
  %v5489 = vpop.f32.mrb[0].mxu0
  %v5490 = vpop.f32.mrb[0].mxu0
  %5491 = vdwg.mxu0
  %5492 = vmatprep.subr.bf16.mxu0 0
  %5493 = vmatpush1.bf16.msra.mxu0 %v486
  %5494 = vmatprep.subr.bf16.mxu0 0
  %5495 = vmatpush1.bf16.msra.mxu0 %v489
  %5496 = vmatprep.subr.bf16.mxu0 0
  %5497 = vmatpush1.bf16.msra.mxu0 %v492
  %5498 = vmatprep.subr.bf16.mxu0 0
  %5499 = vmatpush1.bf16.msra.mxu0 %v495
  %5500 = vmatprep.subr.bf16.mxu0 0
  %5501 = vmatpush1.bf16.msra.mxu0 %v498
  %5502 = vmatprep.subr.bf16.mxu0 0
  %5503 = vmatpush1.bf16.msra.mxu0 %v501
  %5504 = vmatprep.subr.bf16.mxu0 0
  %5505 = vmatpush1.bf16.msra.mxu0 %v504
  %5506 = vmatprep.subr.bf16.mxu0 0
  %5507 = vmatpush1.bf16.msra.mxu0 %v507
  %5508 = vmatprep.subr.bf16.mxu0 0
  %5509 = vmatpush1.bf16.msra.mxu0 0
  %5510 = vmatprep.subr.bf16.mxu0 0
  %5511 = vmatpush1.bf16.msra.mxu0 0
  %5512 = vmatprep.subr.bf16.mxu0 0
  %5513 = vmatpush1.bf16.msra.mxu0 0
  %5514 = vmatprep.subr.bf16.mxu0 0
  %5515 = vmatpush1.bf16.msra.mxu0 0
  %5516 = vmatprep.subr.bf16.mxu0 0
  %5517 = vmatpush1.bf16.msra.mxu0 0
  %5518 = vmatprep.subr.bf16.mxu0 0
  %5519 = vmatpush1.bf16.msra.mxu0 0
  %5520 = vmatprep.subr.bf16.mxu0 0
  %5521 = vmatpush1.bf16.msra.mxu0 0
  %5522 = vmatprep.subr.bf16.mxu0 0
  %5523 = vmatpush1.bf16.msra.mxu0 0
  %5524 = vmatprep.mubr.bf16.mxu0 0
  %5525 = vmatmul.mubr.bf16.gmra.mrb[0].mxu0 %v5450
  %v5526 = vpop.f32.mrb[0].mxu0
  %v5527 = vadd.f32 0.0, %v5526
  %v5528 = vpop.f32.mrb[0].mxu0
  %v5529 = vpop.f32.mrb[0].mxu0
  %v5530 = vpop.f32.mrb[0].mxu0
  %5531 = vdwg.mxu0
  %v5532 = vadd.f32 %v5447, %v5486
  %v5533 = vadd.f32 %v5448, %v5488
  %v5534 = vmul.f32 %v5532, 0.5
  %v5535 = vmul.f32 %v5533, 0.5
  %v5536 = vtanh.pop %v5534
  %v5537 = vtanh.pop %v5535
  %v5538 = vadd.f32 %v5536, 1.0
  %v5539 = vadd.f32 %v5537, 1.0
  %v5540 = vmul.f32 %v5538, 0.5
  %v5541 = vmul.f32 %v5539, 0.5
  %v5542 = vadd.f32 %v5527, %v361
  %v5543 = vmul.f32 %v5540, %v5542
  %v5544 = vadd.f32 %v5449, %v5543
  %v5545 = vtanh.pop %v5544
  %v5546 = vsub.f32 1.0, %v5541
  %v5547 = vmul.f32 %v5546, %v5545
  %v5548 = vmul.f32 %v5541, %v4722
  %v5549 = vadd.f32 %v5547, %v5548
  %5550 = vmatprep.subr.bf16.mxu0 %v762
  %5551 = vmatpush1.bf16.msra.mxu0 %v761
  %5552 = vmatprep.subr.bf16.mxu0 %v765
  %5553 = vmatpush1.bf16.msra.mxu0 %v764
  %5554 = vmatprep.subr.bf16.mxu0 %v768
  %5555 = vmatpush1.bf16.msra.mxu0 %v767
  %5556 = vmatprep.subr.bf16.mxu0 %v771
  %5557 = vmatpush1.bf16.msra.mxu0 %v770
  %5558 = vmatprep.subr.bf16.mxu0 %v774
  %5559 = vmatpush1.bf16.msra.mxu0 %v773
  %5560 = vmatprep.subr.bf16.mxu0 %v777
  %5561 = vmatpush1.bf16.msra.mxu0 %v776
  %5562 = vmatprep.subr.bf16.mxu0 %v780
  %5563 = vmatpush1.bf16.msra.mxu0 %v779
  %5564 = vmatprep.subr.bf16.mxu0 %v783
  %5565 = vmatpush1.bf16.msra.mxu0 %v782
  %5566 = vmatprep.subr.bf16.mxu0 0
  %5567 = vmatpush1.bf16.msra.mxu0 0
  %5568 = vmatprep.subr.bf16.mxu0 0
  %5569 = vmatpush1.bf16.msra.mxu0 0
  %5570 = vmatprep.subr.bf16.mxu0 0
  %5571 = vmatpush1.bf16.msra.mxu0 0
  %5572 = vmatprep.subr.bf16.mxu0 0
  %5573 = vmatpush1.bf16.msra.mxu0 0
  %5574 = vmatprep.subr.bf16.mxu0 0
  %5575 = vmatpush1.bf16.msra.mxu0 0
  %5576 = vmatprep.subr.bf16.mxu0 0
  %5577 = vmatpush1.bf16.msra.mxu0 0
  %5578 = vmatprep.subr.bf16.mxu0 0
  %5579 = vmatpush1.bf16.msra.mxu0 0
  %5580 = vmatprep.subr.bf16.mxu0 0
  %5581 = vmatpush1.bf16.msra.mxu0 0
  %5582 = vmatprep.mubr.bf16.mxu0 0
  %5583 = vmatmul.mubr.bf16.gmra.mrb[0].mxu0 %v5450
  %v5584 = vpop.f32.mrb[0].mxu0
  %v5585 = vadd.f32 %v669, %v5584
  %v5586 = vpop.f32.mrb[0].mxu0
  %v5587 = vadd.f32 %v673, %v5586
  %v5588 = vpop.f32.mrb[0].mxu0
  %v5589 = vpop.f32.mrb[0].mxu0
  %5590 = vdwg.mxu0
  %5591 = vmatprep.subr.bf16.mxu0 0
  %5592 = vmatpush1.bf16.msra.mxu0 %v763
  %5593 = vmatprep.subr.bf16.mxu0 0
  %5594 = vmatpush1.bf16.msra.mxu0 %v766
  %5595 = vmatprep.subr.bf16.mxu0 0
  %5596 = vmatpush1.bf16.msra.mxu0 %v769
  %5597 = vmatprep.subr.bf16.mxu0 0
  %5598 = vmatpush1.bf16.msra.mxu0 %v772
  %5599 = vmatprep.subr.bf16.mxu0 0
  %5600 = vmatpush1.bf16.msra.mxu0 %v775
  %5601 = vmatprep.subr.bf16.mxu0 0
  %5602 = vmatpush1.bf16.msra.mxu0 %v778
  %5603 = vmatprep.subr.bf16.mxu0 0
  %5604 = vmatpush1.bf16.msra.mxu0 %v781
  %5605 = vmatprep.subr.bf16.mxu0 0
  %5606 = vmatpush1.bf16.msra.mxu0 %v784
  %5607 = vmatprep.subr.bf16.mxu0 0
  %5608 = vmatpush1.bf16.msra.mxu0 0
  %5609 = vmatprep.subr.bf16.mxu0 0
  %5610 = vmatpush1.bf16.msra.mxu0 0
  %5611 = vmatprep.subr.bf16.mxu0 0
  %5612 = vmatpush1.bf16.msra.mxu0 0
  %5613 = vmatprep.subr.bf16.mxu0 0
  %5614 = vmatpush1.bf16.msra.mxu0 0
  %5615 = vmatprep.subr.bf16.mxu0 0
  %5616 = vmatpush1.bf16.msra.mxu0 0
  %5617 = vmatprep.subr.bf16.mxu0 0
  %5618 = vmatpush1.bf16.msra.mxu0 0
  %5619 = vmatprep.subr.bf16.mxu0 0
  %5620 = vmatpush1.bf16.msra.mxu0 0
  %5621 = vmatprep.subr.bf16.mxu0 0
  %5622 = vmatpush1.bf16.msra.mxu0 0
  %5623 = vmatprep.mubr.bf16.mxu0 0
  %5624 = vmatmul.mubr.bf16.gmra.mrb[0].mxu0 %v5450
  %v5625 = vpop.f32.mrb[0].mxu0
  %v5626 = vadd.f32 %v677, %v5625
  %v5627 = vpop.f32.mrb[0].mxu0
  %v5628 = vpop.f32.mrb[0].mxu0
  %v5629 = vpop.f32.mrb[0].mxu0
  %5630 = vdwg.mxu0
  %v5631 = vpack.c.bf16 %v4903, %v4903
  %5632 = vmatprep.subr.bf16.mxu0 %v1210
  %5633 = vmatpush1.bf16.msra.mxu0 %v1209
  %5634 = vmatprep.subr.bf16.mxu0 %v1213
  %5635 = vmatpush1.bf16.msra.mxu0 %v1212
  %5636 = vmatprep.subr.bf16.mxu0 %v1216
  %5637 = vmatpush1.bf16.msra.mxu0 %v1215
  %5638 = vmatprep.subr.bf16.mxu0 %v1219
  %5639 = vmatpush1.bf16.msra.mxu0 %v1218
  %5640 = vmatprep.subr.bf16.mxu0 %v1222
  %5641 = vmatpush1.bf16.msra.mxu0 %v1221
  %5642 = vmatprep.subr.bf16.mxu0 %v1225
  %5643 = vmatpush1.bf16.msra.mxu0 %v1224
  %5644 = vmatprep.subr.bf16.mxu0 %v1228
  %5645 = vmatpush1.bf16.msra.mxu0 %v1227
  %5646 = vmatprep.subr.bf16.mxu0 %v1231
  %5647 = vmatpush1.bf16.msra.mxu0 %v1230
  %5648 = vmatprep.subr.bf16.mxu0 0
  %5649 = vmatpush1.bf16.msra.mxu0 0
  %5650 = vmatprep.subr.bf16.mxu0 0
  %5651 = vmatpush1.bf16.msra.mxu0 0
  %5652 = vmatprep.subr.bf16.mxu0 0
  %5653 = vmatpush1.bf16.msra.mxu0 0
  %5654 = vmatprep.subr.bf16.mxu0 0
  %5655 = vmatpush1.bf16.msra.mxu0 0
  %5656 = vmatprep.subr.bf16.mxu0 0
  %5657 = vmatpush1.bf16.msra.mxu0 0
  %5658 = vmatprep.subr.bf16.mxu0 0
  %5659 = vmatpush1.bf16.msra.mxu0 0
  %5660 = vmatprep.subr.bf16.mxu0 0
  %5661 = vmatpush1.bf16.msra.mxu0 0
  %5662 = vmatprep.subr.bf16.mxu0 0
  %5663 = vmatpush1.bf16.msra.mxu0 0
  %5664 = vmatprep.mubr.bf16.mxu0 0
  %5665 = vmatmul.mubr.bf16.gmra.mrb[0].mxu0 %v5631
  %v5666 = vpop.f32.mrb[0].mxu0
  %v5667 = vadd.f32 0.0, %v5666
  %v5668 = vpop.f32.mrb[0].mxu0
  %v5669 = vadd.f32 0.0, %v5668
  %v5670 = vpop.f32.mrb[0].mxu0
  %v5671 = vpop.f32.mrb[0].mxu0
  %5672 = vdwg.mxu0
  %5673 = vmatprep.subr.bf16.mxu0 0
  %5674 = vmatpush1.bf16.msra.mxu0 %v1211
  %5675 = vmatprep.subr.bf16.mxu0 0
  %5676 = vmatpush1.bf16.msra.mxu0 %v1214
  %5677 = vmatprep.subr.bf16.mxu0 0
  %5678 = vmatpush1.bf16.msra.mxu0 %v1217
  %5679 = vmatprep.subr.bf16.mxu0 0
  %5680 = vmatpush1.bf16.msra.mxu0 %v1220
  %5681 = vmatprep.subr.bf16.mxu0 0
  %5682 = vmatpush1.bf16.msra.mxu0 %v1223
  %5683 = vmatprep.subr.bf16.mxu0 0
  %5684 = vmatpush1.bf16.msra.mxu0 %v1226
  %5685 = vmatprep.subr.bf16.mxu0 0
  %5686 = vmatpush1.bf16.msra.mxu0 %v1229
  %5687 = vmatprep.subr.bf16.mxu0 0
  %5688 = vmatpush1.bf16.msra.mxu0 %v1232
  %5689 = vmatprep.subr.bf16.mxu0 0
  %5690 = vmatpush1.bf16.msra.mxu0 0
  %5691 = vmatprep.subr.bf16.mxu0 0
  %5692 = vmatpush1.bf16.msra.mxu0 0
  %5693 = vmatprep.subr.bf16.mxu0 0
  %5694 = vmatpush1.bf16.msra.mxu0 0
  %5695 = vmatprep.subr.bf16.mxu0 0
  %5696 = vmatpush1.bf16.msra.mxu0 0
  %5697 = vmatprep.subr.bf16.mxu0 0
  %5698 = vmatpush1.bf16.msra.mxu0 0
  %5699 = vmatprep.subr.bf16.mxu0 0
  %5700 = vmatpush1.bf16.msra.mxu0 0
  %5701 = vmatprep.subr.bf16.mxu0 0
  %5702 = vmatpush1.bf16.msra.mxu0 0
  %5703 = vmatprep.subr.bf16.mxu0 0
  %5704 = vmatpush1.bf16.msra.mxu0 0
  %5705 = vmatprep.mubr.bf16.mxu0 0
  %5706 = vmatmul.mubr.bf16.gmra.mrb[0].mxu0 %v5631
  %v5707 = vpop.f32.mrb[0].mxu0
  %v5708 = vadd.f32 0.0, %v5707
  %v5709 = vpop.f32.mrb[0].mxu0
  %v5710 = vpop.f32.mrb[0].mxu0
  %v5711 = vpop.f32.mrb[0].mxu0
  %5712 = vdwg.mxu0
  %v5713 = vadd.f32 %v5585, %v5667
  %v5714 = vadd.f32 %v5587, %v5669
  %v5715 = vmul.f32 %v5713, 0.5
  %v5716 = vmul.f32 %v5714, 0.5
  %v5717 = vtanh.pop %v5715
  %v5718 = vtanh.pop %v5716
  %v5719 = vadd.f32 %v5717, 1.0
  %v5720 = vadd.f32 %v5718, 1.0
  %v5721 = vmul.f32 %v5719, 0.5
  %v5722 = vmul.f32 %v5720, 0.5
  %v5723 = vadd.f32 %v5708, %v904
  %v5724 = vmul.f32 %v5721, %v5723
  %v5725 = vadd.f32 %v5626, %v5724
  %v5726 = vtanh.pop %v5725
  %v5727 = vsub.f32 1.0, %v5722
  %v5728 = vmul.f32 %v5727, %v5726
  %v5729 = vmul.f32 %v5722, %v4903
  %v5730 = vadd.f32 %v5728, %v5729
  %5731 = vmatprep.subr.bf16.mxu0 %v1488
  %5732 = vmatpush1.bf16.msra.mxu0 %v1487
  %5733 = vmatprep.subr.bf16.mxu0 %v1491
  %5734 = vmatpush1.bf16.msra.mxu0 %v1490
  %5735 = vmatprep.subr.bf16.mxu0 %v1494
  %5736 = vmatpush1.bf16.msra.mxu0 %v1493
  %5737 = vmatprep.subr.bf16.mxu0 %v1497
  %5738 = vmatpush1.bf16.msra.mxu0 %v1496
  %5739 = vmatprep.subr.bf16.mxu0 %v1500
  %5740 = vmatpush1.bf16.msra.mxu0 %v1499
  %5741 = vmatprep.subr.bf16.mxu0 %v1503
  %5742 = vmatpush1.bf16.msra.mxu0 %v1502
  %5743 = vmatprep.subr.bf16.mxu0 %v1506
  %5744 = vmatpush1.bf16.msra.mxu0 %v1505
  %5745 = vmatprep.subr.bf16.mxu0 %v1509
  %5746 = vmatpush1.bf16.msra.mxu0 %v1508
  %5747 = vmatprep.subr.bf16.mxu0 0
  %5748 = vmatpush1.bf16.msra.mxu0 0
  %5749 = vmatprep.subr.bf16.mxu0 0
  %5750 = vmatpush1.bf16.msra.mxu0 0
  %5751 = vmatprep.subr.bf16.mxu0 0
  %5752 = vmatpush1.bf16.msra.mxu0 0
  %5753 = vmatprep.subr.bf16.mxu0 0
  %5754 = vmatpush1.bf16.msra.mxu0 0
  %5755 = vmatprep.subr.bf16.mxu0 0
  %5756 = vmatpush1.bf16.msra.mxu0 0
  %5757 = vmatprep.subr.bf16.mxu0 0
  %5758 = vmatpush1.bf16.msra.mxu0 0
  %5759 = vmatprep.subr.bf16.mxu0 0
  %5760 = vmatpush1.bf16.msra.mxu0 0
  %5761 = vmatprep.subr.bf16.mxu0 0
  %5762 = vmatpush1.bf16.msra.mxu0 0
  %5763 = vmatprep.mubr.bf16.mxu0 0
  %5764 = vmatmul.mubr.bf16.gmra.mrb[0].mxu0 %v5631
  %v5765 = vpop.f32.mrb[0].mxu0
  %v5766 = vadd.f32 %v1395, %v5765
  %v5767 = vpop.f32.mrb[0].mxu0
  %v5768 = vadd.f32 %v1399, %v5767
  %v5769 = vpop.f32.mrb[0].mxu0
  %v5770 = vpop.f32.mrb[0].mxu0
  %5771 = vdwg.mxu0
  %5772 = vmatprep.subr.bf16.mxu0 0
  %5773 = vmatpush1.bf16.msra.mxu0 %v1489
  %5774 = vmatprep.subr.bf16.mxu0 0
  %5775 = vmatpush1.bf16.msra.mxu0 %v1492
  %5776 = vmatprep.subr.bf16.mxu0 0
  %5777 = vmatpush1.bf16.msra.mxu0 %v1495
  %5778 = vmatprep.subr.bf16.mxu0 0
  %5779 = vmatpush1.bf16.msra.mxu0 %v1498
  %5780 = vmatprep.subr.bf16.mxu0 0
  %5781 = vmatpush1.bf16.msra.mxu0 %v1501
  %5782 = vmatprep.subr.bf16.mxu0 0
  %5783 = vmatpush1.bf16.msra.mxu0 %v1504
  %5784 = vmatprep.subr.bf16.mxu0 0
  %5785 = vmatpush1.bf16.msra.mxu0 %v1507
  %5786 = vmatprep.subr.bf16.mxu0 0
  %5787 = vmatpush1.bf16.msra.mxu0 %v1510
  %5788 = vmatprep.subr.bf16.mxu0 0
  %5789 = vmatpush1.bf16.msra.mxu0 0
  %5790 = vmatprep.subr.bf16.mxu0 0
  %5791 = vmatpush1.bf16.msra.mxu0 0
  %5792 = vmatprep.subr.bf16.mxu0 0
  %5793 = vmatpush1.bf16.msra.mxu0 0
  %5794 = vmatprep.subr.bf16.mxu0 0
  %5795 = vmatpush1.bf16.msra.mxu0 0
  %5796 = vmatprep.subr.bf16.mxu0 0
  %5797 = vmatpush1.bf16.msra.mxu0 0
  %5798 = vmatprep.subr.bf16.mxu0 0
  %5799 = vmatpush1.bf16.msra.mxu0 0
  %5800 = vmatprep.subr.bf16.mxu0 0
  %5801 = vmatpush1.bf16.msra.mxu0 0
  %5802 = vmatprep.subr.bf16.mxu0 0
  %5803 = vmatpush1.bf16.msra.mxu0 0
  %5804 = vmatprep.mubr.bf16.mxu0 0
  %5805 = vmatmul.mubr.bf16.gmra.mrb[0].mxu0 %v5631
  %v5806 = vpop.f32.mrb[0].mxu0
  %v5807 = vadd.f32 %v1403, %v5806
  %v5808 = vpop.f32.mrb[0].mxu0
  %v5809 = vpop.f32.mrb[0].mxu0
  %v5810 = vpop.f32.mrb[0].mxu0
  %5811 = vdwg.mxu0
  %v5812 = vpack.c.bf16 %v5084, %v5084
  %5813 = vmatprep.subr.bf16.mxu0 %v2117
  %5814 = vmatpush1.bf16.msra.mxu0 %v2116
  %5815 = vmatprep.subr.bf16.mxu0 %v2120
  %5816 = vmatpush1.bf16.msra.mxu0 %v2119
  %5817 = vmatprep.subr.bf16.mxu0 %v2123
  %5818 = vmatpush1.bf16.msra.mxu0 %v2122
  %5819 = vmatprep.subr.bf16.mxu0 %v2126
  %5820 = vmatpush1.bf16.msra.mxu0 %v2125
  %5821 = vmatprep.subr.bf16.mxu0 %v2129
  %5822 = vmatpush1.bf16.msra.mxu0 %v2128
  %5823 = vmatprep.subr.bf16.mxu0 %v2132
  %5824 = vmatpush1.bf16.msra.mxu0 %v2131
  %5825 = vmatprep.subr.bf16.mxu0 %v2135
  %5826 = vmatpush1.bf16.msra.mxu0 %v2134
  %5827 = vmatprep.subr.bf16.mxu0 %v2138
  %5828 = vmatpush1.bf16.msra.mxu0 %v2137
  %5829 = vmatprep.subr.bf16.mxu0 0
  %5830 = vmatpush1.bf16.msra.mxu0 0
  %5831 = vmatprep.subr.bf16.mxu0 0
  %5832 = vmatpush1.bf16.msra.mxu0 0
  %5833 = vmatprep.subr.bf16.mxu0 0
  %5834 = vmatpush1.bf16.msra.mxu0 0
  %5835 = vmatprep.subr.bf16.mxu0 0
  %5836 = vmatpush1.bf16.msra.mxu0 0
  %5837 = vmatprep.subr.bf16.mxu0 0
  %5838 = vmatpush1.bf16.msra.mxu0 0
  %5839 = vmatprep.subr.bf16.mxu0 0
  %5840 = vmatpush1.bf16.msra.mxu0 0
  %5841 = vmatprep.subr.bf16.mxu0 0
  %5842 = vmatpush1.bf16.msra.mxu0 0
  %5843 = vmatprep.subr.bf16.mxu0 0
  %5844 = vmatpush1.bf16.msra.mxu0 0
  %5845 = vmatprep.mubr.bf16.mxu0 0
  %5846 = vmatmul.mubr.bf16.gmra.mrb[0].mxu0 %v5812
  %v5847 = vpop.f32.mrb[0].mxu0
  %v5848 = vadd.f32 0.0, %v5847
  %v5849 = vpop.f32.mrb[0].mxu0
  %v5850 = vadd.f32 0.0, %v5849
  %v5851 = vpop.f32.mrb[0].mxu0
  %v5852 = vpop.f32.mrb[0].mxu0
  %5853 = vdwg.mxu0
  %5854 = vmatprep.subr.bf16.mxu0 0
  %5855 = vmatpush1.bf16.msra.mxu0 %v2118
  %5856 = vmatprep.subr.bf16.mxu0 0
  %5857 = vmatpush1.bf16.msra.mxu0 %v2121
  %5858 = vmatprep.subr.bf16.mxu0 0
  %5859 = vmatpush1.bf16.msra.mxu0 %v2124
  %5860 = vmatprep.subr.bf16.mxu0 0
  %5861 = vmatpush1.bf16.msra.mxu0 %v2127
  %5862 = vmatprep.subr.bf16.mxu0 0
  %5863 = vmatpush1.bf16.msra.mxu0 %v2130
  %5864 = vmatprep.subr.bf16.mxu0 0
  %5865 = vmatpush1.bf16.msra.mxu0 %v2133
  %5866 = vmatprep.subr.bf16.mxu0 0
  %5867 = vmatpush1.bf16.msra.mxu0 %v2136
  %5868 = vmatprep.subr.bf16.mxu0 0
  %5869 = vmatpush1.bf16.msra.mxu0 %v2139
  %5870 = vmatprep.subr.bf16.mxu0 0
  %5871 = vmatpush1.bf16.msra.mxu0 0
  %5872 = vmatprep.subr.bf16.mxu0 0
  %5873 = vmatpush1.bf16.msra.mxu0 0
  %5874 = vmatprep.subr.bf16.mxu0 0
  %5875 = vmatpush1.bf16.msra.mxu0 0
  %5876 = vmatprep.subr.bf16.mxu0 0
  %5877 = vmatpush1.bf16.msra.mxu0 0
  %5878 = vmatprep.subr.bf16.mxu0 0
  %5879 = vmatpush1.bf16.msra.mxu0 0
  %5880 = vmatprep.subr.bf16.mxu0 0
  %5881 = vmatpush1.bf16.msra.mxu0 0
  %5882 = vmatprep.subr.bf16.mxu0 0
  %5883 = vmatpush1.bf16.msra.mxu0 0
  %5884 = vmatprep.subr.bf16.mxu0 0
  %5885 = vmatpush1.bf16.msra.mxu0 0
  %5886 = vmatprep.mubr.bf16.mxu0 0
  %5887 = vmatmul.mubr.bf16.gmra.mrb[0].mxu0 %v5812
  %v5888 = vpop.f32.mrb[0].mxu0
  %v5889 = vadd.f32 0.0, %v5888
  %v5890 = vpop.f32.mrb[0].mxu0
  %v5891 = vpop.f32.mrb[0].mxu0
  %v5892 = vpop.f32.mrb[0].mxu0
  %5893 = vdwg.mxu0
  %v5894 = vadd.f32 %v5766, %v5848
  %v5895 = vadd.f32 %v5768, %v5850
  %v5896 = vmul.f32 %v5894, 0.5
  %v5897 = vmul.f32 %v5895, 0.5
  %v5898 = vtanh.pop %v5896
  %v5899 = vtanh.pop %v5897
  %v5900 = vadd.f32 %v5898, 1.0
  %v5901 = vadd.f32 %v5899, 1.0
  %v5902 = vmul.f32 %v5900, 0.5
  %v5903 = vmul.f32 %v5901, 0.5
  %v5904 = vadd.f32 %v5889, %v1630
  %v5905 = vmul.f32 %v5902, %v5904
  %v5906 = vadd.f32 %v5807, %v5905
  %v5907 = vtanh.pop %v5906
  %v5908 = vsub.f32 1.0, %v5903
  %v5909 = vmul.f32 %v5908, %v5907
  %v5910 = vmul.f32 %v5903, %v5084
  %v5911 = vadd.f32 %v5909, %v5910
  %5912 = vmatprep.subr.bf16.mxu0 %v2395
  %5913 = vmatpush1.bf16.msra.mxu0 %v2394
  %5914 = vmatprep.subr.bf16.mxu0 %v2398
  %5915 = vmatpush1.bf16.msra.mxu0 %v2397
  %5916 = vmatprep.subr.bf16.mxu0 %v2401
  %5917 = vmatpush1.bf16.msra.mxu0 %v2400
  %5918 = vmatprep.subr.bf16.mxu0 %v2404
  %5919 = vmatpush1.bf16.msra.mxu0 %v2403
  %5920 = vmatprep.subr.bf16.mxu0 %v2407
  %5921 = vmatpush1.bf16.msra.mxu0 %v2406
  %5922 = vmatprep.subr.bf16.mxu0 %v2410
  %5923 = vmatpush1.bf16.msra.mxu0 %v2409
  %5924 = vmatprep.subr.bf16.mxu0 %v2413
  %5925 = vmatpush1.bf16.msra.mxu0 %v2412
  %5926 = vmatprep.subr.bf16.mxu0 %v2416
  %5927 = vmatpush1.bf16.msra.mxu0 %v2415
  %5928 = vmatprep.subr.bf16.mxu0 0
  %5929 = vmatpush1.bf16.msra.mxu0 0
  %5930 = vmatprep.subr.bf16.mxu0 0
  %5931 = vmatpush1.bf16.msra.mxu0 0
  %5932 = vmatprep.subr.bf16.mxu0 0
  %5933 = vmatpush1.bf16.msra.mxu0 0
  %5934 = vmatprep.subr.bf16.mxu0 0
  %5935 = vmatpush1.bf16.msra.mxu0 0
  %5936 = vmatprep.subr.bf16.mxu0 0
  %5937 = vmatpush1.bf16.msra.mxu0 0
  %5938 = vmatprep.subr.bf16.mxu0 0
  %5939 = vmatpush1.bf16.msra.mxu0 0
  %5940 = vmatprep.subr.bf16.mxu0 0
  %5941 = vmatpush1.bf16.msra.mxu0 0
  %5942 = vmatprep.subr.bf16.mxu0 0
  %5943 = vmatpush1.bf16.msra.mxu0 0
  %5944 = vmatprep.mubr.bf16.mxu0 0
  %5945 = vmatmul.mubr.bf16.gmra.mrb[0].mxu0 %v5812
  %v5946 = vpop.f32.mrb[0].mxu0
  %v5947 = vadd.f32 %v2302, %v5946
  %v5948 = vpop.f32.mrb[0].mxu0
  %v5949 = vadd.f32 %v2306, %v5948
  %v5950 = vpop.f32.mrb[0].mxu0
  %v5951 = vpop.f32.mrb[0].mxu0
  %5952 = vdwg.mxu0
  %5953 = vmatprep.subr.bf16.mxu0 0
  %5954 = vmatpush1.bf16.msra.mxu0 %v2396
  %5955 = vmatprep.subr.bf16.mxu0 0
  %5956 = vmatpush1.bf16.msra.mxu0 %v2399
  %5957 = vmatprep.subr.bf16.mxu0 0
  %5958 = vmatpush1.bf16.msra.mxu0 %v2402
  %5959 = vmatprep.subr.bf16.mxu0 0
  %5960 = vmatpush1.bf16.msra.mxu0 %v2405
  %5961 = vmatprep.subr.bf16.mxu0 0
  %5962 = vmatpush1.bf16.msra.mxu0 %v2408
  %5963 = vmatprep.subr.bf16.mxu0 0
  %5964 = vmatpush1.bf16.msra.mxu0 %v2411
  %5965 = vmatprep.subr.bf16.mxu0 0
  %5966 = vmatpush1.bf16.msra.mxu0 %v2414
  %5967 = vmatprep.subr.bf16.mxu0 0
  %5968 = vmatpush1.bf16.msra.mxu0 %v2417
  %5969 = vmatprep.subr.bf16.mxu0 0
  %5970 = vmatpush1.bf16.msra.mxu0 0
  %5971 = vmatprep.subr.bf16.mxu0 0
  %5972 = vmatpush1.bf16.msra.mxu0 0
  %5973 = vmatprep.subr.bf16.mxu0 0
  %5974 = vmatpush1.bf16.msra.mxu0 0
  %5975 = vmatprep.subr.bf16.mxu0 0
  %5976 = vmatpush1.bf16.msra.mxu0 0
  %5977 = vmatprep.subr.bf16.mxu0 0
  %5978 = vmatpush1.bf16.msra.mxu0 0
  %5979 = vmatprep.subr.bf16.mxu0 0
  %5980 = vmatpush1.bf16.msra.mxu0 0
  %5981 = vmatprep.subr.bf16.mxu0 0
  %5982 = vmatpush1.bf16.msra.mxu0 0
  %5983 = vmatprep.subr.bf16.mxu0 0
  %5984 = vmatpush1.bf16.msra.mxu0 0
  %5985 = vmatprep.mubr.bf16.mxu0 0
  %5986 = vmatmul.mubr.bf16.gmra.mrb[0].mxu0 %v5812
  %v5987 = vpop.f32.mrb[0].mxu0
  %v5988 = vadd.f32 %v2310, %v5987
  %v5989 = vpop.f32.mrb[0].mxu0
  %v5990 = vpop.f32.mrb[0].mxu0
  %v5991 = vpop.f32.mrb[0].mxu0
  %5992 = vdwg.mxu0
  %v5993 = vpack.c.bf16 %v5265, %v5265
  %5994 = vmatprep.subr.bf16.mxu0 %v3205
  %5995 = vmatpush1.bf16.msra.mxu0 %v3204
  %5996 = vmatprep.subr.bf16.mxu0 %v3208
  %5997 = vmatpush1.bf16.msra.mxu0 %v3207
  %5998 = vmatprep.subr.bf16.mxu0 %v3211
  %5999 = vmatpush1.bf16.msra.mxu0 %v3210
  %6000 = vmatprep.subr.bf16.mxu0 %v3214
  %6001 = vmatpush1.bf16.msra.mxu0 %v3213
  %6002 = vmatprep.subr.bf16.mxu0 %v3217
  %6003 = vmatpush1.bf16.msra.mxu0 %v3216
  %6004 = vmatprep.subr.bf16.mxu0 %v3220
  %6005 = vmatpush1.bf16.msra.mxu0 %v3219
  %6006 = vmatprep.subr.bf16.mxu0 %v3223
  %6007 = vmatpush1.bf16.msra.mxu0 %v3222
  %6008 = vmatprep.subr.bf16.mxu0 %v3226
  %6009 = vmatpush1.bf16.msra.mxu0 %v3225
  %6010 = vmatprep.subr.bf16.mxu0 0
  %6011 = vmatpush1.bf16.msra.mxu0 0
  %6012 = vmatprep.subr.bf16.mxu0 0
  %6013 = vmatpush1.bf16.msra.mxu0 0
  %6014 = vmatprep.subr.bf16.mxu0 0
  %6015 = vmatpush1.bf16.msra.mxu0 0
  %6016 = vmatprep.subr.bf16.mxu0 0
  %6017 = vmatpush1.bf16.msra.mxu0 0
  %6018 = vmatprep.subr.bf16.mxu0 0
  %6019 = vmatpush1.bf16.msra.mxu0 0
  %6020 = vmatprep.subr.bf16.mxu0 0
  %6021 = vmatpush1.bf16.msra.mxu0 0
  %6022 = vmatprep.subr.bf16.mxu0 0
  %6023 = vmatpush1.bf16.msra.mxu0 0
  %6024 = vmatprep.subr.bf16.mxu0 0
  %6025 = vmatpush1.bf16.msra.mxu0 0
  %6026 = vmatprep.mubr.bf16.mxu0 0
  %6027 = vmatmul.mubr.bf16.gmra.mrb[0].mxu0 %v5993
  %v6028 = vpop.f32.mrb[0].mxu0
  %v6029 = vadd.f32 0.0, %v6028
  %v6030 = vpop.f32.mrb[0].mxu0
  %v6031 = vadd.f32 0.0, %v6030
  %v6032 = vpop.f32.mrb[0].mxu0
  %v6033 = vpop.f32.mrb[0].mxu0
  %6034 = vdwg.mxu0
  %6035 = vmatprep.subr.bf16.mxu0 0
  %6036 = vmatpush1.bf16.msra.mxu0 %v3206
  %6037 = vmatprep.subr.bf16.mxu0 0
  %6038 = vmatpush1.bf16.msra.mxu0 %v3209
  %6039 = vmatprep.subr.bf16.mxu0 0
  %6040 = vmatpush1.bf16.msra.mxu0 %v3212
  %6041 = vmatprep.subr.bf16.mxu0 0
  %6042 = vmatpush1.bf16.msra.mxu0 %v3215
  %6043 = vmatprep.subr.bf16.mxu0 0
  %6044 = vmatpush1.bf16.msra.mxu0 %v3218
  %6045 = vmatprep.subr.bf16.mxu0 0
  %6046 = vmatpush1.bf16.msra.mxu0 %v3221
  %6047 = vmatprep.subr.bf16.mxu0 0
  %6048 = vmatpush1.bf16.msra.mxu0 %v3224
  %6049 = vmatprep.subr.bf16.mxu0 0
  %6050 = vmatpush1.bf16.msra.mxu0 %v3227
  %6051 = vmatprep.subr.bf16.mxu0 0
  %6052 = vmatpush1.bf16.msra.mxu0 0
  %6053 = vmatprep.subr.bf16.mxu0 0
  %6054 = vmatpush1.bf16.msra.mxu0 0
  %6055 = vmatprep.subr.bf16.mxu0 0
  %6056 = vmatpush1.bf16.msra.mxu0 0
  %6057 = vmatprep.subr.bf16.mxu0 0
  %6058 = vmatpush1.bf16.msra.mxu0 0
  %6059 = vmatprep.subr.bf16.mxu0 0
  %6060 = vmatpush1.bf16.msra.mxu0 0
  %6061 = vmatprep.subr.bf16.mxu0 0
  %6062 = vmatpush1.bf16.msra.mxu0 0
  %6063 = vmatprep.subr.bf16.mxu0 0
  %6064 = vmatpush1.bf16.msra.mxu0 0
  %6065 = vmatprep.subr.bf16.mxu0 0
  %6066 = vmatpush1.bf16.msra.mxu0 0
  %6067 = vmatprep.mubr.bf16.mxu0 0
  %6068 = vmatmul.mubr.bf16.gmra.mrb[0].mxu0 %v5993
  %v6069 = vpop.f32.mrb[0].mxu0
  %v6070 = vadd.f32 0.0, %v6069
  %v6071 = vpop.f32.mrb[0].mxu0
  %v6072 = vpop.f32.mrb[0].mxu0
  %v6073 = vpop.f32.mrb[0].mxu0
  %6074 = vdwg.mxu0
  %v6075 = vadd.f32 %v5947, %v6029
  %v6076 = vadd.f32 %v5949, %v6031
  %v6077 = vmul.f32 %v6075, 0.5
  %v6078 = vmul.f32 %v6076, 0.5
  %v6079 = vtanh.pop %v6077
  %v6080 = vtanh.pop %v6078
  %v6081 = vadd.f32 %v6079, 1.0
  %v6082 = vadd.f32 %v6080, 1.0
  %v6083 = vmul.f32 %v6081, 0.5
  %v6084 = vmul.f32 %v6082, 0.5
  %v6085 = vadd.f32 %v6070, %v2537
  %v6086 = vmul.f32 %v6083, %v6085
  %v6087 = vadd.f32 %v5988, %v6086
  %v6088 = vtanh.pop %v6087
  %v6089 = vsub.f32 1.0, %v6084
  %v6090 = vmul.f32 %v6089, %v6088
  %v6091 = vmul.f32 %v6084, %v5265
  %v6092 = vadd.f32 %v6090, %v6091
  %6093 = vmatprep.subr.bf16.mxu0 %v3483
  %6094 = vmatpush1.bf16.msra.mxu0 %v3482
  %6095 = vmatprep.subr.bf16.mxu0 %v3486
  %6096 = vmatpush1.bf16.msra.mxu0 %v3485
  %6097 = vmatprep.subr.bf16.mxu0 %v3489
  %6098 = vmatpush1.bf16.msra.mxu0 %v3488
  %6099 = vmatprep.subr.bf16.mxu0 %v3492
  %6100 = vmatpush1.bf16.msra.mxu0 %v3491
  %6101 = vmatprep.subr.bf16.mxu0 %v3495
  %6102 = vmatpush1.bf16.msra.mxu0 %v3494
  %6103 = vmatprep.subr.bf16.mxu0 %v3498
  %6104 = vmatpush1.bf16.msra.mxu0 %v3497
  %6105 = vmatprep.subr.bf16.mxu0 %v3501
  %6106 = vmatpush1.bf16.msra.mxu0 %v3500
  %6107 = vmatprep.subr.bf16.mxu0 %v3504
  %6108 = vmatpush1.bf16.msra.mxu0 %v3503
  %6109 = vmatprep.subr.bf16.mxu0 0
  %6110 = vmatpush1.bf16.msra.mxu0 0
  %6111 = vmatprep.subr.bf16.mxu0 0
  %6112 = vmatpush1.bf16.msra.mxu0 0
  %6113 = vmatprep.subr.bf16.mxu0 0
  %6114 = vmatpush1.bf16.msra.mxu0 0
  %6115 = vmatprep.subr.bf16.mxu0 0
  %6116 = vmatpush1.bf16.msra.mxu0 0
  %6117 = vmatprep.subr.bf16.mxu0 0
  %6118 = vmatpush1.bf16.msra.mxu0 0
  %6119 = vmatprep.subr.bf16.mxu0 0
  %6120 = vmatpush1.bf16.msra.mxu0 0
  %6121 = vmatprep.subr.bf16.mxu0 0
  %6122 = vmatpush1.bf16.msra.mxu0 0
  %6123 = vmatprep.subr.bf16.mxu0 0
  %6124 = vmatpush1.bf16.msra.mxu0 0
  %6125 = vmatprep.mubr.bf16.mxu0 0
  %6126 = vmatmul.mubr.bf16.gmra.mrb[0].mxu0 %v5993
  %v6127 = vpop.f32.mrb[0].mxu0
  %v6128 = vadd.f32 %v3390, %v6127
  %v6129 = vpop.f32.mrb[0].mxu0
  %v6130 = vadd.f32 %v3394, %v6129
  %v6131 = vpop.f32.mrb[0].mxu0
  %v6132 = vpop.f32.mrb[0].mxu0
  %6133 = vdwg.mxu0
  %6134 = vmatprep.subr.bf16.mxu0 0
  %6135 = vmatpush1.bf16.msra.mxu0 %v3484
  %6136 = vmatprep.subr.bf16.mxu0 0
  %6137 = vmatpush1.bf16.msra.mxu0 %v3487
  %6138 = vmatprep.subr.bf16.mxu0 0
  %6139 = vmatpush1.bf16.msra.mxu0 %v3490
  %6140 = vmatprep.subr.bf16.mxu0 0
  %6141 = vmatpush1.bf16.msra.mxu0 %v3493
  %6142 = vmatprep.subr.bf16.mxu0 0
  %6143 = vmatpush1.bf16.msra.mxu0 %v3496
  %6144 = vmatprep.subr.bf16.mxu0 0
  %6145 = vmatpush1.bf16.msra.mxu0 %v3499
  %6146 = vmatprep.subr.bf16.mxu0 0
  %6147 = vmatpush1.bf16.msra.mxu0 %v3502
  %6148 = vmatprep.subr.bf16.mxu0 0
  %6149 = vmatpush1.bf16.msra.mxu0 %v3505
  %6150 = vmatprep.subr.bf16.mxu0 0
  %6151 = vmatpush1.bf16.msra.mxu0 0
  %6152 = vmatprep.subr.bf16.mxu0 0
  %6153 = vmatpush1.bf16.msra.mxu0 0
  %6154 = vmatprep.subr.bf16.mxu0 0
  %6155 = vmatpush1.bf16.msra.mxu0 0
  %6156 = vmatprep.subr.bf16.mxu0 0
  %6157 = vmatpush1.bf16.msra.mxu0 0
  %6158 = vmatprep.subr.bf16.mxu0 0
  %6159 = vmatpush1.bf16.msra.mxu0 0
  %6160 = vmatprep.subr.bf16.mxu0 0
  %6161 = vmatpush1.bf16.msra.mxu0 0
  %6162 = vmatprep.subr.bf16.mxu0 0
  %6163 = vmatpush1.bf16.msra.mxu0 0
  %6164 = vmatprep.subr.bf16.mxu0 0
  %6165 = vmatpush1.bf16.msra.mxu0 0
  %6166 = vmatprep.mubr.bf16.mxu0 0
  %6167 = vmatmul.mubr.bf16.gmra.mrb[0].mxu0 %v5993
  %v6168 = vpop.f32.mrb[0].mxu0
  %v6169 = vadd.f32 %v3398, %v6168
  %v6170 = vpop.f32.mrb[0].mxu0
  %v6171 = vpop.f32.mrb[0].mxu0
  %v6172 = vpop.f32.mrb[0].mxu0
  %6173 = vdwg.mxu0
  %v6174 = vpack.c.bf16 %v5446, %v5446
  %6175 = vmatprep.subr.bf16.mxu0 %v4474
  %6176 = vmatpush1.bf16.msra.mxu0 %v4473
  %6177 = vmatprep.subr.bf16.mxu0 %v4477
  %6178 = vmatpush1.bf16.msra.mxu0 %v4476
  %6179 = vmatprep.subr.bf16.mxu0 %v4480
  %6180 = vmatpush1.bf16.msra.mxu0 %v4479
  %6181 = vmatprep.subr.bf16.mxu0 %v4483
  %6182 = vmatpush1.bf16.msra.mxu0 %v4482
  %6183 = vmatprep.subr.bf16.mxu0 %v4486
  %6184 = vmatpush1.bf16.msra.mxu0 %v4485
  %6185 = vmatprep.subr.bf16.mxu0 %v4489
  %6186 = vmatpush1.bf16.msra.mxu0 %v4488
  %6187 = vmatprep.subr.bf16.mxu0 %v4492
  %6188 = vmatpush1.bf16.msra.mxu0 %v4491
  %6189 = vmatprep.subr.bf16.mxu0 %v4495
  %6190 = vmatpush1.bf16.msra.mxu0 %v4494
  %6191 = vmatprep.subr.bf16.mxu0 0
  %6192 = vmatpush1.bf16.msra.mxu0 0
  %6193 = vmatprep.subr.bf16.mxu0 0
  %6194 = vmatpush1.bf16.msra.mxu0 0
  %6195 = vmatprep.subr.bf16.mxu0 0
  %6196 = vmatpush1.bf16.msra.mxu0 0
  %6197 = vmatprep.subr.bf16.mxu0 0
  %6198 = vmatpush1.bf16.msra.mxu0 0
  %6199 = vmatprep.subr.bf16.mxu0 0
  %6200 = vmatpush1.bf16.msra.mxu0 0
  %6201 = vmatprep.subr.bf16.mxu0 0
  %6202 = vmatpush1.bf16.msra.mxu0 0
  %6203 = vmatprep.subr.bf16.mxu0 0
  %6204 = vmatpush1.bf16.msra.mxu0 0
  %6205 = vmatprep.subr.bf16.mxu0 0
  %6206 = vmatpush1.bf16.msra.mxu0 0
  %6207 = vmatprep.mubr.bf16.mxu0 0
  %6208 = vmatmul.mubr.bf16.gmra.mrb[0].mxu0 %v6174
  %v6209 = vpop.f32.mrb[0].mxu0
  %v6210 = vadd.f32 0.0, %v6209
  %v6211 = vpop.f32.mrb[0].mxu0
  %v6212 = vadd.f32 0.0, %v6211
  %v6213 = vpop.f32.mrb[0].mxu0
  %v6214 = vpop.f32.mrb[0].mxu0
  %6215 = vdwg.mxu0
  %6216 = vmatprep.subr.bf16.mxu0 0
  %6217 = vmatpush1.bf16.msra.mxu0 %v4475
  %6218 = vmatprep.subr.bf16.mxu0 0
  %6219 = vmatpush1.bf16.msra.mxu0 %v4478
  %6220 = vmatprep.subr.bf16.mxu0 0
  %6221 = vmatpush1.bf16.msra.mxu0 %v4481
  %6222 = vmatprep.subr.bf16.mxu0 0
  %6223 = vmatpush1.bf16.msra.mxu0 %v4484
  %6224 = vmatprep.subr.bf16.mxu0 0
  %6225 = vmatpush1.bf16.msra.mxu0 %v4487
  %6226 = vmatprep.subr.bf16.mxu0 0
  %6227 = vmatpush1.bf16.msra.mxu0 %v4490
  %6228 = vmatprep.subr.bf16.mxu0 0
  %6229 = vmatpush1.bf16.msra.mxu0 %v4493
  %6230 = vmatprep.subr.bf16.mxu0 0
  %6231 = vmatpush1.bf16.msra.mxu0 %v4496
  %6232 = vmatprep.subr.bf16.mxu0 0
  %6233 = vmatpush1.bf16.msra.mxu0 0
  %6234 = vmatprep.subr.bf16.mxu0 0
  %6235 = vmatpush1.bf16.msra.mxu0 0
  %6236 = vmatprep.subr.bf16.mxu0 0
  %6237 = vmatpush1.bf16.msra.mxu0 0
  %6238 = vmatprep.subr.bf16.mxu0 0
  %6239 = vmatpush1.bf16.msra.mxu0 0
  %6240 = vmatprep.subr.bf16.mxu0 0
  %6241 = vmatpush1.bf16.msra.mxu0 0
  %6242 = vmatprep.subr.bf16.mxu0 0
  %6243 = vmatpush1.bf16.msra.mxu0 0
  %6244 = vmatprep.subr.bf16.mxu0 0
  %6245 = vmatpush1.bf16.msra.mxu0 0
  %6246 = vmatprep.subr.bf16.mxu0 0
  %6247 = vmatpush1.bf16.msra.mxu0 0
  %6248 = vmatprep.mubr.bf16.mxu0 0
  %6249 = vmatmul.mubr.bf16.gmra.mrb[0].mxu0 %v6174
  %v6250 = vpop.f32.mrb[0].mxu0
  %v6251 = vadd.f32 0.0, %v6250
  %v6252 = vpop.f32.mrb[0].mxu0
  %v6253 = vpop.f32.mrb[0].mxu0
  %v6254 = vpop.f32.mrb[0].mxu0
  %6255 = vdwg.mxu0
  %v6256 = vadd.f32 %v6128, %v6210
  %v6257 = vadd.f32 %v6130, %v6212
  %v6258 = vmul.f32 %v6256, 0.5
  %v6259 = vmul.f32 %v6257, 0.5
  %v6260 = vtanh.pop %v6258
  %v6261 = vtanh.pop %v6259
  %v6262 = vadd.f32 %v6260, 1.0
  %v6263 = vadd.f32 %v6261, 1.0
  %v6264 = vmul.f32 %v6262, 0.5
  %v6265 = vmul.f32 %v6263, 0.5
  %v6266 = vadd.f32 %v6251, %v3625
  %v6267 = vmul.f32 %v6264, %v6266
  %v6268 = vadd.f32 %v6169, %v6267
  %v6269 = vtanh.pop %v6268
  %v6270 = vsub.f32 1.0, %v6265
  %v6271 = vmul.f32 %v6270, %v6269
  %v6272 = vmul.f32 %v6265, %v5446
  %v6273 = vadd.f32 %v6271, %v6272
  %v6274 = vpack.c.bf16 %v5549, %v5549
  %6275 = vmatprep.subr.bf16.mxu0 %v762
  %6276 = vmatpush1.bf16.msra.mxu0 %v761
  %6277 = vmatprep.subr.bf16.mxu0 %v765
  %6278 = vmatpush1.bf16.msra.mxu0 %v764
  %6279 = vmatprep.subr.bf16.mxu0 %v768
  %6280 = vmatpush1.bf16.msra.mxu0 %v767
  %6281 = vmatprep.subr.bf16.mxu0 %v771
  %6282 = vmatpush1.bf16.msra.mxu0 %v770
  %6283 = vmatprep.subr.bf16.mxu0 %v774
  %6284 = vmatpush1.bf16.msra.mxu0 %v773
  %6285 = vmatprep.subr.bf16.mxu0 %v777
  %6286 = vmatpush1.bf16.msra.mxu0 %v776
  %6287 = vmatprep.subr.bf16.mxu0 %v780
  %6288 = vmatpush1.bf16.msra.mxu0 %v779
  %6289 = vmatprep.subr.bf16.mxu0 %v783
  %6290 = vmatpush1.bf16.msra.mxu0 %v782
  %6291 = vmatprep.subr.bf16.mxu0 0
  %6292 = vmatpush1.bf16.msra.mxu0 0
  %6293 = vmatprep.subr.bf16.mxu0 0
  %6294 = vmatpush1.bf16.msra.mxu0 0
  %6295 = vmatprep.subr.bf16.mxu0 0
  %6296 = vmatpush1.bf16.msra.mxu0 0
  %6297 = vmatprep.subr.bf16.mxu0 0
  %6298 = vmatpush1.bf16.msra.mxu0 0
  %6299 = vmatprep.subr.bf16.mxu0 0
  %6300 = vmatpush1.bf16.msra.mxu0 0
  %6301 = vmatprep.subr.bf16.mxu0 0
  %6302 = vmatpush1.bf16.msra.mxu0 0
  %6303 = vmatprep.subr.bf16.mxu0 0
  %6304 = vmatpush1.bf16.msra.mxu0 0
  %6305 = vmatprep.subr.bf16.mxu0 0
  %6306 = vmatpush1.bf16.msra.mxu0 0
  %6307 = vmatprep.mubr.bf16.mxu0 0
  %6308 = vmatmul.mubr.bf16.gmra.mrb[0].mxu0 %v6274
  %v6309 = vpop.f32.mrb[0].mxu0
  %v6310 = vadd.f32 %v669, %v6309
  %v6311 = vpop.f32.mrb[0].mxu0
  %v6312 = vadd.f32 %v673, %v6311
  %v6313 = vpop.f32.mrb[0].mxu0
  %v6314 = vpop.f32.mrb[0].mxu0
  %6315 = vdwg.mxu0
  %6316 = vmatprep.subr.bf16.mxu0 0
  %6317 = vmatpush1.bf16.msra.mxu0 %v763
  %6318 = vmatprep.subr.bf16.mxu0 0
  %6319 = vmatpush1.bf16.msra.mxu0 %v766
  %6320 = vmatprep.subr.bf16.mxu0 0
  %6321 = vmatpush1.bf16.msra.mxu0 %v769
  %6322 = vmatprep.subr.bf16.mxu0 0
  %6323 = vmatpush1.bf16.msra.mxu0 %v772
  %6324 = vmatprep.subr.bf16.mxu0 0
  %6325 = vmatpush1.bf16.msra.mxu0 %v775
  %6326 = vmatprep.subr.bf16.mxu0 0
  %6327 = vmatpush1.bf16.msra.mxu0 %v778
  %6328 = vmatprep.subr.bf16.mxu0 0
  %6329 = vmatpush1.bf16.msra.mxu0 %v781
  %6330 = vmatprep.subr.bf16.mxu0 0
  %6331 = vmatpush1.bf16.msra.mxu0 %v784
  %6332 = vmatprep.subr.bf16.mxu0 0
  %6333 = vmatpush1.bf16.msra.mxu0 0
  %6334 = vmatprep.subr.bf16.mxu0 0
  %6335 = vmatpush1.bf16.msra.mxu0 0
  %6336 = vmatprep.subr.bf16.mxu0 0
  %6337 = vmatpush1.bf16.msra.mxu0 0
  %6338 = vmatprep.subr.bf16.mxu0 0
  %6339 = vmatpush1.bf16.msra.mxu0 0
  %6340 = vmatprep.subr.bf16.mxu0 0
  %6341 = vmatpush1.bf16.msra.mxu0 0
  %6342 = vmatprep.subr.bf16.mxu0 0
  %6343 = vmatpush1.bf16.msra.mxu0 0
  %6344 = vmatprep.subr.bf16.mxu0 0
  %6345 = vmatpush1.bf16.msra.mxu0 0
  %6346 = vmatprep.subr.bf16.mxu0 0
  %6347 = vmatpush1.bf16.msra.mxu0 0
  %6348 = vmatprep.mubr.bf16.mxu0 0
  %6349 = vmatmul.mubr.bf16.gmra.mrb[0].mxu0 %v6274
  %v6350 = vpop.f32.mrb[0].mxu0
  %v6351 = vadd.f32 %v677, %v6350
  %v6352 = vpop.f32.mrb[0].mxu0
  %v6353 = vpop.f32.mrb[0].mxu0
  %v6354 = vpop.f32.mrb[0].mxu0
  %6355 = vdwg.mxu0
  %v6356 = vpack.c.bf16 %v5730, %v5730
  %6357 = vmatprep.subr.bf16.mxu0 %v1210
  %6358 = vmatpush1.bf16.msra.mxu0 %v1209
  %6359 = vmatprep.subr.bf16.mxu0 %v1213
  %6360 = vmatpush1.bf16.msra.mxu0 %v1212
  %6361 = vmatprep.subr.bf16.mxu0 %v1216
  %6362 = vmatpush1.bf16.msra.mxu0 %v1215
  %6363 = vmatprep.subr.bf16.mxu0 %v1219
  %6364 = vmatpush1.bf16.msra.mxu0 %v1218
  %6365 = vmatprep.subr.bf16.mxu0 %v1222
  %6366 = vmatpush1.bf16.msra.mxu0 %v1221
  %6367 = vmatprep.subr.bf16.mxu0 %v1225
  %6368 = vmatpush1.bf16.msra.mxu0 %v1224
  %6369 = vmatprep.subr.bf16.mxu0 %v1228
  %6370 = vmatpush1.bf16.msra.mxu0 %v1227
  %6371 = vmatprep.subr.bf16.mxu0 %v1231
  %6372 = vmatpush1.bf16.msra.mxu0 %v1230
  %6373 = vmatprep.subr.bf16.mxu0 0
  %6374 = vmatpush1.bf16.msra.mxu0 0
  %6375 = vmatprep.subr.bf16.mxu0 0
  %6376 = vmatpush1.bf16.msra.mxu0 0
  %6377 = vmatprep.subr.bf16.mxu0 0
  %6378 = vmatpush1.bf16.msra.mxu0 0
  %6379 = vmatprep.subr.bf16.mxu0 0
  %6380 = vmatpush1.bf16.msra.mxu0 0
  %6381 = vmatprep.subr.bf16.mxu0 0
  %6382 = vmatpush1.bf16.msra.mxu0 0
  %6383 = vmatprep.subr.bf16.mxu0 0
  %6384 = vmatpush1.bf16.msra.mxu0 0
  %6385 = vmatprep.subr.bf16.mxu0 0
  %6386 = vmatpush1.bf16.msra.mxu0 0
  %6387 = vmatprep.subr.bf16.mxu0 0
  %6388 = vmatpush1.bf16.msra.mxu0 0
  %6389 = vmatprep.mubr.bf16.mxu0 0
  %6390 = vmatmul.mubr.bf16.gmra.mrb[0].mxu0 %v6356
  %v6391 = vpop.f32.mrb[0].mxu0
  %v6392 = vadd.f32 0.0, %v6391
  %v6393 = vpop.f32.mrb[0].mxu0
  %v6394 = vadd.f32 0.0, %v6393
  %v6395 = vpop.f32.mrb[0].mxu0
  %v6396 = vpop.f32.mrb[0].mxu0
  %6397 = vdwg.mxu0
  %6398 = vmatprep.subr.bf16.mxu0 0
  %6399 = vmatpush1.bf16.msra.mxu0 %v1211
  %6400 = vmatprep.subr.bf16.mxu0 0
  %6401 = vmatpush1.bf16.msra.mxu0 %v1214
  %6402 = vmatprep.subr.bf16.mxu0 0
  %6403 = vmatpush1.bf16.msra.mxu0 %v1217
  %6404 = vmatprep.subr.bf16.mxu0 0
  %6405 = vmatpush1.bf16.msra.mxu0 %v1220
  %6406 = vmatprep.subr.bf16.mxu0 0
  %6407 = vmatpush1.bf16.msra.mxu0 %v1223
  %6408 = vmatprep.subr.bf16.mxu0 0
  %6409 = vmatpush1.bf16.msra.mxu0 %v1226
  %6410 = vmatprep.subr.bf16.mxu0 0
  %6411 = vmatpush1.bf16.msra.mxu0 %v1229
  %6412 = vmatprep.subr.bf16.mxu0 0
  %6413 = vmatpush1.bf16.msra.mxu0 %v1232
  %6414 = vmatprep.subr.bf16.mxu0 0
  %6415 = vmatpush1.bf16.msra.mxu0 0
  %6416 = vmatprep.subr.bf16.mxu0 0
  %6417 = vmatpush1.bf16.msra.mxu0 0
  %6418 = vmatprep.subr.bf16.mxu0 0
  %6419 = vmatpush1.bf16.msra.mxu0 0
  %6420 = vmatprep.subr.bf16.mxu0 0
  %6421 = vmatpush1.bf16.msra.mxu0 0
  %6422 = vmatprep.subr.bf16.mxu0 0
  %6423 = vmatpush1.bf16.msra.mxu0 0
  %6424 = vmatprep.subr.bf16.mxu0 0
  %6425 = vmatpush1.bf16.msra.mxu0 0
  %6426 = vmatprep.subr.bf16.mxu0 0
  %6427 = vmatpush1.bf16.msra.mxu0 0
  %6428 = vmatprep.subr.bf16.mxu0 0
  %6429 = vmatpush1.bf16.msra.mxu0 0
  %6430 = vmatprep.mubr.bf16.mxu0 0
  %6431 = vmatmul.mubr.bf16.gmra.mrb[0].mxu0 %v6356
  %v6432 = vpop.f32.mrb[0].mxu0
  %v6433 = vadd.f32 0.0, %v6432
  %v6434 = vpop.f32.mrb[0].mxu0
  %v6435 = vpop.f32.mrb[0].mxu0
  %v6436 = vpop.f32.mrb[0].mxu0
  %6437 = vdwg.mxu0
  %v6438 = vadd.f32 %v6310, %v6392
  %v6439 = vadd.f32 %v6312, %v6394
  %v6440 = vmul.f32 %v6438, 0.5
  %v6441 = vmul.f32 %v6439, 0.5
  %v6442 = vtanh.pop %v6440
  %v6443 = vtanh.pop %v6441
  %v6444 = vadd.f32 %v6442, 1.0
  %v6445 = vadd.f32 %v6443, 1.0
  %v6446 = vmul.f32 %v6444, 0.5
  %v6447 = vmul.f32 %v6445, 0.5
  %v6448 = vadd.f32 %v6433, %v904
  %v6449 = vmul.f32 %v6446, %v6448
  %v6450 = vadd.f32 %v6351, %v6449
  %v6451 = vtanh.pop %v6450
  %v6452 = vsub.f32 1.0, %v6447
  %v6453 = vmul.f32 %v6452, %v6451
  %v6454 = vmul.f32 %v6447, %v5730
  %v6455 = vadd.f32 %v6453, %v6454
  %6456 = vmatprep.subr.bf16.mxu0 %v1488
  %6457 = vmatpush1.bf16.msra.mxu0 %v1487
  %6458 = vmatprep.subr.bf16.mxu0 %v1491
  %6459 = vmatpush1.bf16.msra.mxu0 %v1490
  %6460 = vmatprep.subr.bf16.mxu0 %v1494
  %6461 = vmatpush1.bf16.msra.mxu0 %v1493
  %6462 = vmatprep.subr.bf16.mxu0 %v1497
  %6463 = vmatpush1.bf16.msra.mxu0 %v1496
  %6464 = vmatprep.subr.bf16.mxu0 %v1500
  %6465 = vmatpush1.bf16.msra.mxu0 %v1499
  %6466 = vmatprep.subr.bf16.mxu0 %v1503
  %6467 = vmatpush1.bf16.msra.mxu0 %v1502
  %6468 = vmatprep.subr.bf16.mxu0 %v1506
  %6469 = vmatpush1.bf16.msra.mxu0 %v1505
  %6470 = vmatprep.subr.bf16.mxu0 %v1509
  %6471 = vmatpush1.bf16.msra.mxu0 %v1508
  %6472 = vmatprep.subr.bf16.mxu0 0
  %6473 = vmatpush1.bf16.msra.mxu0 0
  %6474 = vmatprep.subr.bf16.mxu0 0
  %6475 = vmatpush1.bf16.msra.mxu0 0
  %6476 = vmatprep.subr.bf16.mxu0 0
  %6477 = vmatpush1.bf16.msra.mxu0 0
  %6478 = vmatprep.subr.bf16.mxu0 0
  %6479 = vmatpush1.bf16.msra.mxu0 0
  %6480 = vmatprep.subr.bf16.mxu0 0
  %6481 = vmatpush1.bf16.msra.mxu0 0
  %6482 = vmatprep.subr.bf16.mxu0 0
  %6483 = vmatpush1.bf16.msra.mxu0 0
  %6484 = vmatprep.subr.bf16.mxu0 0
  %6485 = vmatpush1.bf16.msra.mxu0 0
  %6486 = vmatprep.subr.bf16.mxu0 0
  %6487 = vmatpush1.bf16.msra.mxu0 0
  %6488 = vmatprep.mubr.bf16.mxu0 0
  %6489 = vmatmul.mubr.bf16.gmra.mrb[0].mxu0 %v6356
  %v6490 = vpop.f32.mrb[0].mxu0
  %v6491 = vadd.f32 %v1395, %v6490
  %v6492 = vpop.f32.mrb[0].mxu0
  %v6493 = vadd.f32 %v1399, %v6492
  %v6494 = vpop.f32.mrb[0].mxu0
  %v6495 = vpop.f32.mrb[0].mxu0
  %6496 = vdwg.mxu0
  %6497 = vmatprep.subr.bf16.mxu0 0
  %6498 = vmatpush1.bf16.msra.mxu0 %v1489
  %6499 = vmatprep.subr.bf16.mxu0 0
  %6500 = vmatpush1.bf16.msra.mxu0 %v1492
  %6501 = vmatprep.subr.bf16.mxu0 0
  %6502 = vmatpush1.bf16.msra.mxu0 %v1495
  %6503 = vmatprep.subr.bf16.mxu0 0
  %6504 = vmatpush1.bf16.msra.mxu0 %v1498
  %6505 = vmatprep.subr.bf16.mxu0 0
  %6506 = vmatpush1.bf16.msra.mxu0 %v1501
  %6507 = vmatprep.subr.bf16.mxu0 0
  %6508 = vmatpush1.bf16.msra.mxu0 %v1504
  %6509 = vmatprep.subr.bf16.mxu0 0
  %6510 = vmatpush1.bf16.msra.mxu0 %v1507
  %6511 = vmatprep.subr.bf16.mxu0 0
  %6512 = vmatpush1.bf16.msra.mxu0 %v1510
  %6513 = vmatprep.subr.bf16.mxu0 0
  %6514 = vmatpush1.bf16.msra.mxu0 0
  %6515 = vmatprep.subr.bf16.mxu0 0
  %6516 = vmatpush1.bf16.msra.mxu0 0
  %6517 = vmatprep.subr.bf16.mxu0 0
  %6518 = vmatpush1.bf16.msra.mxu0 0
  %6519 = vmatprep.subr.bf16.mxu0 0
  %6520 = vmatpush1.bf16.msra.mxu0 0
  %6521 = vmatprep.subr.bf16.mxu0 0
  %6522 = vmatpush1.bf16.msra.mxu0 0
  %6523 = vmatprep.subr.bf16.mxu0 0
  %6524 = vmatpush1.bf16.msra.mxu0 0
  %6525 = vmatprep.subr.bf16.mxu0 0
  %6526 = vmatpush1.bf16.msra.mxu0 0
  %6527 = vmatprep.subr.bf16.mxu0 0
  %6528 = vmatpush1.bf16.msra.mxu0 0
  %6529 = vmatprep.mubr.bf16.mxu0 0
  %6530 = vmatmul.mubr.bf16.gmra.mrb[0].mxu0 %v6356
  %v6531 = vpop.f32.mrb[0].mxu0
  %v6532 = vadd.f32 %v1403, %v6531
  %v6533 = vpop.f32.mrb[0].mxu0
  %v6534 = vpop.f32.mrb[0].mxu0
  %v6535 = vpop.f32.mrb[0].mxu0
  %6536 = vdwg.mxu0
  %v6537 = vpack.c.bf16 %v5911, %v5911
  %6538 = vmatprep.subr.bf16.mxu0 %v2117
  %6539 = vmatpush1.bf16.msra.mxu0 %v2116
  %6540 = vmatprep.subr.bf16.mxu0 %v2120
  %6541 = vmatpush1.bf16.msra.mxu0 %v2119
  %6542 = vmatprep.subr.bf16.mxu0 %v2123
  %6543 = vmatpush1.bf16.msra.mxu0 %v2122
  %6544 = vmatprep.subr.bf16.mxu0 %v2126
  %6545 = vmatpush1.bf16.msra.mxu0 %v2125
  %6546 = vmatprep.subr.bf16.mxu0 %v2129
  %6547 = vmatpush1.bf16.msra.mxu0 %v2128
  %6548 = vmatprep.subr.bf16.mxu0 %v2132
  %6549 = vmatpush1.bf16.msra.mxu0 %v2131
  %6550 = vmatprep.subr.bf16.mxu0 %v2135
  %6551 = vmatpush1.bf16.msra.mxu0 %v2134
  %6552 = vmatprep.subr.bf16.mxu0 %v2138
  %6553 = vmatpush1.bf16.msra.mxu0 %v2137
  %6554 = vmatprep.subr.bf16.mxu0 0
  %6555 = vmatpush1.bf16.msra.mxu0 0
  %6556 = vmatprep.subr.bf16.mxu0 0
  %6557 = vmatpush1.bf16.msra.mxu0 0
  %6558 = vmatprep.subr.bf16.mxu0 0
  %6559 = vmatpush1.bf16.msra.mxu0 0
  %6560 = vmatprep.subr.bf16.mxu0 0
  %6561 = vmatpush1.bf16.msra.mxu0 0
  %6562 = vmatprep.subr.bf16.mxu0 0
  %6563 = vmatpush1.bf16.msra.mxu0 0
  %6564 = vmatprep.subr.bf16.mxu0 0
  %6565 = vmatpush1.bf16.msra.mxu0 0
  %6566 = vmatprep.subr.bf16.mxu0 0
  %6567 = vmatpush1.bf16.msra.mxu0 0
  %6568 = vmatprep.subr.bf16.mxu0 0
  %6569 = vmatpush1.bf16.msra.mxu0 0
  %6570 = vmatprep.mubr.bf16.mxu0 0
  %6571 = vmatmul.mubr.bf16.gmra.mrb[0].mxu0 %v6537
  %v6572 = vpop.f32.mrb[0].mxu0
  %v6573 = vadd.f32 0.0, %v6572
  %v6574 = vpop.f32.mrb[0].mxu0
  %v6575 = vadd.f32 0.0, %v6574
  %v6576 = vpop.f32.mrb[0].mxu0
  %v6577 = vpop.f32.mrb[0].mxu0
  %6578 = vdwg.mxu0
  %6579 = vmatprep.subr.bf16.mxu0 0
  %6580 = vmatpush1.bf16.msra.mxu0 %v2118
  %6581 = vmatprep.subr.bf16.mxu0 0
  %6582 = vmatpush1.bf16.msra.mxu0 %v2121
  %6583 = vmatprep.subr.bf16.mxu0 0
  %6584 = vmatpush1.bf16.msra.mxu0 %v2124
  %6585 = vmatprep.subr.bf16.mxu0 0
  %6586 = vmatpush1.bf16.msra.mxu0 %v2127
  %6587 = vmatprep.subr.bf16.mxu0 0
  %6588 = vmatpush1.bf16.msra.mxu0 %v2130
  %6589 = vmatprep.subr.bf16.mxu0 0
  %6590 = vmatpush1.bf16.msra.mxu0 %v2133
  %6591 = vmatprep.subr.bf16.mxu0 0
  %6592 = vmatpush1.bf16.msra.mxu0 %v2136
  %6593 = vmatprep.subr.bf16.mxu0 0
  %6594 = vmatpush1.bf16.msra.mxu0 %v2139
  %6595 = vmatprep.subr.bf16.mxu0 0
  %6596 = vmatpush1.bf16.msra.mxu0 0
  %6597 = vmatprep.subr.bf16.mxu0 0
  %6598 = vmatpush1.bf16.msra.mxu0 0
  %6599 = vmatprep.subr.bf16.mxu0 0
  %6600 = vmatpush1.bf16.msra.mxu0 0
  %6601 = vmatprep.subr.bf16.mxu0 0
  %6602 = vmatpush1.bf16.msra.mxu0 0
  %6603 = vmatprep.subr.bf16.mxu0 0
  %6604 = vmatpush1.bf16.msra.mxu0 0
  %6605 = vmatprep.subr.bf16.mxu0 0
  %6606 = vmatpush1.bf16.msra.mxu0 0
  %6607 = vmatprep.subr.bf16.mxu0 0
  %6608 = vmatpush1.bf16.msra.mxu0 0
  %6609 = vmatprep.subr.bf16.mxu0 0
  %6610 = vmatpush1.bf16.msra.mxu0 0
  %6611 = vmatprep.mubr.bf16.mxu0 0
  %6612 = vmatmul.mubr.bf16.gmra.mrb[0].mxu0 %v6537
  %v6613 = vpop.f32.mrb[0].mxu0
  %v6614 = vadd.f32 0.0, %v6613
  %v6615 = vpop.f32.mrb[0].mxu0
  %v6616 = vpop.f32.mrb[0].mxu0
  %v6617 = vpop.f32.mrb[0].mxu0
  %6618 = vdwg.mxu0
  %v6619 = vadd.f32 %v6491, %v6573
  %v6620 = vadd.f32 %v6493, %v6575
  %v6621 = vmul.f32 %v6619, 0.5
  %v6622 = vmul.f32 %v6620, 0.5
  %v6623 = vtanh.pop %v6621
  %v6624 = vtanh.pop %v6622
  %v6625 = vadd.f32 %v6623, 1.0
  %v6626 = vadd.f32 %v6624, 1.0
  %v6627 = vmul.f32 %v6625, 0.5
  %v6628 = vmul.f32 %v6626, 0.5
  %v6629 = vadd.f32 %v6614, %v1630
  %v6630 = vmul.f32 %v6627, %v6629
  %v6631 = vadd.f32 %v6532, %v6630
  %v6632 = vtanh.pop %v6631
  %v6633 = vsub.f32 1.0, %v6628
  %v6634 = vmul.f32 %v6633, %v6632
  %v6635 = vmul.f32 %v6628, %v5911
  %v6636 = vadd.f32 %v6634, %v6635
  %6637 = vmatprep.subr.bf16.mxu0 %v2395
  %6638 = vmatpush1.bf16.msra.mxu0 %v2394
  %6639 = vmatprep.subr.bf16.mxu0 %v2398
  %6640 = vmatpush1.bf16.msra.mxu0 %v2397
  %6641 = vmatprep.subr.bf16.mxu0 %v2401
  %6642 = vmatpush1.bf16.msra.mxu0 %v2400
  %6643 = vmatprep.subr.bf16.mxu0 %v2404
  %6644 = vmatpush1.bf16.msra.mxu0 %v2403
  %6645 = vmatprep.subr.bf16.mxu0 %v2407
  %6646 = vmatpush1.bf16.msra.mxu0 %v2406
  %6647 = vmatprep.subr.bf16.mxu0 %v2410
  %6648 = vmatpush1.bf16.msra.mxu0 %v2409
  %6649 = vmatprep.subr.bf16.mxu0 %v2413
  %6650 = vmatpush1.bf16.msra.mxu0 %v2412
  %6651 = vmatprep.subr.bf16.mxu0 %v2416
  %6652 = vmatpush1.bf16.msra.mxu0 %v2415
  %6653 = vmatprep.subr.bf16.mxu0 0
  %6654 = vmatpush1.bf16.msra.mxu0 0
  %6655 = vmatprep.subr.bf16.mxu0 0
  %6656 = vmatpush1.bf16.msra.mxu0 0
  %6657 = vmatprep.subr.bf16.mxu0 0
  %6658 = vmatpush1.bf16.msra.mxu0 0
  %6659 = vmatprep.subr.bf16.mxu0 0
  %6660 = vmatpush1.bf16.msra.mxu0 0
  %6661 = vmatprep.subr.bf16.mxu0 0
  %6662 = vmatpush1.bf16.msra.mxu0 0
  %6663 = vmatprep.subr.bf16.mxu0 0
  %6664 = vmatpush1.bf16.msra.mxu0 0
  %6665 = vmatprep.subr.bf16.mxu0 0
  %6666 = vmatpush1.bf16.msra.mxu0 0
  %6667 = vmatprep.subr.bf16.mxu0 0
  %6668 = vmatpush1.bf16.msra.mxu0 0
  %6669 = vmatprep.mubr.bf16.mxu0 0
  %6670 = vmatmul.mubr.bf16.gmra.mrb[0].mxu0 %v6537
  %v6671 = vpop.f32.mrb[0].mxu0
  %v6672 = vadd.f32 %v2302, %v6671
  %v6673 = vpop.f32.mrb[0].mxu0
  %v6674 = vadd.f32 %v2306, %v6673
  %v6675 = vpop.f32.mrb[0].mxu0
  %v6676 = vpop.f32.mrb[0].mxu0
  %6677 = vdwg.mxu0
  %6678 = vmatprep.subr.bf16.mxu0 0
  %6679 = vmatpush1.bf16.msra.mxu0 %v2396
  %6680 = vmatprep.subr.bf16.mxu0 0
  %6681 = vmatpush1.bf16.msra.mxu0 %v2399
  %6682 = vmatprep.subr.bf16.mxu0 0
  %6683 = vmatpush1.bf16.msra.mxu0 %v2402
  %6684 = vmatprep.subr.bf16.mxu0 0
  %6685 = vmatpush1.bf16.msra.mxu0 %v2405
  %6686 = vmatprep.subr.bf16.mxu0 0
  %6687 = vmatpush1.bf16.msra.mxu0 %v2408
  %6688 = vmatprep.subr.bf16.mxu0 0
  %6689 = vmatpush1.bf16.msra.mxu0 %v2411
  %6690 = vmatprep.subr.bf16.mxu0 0
  %6691 = vmatpush1.bf16.msra.mxu0 %v2414
  %6692 = vmatprep.subr.bf16.mxu0 0
  %6693 = vmatpush1.bf16.msra.mxu0 %v2417
  %6694 = vmatprep.subr.bf16.mxu0 0
  %6695 = vmatpush1.bf16.msra.mxu0 0
  %6696 = vmatprep.subr.bf16.mxu0 0
  %6697 = vmatpush1.bf16.msra.mxu0 0
  %6698 = vmatprep.subr.bf16.mxu0 0
  %6699 = vmatpush1.bf16.msra.mxu0 0
  %6700 = vmatprep.subr.bf16.mxu0 0
  %6701 = vmatpush1.bf16.msra.mxu0 0
  %6702 = vmatprep.subr.bf16.mxu0 0
  %6703 = vmatpush1.bf16.msra.mxu0 0
  %6704 = vmatprep.subr.bf16.mxu0 0
  %6705 = vmatpush1.bf16.msra.mxu0 0
  %6706 = vmatprep.subr.bf16.mxu0 0
  %6707 = vmatpush1.bf16.msra.mxu0 0
  %6708 = vmatprep.subr.bf16.mxu0 0
  %6709 = vmatpush1.bf16.msra.mxu0 0
  %6710 = vmatprep.mubr.bf16.mxu0 0
  %6711 = vmatmul.mubr.bf16.gmra.mrb[0].mxu0 %v6537
  %v6712 = vpop.f32.mrb[0].mxu0
  %v6713 = vadd.f32 %v2310, %v6712
  %v6714 = vpop.f32.mrb[0].mxu0
  %v6715 = vpop.f32.mrb[0].mxu0
  %v6716 = vpop.f32.mrb[0].mxu0
  %6717 = vdwg.mxu0
  %v6718 = vpack.c.bf16 %v6092, %v6092
  %6719 = vmatprep.subr.bf16.mxu0 %v3205
  %6720 = vmatpush1.bf16.msra.mxu0 %v3204
  %6721 = vmatprep.subr.bf16.mxu0 %v3208
  %6722 = vmatpush1.bf16.msra.mxu0 %v3207
  %6723 = vmatprep.subr.bf16.mxu0 %v3211
  %6724 = vmatpush1.bf16.msra.mxu0 %v3210
  %6725 = vmatprep.subr.bf16.mxu0 %v3214
  %6726 = vmatpush1.bf16.msra.mxu0 %v3213
  %6727 = vmatprep.subr.bf16.mxu0 %v3217
  %6728 = vmatpush1.bf16.msra.mxu0 %v3216
  %6729 = vmatprep.subr.bf16.mxu0 %v3220
  %6730 = vmatpush1.bf16.msra.mxu0 %v3219
  %6731 = vmatprep.subr.bf16.mxu0 %v3223
  %6732 = vmatpush1.bf16.msra.mxu0 %v3222
  %6733 = vmatprep.subr.bf16.mxu0 %v3226
  %6734 = vmatpush1.bf16.msra.mxu0 %v3225
  %6735 = vmatprep.subr.bf16.mxu0 0
  %6736 = vmatpush1.bf16.msra.mxu0 0
  %6737 = vmatprep.subr.bf16.mxu0 0
  %6738 = vmatpush1.bf16.msra.mxu0 0
  %6739 = vmatprep.subr.bf16.mxu0 0
  %6740 = vmatpush1.bf16.msra.mxu0 0
  %6741 = vmatprep.subr.bf16.mxu0 0
  %6742 = vmatpush1.bf16.msra.mxu0 0
  %6743 = vmatprep.subr.bf16.mxu0 0
  %6744 = vmatpush1.bf16.msra.mxu0 0
  %6745 = vmatprep.subr.bf16.mxu0 0
  %6746 = vmatpush1.bf16.msra.mxu0 0
  %6747 = vmatprep.subr.bf16.mxu0 0
  %6748 = vmatpush1.bf16.msra.mxu0 0
  %6749 = vmatprep.subr.bf16.mxu0 0
  %6750 = vmatpush1.bf16.msra.mxu0 0
  %6751 = vmatprep.mubr.bf16.mxu0 0
  %6752 = vmatmul.mubr.bf16.gmra.mrb[0].mxu0 %v6718
  %v6753 = vpop.f32.mrb[0].mxu0
  %v6754 = vadd.f32 0.0, %v6753
  %v6755 = vpop.f32.mrb[0].mxu0
  %v6756 = vadd.f32 0.0, %v6755
  %v6757 = vpop.f32.mrb[0].mxu0
  %v6758 = vpop.f32.mrb[0].mxu0
  %6759 = vdwg.mxu0
  %6760 = vmatprep.subr.bf16.mxu0 0
  %6761 = vmatpush1.bf16.msra.mxu0 %v3206
  %6762 = vmatprep.subr.bf16.mxu0 0
  %6763 = vmatpush1.bf16.msra.mxu0 %v3209
  %6764 = vmatprep.subr.bf16.mxu0 0
  %6765 = vmatpush1.bf16.msra.mxu0 %v3212
  %6766 = vmatprep.subr.bf16.mxu0 0
  %6767 = vmatpush1.bf16.msra.mxu0 %v3215
  %6768 = vmatprep.subr.bf16.mxu0 0
  %6769 = vmatpush1.bf16.msra.mxu0 %v3218
  %6770 = vmatprep.subr.bf16.mxu0 0
  %6771 = vmatpush1.bf16.msra.mxu0 %v3221
  %6772 = vmatprep.subr.bf16.mxu0 0
  %6773 = vmatpush1.bf16.msra.mxu0 %v3224
  %6774 = vmatprep.subr.bf16.mxu0 0
  %6775 = vmatpush1.bf16.msra.mxu0 %v3227
  %6776 = vmatprep.subr.bf16.mxu0 0
  %6777 = vmatpush1.bf16.msra.mxu0 0
  %6778 = vmatprep.subr.bf16.mxu0 0
  %6779 = vmatpush1.bf16.msra.mxu0 0
  %6780 = vmatprep.subr.bf16.mxu0 0
  %6781 = vmatpush1.bf16.msra.mxu0 0
  %6782 = vmatprep.subr.bf16.mxu0 0
  %6783 = vmatpush1.bf16.msra.mxu0 0
  %6784 = vmatprep.subr.bf16.mxu0 0
  %6785 = vmatpush1.bf16.msra.mxu0 0
  %6786 = vmatprep.subr.bf16.mxu0 0
  %6787 = vmatpush1.bf16.msra.mxu0 0
  %6788 = vmatprep.subr.bf16.mxu0 0
  %6789 = vmatpush1.bf16.msra.mxu0 0
  %6790 = vmatprep.subr.bf16.mxu0 0
  %6791 = vmatpush1.bf16.msra.mxu0 0
  %6792 = vmatprep.mubr.bf16.mxu0 0
  %6793 = vmatmul.mubr.bf16.gmra.mrb[0].mxu0 %v6718
  %v6794 = vpop.f32.mrb[0].mxu0
  %v6795 = vadd.f32 0.0, %v6794
  %v6796 = vpop.f32.mrb[0].mxu0
  %v6797 = vpop.f32.mrb[0].mxu0
  %v6798 = vpop.f32.mrb[0].mxu0
  %6799 = vdwg.mxu0
  %v6800 = vadd.f32 %v6672, %v6754
  %v6801 = vadd.f32 %v6674, %v6756
  %v6802 = vmul.f32 %v6800, 0.5
  %v6803 = vmul.f32 %v6801, 0.5
  %v6804 = vtanh.pop %v6802
  %v6805 = vtanh.pop %v6803
  %v6806 = vadd.f32 %v6804, 1.0
  %v6807 = vadd.f32 %v6805, 1.0
  %v6808 = vmul.f32 %v6806, 0.5
  %v6809 = vmul.f32 %v6807, 0.5
  %v6810 = vadd.f32 %v6795, %v2537
  %v6811 = vmul.f32 %v6808, %v6810
  %v6812 = vadd.f32 %v6713, %v6811
  %v6813 = vtanh.pop %v6812
  %v6814 = vsub.f32 1.0, %v6809
  %v6815 = vmul.f32 %v6814, %v6813
  %v6816 = vmul.f32 %v6809, %v6092
  %v6817 = vadd.f32 %v6815, %v6816
  %6818 = vmatprep.subr.bf16.mxu0 %v3483
  %6819 = vmatpush1.bf16.msra.mxu0 %v3482
  %6820 = vmatprep.subr.bf16.mxu0 %v3486
  %6821 = vmatpush1.bf16.msra.mxu0 %v3485
  %6822 = vmatprep.subr.bf16.mxu0 %v3489
  %6823 = vmatpush1.bf16.msra.mxu0 %v3488
  %6824 = vmatprep.subr.bf16.mxu0 %v3492
  %6825 = vmatpush1.bf16.msra.mxu0 %v3491
  %6826 = vmatprep.subr.bf16.mxu0 %v3495
  %6827 = vmatpush1.bf16.msra.mxu0 %v3494
  %6828 = vmatprep.subr.bf16.mxu0 %v3498
  %6829 = vmatpush1.bf16.msra.mxu0 %v3497
  %6830 = vmatprep.subr.bf16.mxu0 %v3501
  %6831 = vmatpush1.bf16.msra.mxu0 %v3500
  %6832 = vmatprep.subr.bf16.mxu0 %v3504
  %6833 = vmatpush1.bf16.msra.mxu0 %v3503
  %6834 = vmatprep.subr.bf16.mxu0 0
  %6835 = vmatpush1.bf16.msra.mxu0 0
  %6836 = vmatprep.subr.bf16.mxu0 0
  %6837 = vmatpush1.bf16.msra.mxu0 0
  %6838 = vmatprep.subr.bf16.mxu0 0
  %6839 = vmatpush1.bf16.msra.mxu0 0
  %6840 = vmatprep.subr.bf16.mxu0 0
  %6841 = vmatpush1.bf16.msra.mxu0 0
  %6842 = vmatprep.subr.bf16.mxu0 0
  %6843 = vmatpush1.bf16.msra.mxu0 0
  %6844 = vmatprep.subr.bf16.mxu0 0
  %6845 = vmatpush1.bf16.msra.mxu0 0
  %6846 = vmatprep.subr.bf16.mxu0 0
  %6847 = vmatpush1.bf16.msra.mxu0 0
  %6848 = vmatprep.subr.bf16.mxu0 0
  %6849 = vmatpush1.bf16.msra.mxu0 0
  %6850 = vmatprep.mubr.bf16.mxu0 0
  %6851 = vmatmul.mubr.bf16.gmra.mrb[0].mxu0 %v6718
  %v6852 = vpop.f32.mrb[0].mxu0
  %v6853 = vadd.f32 %v3390, %v6852
  %v6854 = vpop.f32.mrb[0].mxu0
  %v6855 = vadd.f32 %v3394, %v6854
  %v6856 = vpop.f32.mrb[0].mxu0
  %v6857 = vpop.f32.mrb[0].mxu0
  %6858 = vdwg.mxu0
  %6859 = vmatprep.subr.bf16.mxu0 0
  %6860 = vmatpush1.bf16.msra.mxu0 %v3484
  %6861 = vmatprep.subr.bf16.mxu0 0
  %6862 = vmatpush1.bf16.msra.mxu0 %v3487
  %6863 = vmatprep.subr.bf16.mxu0 0
  %6864 = vmatpush1.bf16.msra.mxu0 %v3490
  %6865 = vmatprep.subr.bf16.mxu0 0
  %6866 = vmatpush1.bf16.msra.mxu0 %v3493
  %6867 = vmatprep.subr.bf16.mxu0 0
  %6868 = vmatpush1.bf16.msra.mxu0 %v3496
  %6869 = vmatprep.subr.bf16.mxu0 0
  %6870 = vmatpush1.bf16.msra.mxu0 %v3499
  %6871 = vmatprep.subr.bf16.mxu0 0
  %6872 = vmatpush1.bf16.msra.mxu0 %v3502
  %6873 = vmatprep.subr.bf16.mxu0 0
  %6874 = vmatpush1.bf16.msra.mxu0 %v3505
  %6875 = vmatprep.subr.bf16.mxu0 0
  %6876 = vmatpush1.bf16.msra.mxu0 0
  %6877 = vmatprep.subr.bf16.mxu0 0
  %6878 = vmatpush1.bf16.msra.mxu0 0
  %6879 = vmatprep.subr.bf16.mxu0 0
  %6880 = vmatpush1.bf16.msra.mxu0 0
  %6881 = vmatprep.subr.bf16.mxu0 0
  %6882 = vmatpush1.bf16.msra.mxu0 0
  %6883 = vmatprep.subr.bf16.mxu0 0
  %6884 = vmatpush1.bf16.msra.mxu0 0
  %6885 = vmatprep.subr.bf16.mxu0 0
  %6886 = vmatpush1.bf16.msra.mxu0 0
  %6887 = vmatprep.subr.bf16.mxu0 0
  %6888 = vmatpush1.bf16.msra.mxu0 0
  %6889 = vmatprep.subr.bf16.mxu0 0
  %6890 = vmatpush1.bf16.msra.mxu0 0
  %6891 = vmatprep.mubr.bf16.mxu0 0
  %6892 = vmatmul.mubr.bf16.gmra.mrb[0].mxu0 %v6718
  %v6893 = vpop.f32.mrb[0].mxu0
  %v6894 = vadd.f32 %v3398, %v6893
  %v6895 = vpop.f32.mrb[0].mxu0
  %v6896 = vpop.f32.mrb[0].mxu0
  %v6897 = vpop.f32.mrb[0].mxu0
  %6898 = vdwg.mxu0
  %v6899 = vpack.c.bf16 %v6273, %v6273
  %6900 = vmatprep.subr.bf16.mxu0 %v4474
  %6901 = vmatpush1.bf16.msra.mxu0 %v4473
  %6902 = vmatprep.subr.bf16.mxu0 %v4477
  %6903 = vmatpush1.bf16.msra.mxu0 %v4476
  %6904 = vmatprep.subr.bf16.mxu0 %v4480
  %6905 = vmatpush1.bf16.msra.mxu0 %v4479
  %6906 = vmatprep.subr.bf16.mxu0 %v4483
  %6907 = vmatpush1.bf16.msra.mxu0 %v4482
  %6908 = vmatprep.subr.bf16.mxu0 %v4486
  %6909 = vmatpush1.bf16.msra.mxu0 %v4485
  %6910 = vmatprep.subr.bf16.mxu0 %v4489
  %6911 = vmatpush1.bf16.msra.mxu0 %v4488
  %6912 = vmatprep.subr.bf16.mxu0 %v4492
  %6913 = vmatpush1.bf16.msra.mxu0 %v4491
  %6914 = vmatprep.subr.bf16.mxu0 %v4495
  %6915 = vmatpush1.bf16.msra.mxu0 %v4494
  %6916 = vmatprep.subr.bf16.mxu0 0
  %6917 = vmatpush1.bf16.msra.mxu0 0
  %6918 = vmatprep.subr.bf16.mxu0 0
  %6919 = vmatpush1.bf16.msra.mxu0 0
  %6920 = vmatprep.subr.bf16.mxu0 0
  %6921 = vmatpush1.bf16.msra.mxu0 0
  %6922 = vmatprep.subr.bf16.mxu0 0
  %6923 = vmatpush1.bf16.msra.mxu0 0
  %6924 = vmatprep.subr.bf16.mxu0 0
  %6925 = vmatpush1.bf16.msra.mxu0 0
  %6926 = vmatprep.subr.bf16.mxu0 0
  %6927 = vmatpush1.bf16.msra.mxu0 0
  %6928 = vmatprep.subr.bf16.mxu0 0
  %6929 = vmatpush1.bf16.msra.mxu0 0
  %6930 = vmatprep.subr.bf16.mxu0 0
  %6931 = vmatpush1.bf16.msra.mxu0 0
  %6932 = vmatprep.mubr.bf16.mxu0 0
  %6933 = vmatmul.mubr.bf16.gmra.mrb[0].mxu0 %v6899
  %v6934 = vpop.f32.mrb[0].mxu0
  %v6935 = vadd.f32 0.0, %v6934
  %v6936 = vpop.f32.mrb[0].mxu0
  %v6937 = vadd.f32 0.0, %v6936
  %v6938 = vpop.f32.mrb[0].mxu0
  %v6939 = vpop.f32.mrb[0].mxu0
  %6940 = vdwg.mxu0
  %6941 = vmatprep.subr.bf16.mxu0 0
  %6942 = vmatpush1.bf16.msra.mxu0 %v4475
  %6943 = vmatprep.subr.bf16.mxu0 0
  %6944 = vmatpush1.bf16.msra.mxu0 %v4478
  %6945 = vmatprep.subr.bf16.mxu0 0
  %6946 = vmatpush1.bf16.msra.mxu0 %v4481
  %6947 = vmatprep.subr.bf16.mxu0 0
  %6948 = vmatpush1.bf16.msra.mxu0 %v4484
  %6949 = vmatprep.subr.bf16.mxu0 0
  %6950 = vmatpush1.bf16.msra.mxu0 %v4487
  %6951 = vmatprep.subr.bf16.mxu0 0
  %6952 = vmatpush1.bf16.msra.mxu0 %v4490
  %6953 = vmatprep.subr.bf16.mxu0 0
  %6954 = vmatpush1.bf16.msra.mxu0 %v4493
  %6955 = vmatprep.subr.bf16.mxu0 0
  %6956 = vmatpush1.bf16.msra.mxu0 %v4496
  %6957 = vmatprep.subr.bf16.mxu0 0
  %6958 = vmatpush1.bf16.msra.mxu0 0
  %6959 = vmatprep.subr.bf16.mxu0 0
  %6960 = vmatpush1.bf16.msra.mxu0 0
  %6961 = vmatprep.subr.bf16.mxu0 0
  %6962 = vmatpush1.bf16.msra.mxu0 0
  %6963 = vmatprep.subr.bf16.mxu0 0
  %6964 = vmatpush1.bf16.msra.mxu0 0
  %6965 = vmatprep.subr.bf16.mxu0 0
  %6966 = vmatpush1.bf16.msra.mxu0 0
  %6967 = vmatprep.subr.bf16.mxu0 0
  %6968 = vmatpush1.bf16.msra.mxu0 0
  %6969 = vmatprep.subr.bf16.mxu0 0
  %6970 = vmatpush1.bf16.msra.mxu0 0
  %6971 = vmatprep.subr.bf16.mxu0 0
  %6972 = vmatpush1.bf16.msra.mxu0 0
  %6973 = vmatprep.mubr.bf16.mxu0 0
  %6974 = vmatmul.mubr.bf16.gmra.mrb[0].mxu0 %v6899
  %v6975 = vpop.f32.mrb[0].mxu0
  %v6976 = vadd.f32 0.0, %v6975
  %v6977 = vpop.f32.mrb[0].mxu0
  %v6978 = vpop.f32.mrb[0].mxu0
  %v6979 = vpop.f32.mrb[0].mxu0
  %6980 = vdwg.mxu0
  %v6981 = vadd.f32 %v6853, %v6935
  %v6982 = vadd.f32 %v6855, %v6937
  %v6983 = vmul.f32 %v6981, 0.5
  %v6984 = vmul.f32 %v6982, 0.5
  %v6985 = vtanh.pop %v6983
  %v6986 = vtanh.pop %v6984
  %v6987 = vadd.f32 %v6985, 1.0
  %v6988 = vadd.f32 %v6986, 1.0
  %v6989 = vmul.f32 %v6987, 0.5
  %v6990 = vmul.f32 %v6988, 0.5
  %v6991 = vadd.f32 %v6976, %v3625
  %v6992 = vmul.f32 %v6989, %v6991
  %v6993 = vadd.f32 %v6894, %v6992
  %v6994 = vtanh.pop %v6993
  %v6995 = vsub.f32 1.0, %v6990
  %v6996 = vmul.f32 %v6995, %v6994
  %v6997 = vmul.f32 %v6990, %v6273
  %v6998 = vadd.f32 %v6996, %v6997
  %v6999 = vpack.c.bf16 %v6455, %v6455
  %7000 = vmatprep.subr.bf16.mxu0 %v1488
  %7001 = vmatpush1.bf16.msra.mxu0 %v1487
  %7002 = vmatprep.subr.bf16.mxu0 %v1491
  %7003 = vmatpush1.bf16.msra.mxu0 %v1490
  %7004 = vmatprep.subr.bf16.mxu0 %v1494
  %7005 = vmatpush1.bf16.msra.mxu0 %v1493
  %7006 = vmatprep.subr.bf16.mxu0 %v1497
  %7007 = vmatpush1.bf16.msra.mxu0 %v1496
  %7008 = vmatprep.subr.bf16.mxu0 %v1500
  %7009 = vmatpush1.bf16.msra.mxu0 %v1499
  %7010 = vmatprep.subr.bf16.mxu0 %v1503
  %7011 = vmatpush1.bf16.msra.mxu0 %v1502
  %7012 = vmatprep.subr.bf16.mxu0 %v1506
  %7013 = vmatpush1.bf16.msra.mxu0 %v1505
  %7014 = vmatprep.subr.bf16.mxu0 %v1509
  %7015 = vmatpush1.bf16.msra.mxu0 %v1508
  %7016 = vmatprep.subr.bf16.mxu0 0
  %7017 = vmatpush1.bf16.msra.mxu0 0
  %7018 = vmatprep.subr.bf16.mxu0 0
  %7019 = vmatpush1.bf16.msra.mxu0 0
  %7020 = vmatprep.subr.bf16.mxu0 0
  %7021 = vmatpush1.bf16.msra.mxu0 0
  %7022 = vmatprep.subr.bf16.mxu0 0
  %7023 = vmatpush1.bf16.msra.mxu0 0
  %7024 = vmatprep.subr.bf16.mxu0 0
  %7025 = vmatpush1.bf16.msra.mxu0 0
  %7026 = vmatprep.subr.bf16.mxu0 0
  %7027 = vmatpush1.bf16.msra.mxu0 0
  %7028 = vmatprep.subr.bf16.mxu0 0
  %7029 = vmatpush1.bf16.msra.mxu0 0
  %7030 = vmatprep.subr.bf16.mxu0 0
  %7031 = vmatpush1.bf16.msra.mxu0 0
  %7032 = vmatprep.mubr.bf16.mxu0 0
  %7033 = vmatmul.mubr.bf16.gmra.mrb[0].mxu0 %v6999
  %v7034 = vpop.f32.mrb[0].mxu0
  %v7035 = vadd.f32 %v1395, %v7034
  %v7036 = vpop.f32.mrb[0].mxu0
  %v7037 = vadd.f32 %v1399, %v7036
  %v7038 = vpop.f32.mrb[0].mxu0
  %v7039 = vpop.f32.mrb[0].mxu0
  %7040 = vdwg.mxu0
  %7041 = vmatprep.subr.bf16.mxu0 0
  %7042 = vmatpush1.bf16.msra.mxu0 %v1489
  %7043 = vmatprep.subr.bf16.mxu0 0
  %7044 = vmatpush1.bf16.msra.mxu0 %v1492
  %7045 = vmatprep.subr.bf16.mxu0 0
  %7046 = vmatpush1.bf16.msra.mxu0 %v1495
  %7047 = vmatprep.subr.bf16.mxu0 0
  %7048 = vmatpush1.bf16.msra.mxu0 %v1498
  %7049 = vmatprep.subr.bf16.mxu0 0
  %7050 = vmatpush1.bf16.msra.mxu0 %v1501
  %7051 = vmatprep.subr.bf16.mxu0 0
  %7052 = vmatpush1.bf16.msra.mxu0 %v1504
  %7053 = vmatprep.subr.bf16.mxu0 0
  %7054 = vmatpush1.bf16.msra.mxu0 %v1507
  %7055 = vmatprep.subr.bf16.mxu0 0
  %7056 = vmatpush1.bf16.msra.mxu0 %v1510
  %7057 = vmatprep.subr.bf16.mxu0 0
  %7058 = vmatpush1.bf16.msra.mxu0 0
  %7059 = vmatprep.subr.bf16.mxu0 0
  %7060 = vmatpush1.bf16.msra.mxu0 0
  %7061 = vmatprep.subr.bf16.mxu0 0
  %7062 = vmatpush1.bf16.msra.mxu0 0
  %7063 = vmatprep.subr.bf16.mxu0 0
  %7064 = vmatpush1.bf16.msra.mxu0 0
  %7065 = vmatprep.subr.bf16.mxu0 0
  %7066 = vmatpush1.bf16.msra.mxu0 0
  %7067 = vmatprep.subr.bf16.mxu0 0
  %7068 = vmatpush1.bf16.msra.mxu0 0
  %7069 = vmatprep.subr.bf16.mxu0 0
  %7070 = vmatpush1.bf16.msra.mxu0 0
  %7071 = vmatprep.subr.bf16.mxu0 0
  %7072 = vmatpush1.bf16.msra.mxu0 0
  %7073 = vmatprep.mubr.bf16.mxu0 0
  %7074 = vmatmul.mubr.bf16.gmra.mrb[0].mxu0 %v6999
  %v7075 = vpop.f32.mrb[0].mxu0
  %v7076 = vadd.f32 %v1403, %v7075
  %v7077 = vpop.f32.mrb[0].mxu0
  %v7078 = vpop.f32.mrb[0].mxu0
  %v7079 = vpop.f32.mrb[0].mxu0
  %7080 = vdwg.mxu0
  %v7081 = vpack.c.bf16 %v6636, %v6636
  %7082 = vmatprep.subr.bf16.mxu0 %v2117
  %7083 = vmatpush1.bf16.msra.mxu0 %v2116
  %7084 = vmatprep.subr.bf16.mxu0 %v2120
  %7085 = vmatpush1.bf16.msra.mxu0 %v2119
  %7086 = vmatprep.subr.bf16.mxu0 %v2123
  %7087 = vmatpush1.bf16.msra.mxu0 %v2122
  %7088 = vmatprep.subr.bf16.mxu0 %v2126
  %7089 = vmatpush1.bf16.msra.mxu0 %v2125
  %7090 = vmatprep.subr.bf16.mxu0 %v2129
  %7091 = vmatpush1.bf16.msra.mxu0 %v2128
  %7092 = vmatprep.subr.bf16.mxu0 %v2132
  %7093 = vmatpush1.bf16.msra.mxu0 %v2131
  %7094 = vmatprep.subr.bf16.mxu0 %v2135
  %7095 = vmatpush1.bf16.msra.mxu0 %v2134
  %7096 = vmatprep.subr.bf16.mxu0 %v2138
  %7097 = vmatpush1.bf16.msra.mxu0 %v2137
  %7098 = vmatprep.subr.bf16.mxu0 0
  %7099 = vmatpush1.bf16.msra.mxu0 0
  %7100 = vmatprep.subr.bf16.mxu0 0
  %7101 = vmatpush1.bf16.msra.mxu0 0
  %7102 = vmatprep.subr.bf16.mxu0 0
  %7103 = vmatpush1.bf16.msra.mxu0 0
  %7104 = vmatprep.subr.bf16.mxu0 0
  %7105 = vmatpush1.bf16.msra.mxu0 0
  %7106 = vmatprep.subr.bf16.mxu0 0
  %7107 = vmatpush1.bf16.msra.mxu0 0
  %7108 = vmatprep.subr.bf16.mxu0 0
  %7109 = vmatpush1.bf16.msra.mxu0 0
  %7110 = vmatprep.subr.bf16.mxu0 0
  %7111 = vmatpush1.bf16.msra.mxu0 0
  %7112 = vmatprep.subr.bf16.mxu0 0
  %7113 = vmatpush1.bf16.msra.mxu0 0
  %7114 = vmatprep.mubr.bf16.mxu0 0
  %7115 = vmatmul.mubr.bf16.gmra.mrb[0].mxu0 %v7081
  %v7116 = vpop.f32.mrb[0].mxu0
  %v7117 = vadd.f32 0.0, %v7116
  %v7118 = vpop.f32.mrb[0].mxu0
  %v7119 = vadd.f32 0.0, %v7118
  %v7120 = vpop.f32.mrb[0].mxu0
  %v7121 = vpop.f32.mrb[0].mxu0
  %7122 = vdwg.mxu0
  %7123 = vmatprep.subr.bf16.mxu0 0
  %7124 = vmatpush1.bf16.msra.mxu0 %v2118
  %7125 = vmatprep.subr.bf16.mxu0 0
  %7126 = vmatpush1.bf16.msra.mxu0 %v2121
  %7127 = vmatprep.subr.bf16.mxu0 0
  %7128 = vmatpush1.bf16.msra.mxu0 %v2124
  %7129 = vmatprep.subr.bf16.mxu0 0
  %7130 = vmatpush1.bf16.msra.mxu0 %v2127
  %7131 = vmatprep.subr.bf16.mxu0 0
  %7132 = vmatpush1.bf16.msra.mxu0 %v2130
  %7133 = vmatprep.subr.bf16.mxu0 0
  %7134 = vmatpush1.bf16.msra.mxu0 %v2133
  %7135 = vmatprep.subr.bf16.mxu0 0
  %7136 = vmatpush1.bf16.msra.mxu0 %v2136
  %7137 = vmatprep.subr.bf16.mxu0 0
  %7138 = vmatpush1.bf16.msra.mxu0 %v2139
  %7139 = vmatprep.subr.bf16.mxu0 0
  %7140 = vmatpush1.bf16.msra.mxu0 0
  %7141 = vmatprep.subr.bf16.mxu0 0
  %7142 = vmatpush1.bf16.msra.mxu0 0
  %7143 = vmatprep.subr.bf16.mxu0 0
  %7144 = vmatpush1.bf16.msra.mxu0 0
  %7145 = vmatprep.subr.bf16.mxu0 0
  %7146 = vmatpush1.bf16.msra.mxu0 0
  %7147 = vmatprep.subr.bf16.mxu0 0
  %7148 = vmatpush1.bf16.msra.mxu0 0
  %7149 = vmatprep.subr.bf16.mxu0 0
  %7150 = vmatpush1.bf16.msra.mxu0 0
  %7151 = vmatprep.subr.bf16.mxu0 0
  %7152 = vmatpush1.bf16.msra.mxu0 0
  %7153 = vmatprep.subr.bf16.mxu0 0
  %7154 = vmatpush1.bf16.msra.mxu0 0
  %7155 = vmatprep.mubr.bf16.mxu0 0
  %7156 = vmatmul.mubr.bf16.gmra.mrb[0].mxu0 %v7081
  %v7157 = vpop.f32.mrb[0].mxu0
  %v7158 = vadd.f32 0.0, %v7157
  %v7159 = vpop.f32.mrb[0].mxu0
  %v7160 = vpop.f32.mrb[0].mxu0
  %v7161 = vpop.f32.mrb[0].mxu0
  %7162 = vdwg.mxu0
  %v7163 = vadd.f32 %v7035, %v7117
  %v7164 = vadd.f32 %v7037, %v7119
  %v7165 = vmul.f32 %v7163, 0.5
  %v7166 = vmul.f32 %v7164, 0.5
  %v7167 = vtanh.pop %v7165
  %v7168 = vtanh.pop %v7166
  %v7169 = vadd.f32 %v7167, 1.0
  %v7170 = vadd.f32 %v7168, 1.0
  %v7171 = vmul.f32 %v7169, 0.5
  %v7172 = vmul.f32 %v7170, 0.5
  %v7173 = vadd.f32 %v7158, %v1630
  %v7174 = vmul.f32 %v7171, %v7173
  %v7175 = vadd.f32 %v7076, %v7174
  %v7176 = vtanh.pop %v7175
  %v7177 = vsub.f32 1.0, %v7172
  %v7178 = vmul.f32 %v7177, %v7176
  %v7179 = vmul.f32 %v7172, %v6636
  %v7180 = vadd.f32 %v7178, %v7179
  %7181 = vmatprep.subr.bf16.mxu0 %v2395
  %7182 = vmatpush1.bf16.msra.mxu0 %v2394
  %7183 = vmatprep.subr.bf16.mxu0 %v2398
  %7184 = vmatpush1.bf16.msra.mxu0 %v2397
  %7185 = vmatprep.subr.bf16.mxu0 %v2401
  %7186 = vmatpush1.bf16.msra.mxu0 %v2400
  %7187 = vmatprep.subr.bf16.mxu0 %v2404
  %7188 = vmatpush1.bf16.msra.mxu0 %v2403
  %7189 = vmatprep.subr.bf16.mxu0 %v2407
  %7190 = vmatpush1.bf16.msra.mxu0 %v2406
  %7191 = vmatprep.subr.bf16.mxu0 %v2410
  %7192 = vmatpush1.bf16.msra.mxu0 %v2409
  %7193 = vmatprep.subr.bf16.mxu0 %v2413
  %7194 = vmatpush1.bf16.msra.mxu0 %v2412
  %7195 = vmatprep.subr.bf16.mxu0 %v2416
  %7196 = vmatpush1.bf16.msra.mxu0 %v2415
  %7197 = vmatprep.subr.bf16.mxu0 0
  %7198 = vmatpush1.bf16.msra.mxu0 0
  %7199 = vmatprep.subr.bf16.mxu0 0
  %7200 = vmatpush1.bf16.msra.mxu0 0
  %7201 = vmatprep.subr.bf16.mxu0 0
  %7202 = vmatpush1.bf16.msra.mxu0 0
  %7203 = vmatprep.subr.bf16.mxu0 0
  %7204 = vmatpush1.bf16.msra.mxu0 0
  %7205 = vmatprep.subr.bf16.mxu0 0
  %7206 = vmatpush1.bf16.msra.mxu0 0
  %7207 = vmatprep.subr.bf16.mxu0 0
  %7208 = vmatpush1.bf16.msra.mxu0 0
  %7209 = vmatprep.subr.bf16.mxu0 0
  %7210 = vmatpush1.bf16.msra.mxu0 0
  %7211 = vmatprep.subr.bf16.mxu0 0
  %7212 = vmatpush1.bf16.msra.mxu0 0
  %7213 = vmatprep.mubr.bf16.mxu0 0
  %7214 = vmatmul.mubr.bf16.gmra.mrb[0].mxu0 %v7081
  %v7215 = vpop.f32.mrb[0].mxu0
  %v7216 = vadd.f32 %v2302, %v7215
  %v7217 = vpop.f32.mrb[0].mxu0
  %v7218 = vadd.f32 %v2306, %v7217
  %v7219 = vpop.f32.mrb[0].mxu0
  %v7220 = vpop.f32.mrb[0].mxu0
  %7221 = vdwg.mxu0
  %7222 = vmatprep.subr.bf16.mxu0 0
  %7223 = vmatpush1.bf16.msra.mxu0 %v2396
  %7224 = vmatprep.subr.bf16.mxu0 0
  %7225 = vmatpush1.bf16.msra.mxu0 %v2399
  %7226 = vmatprep.subr.bf16.mxu0 0
  %7227 = vmatpush1.bf16.msra.mxu0 %v2402
  %7228 = vmatprep.subr.bf16.mxu0 0
  %7229 = vmatpush1.bf16.msra.mxu0 %v2405
  %7230 = vmatprep.subr.bf16.mxu0 0
  %7231 = vmatpush1.bf16.msra.mxu0 %v2408
  %7232 = vmatprep.subr.bf16.mxu0 0
  %7233 = vmatpush1.bf16.msra.mxu0 %v2411
  %7234 = vmatprep.subr.bf16.mxu0 0
  %7235 = vmatpush1.bf16.msra.mxu0 %v2414
  %7236 = vmatprep.subr.bf16.mxu0 0
  %7237 = vmatpush1.bf16.msra.mxu0 %v2417
  %7238 = vmatprep.subr.bf16.mxu0 0
  %7239 = vmatpush1.bf16.msra.mxu0 0
  %7240 = vmatprep.subr.bf16.mxu0 0
  %7241 = vmatpush1.bf16.msra.mxu0 0
  %7242 = vmatprep.subr.bf16.mxu0 0
  %7243 = vmatpush1.bf16.msra.mxu0 0
  %7244 = vmatprep.subr.bf16.mxu0 0
  %7245 = vmatpush1.bf16.msra.mxu0 0
  %7246 = vmatprep.subr.bf16.mxu0 0
  %7247 = vmatpush1.bf16.msra.mxu0 0
  %7248 = vmatprep.subr.bf16.mxu0 0
  %7249 = vmatpush1.bf16.msra.mxu0 0
  %7250 = vmatprep.subr.bf16.mxu0 0
  %7251 = vmatpush1.bf16.msra.mxu0 0
  %7252 = vmatprep.subr.bf16.mxu0 0
  %7253 = vmatpush1.bf16.msra.mxu0 0
  %7254 = vmatprep.mubr.bf16.mxu0 0
  %7255 = vmatmul.mubr.bf16.gmra.mrb[0].mxu0 %v7081
  %v7256 = vpop.f32.mrb[0].mxu0
  %v7257 = vadd.f32 %v2310, %v7256
  %v7258 = vpop.f32.mrb[0].mxu0
  %v7259 = vpop.f32.mrb[0].mxu0
  %v7260 = vpop.f32.mrb[0].mxu0
  %7261 = vdwg.mxu0
  %v7262 = vpack.c.bf16 %v6817, %v6817
  %7263 = vmatprep.subr.bf16.mxu0 %v3205
  %7264 = vmatpush1.bf16.msra.mxu0 %v3204
  %7265 = vmatprep.subr.bf16.mxu0 %v3208
  %7266 = vmatpush1.bf16.msra.mxu0 %v3207
  %7267 = vmatprep.subr.bf16.mxu0 %v3211
  %7268 = vmatpush1.bf16.msra.mxu0 %v3210
  %7269 = vmatprep.subr.bf16.mxu0 %v3214
  %7270 = vmatpush1.bf16.msra.mxu0 %v3213
  %7271 = vmatprep.subr.bf16.mxu0 %v3217
  %7272 = vmatpush1.bf16.msra.mxu0 %v3216
  %7273 = vmatprep.subr.bf16.mxu0 %v3220
  %7274 = vmatpush1.bf16.msra.mxu0 %v3219
  %7275 = vmatprep.subr.bf16.mxu0 %v3223
  %7276 = vmatpush1.bf16.msra.mxu0 %v3222
  %7277 = vmatprep.subr.bf16.mxu0 %v3226
  %7278 = vmatpush1.bf16.msra.mxu0 %v3225
  %7279 = vmatprep.subr.bf16.mxu0 0
  %7280 = vmatpush1.bf16.msra.mxu0 0
  %7281 = vmatprep.subr.bf16.mxu0 0
  %7282 = vmatpush1.bf16.msra.mxu0 0
  %7283 = vmatprep.subr.bf16.mxu0 0
  %7284 = vmatpush1.bf16.msra.mxu0 0
  %7285 = vmatprep.subr.bf16.mxu0 0
  %7286 = vmatpush1.bf16.msra.mxu0 0
  %7287 = vmatprep.subr.bf16.mxu0 0
  %7288 = vmatpush1.bf16.msra.mxu0 0
  %7289 = vmatprep.subr.bf16.mxu0 0
  %7290 = vmatpush1.bf16.msra.mxu0 0
  %7291 = vmatprep.subr.bf16.mxu0 0
  %7292 = vmatpush1.bf16.msra.mxu0 0
  %7293 = vmatprep.subr.bf16.mxu0 0
  %7294 = vmatpush1.bf16.msra.mxu0 0
  %7295 = vmatprep.mubr.bf16.mxu0 0
  %7296 = vmatmul.mubr.bf16.gmra.mrb[0].mxu0 %v7262
  %v7297 = vpop.f32.mrb[0].mxu0
  %v7298 = vadd.f32 0.0, %v7297
  %v7299 = vpop.f32.mrb[0].mxu0
  %v7300 = vadd.f32 0.0, %v7299
  %v7301 = vpop.f32.mrb[0].mxu0
  %v7302 = vpop.f32.mrb[0].mxu0
  %7303 = vdwg.mxu0
  %7304 = vmatprep.subr.bf16.mxu0 0
  %7305 = vmatpush1.bf16.msra.mxu0 %v3206
  %7306 = vmatprep.subr.bf16.mxu0 0
  %7307 = vmatpush1.bf16.msra.mxu0 %v3209
  %7308 = vmatprep.subr.bf16.mxu0 0
  %7309 = vmatpush1.bf16.msra.mxu0 %v3212
  %7310 = vmatprep.subr.bf16.mxu0 0
  %7311 = vmatpush1.bf16.msra.mxu0 %v3215
  %7312 = vmatprep.subr.bf16.mxu0 0
  %7313 = vmatpush1.bf16.msra.mxu0 %v3218
  %7314 = vmatprep.subr.bf16.mxu0 0
  %7315 = vmatpush1.bf16.msra.mxu0 %v3221
  %7316 = vmatprep.subr.bf16.mxu0 0
  %7317 = vmatpush1.bf16.msra.mxu0 %v3224
  %7318 = vmatprep.subr.bf16.mxu0 0
  %7319 = vmatpush1.bf16.msra.mxu0 %v3227
  %7320 = vmatprep.subr.bf16.mxu0 0
  %7321 = vmatpush1.bf16.msra.mxu0 0
  %7322 = vmatprep.subr.bf16.mxu0 0
  %7323 = vmatpush1.bf16.msra.mxu0 0
  %7324 = vmatprep.subr.bf16.mxu0 0
  %7325 = vmatpush1.bf16.msra.mxu0 0
  %7326 = vmatprep.subr.bf16.mxu0 0
  %7327 = vmatpush1.bf16.msra.mxu0 0
  %7328 = vmatprep.subr.bf16.mxu0 0
  %7329 = vmatpush1.bf16.msra.mxu0 0
  %7330 = vmatprep.subr.bf16.mxu0 0
  %7331 = vmatpush1.bf16.msra.mxu0 0
  %7332 = vmatprep.subr.bf16.mxu0 0
  %7333 = vmatpush1.bf16.msra.mxu0 0
  %7334 = vmatprep.subr.bf16.mxu0 0
  %7335 = vmatpush1.bf16.msra.mxu0 0
  %7336 = vmatprep.mubr.bf16.mxu0 0
  %7337 = vmatmul.mubr.bf16.gmra.mrb[0].mxu0 %v7262
  %v7338 = vpop.f32.mrb[0].mxu0
  %v7339 = vadd.f32 0.0, %v7338
  %v7340 = vpop.f32.mrb[0].mxu0
  %v7341 = vpop.f32.mrb[0].mxu0
  %v7342 = vpop.f32.mrb[0].mxu0
  %7343 = vdwg.mxu0
  %v7344 = vadd.f32 %v7216, %v7298
  %v7345 = vadd.f32 %v7218, %v7300
  %v7346 = vmul.f32 %v7344, 0.5
  %v7347 = vmul.f32 %v7345, 0.5
  %v7348 = vtanh.pop %v7346
  %v7349 = vtanh.pop %v7347
  %v7350 = vadd.f32 %v7348, 1.0
  %v7351 = vadd.f32 %v7349, 1.0
  %v7352 = vmul.f32 %v7350, 0.5
  %v7353 = vmul.f32 %v7351, 0.5
  %v7354 = vadd.f32 %v7339, %v2537
  %v7355 = vmul.f32 %v7352, %v7354
  %v7356 = vadd.f32 %v7257, %v7355
  %v7357 = vtanh.pop %v7356
  %v7358 = vsub.f32 1.0, %v7353
  %v7359 = vmul.f32 %v7358, %v7357
  %v7360 = vmul.f32 %v7353, %v6817
  %v7361 = vadd.f32 %v7359, %v7360
  %7362 = vmatprep.subr.bf16.mxu0 %v3483
  %7363 = vmatpush1.bf16.msra.mxu0 %v3482
  %7364 = vmatprep.subr.bf16.mxu0 %v3486
  %7365 = vmatpush1.bf16.msra.mxu0 %v3485
  %7366 = vmatprep.subr.bf16.mxu0 %v3489
  %7367 = vmatpush1.bf16.msra.mxu0 %v3488
  %7368 = vmatprep.subr.bf16.mxu0 %v3492
  %7369 = vmatpush1.bf16.msra.mxu0 %v3491
  %7370 = vmatprep.subr.bf16.mxu0 %v3495
  %7371 = vmatpush1.bf16.msra.mxu0 %v3494
  %7372 = vmatprep.subr.bf16.mxu0 %v3498
  %7373 = vmatpush1.bf16.msra.mxu0 %v3497
  %7374 = vmatprep.subr.bf16.mxu0 %v3501
  %7375 = vmatpush1.bf16.msra.mxu0 %v3500
  %7376 = vmatprep.subr.bf16.mxu0 %v3504
  %7377 = vmatpush1.bf16.msra.mxu0 %v3503
  %7378 = vmatprep.subr.bf16.mxu0 0
  %7379 = vmatpush1.bf16.msra.mxu0 0
  %7380 = vmatprep.subr.bf16.mxu0 0
  %7381 = vmatpush1.bf16.msra.mxu0 0
  %7382 = vmatprep.subr.bf16.mxu0 0
  %7383 = vmatpush1.bf16.msra.mxu0 0
  %7384 = vmatprep.subr.bf16.mxu0 0
  %7385 = vmatpush1.bf16.msra.mxu0 0
  %7386 = vmatprep.subr.bf16.mxu0 0
  %7387 = vmatpush1.bf16.msra.mxu0 0
  %7388 = vmatprep.subr.bf16.mxu0 0
  %7389 = vmatpush1.bf16.msra.mxu0 0
  %7390 = vmatprep.subr.bf16.mxu0 0
  %7391 = vmatpush1.bf16.msra.mxu0 0
  %7392 = vmatprep.subr.bf16.mxu0 0
  %7393 = vmatpush1.bf16.msra.mxu0 0
  %7394 = vmatprep.mubr.bf16.mxu0 0
  %7395 = vmatmul.mubr.bf16.gmra.mrb[0].mxu0 %v7262
  %v7396 = vpop.f32.mrb[0].mxu0
  %v7397 = vadd.f32 %v3390, %v7396
  %v7398 = vpop.f32.mrb[0].mxu0
  %v7399 = vadd.f32 %v3394, %v7398
  %v7400 = vpop.f32.mrb[0].mxu0
  %v7401 = vpop.f32.mrb[0].mxu0
  %7402 = vdwg.mxu0
  %7403 = vmatprep.subr.bf16.mxu0 0
  %7404 = vmatpush1.bf16.msra.mxu0 %v3484
  %7405 = vmatprep.subr.bf16.mxu0 0
  %7406 = vmatpush1.bf16.msra.mxu0 %v3487
  %7407 = vmatprep.subr.bf16.mxu0 0
  %7408 = vmatpush1.bf16.msra.mxu0 %v3490
  %7409 = vmatprep.subr.bf16.mxu0 0
  %7410 = vmatpush1.bf16.msra.mxu0 %v3493
  %7411 = vmatprep.subr.bf16.mxu0 0
  %7412 = vmatpush1.bf16.msra.mxu0 %v3496
  %7413 = vmatprep.subr.bf16.mxu0 0
  %7414 = vmatpush1.bf16.msra.mxu0 %v3499
  %7415 = vmatprep.subr.bf16.mxu0 0
  %7416 = vmatpush1.bf16.msra.mxu0 %v3502
  %7417 = vmatprep.subr.bf16.mxu0 0
  %7418 = vmatpush1.bf16.msra.mxu0 %v3505
  %7419 = vmatprep.subr.bf16.mxu0 0
  %7420 = vmatpush1.bf16.msra.mxu0 0
  %7421 = vmatprep.subr.bf16.mxu0 0
  %7422 = vmatpush1.bf16.msra.mxu0 0
  %7423 = vmatprep.subr.bf16.mxu0 0
  %7424 = vmatpush1.bf16.msra.mxu0 0
  %7425 = vmatprep.subr.bf16.mxu0 0
  %7426 = vmatpush1.bf16.msra.mxu0 0
  %7427 = vmatprep.subr.bf16.mxu0 0
  %7428 = vmatpush1.bf16.msra.mxu0 0
  %7429 = vmatprep.subr.bf16.mxu0 0
  %7430 = vmatpush1.bf16.msra.mxu0 0
  %7431 = vmatprep.subr.bf16.mxu0 0
  %7432 = vmatpush1.bf16.msra.mxu0 0
  %7433 = vmatprep.subr.bf16.mxu0 0
  %7434 = vmatpush1.bf16.msra.mxu0 0
  %7435 = vmatprep.mubr.bf16.mxu0 0
  %7436 = vmatmul.mubr.bf16.gmra.mrb[0].mxu0 %v7262
  %v7437 = vpop.f32.mrb[0].mxu0
  %v7438 = vadd.f32 %v3398, %v7437
  %v7439 = vpop.f32.mrb[0].mxu0
  %v7440 = vpop.f32.mrb[0].mxu0
  %v7441 = vpop.f32.mrb[0].mxu0
  %7442 = vdwg.mxu0
  %v7443 = vpack.c.bf16 %v6998, %v6998
  %7444 = vmatprep.subr.bf16.mxu0 %v4474
  %7445 = vmatpush1.bf16.msra.mxu0 %v4473
  %7446 = vmatprep.subr.bf16.mxu0 %v4477
  %7447 = vmatpush1.bf16.msra.mxu0 %v4476
  %7448 = vmatprep.subr.bf16.mxu0 %v4480
  %7449 = vmatpush1.bf16.msra.mxu0 %v4479
  %7450 = vmatprep.subr.bf16.mxu0 %v4483
  %7451 = vmatpush1.bf16.msra.mxu0 %v4482
  %7452 = vmatprep.subr.bf16.mxu0 %v4486
  %7453 = vmatpush1.bf16.msra.mxu0 %v4485
  %7454 = vmatprep.subr.bf16.mxu0 %v4489
  %7455 = vmatpush1.bf16.msra.mxu0 %v4488
  %7456 = vmatprep.subr.bf16.mxu0 %v4492
  %7457 = vmatpush1.bf16.msra.mxu0 %v4491
  %7458 = vmatprep.subr.bf16.mxu0 %v4495
  %7459 = vmatpush1.bf16.msra.mxu0 %v4494
  %7460 = vmatprep.subr.bf16.mxu0 0
  %7461 = vmatpush1.bf16.msra.mxu0 0
  %7462 = vmatprep.subr.bf16.mxu0 0
  %7463 = vmatpush1.bf16.msra.mxu0 0
  %7464 = vmatprep.subr.bf16.mxu0 0
  %7465 = vmatpush1.bf16.msra.mxu0 0
  %7466 = vmatprep.subr.bf16.mxu0 0
  %7467 = vmatpush1.bf16.msra.mxu0 0
  %7468 = vmatprep.subr.bf16.mxu0 0
  %7469 = vmatpush1.bf16.msra.mxu0 0
  %7470 = vmatprep.subr.bf16.mxu0 0
  %7471 = vmatpush1.bf16.msra.mxu0 0
  %7472 = vmatprep.subr.bf16.mxu0 0
  %7473 = vmatpush1.bf16.msra.mxu0 0
  %7474 = vmatprep.subr.bf16.mxu0 0
  %7475 = vmatpush1.bf16.msra.mxu0 0
  %7476 = vmatprep.mubr.bf16.mxu0 0
  %7477 = vmatmul.mubr.bf16.gmra.mrb[0].mxu0 %v7443
  %v7478 = vpop.f32.mrb[0].mxu0
  %v7479 = vadd.f32 0.0, %v7478
  %v7480 = vpop.f32.mrb[0].mxu0
  %v7481 = vadd.f32 0.0, %v7480
  %v7482 = vpop.f32.mrb[0].mxu0
  %v7483 = vpop.f32.mrb[0].mxu0
  %7484 = vdwg.mxu0
  %7485 = vmatprep.subr.bf16.mxu0 0
  %7486 = vmatpush1.bf16.msra.mxu0 %v4475
  %7487 = vmatprep.subr.bf16.mxu0 0
  %7488 = vmatpush1.bf16.msra.mxu0 %v4478
  %7489 = vmatprep.subr.bf16.mxu0 0
  %7490 = vmatpush1.bf16.msra.mxu0 %v4481
  %7491 = vmatprep.subr.bf16.mxu0 0
  %7492 = vmatpush1.bf16.msra.mxu0 %v4484
  %7493 = vmatprep.subr.bf16.mxu0 0
  %7494 = vmatpush1.bf16.msra.mxu0 %v4487
  %7495 = vmatprep.subr.bf16.mxu0 0
  %7496 = vmatpush1.bf16.msra.mxu0 %v4490
  %7497 = vmatprep.subr.bf16.mxu0 0
  %7498 = vmatpush1.bf16.msra.mxu0 %v4493
  %7499 = vmatprep.subr.bf16.mxu0 0
  %7500 = vmatpush1.bf16.msra.mxu0 %v4496
  %7501 = vmatprep.subr.bf16.mxu0 0
  %7502 = vmatpush1.bf16.msra.mxu0 0
  %7503 = vmatprep.subr.bf16.mxu0 0
  %7504 = vmatpush1.bf16.msra.mxu0 0
  %7505 = vmatprep.subr.bf16.mxu0 0
  %7506 = vmatpush1.bf16.msra.mxu0 0
  %7507 = vmatprep.subr.bf16.mxu0 0
  %7508 = vmatpush1.bf16.msra.mxu0 0
  %7509 = vmatprep.subr.bf16.mxu0 0
  %7510 = vmatpush1.bf16.msra.mxu0 0
  %7511 = vmatprep.subr.bf16.mxu0 0
  %7512 = vmatpush1.bf16.msra.mxu0 0
  %7513 = vmatprep.subr.bf16.mxu0 0
  %7514 = vmatpush1.bf16.msra.mxu0 0
  %7515 = vmatprep.subr.bf16.mxu0 0
  %7516 = vmatpush1.bf16.msra.mxu0 0
  %7517 = vmatprep.mubr.bf16.mxu0 0
  %7518 = vmatmul.mubr.bf16.gmra.mrb[0].mxu0 %v7443
  %v7519 = vpop.f32.mrb[0].mxu0
  %v7520 = vadd.f32 0.0, %v7519
  %v7521 = vpop.f32.mrb[0].mxu0
  %v7522 = vpop.f32.mrb[0].mxu0
  %v7523 = vpop.f32.mrb[0].mxu0
  %7524 = vdwg.mxu0
  %v7525 = vadd.f32 %v7397, %v7479
  %v7526 = vadd.f32 %v7399, %v7481
  %v7527 = vmul.f32 %v7525, 0.5
  %v7528 = vmul.f32 %v7526, 0.5
  %v7529 = vtanh.pop %v7527
  %v7530 = vtanh.pop %v7528
  %v7531 = vadd.f32 %v7529, 1.0
  %v7532 = vadd.f32 %v7530, 1.0
  %v7533 = vmul.f32 %v7531, 0.5
  %v7534 = vmul.f32 %v7532, 0.5
  %v7535 = vadd.f32 %v7520, %v3625
  %v7536 = vmul.f32 %v7533, %v7535
  %v7537 = vadd.f32 %v7438, %v7536
  %v7538 = vtanh.pop %v7537
  %v7539 = vsub.f32 1.0, %v7534
  %v7540 = vmul.f32 %v7539, %v7538
  %v7541 = vmul.f32 %v7534, %v6998
  %v7542 = vadd.f32 %v7540, %v7541
  %v7543 = vpack.c.bf16 %v7180, %v7180
  %7544 = vmatprep.subr.bf16.mxu0 %v2395
  %7545 = vmatpush1.bf16.msra.mxu0 %v2394
  %7546 = vmatprep.subr.bf16.mxu0 %v2398
  %7547 = vmatpush1.bf16.msra.mxu0 %v2397
  %7548 = vmatprep.subr.bf16.mxu0 %v2401
  %7549 = vmatpush1.bf16.msra.mxu0 %v2400
  %7550 = vmatprep.subr.bf16.mxu0 %v2404
  %7551 = vmatpush1.bf16.msra.mxu0 %v2403
  %7552 = vmatprep.subr.bf16.mxu0 %v2407
  %7553 = vmatpush1.bf16.msra.mxu0 %v2406
  %7554 = vmatprep.subr.bf16.mxu0 %v2410
  %7555 = vmatpush1.bf16.msra.mxu0 %v2409
  %7556 = vmatprep.subr.bf16.mxu0 %v2413
  %7557 = vmatpush1.bf16.msra.mxu0 %v2412
  %7558 = vmatprep.subr.bf16.mxu0 %v2416
  %7559 = vmatpush1.bf16.msra.mxu0 %v2415
  %7560 = vmatprep.subr.bf16.mxu0 0
  %7561 = vmatpush1.bf16.msra.mxu0 0
  %7562 = vmatprep.subr.bf16.mxu0 0
  %7563 = vmatpush1.bf16.msra.mxu0 0
  %7564 = vmatprep.subr.bf16.mxu0 0
  %7565 = vmatpush1.bf16.msra.mxu0 0
  %7566 = vmatprep.subr.bf16.mxu0 0
  %7567 = vmatpush1.bf16.msra.mxu0 0
  %7568 = vmatprep.subr.bf16.mxu0 0
  %7569 = vmatpush1.bf16.msra.mxu0 0
  %7570 = vmatprep.subr.bf16.mxu0 0
  %7571 = vmatpush1.bf16.msra.mxu0 0
  %7572 = vmatprep.subr.bf16.mxu0 0
  %7573 = vmatpush1.bf16.msra.mxu0 0
  %7574 = vmatprep.subr.bf16.mxu0 0
  %7575 = vmatpush1.bf16.msra.mxu0 0
  %7576 = vmatprep.mubr.bf16.mxu0 0
  %7577 = vmatmul.mubr.bf16.gmra.mrb[0].mxu0 %v7543
  %v7578 = vpop.f32.mrb[0].mxu0
  %v7579 = vadd.f32 %v2302, %v7578
  %v7580 = vpop.f32.mrb[0].mxu0
  %v7581 = vadd.f32 %v2306, %v7580
  %v7582 = vpop.f32.mrb[0].mxu0
  %v7583 = vpop.f32.mrb[0].mxu0
  %7584 = vdwg.mxu0
  %7585 = vmatprep.subr.bf16.mxu0 0
  %7586 = vmatpush1.bf16.msra.mxu0 %v2396
  %7587 = vmatprep.subr.bf16.mxu0 0
  %7588 = vmatpush1.bf16.msra.mxu0 %v2399
  %7589 = vmatprep.subr.bf16.mxu0 0
  %7590 = vmatpush1.bf16.msra.mxu0 %v2402
  %7591 = vmatprep.subr.bf16.mxu0 0
  %7592 = vmatpush1.bf16.msra.mxu0 %v2405
  %7593 = vmatprep.subr.bf16.mxu0 0
  %7594 = vmatpush1.bf16.msra.mxu0 %v2408
  %7595 = vmatprep.subr.bf16.mxu0 0
  %7596 = vmatpush1.bf16.msra.mxu0 %v2411
  %7597 = vmatprep.subr.bf16.mxu0 0
  %7598 = vmatpush1.bf16.msra.mxu0 %v2414
  %7599 = vmatprep.subr.bf16.mxu0 0
  %7600 = vmatpush1.bf16.msra.mxu0 %v2417
  %7601 = vmatprep.subr.bf16.mxu0 0
  %7602 = vmatpush1.bf16.msra.mxu0 0
  %7603 = vmatprep.subr.bf16.mxu0 0
  %7604 = vmatpush1.bf16.msra.mxu0 0
  %7605 = vmatprep.subr.bf16.mxu0 0
  %7606 = vmatpush1.bf16.msra.mxu0 0
  %7607 = vmatprep.subr.bf16.mxu0 0
  %7608 = vmatpush1.bf16.msra.mxu0 0
  %7609 = vmatprep.subr.bf16.mxu0 0
  %7610 = vmatpush1.bf16.msra.mxu0 0
  %7611 = vmatprep.subr.bf16.mxu0 0
  %7612 = vmatpush1.bf16.msra.mxu0 0
  %7613 = vmatprep.subr.bf16.mxu0 0
  %7614 = vmatpush1.bf16.msra.mxu0 0
  %7615 = vmatprep.subr.bf16.mxu0 0
  %7616 = vmatpush1.bf16.msra.mxu0 0
  %7617 = vmatprep.mubr.bf16.mxu0 0
  %7618 = vmatmul.mubr.bf16.gmra.mrb[0].mxu0 %v7543
  %v7619 = vpop.f32.mrb[0].mxu0
  %v7620 = vadd.f32 %v2310, %v7619
  %v7621 = vpop.f32.mrb[0].mxu0
  %v7622 = vpop.f32.mrb[0].mxu0
  %v7623 = vpop.f32.mrb[0].mxu0
  %7624 = vdwg.mxu0
  %v7625 = vpack.c.bf16 %v7361, %v7361
  %7626 = vmatprep.subr.bf16.mxu0 %v3205
  %7627 = vmatpush1.bf16.msra.mxu0 %v3204
  %7628 = vmatprep.subr.bf16.mxu0 %v3208
  %7629 = vmatpush1.bf16.msra.mxu0 %v3207
  %7630 = vmatprep.subr.bf16.mxu0 %v3211
  %7631 = vmatpush1.bf16.msra.mxu0 %v3210
  %7632 = vmatprep.subr.bf16.mxu0 %v3214
  %7633 = vmatpush1.bf16.msra.mxu0 %v3213
  %7634 = vmatprep.subr.bf16.mxu0 %v3217
  %7635 = vmatpush1.bf16.msra.mxu0 %v3216
  %7636 = vmatprep.subr.bf16.mxu0 %v3220
  %7637 = vmatpush1.bf16.msra.mxu0 %v3219
  %7638 = vmatprep.subr.bf16.mxu0 %v3223
  %7639 = vmatpush1.bf16.msra.mxu0 %v3222
  %7640 = vmatprep.subr.bf16.mxu0 %v3226
  %7641 = vmatpush1.bf16.msra.mxu0 %v3225
  %7642 = vmatprep.subr.bf16.mxu0 0
  %7643 = vmatpush1.bf16.msra.mxu0 0
  %7644 = vmatprep.subr.bf16.mxu0 0
  %7645 = vmatpush1.bf16.msra.mxu0 0
  %7646 = vmatprep.subr.bf16.mxu0 0
  %7647 = vmatpush1.bf16.msra.mxu0 0
  %7648 = vmatprep.subr.bf16.mxu0 0
  %7649 = vmatpush1.bf16.msra.mxu0 0
  %7650 = vmatprep.subr.bf16.mxu0 0
  %7651 = vmatpush1.bf16.msra.mxu0 0
  %7652 = vmatprep.subr.bf16.mxu0 0
  %7653 = vmatpush1.bf16.msra.mxu0 0
  %7654 = vmatprep.subr.bf16.mxu0 0
  %7655 = vmatpush1.bf16.msra.mxu0 0
  %7656 = vmatprep.subr.bf16.mxu0 0
  %7657 = vmatpush1.bf16.msra.mxu0 0
  %7658 = vmatprep.mubr.bf16.mxu0 0
  %7659 = vmatmul.mubr.bf16.gmra.mrb[0].mxu0 %v7625
  %v7660 = vpop.f32.mrb[0].mxu0
  %v7661 = vadd.f32 0.0, %v7660
  %v7662 = vpop.f32.mrb[0].mxu0
  %v7663 = vadd.f32 0.0, %v7662
  %v7664 = vpop.f32.mrb[0].mxu0
  %v7665 = vpop.f32.mrb[0].mxu0
  %7666 = vdwg.mxu0
  %7667 = vmatprep.subr.bf16.mxu0 0
  %7668 = vmatpush1.bf16.msra.mxu0 %v3206
  %7669 = vmatprep.subr.bf16.mxu0 0
  %7670 = vmatpush1.bf16.msra.mxu0 %v3209
  %7671 = vmatprep.subr.bf16.mxu0 0
  %7672 = vmatpush1.bf16.msra.mxu0 %v3212
  %7673 = vmatprep.subr.bf16.mxu0 0
  %7674 = vmatpush1.bf16.msra.mxu0 %v3215
  %7675 = vmatprep.subr.bf16.mxu0 0
  %7676 = vmatpush1.bf16.msra.mxu0 %v3218
  %7677 = vmatprep.subr.bf16.mxu0 0
  %7678 = vmatpush1.bf16.msra.mxu0 %v3221
  %7679 = vmatprep.subr.bf16.mxu0 0
  %7680 = vmatpush1.bf16.msra.mxu0 %v3224
  %7681 = vmatprep.subr.bf16.mxu0 0
  %7682 = vmatpush1.bf16.msra.mxu0 %v3227
  %7683 = vmatprep.subr.bf16.mxu0 0
  %7684 = vmatpush1.bf16.msra.mxu0 0
  %7685 = vmatprep.subr.bf16.mxu0 0
  %7686 = vmatpush1.bf16.msra.mxu0 0
  %7687 = vmatprep.subr.bf16.mxu0 0
  %7688 = vmatpush1.bf16.msra.mxu0 0
  %7689 = vmatprep.subr.bf16.mxu0 0
  %7690 = vmatpush1.bf16.msra.mxu0 0
  %7691 = vmatprep.subr.bf16.mxu0 0
  %7692 = vmatpush1.bf16.msra.mxu0 0
  %7693 = vmatprep.subr.bf16.mxu0 0
  %7694 = vmatpush1.bf16.msra.mxu0 0
  %7695 = vmatprep.subr.bf16.mxu0 0
  %7696 = vmatpush1.bf16.msra.mxu0 0
  %7697 = vmatprep.subr.bf16.mxu0 0
  %7698 = vmatpush1.bf16.msra.mxu0 0
  %7699 = vmatprep.mubr.bf16.mxu0 0
  %7700 = vmatmul.mubr.bf16.gmra.mrb[0].mxu0 %v7625
  %v7701 = vpop.f32.mrb[0].mxu0
  %v7702 = vadd.f32 0.0, %v7701
  %v7703 = vpop.f32.mrb[0].mxu0
  %v7704 = vpop.f32.mrb[0].mxu0
  %v7705 = vpop.f32.mrb[0].mxu0
  %7706 = vdwg.mxu0
  %v7707 = vadd.f32 %v7579, %v7661
  %v7708 = vadd.f32 %v7581, %v7663
  %v7709 = vmul.f32 %v7707, 0.5
  %v7710 = vmul.f32 %v7708, 0.5
  %v7711 = vtanh.pop %v7709
  %v7712 = vtanh.pop %v7710
  %v7713 = vadd.f32 %v7711, 1.0
  %v7714 = vadd.f32 %v7712, 1.0
  %v7715 = vmul.f32 %v7713, 0.5
  %v7716 = vmul.f32 %v7714, 0.5
  %v7717 = vadd.f32 %v7702, %v2537
  %v7718 = vmul.f32 %v7715, %v7717
  %v7719 = vadd.f32 %v7620, %v7718
  %v7720 = vtanh.pop %v7719
  %v7721 = vsub.f32 1.0, %v7716
  %v7722 = vmul.f32 %v7721, %v7720
  %v7723 = vmul.f32 %v7716, %v7361
  %v7724 = vadd.f32 %v7722, %v7723
  %7725 = vmatprep.subr.bf16.mxu0 %v3483
  %7726 = vmatpush1.bf16.msra.mxu0 %v3482
  %7727 = vmatprep.subr.bf16.mxu0 %v3486
  %7728 = vmatpush1.bf16.msra.mxu0 %v3485
  %7729 = vmatprep.subr.bf16.mxu0 %v3489
  %7730 = vmatpush1.bf16.msra.mxu0 %v3488
  %7731 = vmatprep.subr.bf16.mxu0 %v3492
  %7732 = vmatpush1.bf16.msra.mxu0 %v3491
  %7733 = vmatprep.subr.bf16.mxu0 %v3495
  %7734 = vmatpush1.bf16.msra.mxu0 %v3494
  %7735 = vmatprep.subr.bf16.mxu0 %v3498
  %7736 = vmatpush1.bf16.msra.mxu0 %v3497
  %7737 = vmatprep.subr.bf16.mxu0 %v3501
  %7738 = vmatpush1.bf16.msra.mxu0 %v3500
  %7739 = vmatprep.subr.bf16.mxu0 %v3504
  %7740 = vmatpush1.bf16.msra.mxu0 %v3503
  %7741 = vmatprep.subr.bf16.mxu0 0
  %7742 = vmatpush1.bf16.msra.mxu0 0
  %7743 = vmatprep.subr.bf16.mxu0 0
  %7744 = vmatpush1.bf16.msra.mxu0 0
  %7745 = vmatprep.subr.bf16.mxu0 0
  %7746 = vmatpush1.bf16.msra.mxu0 0
  %7747 = vmatprep.subr.bf16.mxu0 0
  %7748 = vmatpush1.bf16.msra.mxu0 0
  %7749 = vmatprep.subr.bf16.mxu0 0
  %7750 = vmatpush1.bf16.msra.mxu0 0
  %7751 = vmatprep.subr.bf16.mxu0 0
  %7752 = vmatpush1.bf16.msra.mxu0 0
  %7753 = vmatprep.subr.bf16.mxu0 0
  %7754 = vmatpush1.bf16.msra.mxu0 0
  %7755 = vmatprep.subr.bf16.mxu0 0
  %7756 = vmatpush1.bf16.msra.mxu0 0
  %7757 = vmatprep.mubr.bf16.mxu0 0
  %7758 = vmatmul.mubr.bf16.gmra.mrb[0].mxu0 %v7625
  %v7759 = vpop.f32.mrb[0].mxu0
  %v7760 = vadd.f32 %v3390, %v7759
  %v7761 = vpop.f32.mrb[0].mxu0
  %v7762 = vadd.f32 %v3394, %v7761
  %v7763 = vpop.f32.mrb[0].mxu0
  %v7764 = vpop.f32.mrb[0].mxu0
  %7765 = vdwg.mxu0
  %7766 = vmatprep.subr.bf16.mxu0 0
  %7767 = vmatpush1.bf16.msra.mxu0 %v3484
  %7768 = vmatprep.subr.bf16.mxu0 0
  %7769 = vmatpush1.bf16.msra.mxu0 %v3487
  %7770 = vmatprep.subr.bf16.mxu0 0
  %7771 = vmatpush1.bf16.msra.mxu0 %v3490
  %7772 = vmatprep.subr.bf16.mxu0 0
  %7773 = vmatpush1.bf16.msra.mxu0 %v3493
  %7774 = vmatprep.subr.bf16.mxu0 0
  %7775 = vmatpush1.bf16.msra.mxu0 %v3496
  %7776 = vmatprep.subr.bf16.mxu0 0
  %7777 = vmatpush1.bf16.msra.mxu0 %v3499
  %7778 = vmatprep.subr.bf16.mxu0 0
  %7779 = vmatpush1.bf16.msra.mxu0 %v3502
  %7780 = vmatprep.subr.bf16.mxu0 0
  %7781 = vmatpush1.bf16.msra.mxu0 %v3505
  %7782 = vmatprep.subr.bf16.mxu0 0
  %7783 = vmatpush1.bf16.msra.mxu0 0
  %7784 = vmatprep.subr.bf16.mxu0 0
  %7785 = vmatpush1.bf16.msra.mxu0 0
  %7786 = vmatprep.subr.bf16.mxu0 0
  %7787 = vmatpush1.bf16.msra.mxu0 0
  %7788 = vmatprep.subr.bf16.mxu0 0
  %7789 = vmatpush1.bf16.msra.mxu0 0
  %7790 = vmatprep.subr.bf16.mxu0 0
  %7791 = vmatpush1.bf16.msra.mxu0 0
  %7792 = vmatprep.subr.bf16.mxu0 0
  %7793 = vmatpush1.bf16.msra.mxu0 0
  %7794 = vmatprep.subr.bf16.mxu0 0
  %7795 = vmatpush1.bf16.msra.mxu0 0
  %7796 = vmatprep.subr.bf16.mxu0 0
  %7797 = vmatpush1.bf16.msra.mxu0 0
  %7798 = vmatprep.mubr.bf16.mxu0 0
  %7799 = vmatmul.mubr.bf16.gmra.mrb[0].mxu0 %v7625
  %v7800 = vpop.f32.mrb[0].mxu0
  %v7801 = vadd.f32 %v3398, %v7800
  %v7802 = vpop.f32.mrb[0].mxu0
  %v7803 = vpop.f32.mrb[0].mxu0
  %v7804 = vpop.f32.mrb[0].mxu0
  %7805 = vdwg.mxu0
  %v7806 = vpack.c.bf16 %v7542, %v7542
  %7807 = vmatprep.subr.bf16.mxu0 %v4474
  %7808 = vmatpush1.bf16.msra.mxu0 %v4473
  %7809 = vmatprep.subr.bf16.mxu0 %v4477
  %7810 = vmatpush1.bf16.msra.mxu0 %v4476
  %7811 = vmatprep.subr.bf16.mxu0 %v4480
  %7812 = vmatpush1.bf16.msra.mxu0 %v4479
  %7813 = vmatprep.subr.bf16.mxu0 %v4483
  %7814 = vmatpush1.bf16.msra.mxu0 %v4482
  %7815 = vmatprep.subr.bf16.mxu0 %v4486
  %7816 = vmatpush1.bf16.msra.mxu0 %v4485
  %7817 = vmatprep.subr.bf16.mxu0 %v4489
  %7818 = vmatpush1.bf16.msra.mxu0 %v4488
  %7819 = vmatprep.subr.bf16.mxu0 %v4492
  %7820 = vmatpush1.bf16.msra.mxu0 %v4491
  %7821 = vmatprep.subr.bf16.mxu0 %v4495
  %7822 = vmatpush1.bf16.msra.mxu0 %v4494
  %7823 = vmatprep.subr.bf16.mxu0 0
  %7824 = vmatpush1.bf16.msra.mxu0 0
  %7825 = vmatprep.subr.bf16.mxu0 0
  %7826 = vmatpush1.bf16.msra.mxu0 0
  %7827 = vmatprep.subr.bf16.mxu0 0
  %7828 = vmatpush1.bf16.msra.mxu0 0
  %7829 = vmatprep.subr.bf16.mxu0 0
  %7830 = vmatpush1.bf16.msra.mxu0 0
  %7831 = vmatprep.subr.bf16.mxu0 0
  %7832 = vmatpush1.bf16.msra.mxu0 0
  %7833 = vmatprep.subr.bf16.mxu0 0
  %7834 = vmatpush1.bf16.msra.mxu0 0
  %7835 = vmatprep.subr.bf16.mxu0 0
  %7836 = vmatpush1.bf16.msra.mxu0 0
  %7837 = vmatprep.subr.bf16.mxu0 0
  %7838 = vmatpush1.bf16.msra.mxu0 0
  %7839 = vmatprep.mubr.bf16.mxu0 0
  %7840 = vmatmul.mubr.bf16.gmra.mrb[0].mxu0 %v7806
  %v7841 = vpop.f32.mrb[0].mxu0
  %v7842 = vadd.f32 0.0, %v7841
  %v7843 = vpop.f32.mrb[0].mxu0
  %v7844 = vadd.f32 0.0, %v7843
  %v7845 = vpop.f32.mrb[0].mxu0
  %v7846 = vpop.f32.mrb[0].mxu0
  %7847 = vdwg.mxu0
  %7848 = vmatprep.subr.bf16.mxu0 0
  %7849 = vmatpush1.bf16.msra.mxu0 %v4475
  %7850 = vmatprep.subr.bf16.mxu0 0
  %7851 = vmatpush1.bf16.msra.mxu0 %v4478
  %7852 = vmatprep.subr.bf16.mxu0 0
  %7853 = vmatpush1.bf16.msra.mxu0 %v4481
  %7854 = vmatprep.subr.bf16.mxu0 0
  %7855 = vmatpush1.bf16.msra.mxu0 %v4484
  %7856 = vmatprep.subr.bf16.mxu0 0
  %7857 = vmatpush1.bf16.msra.mxu0 %v4487
  %7858 = vmatprep.subr.bf16.mxu0 0
  %7859 = vmatpush1.bf16.msra.mxu0 %v4490
  %7860 = vmatprep.subr.bf16.mxu0 0
  %7861 = vmatpush1.bf16.msra.mxu0 %v4493
  %7862 = vmatprep.subr.bf16.mxu0 0
  %7863 = vmatpush1.bf16.msra.mxu0 %v4496
  %7864 = vmatprep.subr.bf16.mxu0 0
  %7865 = vmatpush1.bf16.msra.mxu0 0
  %7866 = vmatprep.subr.bf16.mxu0 0
  %7867 = vmatpush1.bf16.msra.mxu0 0
  %7868 = vmatprep.subr.bf16.mxu0 0
  %7869 = vmatpush1.bf16.msra.mxu0 0
  %7870 = vmatprep.subr.bf16.mxu0 0
  %7871 = vmatpush1.bf16.msra.mxu0 0
  %7872 = vmatprep.subr.bf16.mxu0 0
  %7873 = vmatpush1.bf16.msra.mxu0 0
  %7874 = vmatprep.subr.bf16.mxu0 0
  %7875 = vmatpush1.bf16.msra.mxu0 0
  %7876 = vmatprep.subr.bf16.mxu0 0
  %7877 = vmatpush1.bf16.msra.mxu0 0
  %7878 = vmatprep.subr.bf16.mxu0 0
  %7879 = vmatpush1.bf16.msra.mxu0 0
  %7880 = vmatprep.mubr.bf16.mxu0 0
  %7881 = vmatmul.mubr.bf16.gmra.mrb[0].mxu0 %v7806
  %v7882 = vpop.f32.mrb[0].mxu0
  %v7883 = vadd.f32 0.0, %v7882
  %v7884 = vpop.f32.mrb[0].mxu0
  %v7885 = vpop.f32.mrb[0].mxu0
  %v7886 = vpop.f32.mrb[0].mxu0
  %7887 = vdwg.mxu0
  %v7888 = vadd.f32 %v7760, %v7842
  %v7889 = vadd.f32 %v7762, %v7844
  %v7890 = vmul.f32 %v7888, 0.5
  %v7891 = vmul.f32 %v7889, 0.5
  %v7892 = vtanh.pop %v7890
  %v7893 = vtanh.pop %v7891
  %v7894 = vadd.f32 %v7892, 1.0
  %v7895 = vadd.f32 %v7893, 1.0
  %v7896 = vmul.f32 %v7894, 0.5
  %v7897 = vmul.f32 %v7895, 0.5
  %v7898 = vadd.f32 %v7883, %v3625
  %v7899 = vmul.f32 %v7896, %v7898
  %v7900 = vadd.f32 %v7801, %v7899
  %v7901 = vtanh.pop %v7900
  %v7902 = vsub.f32 1.0, %v7897
  %v7903 = vmul.f32 %v7902, %v7901
  %v7904 = vmul.f32 %v7897, %v7542
  %v7905 = vadd.f32 %v7903, %v7904
  %v7906 = vpack.c.bf16 %v7724, %v7724
  %7907 = vmatprep.subr.bf16.mxu0 %v3483
  %7908 = vmatpush1.bf16.msra.mxu0 %v3482
  %7909 = vmatprep.subr.bf16.mxu0 %v3486
  %7910 = vmatpush1.bf16.msra.mxu0 %v3485
  %7911 = vmatprep.subr.bf16.mxu0 %v3489
  %7912 = vmatpush1.bf16.msra.mxu0 %v3488
  %7913 = vmatprep.subr.bf16.mxu0 %v3492
  %7914 = vmatpush1.bf16.msra.mxu0 %v3491
  %7915 = vmatprep.subr.bf16.mxu0 %v3495
  %7916 = vmatpush1.bf16.msra.mxu0 %v3494
  %7917 = vmatprep.subr.bf16.mxu0 %v3498
  %7918 = vmatpush1.bf16.msra.mxu0 %v3497
  %7919 = vmatprep.subr.bf16.mxu0 %v3501
  %7920 = vmatpush1.bf16.msra.mxu0 %v3500
  %7921 = vmatprep.subr.bf16.mxu0 %v3504
  %7922 = vmatpush1.bf16.msra.mxu0 %v3503
  %7923 = vmatprep.subr.bf16.mxu0 0
  %7924 = vmatpush1.bf16.msra.mxu0 0
  %7925 = vmatprep.subr.bf16.mxu0 0
  %7926 = vmatpush1.bf16.msra.mxu0 0
  %7927 = vmatprep.subr.bf16.mxu0 0
  %7928 = vmatpush1.bf16.msra.mxu0 0
  %7929 = vmatprep.subr.bf16.mxu0 0
  %7930 = vmatpush1.bf16.msra.mxu0 0
  %7931 = vmatprep.subr.bf16.mxu0 0
  %7932 = vmatpush1.bf16.msra.mxu0 0
  %7933 = vmatprep.subr.bf16.mxu0 0
  %7934 = vmatpush1.bf16.msra.mxu0 0
  %7935 = vmatprep.subr.bf16.mxu0 0
  %7936 = vmatpush1.bf16.msra.mxu0 0
  %7937 = vmatprep.subr.bf16.mxu0 0
  %7938 = vmatpush1.bf16.msra.mxu0 0
  %7939 = vmatprep.mubr.bf16.mxu0 0
  %7940 = vmatmul.mubr.bf16.gmra.mrb[0].mxu0 %v7906
  %v7941 = vpop.f32.mrb[0].mxu0
  %v7942 = vadd.f32 %v3390, %v7941
  %v7943 = vpop.f32.mrb[0].mxu0
  %v7944 = vadd.f32 %v3394, %v7943
  %v7945 = vpop.f32.mrb[0].mxu0
  %v7946 = vpop.f32.mrb[0].mxu0
  %7947 = vdwg.mxu0
  %7948 = vmatprep.subr.bf16.mxu0 0
  %7949 = vmatpush1.bf16.msra.mxu0 %v3484
  %7950 = vmatprep.subr.bf16.mxu0 0
  %7951 = vmatpush1.bf16.msra.mxu0 %v3487
  %7952 = vmatprep.subr.bf16.mxu0 0
  %7953 = vmatpush1.bf16.msra.mxu0 %v3490
  %7954 = vmatprep.subr.bf16.mxu0 0
  %7955 = vmatpush1.bf16.msra.mxu0 %v3493
  %7956 = vmatprep.subr.bf16.mxu0 0
  %7957 = vmatpush1.bf16.msra.mxu0 %v3496
  %7958 = vmatprep.subr.bf16.mxu0 0
  %7959 = vmatpush1.bf16.msra.mxu0 %v3499
  %7960 = vmatprep.subr.bf16.mxu0 0
  %7961 = vmatpush1.bf16.msra.mxu0 %v3502
  %7962 = vmatprep.subr.bf16.mxu0 0
  %7963 = vmatpush1.bf16.msra.mxu0 %v3505
  %7964 = vmatprep.subr.bf16.mxu0 0
  %7965 = vmatpush1.bf16.msra.mxu0 0
  %7966 = vmatprep.subr.bf16.mxu0 0
  %7967 = vmatpush1.bf16.msra.mxu0 0
  %7968 = vmatprep.subr.bf16.mxu0 0
  %7969 = vmatpush1.bf16.msra.mxu0 0
  %7970 = vmatprep.subr.bf16.mxu0 0
  %7971 = vmatpush1.bf16.msra.mxu0 0
  %7972 = vmatprep.subr.bf16.mxu0 0
  %7973 = vmatpush1.bf16.msra.mxu0 0
  %7974 = vmatprep.subr.bf16.mxu0 0
  %7975 = vmatpush1.bf16.msra.mxu0 0
  %7976 = vmatprep.subr.bf16.mxu0 0
  %7977 = vmatpush1.bf16.msra.mxu0 0
  %7978 = vmatprep.subr.bf16.mxu0 0
  %7979 = vmatpush1.bf16.msra.mxu0 0
  %7980 = vmatprep.mubr.bf16.mxu0 0
  %7981 = vmatmul.mubr.bf16.gmra.mrb[0].mxu0 %v7906
  %v7982 = vpop.f32.mrb[0].mxu0
  %v7983 = vadd.f32 %v3398, %v7982
  %v7984 = vpop.f32.mrb[0].mxu0
  %v7985 = vpop.f32.mrb[0].mxu0
  %v7986 = vpop.f32.mrb[0].mxu0
  %7987 = vdwg.mxu0
  %v7988 = vpack.c.bf16 %v7905, %v7905
  %7989 = vmatprep.subr.bf16.mxu0 %v4474
  %7990 = vmatpush1.bf16.msra.mxu0 %v4473
  %7991 = vmatprep.subr.bf16.mxu0 %v4477
  %7992 = vmatpush1.bf16.msra.mxu0 %v4476
  %7993 = vmatprep.subr.bf16.mxu0 %v4480
  %7994 = vmatpush1.bf16.msra.mxu0 %v4479
  %7995 = vmatprep.subr.bf16.mxu0 %v4483
  %7996 = vmatpush1.bf16.msra.mxu0 %v4482
  %7997 = vmatprep.subr.bf16.mxu0 %v4486
  %7998 = vmatpush1.bf16.msra.mxu0 %v4485
  %7999 = vmatprep.subr.bf16.mxu0 %v4489
  %8000 = vmatpush1.bf16.msra.mxu0 %v4488
  %8001 = vmatprep.subr.bf16.mxu0 %v4492
  %8002 = vmatpush1.bf16.msra.mxu0 %v4491
  %8003 = vmatprep.subr.bf16.mxu0 %v4495
  %8004 = vmatpush1.bf16.msra.mxu0 %v4494
  %8005 = vmatprep.subr.bf16.mxu0 0
  %8006 = vmatpush1.bf16.msra.mxu0 0
  %8007 = vmatprep.subr.bf16.mxu0 0
  %8008 = vmatpush1.bf16.msra.mxu0 0
  %8009 = vmatprep.subr.bf16.mxu0 0
  %8010 = vmatpush1.bf16.msra.mxu0 0
  %8011 = vmatprep.subr.bf16.mxu0 0
  %8012 = vmatpush1.bf16.msra.mxu0 0
  %8013 = vmatprep.subr.bf16.mxu0 0
  %8014 = vmatpush1.bf16.msra.mxu0 0
  %8015 = vmatprep.subr.bf16.mxu0 0
  %8016 = vmatpush1.bf16.msra.mxu0 0
  %8017 = vmatprep.subr.bf16.mxu0 0
  %8018 = vmatpush1.bf16.msra.mxu0 0
  %8019 = vmatprep.subr.bf16.mxu0 0
  %8020 = vmatpush1.bf16.msra.mxu0 0
  %8021 = vmatprep.mubr.bf16.mxu0 0
  %8022 = vmatmul.mubr.bf16.gmra.mrb[0].mxu0 %v7988
  %v8023 = vpop.f32.mrb[0].mxu0
  %v8024 = vadd.f32 0.0, %v8023
  %v8025 = vpop.f32.mrb[0].mxu0
  %v8026 = vadd.f32 0.0, %v8025
  %v8027 = vpop.f32.mrb[0].mxu0
  %v8028 = vpop.f32.mrb[0].mxu0
  %8029 = vdwg.mxu0
  %8030 = vmatprep.subr.bf16.mxu0 0
  %8031 = vmatpush1.bf16.msra.mxu0 %v4475
  %8032 = vmatprep.subr.bf16.mxu0 0
  %8033 = vmatpush1.bf16.msra.mxu0 %v4478
  %8034 = vmatprep.subr.bf16.mxu0 0
  %8035 = vmatpush1.bf16.msra.mxu0 %v4481
  %8036 = vmatprep.subr.bf16.mxu0 0
  %8037 = vmatpush1.bf16.msra.mxu0 %v4484
  %8038 = vmatprep.subr.bf16.mxu0 0
  %8039 = vmatpush1.bf16.msra.mxu0 %v4487
  %8040 = vmatprep.subr.bf16.mxu0 0
  %8041 = vmatpush1.bf16.msra.mxu0 %v4490
  %8042 = vmatprep.subr.bf16.mxu0 0
  %8043 = vmatpush1.bf16.msra.mxu0 %v4493
  %8044 = vmatprep.subr.bf16.mxu0 0
  %8045 = vmatpush1.bf16.msra.mxu0 %v4496
  %8046 = vmatprep.subr.bf16.mxu0 0
  %8047 = vmatpush1.bf16.msra.mxu0 0
  %8048 = vmatprep.subr.bf16.mxu0 0
  %8049 = vmatpush1.bf16.msra.mxu0 0
  %8050 = vmatprep.subr.bf16.mxu0 0
  %8051 = vmatpush1.bf16.msra.mxu0 0
  %8052 = vmatprep.subr.bf16.mxu0 0
  %8053 = vmatpush1.bf16.msra.mxu0 0
  %8054 = vmatprep.subr.bf16.mxu0 0
  %8055 = vmatpush1.bf16.msra.mxu0 0
  %8056 = vmatprep.subr.bf16.mxu0 0
  %8057 = vmatpush1.bf16.msra.mxu0 0
  %8058 = vmatprep.subr.bf16.mxu0 0
  %8059 = vmatpush1.bf16.msra.mxu0 0
  %8060 = vmatprep.subr.bf16.mxu0 0
  %8061 = vmatpush1.bf16.msra.mxu0 0
  %8062 = vmatprep.mubr.bf16.mxu0 0
  %8063 = vmatmul.mubr.bf16.gmra.mrb[0].mxu0 %v7988
  %v8064 = vpop.f32.mrb[0].mxu0
  %v8065 = vadd.f32 0.0, %v8064
  %v8066 = vpop.f32.mrb[0].mxu0
  %v8067 = vpop.f32.mrb[0].mxu0
  %v8068 = vpop.f32.mrb[0].mxu0
  %8069 = vdwg.mxu0
  %v8070 = vadd.f32 %v7942, %v8024
  %v8071 = vadd.f32 %v7944, %v8026
  %v8072 = vmul.f32 %v8070, 0.5
  %v8073 = vmul.f32 %v8071, 0.5
  %v8074 = vtanh.pop %v8072
  %v8075 = vtanh.pop %v8073
  %v8076 = vadd.f32 %v8074, 1.0
  %v8077 = vadd.f32 %v8075, 1.0
  %v8078 = vmul.f32 %v8076, 0.5
  %v8079 = vmul.f32 %v8077, 0.5
  %v8080 = vadd.f32 %v8065, %v3625
  %v8081 = vmul.f32 %v8078, %v8080
  %v8082 = vadd.f32 %v7983, %v8081
  %v8083 = vtanh.pop %v8082
  %v8084 = vsub.f32 1.0, %v8079
  %v8085 = vmul.f32 %v8084, %v8083
  %v8086 = vmul.f32 %v8079, %v7905
  %v8087 = vadd.f32 %v8085, %v8086
  %v8088 = vld [vmem:[%s6] sm:$0xff]
  %v8089 = vld [vmem:[%s6 + $0x8] sm:$0xff]
  %v8090 = vld [vmem:[%s6 + $0x10] sm:$0xff]
  %v8091 = vld [vmem:[%s6 + $0x18] sm:$0xff]
  %v8092 = vld [vmem:[%s6 + $0x20] sm:$0xff]
  %v8093 = vld [vmem:[%s6 + $0x28] sm:$0xff]
  %v8094 = vld [vmem:[%s6 + $0x30] sm:$0xff]
  %v8095 = vld [vmem:[%s6 + $0x38] sm:$0xff]
  %v8096 = vld [vmem:[%s6 + $0x40] sm:$0xff]
  %v8097 = vld [vmem:[%s6 + $0x48] sm:$0xff]
  %v8098 = vld [vmem:[%s6 + $0x50] sm:$0xff]
  %v8099 = vld [vmem:[%s6 + $0x58] sm:$0xff]
  %v8100 = vld [vmem:[%s6 + $0x60] sm:$0xff]
  %v8101 = vld [vmem:[%s6 + $0x68] sm:$0xff]
  %v8102 = vld [vmem:[%s6 + $0x70] sm:$0xff]
  %v8103 = vld [vmem:[%s6 + $0x78] sm:$0xff]
  %v8104 = vld [vmem:[%s7] sm:$0x1]
  %v8106 = vlaneseq
  %v8107 = vshrl.u32 %v8106, 7
  %v8108 = vsub.s32 0, %v8107
  %v8109 = vrot.slane %v8104, %v8108
  %8111 = vmatprep.subr.mxu0 0.0
  %8112 = vmatpush1.msra.mxu0 %v8088
  %8113 = vmatprep.subr.mxu0 0.0
  %8114 = vmatpush1.msra.mxu0 %v8089
  %8115 = vmatprep.subr.mxu0 0.0
  %8116 = vmatpush1.msra.mxu0 %v8090
  %8117 = vmatprep.subr.mxu0 0.0
  %8118 = vmatpush1.msra.mxu0 %v8091
  %8119 = vmatprep.subr.mxu0 0.0
  %8120 = vmatpush1.msra.mxu0 %v8092
  %8121 = vmatprep.subr.mxu0 0.0
  %8122 = vmatpush1.msra.mxu0 %v8093
  %8123 = vmatprep.subr.mxu0 0.0
  %8124 = vmatpush1.msra.mxu0 %v8094
  %8125 = vmatprep.subr.mxu0 0.0
  %8126 = vmatpush1.msra.mxu0 %v8095
  %8127 = vmatprep.subr.mxu0 0.0
  %8128 = vmatpush1.msra.mxu0 %v8096
  %8129 = vmatprep.subr.mxu0 0.0
  %8130 = vmatpush1.msra.mxu0 %v8097
  %8131 = vmatprep.subr.mxu0 0.0
  %8132 = vmatpush1.msra.mxu0 %v8098
  %8133 = vmatprep.subr.mxu0 0.0
  %8134 = vmatpush1.msra.mxu0 %v8099
  %8135 = vmatprep.subr.mxu0 0.0
  %8136 = vmatpush1.msra.mxu0 %v8100
  %8137 = vmatprep.subr.mxu0 0.0
  %8138 = vmatpush1.msra.mxu0 %v8101
  %8139 = vmatprep.subr.mxu0 0.0
  %8140 = vmatpush1.msra.mxu0 %v8102
  %8141 = vmatprep.subr.mxu0 0.0
  %8142 = vmatpush1.msra.mxu0 %v8103
  %8143 = vmatprep.subr.mxu0 0.0
  %8144 = vmatpush1.msra.mxu0 0.0
  %8145 = vmatprep.subr.mxu0 0.0
  %8146 = vmatpush1.msra.mxu0 0.0
  %8147 = vmatprep.subr.mxu0 0.0
  %8148 = vmatpush1.msra.mxu0 0.0
  %8149 = vmatprep.subr.mxu0 0.0
  %8150 = vmatpush1.msra.mxu0 0.0
  %8151 = vmatprep.subr.mxu0 0.0
  %8152 = vmatpush1.msra.mxu0 0.0
  %8153 = vmatprep.subr.mxu0 0.0
  %8154 = vmatpush1.msra.mxu0 0.0
  %8155 = vmatprep.subr.mxu0 0.0
  %8156 = vmatpush1.msra.mxu0 0.0
  %8157 = vmatprep.subr.mxu0 0.0
  %8158 = vmatpush1.msra.mxu0 0.0
  %8159 = vmatprep.subr.mxu0 0.0
  %8160 = vmatpush1.msra.mxu0 0.0
  %8161 = vmatprep.subr.mxu0 0.0
  %8162 = vmatpush1.msra.mxu0 0.0
  %8163 = vmatprep.subr.mxu0 0.0
  %8164 = vmatpush1.msra.mxu0 0.0
  %8165 = vmatprep.subr.mxu0 0.0
  %8166 = vmatpush1.msra.mxu0 0.0
  %8167 = vmatprep.subr.mxu0 0.0
  %8168 = vmatpush1.msra.mxu0 0.0
  %8169 = vmatprep.subr.mxu0 0.0
  %8170 = vmatpush1.msra.mxu0 0.0
  %8171 = vmatprep.subr.mxu0 0.0
  %8172 = vmatpush1.msra.mxu0 0.0
  %8173 = vmatprep.subr.mxu0 0.0
  %8174 = vmatpush1.msra.mxu0 0.0
  %8175 = vmatprep.mubr.f32.mxu0 0.0
  %8176 = vmatmul.mubr.f32.gmra.mrb[0].mxu0 %v8087
  %v8177 = vpop.f32.mrb[0].mxu0
  %v8178 = vadd.f32 %v8109, %v8177
  %v8179 = vpop.f32.mrb[0].mxu0
  %8180 = vdwg.mxu0
  %8181 = vst [vmem:[%s8] sm:$0xff] %v8178
  // Predicated region
  $region34: #{ner_forward.1} parent=0 // pred_check
    _
  $region35: #{ner_forward.1} parent=0 // pred_check_branch
    %8183 = sbr.rel (0) target = $region37
  $region36: #{ner_forward.1} parent=0 // pred_region
    _
  $region37: #{ner_forward.1} parent=0 // pred_fallthru
    _
  // Predicated region
  $region38: #{ner_forward.1} parent=0 // pred_check
    _
  $region39: #{ner_forward.1} parent=0 // pred_check_branch
    %8185 = sbr.rel (0) target = $region41
  $region40: #{ner_forward.1} parent=0 // pred_region
    _
  $region41: #{ner_forward.1} parent=0 // pred_fallthru
    _

</llo_original>
